<compile_context>
chip_gen: v7x
topology: tpu7x:2x2x1
jax: 0.10.0
libtpu: 0.0.40
codegen_flags: <defaults>
</compile_context>

<pallas_src>
import functools

import jax
import jax.numpy as jnp
from jax.experimental import pallas as pl
from jax.experimental.pallas import tpu as pltpu


def _round_up(x, m):
    return (x + m - 1) // m * m


def _disp_head_kernel(x_ref, w1_ref, b1_ref, w2_ref, b2_ref, o_ref,
                      xp_ref, col_ref, hpb_ref, *, H, W, Wp, C1, C2, TH):
    # x_ref : (1, H, W, C1)        full input image (NHWC), f32
    # w1_ref: (9*C1, C2)           conv1 weights, taps stacked on contraction, bf16
    # b1_ref: (1, C2)              conv1 bias, f32
    # w2_ref: (9, 1, 1, C2)        conv2 weights (Cout=1), per-tap channel vectors, f32
    # b2_ref: (1, 1)               conv2 bias, f32
    # o_ref : (1, TH, W)           output row block (single channel)
    # xp_ref : (H+4, Wp, C1)       zero-padded input (2-row / 1-col halo), bf16 scratch
    # col_ref: ((TH+2)*W, 9*C1)    per-block conv1 im2col buffer, bf16 scratch
    # hpb_ref: (TH+2, Wp, C2)      per-block zero-padded hidden (post-ReLU), f32 scratch
    r = pl.program_id(1)
    R = pl.num_programs(1)

    # ---- once per image: zero-pad the full input into VMEM.  Two zero rows on
    #      top/bottom (and one zero column left/right) so every row block can
    #      slice TH+4 input rows with purely static shapes. ----
    @pl.when(r == 0)
    def _():
        xp_ref[...] = jnp.zeros_like(xp_ref)
        xp_ref[2:2 + H, 1:1 + W, :] = x_ref[0].astype(xp_ref.dtype)

    # ---- conv1 for this row block: TH+2 hidden rows (incl. 1-row halo each
    #      side, recomputed per block).  Hidden row a = r*TH + s - 1 reads
    #      padded-input rows (r*TH + s) .. (r*TH + s + 2) of xp_ref. ----
    for ky in range(3):
        for kx in range(3):
            t = ky * 3 + kx
            patch = xp_ref[pl.ds(r * TH + ky, TH + 2), kx:kx + W, :]   # (TH+2, W, C1)
            col_ref[:, t * C1:(t + 1) * C1] = patch.reshape((TH + 2) * W, C1)

    # one full-depth bf16 MXU matmul, f32 accumulate: ((TH+2)*W, 9*C1) @ (9*C1, C2)
    h = jnp.dot(col_ref[...], w1_ref[...], preferred_element_type=jnp.float32)
    h = jnp.maximum(h + b1_ref[...], 0.0)                     # bias + ReLU

    # ---- padded hidden block for conv2 (zeros in the 1-col halo and, at the
    #      image top/bottom, in the structural-padding halo rows). ----
    hpb_ref[...] = jnp.zeros_like(hpb_ref)
    hpb_ref[:, 1:1 + W, :] = h.reshape(TH + 2, W, C2)

    @pl.when(r == 0)                  # top halo row is conv padding, not data
    def _():
        hpb_ref[0:1] = jnp.zeros((1, Wp, C2), hpb_ref.dtype)

    @pl.when(r == R - 1)              # bottom halo row is conv padding, not data
    def _():
        hpb_ref[TH + 1:TH + 2] = jnp.zeros((1, Wp, C2), hpb_ref.dtype)

    # ---- conv2 (Cout = 1): broadcast-MAC + channel (lane) reduce on VPU/XLU ----
    acc = jnp.zeros((TH, W), jnp.float32)
    for ky in range(3):
        for kx in range(3):
            t = ky * 3 + kx
            patch = hpb_ref[ky:ky + TH, kx:kx + W, :]          # (TH, W, C2) f32
            acc = acc + jnp.sum(patch * w2_ref[t], axis=-1)    # (TH, W)
    o_ref[0] = acc + b2_ref[...]                               # bias (broadcast)


def disp_head(params, x, *, row_block=8):
    """x: (N, C1, H, W) NCHW f32  ->  (N, 1, H, W) f32 = conv2(relu(conv1(x)))."""
    w1, b1, w2, b2 = params['w1'], params['b1'], params['w2'], params['b2']
    N, C1, H, W = x.shape
    C2 = w1.shape[-1]
    assert w1.shape == (3, 3, C1, C2) and w2.shape == (3, 3, C2, 1)
    assert W % 8 == 0, "kernel assumes W is a multiple of 8 (sublane tiling)"
    # TODO(synk): for very wide images also tile the W axis so the per-block
    # im2col buffer ((TH+2)*W, 9*C1) stays comfortably inside VMEM.
    TH = row_block if H % row_block == 0 else H
    R = H // TH
    Wp = _round_up(W + 2, 8)

    x_nhwc = jnp.transpose(x, (0, 2, 3, 1))                        # NCHW -> NHWC
    w1_k = w1.reshape(9 * C1, C2).astype(jnp.bfloat16)             # taps on contraction
    b1_k = b1.reshape(1, C2)
    w2_k = jnp.transpose(w2, (0, 1, 3, 2)).reshape(9, 1, 1, C2)    # per-tap channel vecs
    b2_k = b2.reshape(1, 1)

    kern = functools.partial(_disp_head_kernel, H=H, W=W, Wp=Wp,
                             C1=C1, C2=C2, TH=TH)
    out = pl.pallas_call(
        kern,
        out_shape=jax.ShapeDtypeStruct((N, H, W), jnp.float32),
        grid=(N, R),
        in_specs=[
            # Whole image per n; index constant across r -> stays VMEM-resident.
            pl.BlockSpec((1, H, W, C1), lambda n, r: (n, 0, 0, 0)),
            pl.BlockSpec((9 * C1, C2), lambda n, r: (0, 0)),
            pl.BlockSpec((1, C2), lambda n, r: (0, 0)),
            pl.BlockSpec((9, 1, 1, C2), lambda n, r: (0, 0, 0, 0)),
            pl.BlockSpec((1, 1), lambda n, r: (0, 0)),
        ],
        out_specs=pl.BlockSpec((1, TH, W), lambda n, r: (n, r, 0)),
        scratch_shapes=[
            pltpu.VMEM((H + 4, Wp, C1), jnp.bfloat16),         # padded input (per image)
            pltpu.VMEM(((TH + 2) * W, 9 * C1), jnp.bfloat16),  # per-block im2col
            pltpu.VMEM((TH + 2, Wp, C2), jnp.float32),         # per-block padded hidden
        ],
        compiler_params=pltpu.CompilerParams(
            # r must be "arbitrary": it reuses the per-image xp scratch filled
            # at r == 0 (and the resident whole-image input block).
            dimension_semantics=("parallel", "arbitrary")),
    )(x_nhwc, w1_k, b1_k, w2_k, b2_k)
    return out.reshape(N, 1, H, W)                                  # channel dim = 1


# ----------------------- parameter init / reference ------------------------

def _init_conv(key, K, Cin, Cout):
    # Deterministic init mimicking PyTorch Conv2d defaults (uniform +-1/sqrt(fan_in)).
    wkey, bkey = jax.random.split(key)
    fan_in = Cin * K * K
    bound = 1.0 / (fan_in ** 0.5)
    w = jax.random.uniform(wkey, (K, K, Cin, Cout), jnp.float32, -bound, bound)
    b = jax.random.uniform(bkey, (Cout,), jnp.float32, -bound, bound)
    return w, b


def reference_forward(params, x):
    x_nhwc = jnp.transpose(x, (0, 2, 3, 1))

    def conv(y, w, b):
        y = jax.lax.conv_general_dilated(
            y, w, window_strides=(1, 1), padding=((1, 1), (1, 1)),
            dimension_numbers=('NHWC', 'HWIO', 'NHWC'),
            precision=jax.lax.Precision.HIGHEST)
        return y + b.reshape(1, 1, 1, -1)

    h = jnp.maximum(conv(x_nhwc, params['w1'], params['b1']), 0.0)
    y = conv(h, params['w2'], params['b2'])
    return jnp.transpose(y, (0, 3, 1, 2))


if __name__ == "__main__":
    key = jax.random.PRNGKey(0)
    k1, k2, k3 = jax.random.split(key, 3)

    input_dim, hidden_dim, output_dim = 128, 256, 1     # DispHead defaults
    N, H, W = 2, 16, 16                                 # -> grid (2 images x 2 row blocks)

    w1, b1 = _init_conv(k1, 3, input_dim, hidden_dim)
    w2, b2 = _init_conv(k2, 3, hidden_dim, output_dim)
    params = {'w1': w1, 'b1': b1, 'w2': w2, 'b2': b2}

    x = jax.random.normal(k3, (N, input_dim, H, W), jnp.float32)

    out = disp_head(params, x)
    out = jax.block_until_ready(out)
    assert out.shape == (N, output_dim, H, W), out.shape

    ref = reference_forward(params, x)
    max_err = float(jnp.max(jnp.abs(out - ref)))
    # conv1 uses bf16 MXU operands with f32 accumulation -> modest tolerance.
    assert jnp.allclose(out, ref, atol=2e-2, rtol=2e-2), max_err

    print("KERNEL_OK")
</pallas_src>

<mosaic_0001>
module attributes {stable_mosaic.version = 11 : i64} {
  func.func @_disp_head_kernel(%arg0: i32, %arg1: i32, %arg2: memref<1x16x16x128xf32, #tpu.memory_space<vmem>>, %arg3: memref<1152x256xbf16, #tpu.memory_space<vmem>>, %arg4: memref<1x256xf32, #tpu.memory_space<vmem>>, %arg5: memref<9x1x1x256xf32, #tpu.memory_space<vmem>>, %arg6: memref<1x1xf32, #tpu.memory_space<vmem>>, %arg7: memref<1x8x16xf32, #tpu.memory_space<vmem>>, %arg8: memref<20x24x128xbf16, #tpu.memory_space<vmem>>, %arg9: memref<160x1152xbf16, #tpu.memory_space<vmem>>, %arg10: memref<10x24x256xf32, #tpu.memory_space<vmem>>) attributes {dimension_semantics = [#tpu.dimension_semantics<parallel>, #tpu.dimension_semantics<arbitrary>], iteration_bounds = array<i64: 2, 2>, scalar_prefetch = 0 : i64, scratch_operands = 3 : i64, tpu.core_type = #tpu.core_type<tc>, window_params = [{transform_indices = @transform_0, window_bounds = array<i64: 1, 16, 16, 128>}, {pipeline_mode = #tpu.pipeline_mode<synchronous>, transform_indices = @transform_1, window_bounds = array<i64: 1152, 256>}, {pipeline_mode = #tpu.pipeline_mode<synchronous>, transform_indices = @transform_2, window_bounds = array<i64: 1, 256>}, {pipeline_mode = #tpu.pipeline_mode<synchronous>, transform_indices = @transform_3, window_bounds = array<i64: 9, 1, 1, 256>}, {pipeline_mode = #tpu.pipeline_mode<synchronous>, transform_indices = @transform_4, window_bounds = array<i64: 1, 1>}, {transform_indices = @transform_5, window_bounds = array<i64: 1, 8, 16>}]} {
    %c0_i32 = arith.constant 0 : i32
    %0 = arith.cmpi eq, %arg1, %c0_i32 : i32
    %1 = arith.extui %0 : i1 to i32
    %c0_i32_0 = arith.constant 0 : i32
    %2 = arith.cmpi ne, %1, %c0_i32_0 : i32
    scf.if %2 {
      %cst_131 = arith.constant 0.000000e+00 : bf16
      %145 = vector.broadcast %cst_131 : bf16 to vector<20x24x128xbf16>
      %c0_132 = arith.constant 0 : index
      %c0_133 = arith.constant 0 : index
      %c0_134 = arith.constant 0 : index
      %146 = vector.load %arg8[%c0_132, %c0_133, %c0_134] : memref<20x24x128xbf16, #tpu.memory_space<vmem>>, vector<20x24x128xbf16>
      tpu.vector_store %arg8[%c0_132, %c0_133, %c0_134], %145 {strides = array<i32>} : memref<20x24x128xbf16, #tpu.memory_space<vmem>>, vector<20x24x128xbf16>,
      %c0_135 = arith.constant 0 : index
      %c0_136 = arith.constant 0 : index
      %c0_137 = arith.constant 0 : index
      %c0_138 = arith.constant 0 : index
      %147 = vector.load %arg2[%c0_135, %c0_136, %c0_137, %c0_138] : memref<1x16x16x128xf32, #tpu.memory_space<vmem>>, vector<1x16x16x128xf32>
      %148 = vector.shape_cast %147 : vector<1x16x16x128xf32> to vector<16x16x128xf32>
      %149 = arith.truncf %148 : vector<16x16x128xf32> to vector<16x16x128xbf16>
      %c2_139 = arith.constant 2 : index
      %c1_140 = arith.constant 1 : index
      %c0_141 = arith.constant 0 : index
      %150 = vector.load %arg8[%c2_139, %c1_140, %c0_141] : memref<20x24x128xbf16, #tpu.memory_space<vmem>>, vector<16x16x128xbf16>
      tpu.vector_store %arg8[%c2_139, %c1_140, %c0_141], %149 {strides = array<i32>} : memref<20x24x128xbf16, #tpu.memory_space<vmem>>, vector<16x16x128xbf16>,
    } else {
    }
    %c8_i32 = arith.constant 8 : i32
    %3 = arith.muli %arg1, %c8_i32 : i32
    %c0_i32_1 = arith.constant 0 : i32
    %4 = arith.addi %3, %c0_i32_1 : i32
    %5 = arith.index_cast %4 : i32 to index
    %c0 = arith.constant 0 : index
    %c0_2 = arith.constant 0 : index
    %6 = vector.load %arg8[%5, %c0, %c0_2] : memref<20x24x128xbf16, #tpu.memory_space<vmem>>, vector<10x16x128xbf16>
    %7 = vector.shape_cast %6 : vector<10x16x128xbf16> to vector<160x128xbf16>
    %c0_3 = arith.constant 0 : index
    %c0_4 = arith.constant 0 : index
    %8 = vector.load %arg9[%c0_3, %c0_4] : memref<160x1152xbf16, #tpu.memory_space<vmem>>, vector<160x128xbf16>
    tpu.vector_store %arg9[%c0_3, %c0_4], %7 {strides = array<i32>} : memref<160x1152xbf16, #tpu.memory_space<vmem>>, vector<160x128xbf16>,
    %c8_i32_5 = arith.constant 8 : i32
    %9 = arith.muli %arg1, %c8_i32_5 : i32
    %c0_i32_6 = arith.constant 0 : i32
    %10 = arith.addi %9, %c0_i32_6 : i32
    %11 = arith.index_cast %10 : i32 to index
    %c1 = arith.constant 1 : index
    %c0_7 = arith.constant 0 : index
    %12 = vector.load %arg8[%11, %c1, %c0_7] : memref<20x24x128xbf16, #tpu.memory_space<vmem>>, vector<10x16x128xbf16>
    %13 = vector.shape_cast %12 : vector<10x16x128xbf16> to vector<160x128xbf16>
    %c0_8 = arith.constant 0 : index
    %c128 = arith.constant 128 : index
    %14 = vector.load %arg9[%c0_8, %c128] : memref<160x1152xbf16, #tpu.memory_space<vmem>>, vector<160x128xbf16>
    tpu.vector_store %arg9[%c0_8, %c128], %13 {strides = array<i32>} : memref<160x1152xbf16, #tpu.memory_space<vmem>>, vector<160x128xbf16>,
    %c8_i32_9 = arith.constant 8 : i32
    %15 = arith.muli %arg1, %c8_i32_9 : i32
    %c0_i32_10 = arith.constant 0 : i32
    %16 = arith.addi %15, %c0_i32_10 : i32
    %17 = arith.index_cast %16 : i32 to index
    %c2 = arith.constant 2 : index
    %c0_11 = arith.constant 0 : index
    %18 = vector.load %arg8[%17, %c2, %c0_11] : memref<20x24x128xbf16, #tpu.memory_space<vmem>>, vector<10x16x128xbf16>
    %19 = vector.shape_cast %18 : vector<10x16x128xbf16> to vector<160x128xbf16>
    %c0_12 = arith.constant 0 : index
    %c256 = arith.constant 256 : index
    %20 = vector.load %arg9[%c0_12, %c256] : memref<160x1152xbf16, #tpu.memory_space<vmem>>, vector<160x128xbf16>
    tpu.vector_store %arg9[%c0_12, %c256], %19 {strides = array<i32>} : memref<160x1152xbf16, #tpu.memory_space<vmem>>, vector<160x128xbf16>,
    %c8_i32_13 = arith.constant 8 : i32
    %21 = arith.muli %arg1, %c8_i32_13 : i32
    %c1_i32 = arith.constant 1 : i32
    %22 = arith.addi %21, %c1_i32 : i32
    %23 = arith.index_cast %22 : i32 to index
    %c0_14 = arith.constant 0 : index
    %c0_15 = arith.constant 0 : index
    %24 = vector.load %arg8[%23, %c0_14, %c0_15] : memref<20x24x128xbf16, #tpu.memory_space<vmem>>, vector<10x16x128xbf16>
    %25 = vector.shape_cast %24 : vector<10x16x128xbf16> to vector<160x128xbf16>
    %c0_16 = arith.constant 0 : index
    %c384 = arith.constant 384 : index
    %26 = vector.load %arg9[%c0_16, %c384] : memref<160x1152xbf16, #tpu.memory_space<vmem>>, vector<160x128xbf16>
    tpu.vector_store %arg9[%c0_16, %c384], %25 {strides = array<i32>} : memref<160x1152xbf16, #tpu.memory_space<vmem>>, vector<160x128xbf16>,
    %c8_i32_17 = arith.constant 8 : i32
    %27 = arith.muli %arg1, %c8_i32_17 : i32
    %c1_i32_18 = arith.constant 1 : i32
    %28 = arith.addi %27, %c1_i32_18 : i32
    %29 = arith.index_cast %28 : i32 to index
    %c1_19 = arith.constant 1 : index
    %c0_20 = arith.constant 0 : index
    %30 = vector.load %arg8[%29, %c1_19, %c0_20] : memref<20x24x128xbf16, #tpu.memory_space<vmem>>, vector<10x16x128xbf16>
    %31 = vector.shape_cast %30 : vector<10x16x128xbf16> to vector<160x128xbf16>
    %c0_21 = arith.constant 0 : index
    %c512 = arith.constant 512 : index
    %32 = vector.load %arg9[%c0_21, %c512] : memref<160x1152xbf16, #tpu.memory_space<vmem>>, vector<160x128xbf16>
    tpu.vector_store %arg9[%c0_21, %c512], %31 {strides = array<i32>} : memref<160x1152xbf16, #tpu.memory_space<vmem>>, vector<160x128xbf16>,
    %c8_i32_22 = arith.constant 8 : i32
    %33 = arith.muli %arg1, %c8_i32_22 : i32
    %c1_i32_23 = arith.constant 1 : i32
    %34 = arith.addi %33, %c1_i32_23 : i32
    %35 = arith.index_cast %34 : i32 to index
    %c2_24 = arith.constant 2 : index
    %c0_25 = arith.constant 0 : index
    %36 = vector.load %arg8[%35, %c2_24, %c0_25] : memref<20x24x128xbf16, #tpu.memory_space<vmem>>, vector<10x16x128xbf16>
    %37 = vector.shape_cast %36 : vector<10x16x128xbf16> to vector<160x128xbf16>
    %c0_26 = arith.constant 0 : index
    %c640 = arith.constant 640 : index
    %38 = vector.load %arg9[%c0_26, %c640] : memref<160x1152xbf16, #tpu.memory_space<vmem>>, vector<160x128xbf16>
    tpu.vector_store %arg9[%c0_26, %c640], %37 {strides = array<i32>} : memref<160x1152xbf16, #tpu.memory_space<vmem>>, vector<160x128xbf16>,
    %c8_i32_27 = arith.constant 8 : i32
    %39 = arith.muli %arg1, %c8_i32_27 : i32
    %c2_i32 = arith.constant 2 : i32
    %40 = arith.addi %39, %c2_i32 : i32
    %41 = arith.index_cast %40 : i32 to index
    %c0_28 = arith.constant 0 : index
    %c0_29 = arith.constant 0 : index
    %42 = vector.load %arg8[%41, %c0_28, %c0_29] : memref<20x24x128xbf16, #tpu.memory_space<vmem>>, vector<10x16x128xbf16>
    %43 = vector.shape_cast %42 : vector<10x16x128xbf16> to vector<160x128xbf16>
    %c0_30 = arith.constant 0 : index
    %c768 = arith.constant 768 : index
    %44 = vector.load %arg9[%c0_30, %c768] : memref<160x1152xbf16, #tpu.memory_space<vmem>>, vector<160x128xbf16>
    tpu.vector_store %arg9[%c0_30, %c768], %43 {strides = array<i32>} : memref<160x1152xbf16, #tpu.memory_space<vmem>>, vector<160x128xbf16>,
    %c8_i32_31 = arith.constant 8 : i32
    %45 = arith.muli %arg1, %c8_i32_31 : i32
    %c2_i32_32 = arith.constant 2 : i32
    %46 = arith.addi %45, %c2_i32_32 : i32
    %47 = arith.index_cast %46 : i32 to index
    %c1_33 = arith.constant 1 : index
    %c0_34 = arith.constant 0 : index
    %48 = vector.load %arg8[%47, %c1_33, %c0_34] : memref<20x24x128xbf16, #tpu.memory_space<vmem>>, vector<10x16x128xbf16>
    %49 = vector.shape_cast %48 : vector<10x16x128xbf16> to vector<160x128xbf16>
    %c0_35 = arith.constant 0 : index
    %c896 = arith.constant 896 : index
    %50 = vector.load %arg9[%c0_35, %c896] : memref<160x1152xbf16, #tpu.memory_space<vmem>>, vector<160x128xbf16>
    tpu.vector_store %arg9[%c0_35, %c896], %49 {strides = array<i32>} : memref<160x1152xbf16, #tpu.memory_space<vmem>>, vector<160x128xbf16>,
    %c8_i32_36 = arith.constant 8 : i32
    %51 = arith.muli %arg1, %c8_i32_36 : i32
    %c2_i32_37 = arith.constant 2 : i32
    %52 = arith.addi %51, %c2_i32_37 : i32
    %53 = arith.index_cast %52 : i32 to index
    %c2_38 = arith.constant 2 : index
    %c0_39 = arith.constant 0 : index
    %54 = vector.load %arg8[%53, %c2_38, %c0_39] : memref<20x24x128xbf16, #tpu.memory_space<vmem>>, vector<10x16x128xbf16>
    %55 = vector.shape_cast %54 : vector<10x16x128xbf16> to vector<160x128xbf16>
    %c0_40 = arith.constant 0 : index
    %c1024 = arith.constant 1024 : index
    %56 = vector.load %arg9[%c0_40, %c1024] : memref<160x1152xbf16, #tpu.memory_space<vmem>>, vector<160x128xbf16>
    tpu.vector_store %arg9[%c0_40, %c1024], %55 {strides = array<i32>} : memref<160x1152xbf16, #tpu.memory_space<vmem>>, vector<160x128xbf16>,
    %c0_41 = arith.constant 0 : index
    %c0_42 = arith.constant 0 : index
    %57 = vector.load %arg9[%c0_41, %c0_42] : memref<160x1152xbf16, #tpu.memory_space<vmem>>, vector<160x1152xbf16>
    %c0_43 = arith.constant 0 : index
    %c0_44 = arith.constant 0 : index
    %58 = vector.load %arg3[%c0_43, %c0_44] : memref<1152x256xbf16, #tpu.memory_space<vmem>>, vector<1152x256xbf16>
    %cst = arith.constant dense<0.000000e+00> : vector<160x256xf32>
    %59 = tpu.matmul %57, %58, %cst {dimension_numbers = #tpu.dot_dimension_numbers<[1], [0], [0], [1], [0, 0, 1, 1], [], []>} : vector<160x1152xbf16>, vector<1152x256xbf16>, vector<160x256xf32> -> vector<160x256xf32>
    %c0_45 = arith.constant 0 : index
    %c0_46 = arith.constant 0 : index
    %60 = vector.load %arg4[%c0_45, %c0_46] : memref<1x256xf32, #tpu.memory_space<vmem>>, vector<1x256xf32>
    %61 = vector.broadcast %60 : vector<1x256xf32> to vector<160x256xf32>
    %62 = arith.addf %59, %61 : vector<160x256xf32>
    %cst_47 = arith.constant 0.000000e+00 : f32
    %63 = vector.broadcast %cst_47 : f32 to vector<160x256xf32>
    %64 = arith.maximumf %62, %63 : vector<160x256xf32>
    %cst_48 = arith.constant 0.000000e+00 : f32
    %65 = vector.broadcast %cst_48 : f32 to vector<10x24x256xf32>
    %c0_49 = arith.constant 0 : index
    %c0_50 = arith.constant 0 : index
    %c0_51 = arith.constant 0 : index
    %66 = vector.load %arg10[%c0_49, %c0_50, %c0_51] : memref<10x24x256xf32, #tpu.memory_space<vmem>>, vector<10x24x256xf32>
    tpu.vector_store %arg10[%c0_49, %c0_50, %c0_51], %65 {strides = array<i32>} : memref<10x24x256xf32, #tpu.memory_space<vmem>>, vector<10x24x256xf32>,
    %67 = vector.shape_cast %64 : vector<160x256xf32> to vector<10x16x256xf32>
    %c0_52 = arith.constant 0 : index
    %c1_53 = arith.constant 1 : index
    %c0_54 = arith.constant 0 : index
    %68 = vector.load %arg10[%c0_52, %c1_53, %c0_54] : memref<10x24x256xf32, #tpu.memory_space<vmem>>, vector<10x16x256xf32>
    tpu.vector_store %arg10[%c0_52, %c1_53, %c0_54], %67 {strides = array<i32>} : memref<10x24x256xf32, #tpu.memory_space<vmem>>, vector<10x16x256xf32>,
    %c0_i32_55 = arith.constant 0 : i32
    %69 = arith.cmpi eq, %arg1, %c0_i32_55 : i32
    %70 = arith.extui %69 : i1 to i32
    %c0_i32_56 = arith.constant 0 : i32
    %71 = arith.cmpi ne, %70, %c0_i32_56 : i32
    scf.if %71 {
      %cst_131 = arith.constant 0.000000e+00 : f32
      %145 = vector.broadcast %cst_131 : f32 to vector<1x24x256xf32>
      %c0_132 = arith.constant 0 : index
      %c0_133 = arith.constant 0 : index
      %c0_134 = arith.constant 0 : index
      %146 = vector.load %arg10[%c0_132, %c0_133, %c0_134] : memref<10x24x256xf32, #tpu.memory_space<vmem>>, vector<1x24x256xf32>
      tpu.vector_store %arg10[%c0_132, %c0_133, %c0_134], %145 {strides = array<i32>} : memref<10x24x256xf32, #tpu.memory_space<vmem>>, vector<1x24x256xf32>,
    } else {
    }
    %c1_i32_57 = arith.constant 1 : i32
    %72 = arith.cmpi eq, %arg1, %c1_i32_57 : i32
    %73 = arith.extui %72 : i1 to i32
    %c0_i32_58 = arith.constant 0 : i32
    %74 = arith.cmpi ne, %73, %c0_i32_58 : i32
    scf.if %74 {
      %cst_131 = arith.constant 0.000000e+00 : f32
      %145 = vector.broadcast %cst_131 : f32 to vector<1x24x256xf32>
      %c9 = arith.constant 9 : index
      %c0_132 = arith.constant 0 : index
      %c0_133 = arith.constant 0 : index
      %146 = vector.load %arg10[%c9, %c0_132, %c0_133] : memref<10x24x256xf32, #tpu.memory_space<vmem>>, vector<1x24x256xf32>
      tpu.vector_store %arg10[%c9, %c0_132, %c0_133], %145 {strides = array<i32>} : memref<10x24x256xf32, #tpu.memory_space<vmem>>, vector<1x24x256xf32>,
    } else {
    }
    %cst_59 = arith.constant 0.000000e+00 : f32
    %75 = vector.broadcast %cst_59 : f32 to vector<8x16xf32>
    %c0_60 = arith.constant 0 : index
    %c0_61 = arith.constant 0 : index
    %c0_62 = arith.constant 0 : index
    %76 = vector.load %arg10[%c0_60, %c0_61, %c0_62] : memref<10x24x256xf32, #tpu.memory_space<vmem>>, vector<8x16x256xf32>
    %c0_63 = arith.constant 0 : index
    %c0_64 = arith.constant 0 : index
    %c0_65 = arith.constant 0 : index
    %c0_66 = arith.constant 0 : index
    %77 = vector.load %arg5[%c0_63, %c0_64, %c0_65, %c0_66] : memref<9x1x1x256xf32, #tpu.memory_space<vmem>>, vector<1x1x1x256xf32>
    %78 = vector.shape_cast %77 : vector<1x1x1x256xf32> to vector<1x1x256xf32>
    %79 = vector.broadcast %78 : vector<1x1x256xf32> to vector<8x16x256xf32>
    %80 = arith.mulf %76, %79 : vector<8x16x256xf32>
    %cst_67 = arith.constant dense<0.000000e+00> : vector<8x16xf32>
    %81 = vector.multi_reduction <add>, %80, %cst_67 [2] : vector<8x16x256xf32> to vector<8x16xf32>
    %82 = arith.addf %75, %81 : vector<8x16xf32>
    %c0_68 = arith.constant 0 : index
    %c1_69 = arith.constant 1 : index
    %c0_70 = arith.constant 0 : index
    %83 = vector.load %arg10[%c0_68, %c1_69, %c0_70] : memref<10x24x256xf32, #tpu.memory_space<vmem>>, vector<8x16x256xf32>
    %c1_71 = arith.constant 1 : index
    %c0_72 = arith.constant 0 : index
    %c0_73 = arith.constant 0 : index
    %c0_74 = arith.constant 0 : index
    %84 = vector.load %arg5[%c1_71, %c0_72, %c0_73, %c0_74] : memref<9x1x1x256xf32, #tpu.memory_space<vmem>>, vector<1x1x1x256xf32>
    %85 = vector.shape_cast %84 : vector<1x1x1x256xf32> to vector<1x1x256xf32>
    %86 = vector.broadcast %85 : vector<1x1x256xf32> to vector<8x16x256xf32>
    %87 = arith.mulf %83, %86 : vector<8x16x256xf32>
    %cst_75 = arith.constant dense<0.000000e+00> : vector<8x16xf32>
    %88 = vector.multi_reduction <add>, %87, %cst_75 [2] : vector<8x16x256xf32> to vector<8x16xf32>
    %89 = arith.addf %82, %88 : vector<8x16xf32>
    %c0_76 = arith.constant 0 : index
    %c2_77 = arith.constant 2 : index
    %c0_78 = arith.constant 0 : index
    %90 = vector.load %arg10[%c0_76, %c2_77, %c0_78] : memref<10x24x256xf32, #tpu.memory_space<vmem>>, vector<8x16x256xf32>
    %c2_79 = arith.constant 2 : index
    %c0_80 = arith.constant 0 : index
    %c0_81 = arith.constant 0 : index
    %c0_82 = arith.constant 0 : index
    %91 = vector.load %arg5[%c2_79, %c0_80, %c0_81, %c0_82] : memref<9x1x1x256xf32, #tpu.memory_space<vmem>>, vector<1x1x1x256xf32>
    %92 = vector.shape_cast %91 : vector<1x1x1x256xf32> to vector<1x1x256xf32>
    %93 = vector.broadcast %92 : vector<1x1x256xf32> to vector<8x16x256xf32>
    %94 = arith.mulf %90, %93 : vector<8x16x256xf32>
    %cst_83 = arith.constant dense<0.000000e+00> : vector<8x16xf32>
    %95 = vector.multi_reduction <add>, %94, %cst_83 [2] : vector<8x16x256xf32> to vector<8x16xf32>
    %96 = arith.addf %89, %95 : vector<8x16xf32>
    %c1_84 = arith.constant 1 : index
    %c0_85 = arith.constant 0 : index
    %c0_86 = arith.constant 0 : index
    %97 = vector.load %arg10[%c1_84, %c0_85, %c0_86] : memref<10x24x256xf32, #tpu.memory_space<vmem>>, vector<8x16x256xf32>
    %c3 = arith.constant 3 : index
    %c0_87 = arith.constant 0 : index
    %c0_88 = arith.constant 0 : index
    %c0_89 = arith.constant 0 : index
    %98 = vector.load %arg5[%c3, %c0_87, %c0_88, %c0_89] : memref<9x1x1x256xf32, #tpu.memory_space<vmem>>, vector<1x1x1x256xf32>
    %99 = vector.shape_cast %98 : vector<1x1x1x256xf32> to vector<1x1x256xf32>
    %100 = vector.broadcast %99 : vector<1x1x256xf32> to vector<8x16x256xf32>
    %101 = arith.mulf %97, %100 : vector<8x16x256xf32>
    %cst_90 = arith.constant dense<0.000000e+00> : vector<8x16xf32>
    %102 = vector.multi_reduction <add>, %101, %cst_90 [2] : vector<8x16x256xf32> to vector<8x16xf32>
    %103 = arith.addf %96, %102 : vector<8x16xf32>
    %c1_91 = arith.constant 1 : index
    %c1_92 = arith.constant 1 : index
    %c0_93 = arith.constant 0 : index
    %104 = vector.load %arg10[%c1_91, %c1_92, %c0_93] : memref<10x24x256xf32, #tpu.memory_space<vmem>>, vector<8x16x256xf32>
    %c4 = arith.constant 4 : index
    %c0_94 = arith.constant 0 : index
    %c0_95 = arith.constant 0 : index
    %c0_96 = arith.constant 0 : index
    %105 = vector.load %arg5[%c4, %c0_94, %c0_95, %c0_96] : memref<9x1x1x256xf32, #tpu.memory_space<vmem>>, vector<1x1x1x256xf32>
    %106 = vector.shape_cast %105 : vector<1x1x1x256xf32> to vector<1x1x256xf32>
    %107 = vector.broadcast %106 : vector<1x1x256xf32> to vector<8x16x256xf32>
    %108 = arith.mulf %104, %107 : vector<8x16x256xf32>
    %cst_97 = arith.constant dense<0.000000e+00> : vector<8x16xf32>
    %109 = vector.multi_reduction <add>, %108, %cst_97 [2] : vector<8x16x256xf32> to vector<8x16xf32>
    %110 = arith.addf %103, %109 : vector<8x16xf32>
    %c1_98 = arith.constant 1 : index
    %c2_99 = arith.constant 2 : index
    %c0_100 = arith.constant 0 : index
    %111 = vector.load %arg10[%c1_98, %c2_99, %c0_100] : memref<10x24x256xf32, #tpu.memory_space<vmem>>, vector<8x16x256xf32>
    %c5 = arith.constant 5 : index
    %c0_101 = arith.constant 0 : index
    %c0_102 = arith.constant 0 : index
    %c0_103 = arith.constant 0 : index
    %112 = vector.load %arg5[%c5, %c0_101, %c0_102, %c0_103] : memref<9x1x1x256xf32, #tpu.memory_space<vmem>>, vector<1x1x1x256xf32>
    %113 = vector.shape_cast %112 : vector<1x1x1x256xf32> to vector<1x1x256xf32>
    %114 = vector.broadcast %113 : vector<1x1x256xf32> to vector<8x16x256xf32>
    %115 = arith.mulf %111, %114 : vector<8x16x256xf32>
    %cst_104 = arith.constant dense<0.000000e+00> : vector<8x16xf32>
    %116 = vector.multi_reduction <add>, %115, %cst_104 [2] : vector<8x16x256xf32> to vector<8x16xf32>
    %117 = arith.addf %110, %116 : vector<8x16xf32>
    %c2_105 = arith.constant 2 : index
    %c0_106 = arith.constant 0 : index
    %c0_107 = arith.constant 0 : index
    %118 = vector.load %arg10[%c2_105, %c0_106, %c0_107] : memref<10x24x256xf32, #tpu.memory_space<vmem>>, vector<8x16x256xf32>
    %c6 = arith.constant 6 : index
    %c0_108 = arith.constant 0 : index
    %c0_109 = arith.constant 0 : index
    %c0_110 = arith.constant 0 : index
    %119 = vector.load %arg5[%c6, %c0_108, %c0_109, %c0_110] : memref<9x1x1x256xf32, #tpu.memory_space<vmem>>, vector<1x1x1x256xf32>
    %120 = vector.shape_cast %119 : vector<1x1x1x256xf32> to vector<1x1x256xf32>
    %121 = vector.broadcast %120 : vector<1x1x256xf32> to vector<8x16x256xf32>
    %122 = arith.mulf %118, %121 : vector<8x16x256xf32>
    %cst_111 = arith.constant dense<0.000000e+00> : vector<8x16xf32>
    %123 = vector.multi_reduction <add>, %122, %cst_111 [2] : vector<8x16x256xf32> to vector<8x16xf32>
    %124 = arith.addf %117, %123 : vector<8x16xf32>
    %c2_112 = arith.constant 2 : index
    %c1_113 = arith.constant 1 : index
    %c0_114 = arith.constant 0 : index
    %125 = vector.load %arg10[%c2_112, %c1_113, %c0_114] : memref<10x24x256xf32, #tpu.memory_space<vmem>>, vector<8x16x256xf32>
    %c7 = arith.constant 7 : index
    %c0_115 = arith.constant 0 : index
    %c0_116 = arith.constant 0 : index
    %c0_117 = arith.constant 0 : index
    %126 = vector.load %arg5[%c7, %c0_115, %c0_116, %c0_117] : memref<9x1x1x256xf32, #tpu.memory_space<vmem>>, vector<1x1x1x256xf32>
    %127 = vector.shape_cast %126 : vector<1x1x1x256xf32> to vector<1x1x256xf32>
    %128 = vector.broadcast %127 : vector<1x1x256xf32> to vector<8x16x256xf32>
    %129 = arith.mulf %125, %128 : vector<8x16x256xf32>
    %cst_118 = arith.constant dense<0.000000e+00> : vector<8x16xf32>
    %130 = vector.multi_reduction <add>, %129, %cst_118 [2] : vector<8x16x256xf32> to vector<8x16xf32>
    %131 = arith.addf %124, %130 : vector<8x16xf32>
    %c2_119 = arith.constant 2 : index
    %c2_120 = arith.constant 2 : index
    %c0_121 = arith.constant 0 : index
    %132 = vector.load %arg10[%c2_119, %c2_120, %c0_121] : memref<10x24x256xf32, #tpu.memory_space<vmem>>, vector<8x16x256xf32>
    %c8 = arith.constant 8 : index
    %c0_122 = arith.constant 0 : index
    %c0_123 = arith.constant 0 : index
    %c0_124 = arith.constant 0 : index
    %133 = vector.load %arg5[%c8, %c0_122, %c0_123, %c0_124] : memref<9x1x1x256xf32, #tpu.memory_space<vmem>>, vector<1x1x1x256xf32>
    %134 = vector.shape_cast %133 : vector<1x1x1x256xf32> to vector<1x1x256xf32>
    %135 = vector.broadcast %134 : vector<1x1x256xf32> to vector<8x16x256xf32>
    %136 = arith.mulf %132, %135 : vector<8x16x256xf32>
    %cst_125 = arith.constant dense<0.000000e+00> : vector<8x16xf32>
    %137 = vector.multi_reduction <add>, %136, %cst_125 [2] : vector<8x16x256xf32> to vector<8x16xf32>
    %138 = arith.addf %131, %137 : vector<8x16xf32>
    %c0_126 = arith.constant 0 : index
    %c0_127 = arith.constant 0 : index
    %139 = vector.load %arg6[%c0_126, %c0_127] : memref<1x1xf32, #tpu.memory_space<vmem>>, vector<1x1xf32>
    %140 = vector.broadcast %139 : vector<1x1xf32> to vector<8x16xf32>
    %141 = arith.addf %138, %140 : vector<8x16xf32>
    %c0_128 = arith.constant 0 : index
    %c0_129 = arith.constant 0 : index
    %c0_130 = arith.constant 0 : index
    %142 = vector.load %arg7[%c0_128, %c0_129, %c0_130] : memref<1x8x16xf32, #tpu.memory_space<vmem>>, vector<1x8x16xf32>
    %143 = vector.shape_cast %142 : vector<1x8x16xf32> to vector<8x16xf32>
    %144 = vector.shape_cast %141 : vector<8x16xf32> to vector<1x8x16xf32>
    tpu.vector_store %arg7[%c0_128, %c0_129, %c0_130], %144 {strides = array<i32>} : memref<1x8x16xf32, #tpu.memory_space<vmem>>, vector<1x8x16xf32>,
    return
  }
  func.func @transform_0(%arg0: i32, %arg1: i32) -> (i32, i32, i32, i32) {
    %c0_i32 = arith.constant 0 : i32
    %c0_i32_0 = arith.constant 0 : i32
    %c0_i32_1 = arith.constant 0 : i32
    %c0_i32_2 = arith.constant 0 : i32
    return %arg0, %c0_i32, %c0_i32_0, %c0_i32_1 : i32, i32, i32, i32
  }
  func.func @transform_1(%arg0: i32, %arg1: i32) -> (i32, i32) {
    %c0_i32 = arith.constant 0 : i32
    %c0_i32_0 = arith.constant 0 : i32
    %c0_i32_1 = arith.constant 0 : i32
    return %c0_i32, %c0_i32_0 : i32, i32
  }
  func.func @transform_2(%arg0: i32, %arg1: i32) -> (i32, i32) {
    %c0_i32 = arith.constant 0 : i32
    %c0_i32_0 = arith.constant 0 : i32
    %c0_i32_1 = arith.constant 0 : i32
    return %c0_i32, %c0_i32_0 : i32, i32
  }
  func.func @transform_3(%arg0: i32, %arg1: i32) -> (i32, i32, i32, i32) {
    %c0_i32 = arith.constant 0 : i32
    %c0_i32_0 = arith.constant 0 : i32
    %c0_i32_1 = arith.constant 0 : i32
    %c0_i32_2 = arith.constant 0 : i32
    %c0_i32_3 = arith.constant 0 : i32
    return %c0_i32, %c0_i32_0, %c0_i32_1, %c0_i32_2 : i32, i32, i32, i32
  }
  func.func @transform_4(%arg0: i32, %arg1: i32) -> (i32, i32) {
    %c0_i32 = arith.constant 0 : i32
    %c0_i32_0 = arith.constant 0 : i32
    %c0_i32_1 = arith.constant 0 : i32
    return %c0_i32, %c0_i32_0 : i32, i32
  }
  func.func @transform_5(%arg0: i32, %arg1: i32) -> (i32, i32, i32) {
    %c0_i32 = arith.constant 0 : i32
    %c0_i32_0 = arith.constant 0 : i32
    return %arg0, %arg1, %c0_i32 : i32, i32, i32
  }
}

</mosaic_0001>

<llo_original>
// kernel: tpu_custom_call.1
$region0: #{tpu_custom_call.1}
  #allocation0 [shape = 'u32[]', space=smem, size = 0x4, offset = 0x4, fixed_abs, tag = 'smem constant byte address 0x4 - core index']
  #allocation1 [shape = 'u32[144,128]{1,0:T(1,128)}', space=vmem, size = 0x12000, scoped, tag = 'internal scratch']
  #allocation2 [shape = 'bf16[20,24,128]{2,1,0:T(8,128)(2,1)}', space=vmem, size = 0x1e000, scoped, tag = 'scratch operand']
  #allocation3 [shape = 'bf16[160,1152]{1,0:T(16,128)(2,1)}', space=vmem, size = 0x5a000, scoped, tag = 'scratch operand']
  #allocation4 [shape = 'f32[10,24,256]{2,1,0:T(8,128)}', space=vmem, size = 0x3c000, scoped, tag = 'scratch operand']
  #allocation5 [shape = 'f32[1,1]{1,0:T(1,128)S(1)}', space=vmem, size = 0x200, scoped, tag = 'scoped memory for tpu_custom_call.1']
  %s0 = inlined_call_operand.hbm [shape: f32[2,16,16,128], index: 0, kind: input, shape index: {}]
  %s1 = inlined_call_operand.hbm [shape: bf16[1152,256], index: 1, kind: input, shape index: {}]
  %s2 = inlined_call_operand.vmem [shape: f32[1,256], index: 2, kind: input, shape index: {}]
  %s3 = inlined_call_operand.hbm [shape: f32[9,1,1,256], index: 3, kind: input, shape index: {}]
  %s4 = inlined_call_operand.<no memory space> [shape: f32[1,1], index: 4, kind: input, shape index: {}]
  %s5 = inlined_call_operand.hbm [shape: f32[2,16,16], index: 5, kind: output, shape index: {}]
  %s6 = sld [smem:[#allocation0]]
  $region77: #{tpu_custom_call.1} parent=0
    _
  %s8 = ssub.s32 1, %s6
  %s9 = scalar_select 0, %s8, %s6
  %v10 = vstv %s4
  %11 = vst [vmem:[#allocation5] sm:$0x1] %v10
  $region1: #{tpu_custom_call.1} parent=0
    #allocation6 [shape = 'u8[262144]{0}', space=vmem, size = 0x40000, scoped, tag = 'input window, operand 0']
    #allocation7 [shape = 's32[2]{0}', space=sflag, size = 0x8, scoped, tag = 'scoped memory for tpu_custom_call.1']
    #allocation8 [shape = 's32[2]{0}', space=sflag, size = 0x8, scoped, tag = 'scoped memory for tpu_custom_call.1']
    #allocation9 [shape = 'u8[589824]{0}', space=vmem, size = 0x90000, scoped, tag = 'input window, operand 1, single buffered']
    #allocation10 [shape = 's32[1]{0}', space=sflag, size = 0x4, scoped, tag = 'scoped memory for tpu_custom_call.1']
    #allocation11 [shape = 'u8[9216]{0}', space=vmem, size = 0x2400, scoped, tag = 'input window, operand 3, single buffered']
    #allocation12 [shape = 'u8[8192]{0}', space=vmem, size = 0x2000, scoped, tag = 'output window, operand 0']
    %12 = vsyncpa [#allocation7], 0
    %s13 = scalar_lea.sflag [#allocation7], 1
    %14 = vsyncpa %s13, 0
    %15 = vsyncpa [#allocation10], 0
    %16 = vsyncpa [#allocation8], 0
    %s17 = scalar_lea.sflag [#allocation8], 1
    %18 = vsyncpa %s17, 0
    loop: start=0, step=1, limit=6
    $region2: #{tpu_custom_call.1} parent=1 // loop_pre_header
      _
    $region3: #{tpu_custom_call.1} parent=1 // loop_header
      %s20 = sphi 0, %s24
      %p21 = scmp.ge.s32.totalorder %s20, 6
      %s27 = sphi 0, %s39
      %s28 = sphi 0, %s35
      %s29 = sphi 0, %s27
      %s30 = sphi 0, %s28
      %s31 = sphi 0, %s29
      %s32 = sphi 0, %s30
      %s42 = sphi 0, %s44
      %s45 = sphi 0, %s42
      %s46 = sphi 0, %s45
      %s62 = sphi 0, %s46
      %s66 = sphi 0, %s66
      %s68 = sphi 0, %s66
      %s69 = sphi 0, %s68
      %s83 = sphi 0, %s69
      %s87 = sphi 0, %s87
      %s89 = sphi 0, %s87
      %s90 = sphi 0, %s89
      %s104 = sphi 0, %s90
      %s108 = sphi 0, %s108
      %s110 = sphi 0, %s108
      %s111 = sphi 0, %s110
      %s125 = sphi 0, %s111
      %s129 = sphi 0, %s129
      %s131 = sphi 0, %s129
      %s132 = sphi 0, %s131
      %s146 = sphi 0, %s132
      %s154 = sphi 0, %s156
      %s157 = sphi 0, %s154
      %s158 = sphi 0, %s157
      %s174 = sphi 0, %s158
    $region4: #{tpu_custom_call.1} parent=1 // loop_header_branch
      %23 = sbr.rel (%p21) target = $region8
    $region5: #{tpu_custom_call.1} parent=1 // loop_body
      %s25 = ssub.s32 %s20, 1
      %s26 = ssub.s32 %s20, 2
      %s33 = sadd.s32 1, %s28
      %p34 = scmp.ge.s32.totalorder %s33, 2
      %s35 = scalar_select %p34, 0, %s33
      %s36 = sadd.s32 1, %s27
      %s37 = scalar_select %p34, %s36, %s27
      %p38 = scmp.ge.s32.totalorder %s37, 2
      %s39 = scalar_select %p38, 0, %s37
      %s40 = ssub.s32 %s27, %s39
      %p41 = scmp.eq.s32.totalorder %s40, 0
      %s43 = sadd.s32 %s42, 1
      %s44 = scalar_select %p41, %s42, %s43
      %p47 = pneg %p41
      %p48 = scmp.eq.s32.totalorder %s20, 3
      %p49 = por %p47, %p48
      %p50 = scmp.ne.s32.totalorder %s42, %s45
      %p51 = scmp.eq.s32.totalorder %s20, 0
      %p52 = por %p50, %p51
      %p53 = scmp.ne.s32.totalorder %s42, %s45
      %p54 = scmp.eq.s32.totalorder %s25, 3
      %p55 = por %p53, %p54
      %p56 = scmp.ne.s32.totalorder %s45, %s46
      %p57 = scmp.eq.s32.totalorder %s25, 0
      %p58 = por %p56, %p57
      %p59 = scmp.ne.s32.totalorder %s45, %s46
      %p60 = scmp.eq.s32.totalorder %s26, 3
      %p61 = por %p59, %p60
      %p63 = scmp.ne.s32.totalorder %s46, %s62
      %p64 = scmp.eq.s32.totalorder %s26, 0
      %p65 = por %p63, %p64
      %s67 = sadd.s32 %s66, 1
      %p70 = scmp.eq.s32.totalorder %s20, 3
      %p71 = scmp.ne.s32.totalorder %s66, %s68
      %p72 = scmp.eq.s32.totalorder %s20, 0
      %p73 = por %p71, %p72
      %p74 = scmp.ne.s32.totalorder %s66, %s68
      %p75 = scmp.eq.s32.totalorder %s25, 3
      %p76 = por %p74, %p75
      %p77 = scmp.ne.s32.totalorder %s68, %s69
      %p78 = scmp.eq.s32.totalorder %s25, 0
      %p79 = por %p77, %p78
      %p80 = scmp.ne.s32.totalorder %s68, %s69
      %p81 = scmp.eq.s32.totalorder %s26, 3
      %p82 = por %p80, %p81
      %p84 = scmp.ne.s32.totalorder %s69, %s83
      %p85 = scmp.eq.s32.totalorder %s26, 0
      %p86 = por %p84, %p85
      %s88 = sadd.s32 %s87, 1
      %p91 = scmp.eq.s32.totalorder %s20, 3
      %p92 = scmp.ne.s32.totalorder %s87, %s89
      %p93 = scmp.eq.s32.totalorder %s20, 0
      %p94 = por %p92, %p93
      %p95 = scmp.ne.s32.totalorder %s87, %s89
      %p96 = scmp.eq.s32.totalorder %s25, 3
      %p97 = por %p95, %p96
      %p98 = scmp.ne.s32.totalorder %s89, %s90
      %p99 = scmp.eq.s32.totalorder %s25, 0
      %p100 = por %p98, %p99
      %p101 = scmp.ne.s32.totalorder %s89, %s90
      %p102 = scmp.eq.s32.totalorder %s26, 3
      %p103 = por %p101, %p102
      %p105 = scmp.ne.s32.totalorder %s90, %s104
      %p106 = scmp.eq.s32.totalorder %s26, 0
      %p107 = por %p105, %p106
      %s109 = sadd.s32 %s108, 1
      %p112 = scmp.eq.s32.totalorder %s20, 3
      %p113 = scmp.ne.s32.totalorder %s108, %s110
      %p114 = scmp.eq.s32.totalorder %s20, 0
      %p115 = por %p113, %p114
      %p116 = scmp.ne.s32.totalorder %s108, %s110
      %p117 = scmp.eq.s32.totalorder %s25, 3
      %p118 = por %p116, %p117
      %p119 = scmp.ne.s32.totalorder %s110, %s111
      %p120 = scmp.eq.s32.totalorder %s25, 0
      %p121 = por %p119, %p120
      %p122 = scmp.ne.s32.totalorder %s110, %s111
      %p123 = scmp.eq.s32.totalorder %s26, 3
      %p124 = por %p122, %p123
      %p126 = scmp.ne.s32.totalorder %s111, %s125
      %p127 = scmp.eq.s32.totalorder %s26, 0
      %p128 = por %p126, %p127
      %s130 = sadd.s32 %s129, 1
      %p133 = scmp.eq.s32.totalorder %s20, 3
      %p134 = scmp.ne.s32.totalorder %s129, %s131
      %p135 = scmp.eq.s32.totalorder %s20, 0
      %p136 = por %p134, %p135
      %p137 = scmp.ne.s32.totalorder %s129, %s131
      %p138 = scmp.eq.s32.totalorder %s25, 3
      %p139 = por %p137, %p138
      %p140 = scmp.ne.s32.totalorder %s131, %s132
      %p141 = scmp.eq.s32.totalorder %s25, 0
      %p142 = por %p140, %p141
      %p143 = scmp.ne.s32.totalorder %s131, %s132
      %p144 = scmp.eq.s32.totalorder %s26, 3
      %p145 = por %p143, %p144
      %p147 = scmp.ne.s32.totalorder %s132, %s146
      %p148 = scmp.eq.s32.totalorder %s26, 0
      %p149 = por %p147, %p148
      %s150 = ssub.s32 %s27, %s39
      %s151 = ssub.s32 %s28, %s35
      %s152 = sor.u32 %s150, %s151
      %p153 = scmp.eq.s32.totalorder %s152, 0
      %s155 = sadd.s32 %s154, 1
      %s156 = scalar_select %p153, %s154, %s155
      %p159 = pneg %p153
      %p160 = scmp.eq.s32.totalorder %s20, 3
      %p161 = por %p159, %p160
      %p162 = scmp.ne.s32.totalorder %s154, %s157
      %p163 = scmp.eq.s32.totalorder %s20, 0
      %p164 = por %p162, %p163
      %p165 = scmp.ne.s32.totalorder %s154, %s157
      %p166 = scmp.eq.s32.totalorder %s25, 3
      %p167 = por %p165, %p166
      %p168 = scmp.ne.s32.totalorder %s157, %s158
      %p169 = scmp.eq.s32.totalorder %s25, 0
      %p170 = por %p168, %p169
      %p171 = scmp.ne.s32.totalorder %s157, %s158
      %p172 = scmp.eq.s32.totalorder %s26, 3
      %p173 = por %p171, %p172
      %p175 = scmp.ne.s32.totalorder %s158, %s174
      %p176 = scmp.eq.s32.totalorder %s26, 0
      %p177 = por %p175, %p176
      %p178 = scmp.le.s32.totalorder 1, %s20
      %p179 = scmp.lt.s32.totalorder %s20, 5
      %p180 = pnand %p178, %p179
      %p181 = pneg %p180
      // Predicated region
      $region9: #{tpu_custom_call.1} parent=5 // pred_check
        _
      $region10: #{tpu_custom_call.1} parent=5 // pred_check_branch
        %183 = sbr.rel (%p180) target = $region12
      $region11: #{tpu_custom_call.1} parent=5 // pred_region
        %s184 = ssub.s32 %s20, 1
        // Predicated region
        $region13: #{tpu_custom_call.1} parent=11 // pred_check
          %p185 = pneg %p79
        $region14: #{tpu_custom_call.1} parent=11 // pred_check_branch
          %187 = sbr.rel (%p185) target = $region16
        $region15: #{tpu_custom_call.1} parent=11 // pred_region
          %s189 = ssub.s32 18432, 18432
          %190 = vsyncadd [#allocation10], %s189
          %s191 = sshll.u32 [#allocation9], 4
          %s192 = int_to_ptr.vmem [resolvable:$true] %s191
          %197 = dma.hbm_to_vmem [thread:$0]  %s1, 18432, %s192, [#allocation10], 128, 128, 8
        $region16: #{tpu_custom_call.1} parent=11 // pred_fallthru
          _
        // Predicated region
        $region17: #{tpu_custom_call.1} parent=11 // pred_check
          %p198 = pneg %p100
        $region18: #{tpu_custom_call.1} parent=11 // pred_check_branch
          %200 = sbr.rel (%p198) target = $region20
        $region19: #{tpu_custom_call.1} parent=11 // pred_region
          _
        $region20: #{tpu_custom_call.1} parent=11 // pred_fallthru
          _
        // Predicated region
        $region21: #{tpu_custom_call.1} parent=11 // pred_check
          %p201 = pneg %p121
        $region22: #{tpu_custom_call.1} parent=11 // pred_check_branch
          %203 = sbr.rel (%p201) target = $region24
        $region23: #{tpu_custom_call.1} parent=11 // pred_region
          %s205 = ssub.s32 288, 288
          %206 = vsyncadd [#allocation10], %s205
          %s207 = sshll.u32 [#allocation11], 4
          %s208 = int_to_ptr.vmem [resolvable:$true] %s207
          %213 = dma.hbm_to_vmem [thread:$0]  %s3, 288, %s208, [#allocation10], 32, 32, 2
        $region24: #{tpu_custom_call.1} parent=11 // pred_fallthru
          _
        // Predicated region
        $region25: #{tpu_custom_call.1} parent=11 // pred_check
          %p214 = pneg %p142
        $region26: #{tpu_custom_call.1} parent=11 // pred_check_branch
          %216 = sbr.rel (%p214) target = $region28
        $region27: #{tpu_custom_call.1} parent=11 // pred_region
          _
        $region28: #{tpu_custom_call.1} parent=11 // pred_fallthru
          _
      $region12: #{tpu_custom_call.1} parent=5 // pred_fallthru
        _
      %p217 = scmp.lt.s32.totalorder %s20, 4
      // Predicated region
      $region29: #{tpu_custom_call.1} parent=5 // pred_check
        %p218 = pneg %p217
      $region30: #{tpu_custom_call.1} parent=5 // pred_check_branch
        %220 = sbr.rel (%p218) target = $region32
      $region31: #{tpu_custom_call.1} parent=5 // pred_region
        // Predicated region
        $region33: #{tpu_custom_call.1} parent=31 // pred_check
          %p221 = pneg %p52
        $region34: #{tpu_custom_call.1} parent=31 // pred_check_branch
          %223 = sbr.rel (%p221) target = $region36
        $region35: #{tpu_custom_call.1} parent=31 // pred_region
          %s224 = sand.u32 %s42, 1
          %s225 = scalar_lea.sflag [#allocation7], %s224
          %s226 = sand.u32 %s42, 1
          %s227 = smul.addr %s226, 256
          %s228 = scalar_lea.vmem [#allocation6], %s227
          %s230 = ssub.s32 4096, 4096
          %231 = vsyncadd %s225, %s230
          %s232 = smul.addr %s27, 32
          %s233 = smul.addr %s232, 128
          %s234 = scalar_lea.hbm %s0, %s233
          %s235 = sshll.u32 %s228, 4
          %s236 = int_to_ptr.vmem [resolvable:$true] %s235
          %241 = dma.hbm_to_vmem [thread:$0]  %s234, 4096, %s236, %s225, 128, 128, 8
        $region36: #{tpu_custom_call.1} parent=31 // pred_fallthru
          _
      $region32: #{tpu_custom_call.1} parent=5 // pred_fallthru
        _
      %p242 = scmp.le.s32.totalorder 1, %s20
      %p243 = scmp.lt.s32.totalorder %s20, 5
      %p244 = pnand %p242, %p243
      %p245 = pneg %p244
      // Predicated region
      $region37: #{tpu_custom_call.1} parent=5 // pred_check
        _
      $region38: #{tpu_custom_call.1} parent=5 // pred_check_branch
        %247 = sbr.rel (%p244) target = $region40
      $region39: #{tpu_custom_call.1} parent=5 // pred_region
        %s248 = ssub.s32 %s20, 1
        %s249 = sand.u32 %s45, 1
        %s250 = scalar_lea.sflag [#allocation7], %s249
        %s251 = sand.u32 %s45, 1
        %s252 = smul.addr %s251, 256
        %s253 = scalar_lea.vmem [#allocation6], %s252
        // Predicated region
        $region41: #{tpu_custom_call.1} parent=39 // pred_check
          %p254 = pneg %p58
        $region42: #{tpu_custom_call.1} parent=39 // pred_check_branch
          %256 = sbr.rel (%p254) target = $region44
        $region43: #{tpu_custom_call.1} parent=39 // pred_region
          %257 = dma.done %s250, 4096
        $region44: #{tpu_custom_call.1} parent=39 // pred_fallthru
          _
        // Predicated region
        $region45: #{tpu_custom_call.1} parent=39 // pred_check
          %p258 = pneg %p79
        $region46: #{tpu_custom_call.1} parent=39 // pred_check_branch
          %260 = sbr.rel (%p258) target = $region48
        $region47: #{tpu_custom_call.1} parent=39 // pred_region
          %261 = dma.done [#allocation10], 18432
        $region48: #{tpu_custom_call.1} parent=39 // pred_fallthru
          _
        // Predicated region
        $region49: #{tpu_custom_call.1} parent=39 // pred_check
          %p262 = pneg %p121
        $region50: #{tpu_custom_call.1} parent=39 // pred_check_branch
          %264 = sbr.rel (%p262) target = $region52
        $region51: #{tpu_custom_call.1} parent=39 // pred_region
          %265 = dma.done [#allocation10], 288
        $region52: #{tpu_custom_call.1} parent=39 // pred_fallthru
          _
        %s266 = sand.u32 %s45, 1
        %s267 = scalar_lea.sflag [#allocation7], %s266
        %s268 = sand.u32 %s45, 1
        %s269 = smul.addr %s268, 256
        %s270 = scalar_lea.vmem [#allocation6], %s269
        %p271 = pneg %p58
        %p272 = pneg %p55
        %p273 = pneg %p79
        %p274 = pneg %p76
        %p275 = pneg %p100
        %p276 = pneg %p97
        %p277 = pneg %p121
        %p278 = pneg %p118
        %p279 = pneg %p142
        %p280 = pneg %p139
        %p281 = pneg %p170
        %p282 = pneg %p167
        %s283 = sand.u32 %s157, 1
        %s284 = scalar_lea.sflag [#allocation8], %s283
        %s285 = sand.u32 %s157, 1
        %s286 = smul.addr %s285, 8
        %s287 = scalar_lea.vmem [#allocation12], %s286
        %p289 = scmp.eq.s32.totalorder %s30, 0
        // Predicated region
        $region53: #{tpu_custom_call.1} parent=39 // pred_check
          %p290 = pneg %p289
        $region54: #{tpu_custom_call.1} parent=39 // pred_check_branch
          %292 = sbr.rel (%p290) target = $region56
        $region55: #{tpu_custom_call.1} parent=39 // pred_region
          %293 = vst [vmem:[#allocation2] sm:$0xf] 0
          %294 = vst [vmem:[#allocation2 + $0x4] sm:$0xf] 0
          %295 = vst [vmem:[#allocation2 + $0x8] sm:$0xf] 0
          %296 = vst [vmem:[#allocation2 + $0xc] sm:$0xf] 0
          %297 = vst [vmem:[#allocation2 + $0x10] sm:$0xf] 0
          %298 = vst [vmem:[#allocation2 + $0x14] sm:$0xf] 0
          %299 = vst [vmem:[#allocation2 + $0x18] sm:$0xf] 0
          %300 = vst [vmem:[#allocation2 + $0x1c] sm:$0xf] 0
          %301 = vst [vmem:[#allocation2 + $0x20] sm:$0xf] 0
          %302 = vst [vmem:[#allocation2 + $0x24] sm:$0xf] 0
          %303 = vst [vmem:[#allocation2 + $0x28] sm:$0xf] 0
          %304 = vst [vmem:[#allocation2 + $0x2c] sm:$0xf] 0
          %305 = vst [vmem:[#allocation2 + $0x30] sm:$0xf] 0
          %306 = vst [vmem:[#allocation2 + $0x34] sm:$0xf] 0
          %307 = vst [vmem:[#allocation2 + $0x38] sm:$0xf] 0
          %308 = vst [vmem:[#allocation2 + $0x3c] sm:$0xf] 0
          %309 = vst [vmem:[#allocation2 + $0x40] sm:$0xf] 0
          %310 = vst [vmem:[#allocation2 + $0x44] sm:$0xf] 0
          %311 = vst [vmem:[#allocation2 + $0x48] sm:$0xf] 0
          %312 = vst [vmem:[#allocation2 + $0x4c] sm:$0xf] 0
          %313 = vst [vmem:[#allocation2 + $0x50] sm:$0xf] 0
          %314 = vst [vmem:[#allocation2 + $0x54] sm:$0xf] 0
          %315 = vst [vmem:[#allocation2 + $0x58] sm:$0xf] 0
          %316 = vst [vmem:[#allocation2 + $0x5c] sm:$0xf] 0
          %317 = vst [vmem:[#allocation2 + $0x60] sm:$0xf] 0
          %318 = vst [vmem:[#allocation2 + $0x64] sm:$0xf] 0
          %319 = vst [vmem:[#allocation2 + $0x68] sm:$0xf] 0
          %320 = vst [vmem:[#allocation2 + $0x6c] sm:$0xf] 0
          %321 = vst [vmem:[#allocation2 + $0x70] sm:$0xf] 0
          %322 = vst [vmem:[#allocation2 + $0x74] sm:$0xf] 0
          %323 = vst [vmem:[#allocation2 + $0x78] sm:$0xf] 0
          %324 = vst [vmem:[#allocation2 + $0x7c] sm:$0xf] 0
          %325 = vst [vmem:[#allocation2 + $0x80] sm:$0xf] 0
          %326 = vst [vmem:[#allocation2 + $0x84] sm:$0xf] 0
          %327 = vst [vmem:[#allocation2 + $0x88] sm:$0xf] 0
          %328 = vst [vmem:[#allocation2 + $0x8c] sm:$0xf] 0
          %329 = vst [vmem:[#allocation2 + $0x90] sm:$0xf] 0
          %330 = vst [vmem:[#allocation2 + $0x94] sm:$0xf] 0
          %331 = vst [vmem:[#allocation2 + $0x98] sm:$0xf] 0
          %332 = vst [vmem:[#allocation2 + $0x9c] sm:$0xf] 0
          %333 = vst [vmem:[#allocation2 + $0xa0] sm:$0xf] 0
          %334 = vst [vmem:[#allocation2 + $0xa4] sm:$0xf] 0
          %335 = vst [vmem:[#allocation2 + $0xa8] sm:$0xf] 0
          %336 = vst [vmem:[#allocation2 + $0xac] sm:$0xf] 0
          %337 = vst [vmem:[#allocation2 + $0xb0] sm:$0xf] 0
          %338 = vst [vmem:[#allocation2 + $0xb4] sm:$0xf] 0
          %339 = vst [vmem:[#allocation2 + $0xb8] sm:$0xf] 0
          %340 = vst [vmem:[#allocation2 + $0xbc] sm:$0xf] 0
          %341 = vst [vmem:[#allocation2 + $0xc0] sm:$0xf] 0
          %342 = vst [vmem:[#allocation2 + $0xc4] sm:$0xf] 0
          %343 = vst [vmem:[#allocation2 + $0xc8] sm:$0xf] 0
          %344 = vst [vmem:[#allocation2 + $0xcc] sm:$0xf] 0
          %345 = vst [vmem:[#allocation2 + $0xd0] sm:$0xf] 0
          %346 = vst [vmem:[#allocation2 + $0xd4] sm:$0xf] 0
          %347 = vst [vmem:[#allocation2 + $0xd8] sm:$0xf] 0
          %348 = vst [vmem:[#allocation2 + $0xdc] sm:$0xf] 0
          %349 = vst [vmem:[#allocation2 + $0xe0] sm:$0xf] 0
          %350 = vst [vmem:[#allocation2 + $0xe4] sm:$0xf] 0
          %351 = vst [vmem:[#allocation2 + $0xe8] sm:$0xf] 0
          %352 = vst [vmem:[#allocation2 + $0xec] sm:$0xf] 0
          %v353 = vld [vmem:[%s253] sm:$0xff]
          %v354 = vld [vmem:[%s253 + $0x8] sm:$0xff]
          %v355 = vld [vmem:[%s253 + $0x10] sm:$0xff]
          %v356 = vld [vmem:[%s253 + $0x18] sm:$0xff]
          %v357 = vld [vmem:[%s253 + $0x20] sm:$0xff]
          %v358 = vld [vmem:[%s253 + $0x28] sm:$0xff]
          %v359 = vld [vmem:[%s253 + $0x30] sm:$0xff]
          %v360 = vld [vmem:[%s253 + $0x38] sm:$0xff]
          %v361 = vld [vmem:[%s253 + $0x40] sm:$0xff]
          %v362 = vld [vmem:[%s253 + $0x48] sm:$0xff]
          %v363 = vld [vmem:[%s253 + $0x50] sm:$0xff]
          %v364 = vld [vmem:[%s253 + $0x58] sm:$0xff]
          %v365 = vld [vmem:[%s253 + $0x60] sm:$0xff]
          %v366 = vld [vmem:[%s253 + $0x68] sm:$0xff]
          %v367 = vld [vmem:[%s253 + $0x70] sm:$0xff]
          %v368 = vld [vmem:[%s253 + $0x78] sm:$0xff]
          %v369 = vld [vmem:[%s253 + $0x80] sm:$0xff]
          %v370 = vld [vmem:[%s253 + $0x88] sm:$0xff]
          %v371 = vld [vmem:[%s253 + $0x90] sm:$0xff]
          %v372 = vld [vmem:[%s253 + $0x98] sm:$0xff]
          %v373 = vld [vmem:[%s253 + $0xa0] sm:$0xff]
          %v374 = vld [vmem:[%s253 + $0xa8] sm:$0xff]
          %v375 = vld [vmem:[%s253 + $0xb0] sm:$0xff]
          %v376 = vld [vmem:[%s253 + $0xb8] sm:$0xff]
          %v377 = vld [vmem:[%s253 + $0xc0] sm:$0xff]
          %v378 = vld [vmem:[%s253 + $0xc8] sm:$0xff]
          %v379 = vld [vmem:[%s253 + $0xd0] sm:$0xff]
          %v380 = vld [vmem:[%s253 + $0xd8] sm:$0xff]
          %v381 = vld [vmem:[%s253 + $0xe0] sm:$0xff]
          %v382 = vld [vmem:[%s253 + $0xe8] sm:$0xff]
          %v383 = vld [vmem:[%s253 + $0xf0] sm:$0xff]
          %v384 = vld [vmem:[%s253 + $0xf8] sm:$0xff]
          %v385 = vpack.c.bf16 %v354, %v353
          %v386 = vpack.c.bf16 %v356, %v355
          %v387 = vpack.c.bf16 %v358, %v357
          %v388 = vpack.c.bf16 %v360, %v359
          %v389 = vpack.c.bf16 %v362, %v361
          %v390 = vpack.c.bf16 %v364, %v363
          %v391 = vpack.c.bf16 %v366, %v365
          %v392 = vpack.c.bf16 %v368, %v367
          %v393 = vpack.c.bf16 %v370, %v369
          %v394 = vpack.c.bf16 %v372, %v371
          %v395 = vpack.c.bf16 %v374, %v373
          %v396 = vpack.c.bf16 %v376, %v375
          %v397 = vpack.c.bf16 %v378, %v377
          %v398 = vpack.c.bf16 %v380, %v379
          %v399 = vpack.c.bf16 %v382, %v381
          %v400 = vpack.c.bf16 %v384, %v383
          %v417 = vunpack.c.l.b16 %v385
          %v418 = vunpack.c.h.b16 %v385
          %v419 = vunpack.c.l.b16 %v386
          %v420 = vunpack.c.h.b16 %v386
          %v421 = vunpack.c.l.b16 %v387
          %v422 = vunpack.c.h.b16 %v387
          %v423 = vunpack.c.l.b16 %v388
          %v424 = vunpack.c.h.b16 %v388
          %v425 = vunpack.c.l.b16 %v389
          %v426 = vunpack.c.h.b16 %v389
          %v427 = vunpack.c.l.b16 %v390
          %v428 = vunpack.c.h.b16 %v390
          %v429 = vunpack.c.l.b16 %v391
          %v430 = vunpack.c.h.b16 %v391
          %v431 = vunpack.c.l.b16 %v392
          %v432 = vunpack.c.h.b16 %v392
          %v433 = vunpack.c.l.b16 %v393
          %v434 = vunpack.c.h.b16 %v393
          %v435 = vunpack.c.l.b16 %v394
          %v436 = vunpack.c.h.b16 %v394
          %v437 = vunpack.c.l.b16 %v395
          %v438 = vunpack.c.h.b16 %v395
          %v439 = vunpack.c.l.b16 %v396
          %v440 = vunpack.c.h.b16 %v396
          %v441 = vunpack.c.l.b16 %v397
          %v442 = vunpack.c.h.b16 %v397
          %v443 = vunpack.c.l.b16 %v398
          %v444 = vunpack.c.h.b16 %v398
          %v445 = vunpack.c.l.b16 %v399
          %v446 = vunpack.c.h.b16 %v399
          %v447 = vunpack.c.l.b16 %v400
          %v448 = vunpack.c.h.b16 %v400
          %v449 = vpack.c.b16 %v417, %v417
          %v450 = vpack.c.b16 %v418, %v418
          %v451 = vpack.c.b16 %v419, %v419
          %v452 = vpack.c.b16 %v420, %v420
          %v453 = vpack.c.b16 %v421, %v421
          %v454 = vpack.c.b16 %v422, %v422
          %v455 = vpack.c.b16 %v423, %v423
          %v456 = vpack.c.b16 %v424, %v424
          %v457 = vpack.c.b16 %v425, %v425
          %v458 = vpack.c.b16 %v426, %v426
          %v459 = vpack.c.b16 %v427, %v427
          %v460 = vpack.c.b16 %v428, %v428
          %v461 = vpack.c.b16 %v429, %v429
          %v462 = vpack.c.b16 %v430, %v430
          %v463 = vpack.c.b16 %v431, %v431
          %v464 = vpack.c.b16 %v432, %v432
          %v465 = vpack.c.b16 %v433, %v433
          %v466 = vpack.c.b16 %v434, %v434
          %v467 = vpack.c.b16 %v435, %v435
          %v468 = vpack.c.b16 %v436, %v436
          %v469 = vpack.c.b16 %v437, %v437
          %v470 = vpack.c.b16 %v438, %v438
          %v471 = vpack.c.b16 %v439, %v439
          %v472 = vpack.c.b16 %v440, %v440
          %v473 = vpack.c.b16 %v441, %v441
          %v474 = vpack.c.b16 %v442, %v442
          %v475 = vpack.c.b16 %v443, %v443
          %v476 = vpack.c.b16 %v444, %v444
          %v477 = vpack.c.b16 %v445, %v445
          %v478 = vpack.c.b16 %v446, %v446
          %v479 = vpack.c.b16 %v447, %v447
          %v480 = vpack.c.b16 %v448, %v448
          %vm481 = vsmask.f32 256
          %vm482 = vsmask.f32 4368
          %vm483 = vmor %vm481, %vm482
          %v485 = vshrl.u32 %v449, 16
          %v487 = vrot.slane %v485, 7
          %v488 = vshll.u32 %v449, 16
          %v490 = vor.u32 %v487, %v488
          %v491 = vrot.slane %v487, 4
          %v493 = vshrl.u32 %v450, 16
          %v495 = vrot.slane %v493, 7
          %v496 = vshll.u32 %v450, 16
          %v498 = vor.u32 %v495, %v496
          %v499 = vsel %vm483, %v491, %v498
          %v500 = vrot.slane %v495, 4
          %v502 = vshrl.u32 %v451, 16
          %v504 = vrot.slane %v502, 7
          %v505 = vshll.u32 %v451, 16
          %v507 = vor.u32 %v504, %v505
          %v508 = vrot.slane %v504, 4
          %v510 = vshrl.u32 %v452, 16
          %v512 = vrot.slane %v510, 7
          %v513 = vshll.u32 %v452, 16
          %v515 = vor.u32 %v512, %v513
          %v516 = vsel %vm483, %v508, %v515
          %v517 = vrot.slane %v512, 4
          %v519 = vshrl.u32 %v453, 16
          %v521 = vrot.slane %v519, 7
          %v522 = vshll.u32 %v453, 16
          %v524 = vor.u32 %v521, %v522
          %v525 = vrot.slane %v521, 4
          %v527 = vshrl.u32 %v454, 16
          %v529 = vrot.slane %v527, 7
          %v530 = vshll.u32 %v454, 16
          %v532 = vor.u32 %v529, %v530
          %v533 = vsel %vm483, %v525, %v532
          %v534 = vrot.slane %v529, 4
          %v536 = vshrl.u32 %v455, 16
          %v538 = vrot.slane %v536, 7
          %v539 = vshll.u32 %v455, 16
          %v541 = vor.u32 %v538, %v539
          %v542 = vrot.slane %v538, 4
          %v544 = vshrl.u32 %v456, 16
          %v546 = vrot.slane %v544, 7
          %v547 = vshll.u32 %v456, 16
          %v549 = vor.u32 %v546, %v547
          %v550 = vsel %vm483, %v542, %v549
          %v551 = vrot.slane %v546, 4
          %v553 = vshrl.u32 %v457, 16
          %v555 = vrot.slane %v553, 7
          %v556 = vshll.u32 %v457, 16
          %v558 = vor.u32 %v555, %v556
          %v559 = vrot.slane %v555, 4
          %v561 = vshrl.u32 %v458, 16
          %v563 = vrot.slane %v561, 7
          %v564 = vshll.u32 %v458, 16
          %v566 = vor.u32 %v563, %v564
          %v567 = vsel %vm483, %v559, %v566
          %v568 = vrot.slane %v563, 4
          %v570 = vshrl.u32 %v459, 16
          %v572 = vrot.slane %v570, 7
          %v573 = vshll.u32 %v459, 16
          %v575 = vor.u32 %v572, %v573
          %v576 = vrot.slane %v572, 4
          %v578 = vshrl.u32 %v460, 16
          %v580 = vrot.slane %v578, 7
          %v581 = vshll.u32 %v460, 16
          %v583 = vor.u32 %v580, %v581
          %v584 = vsel %vm483, %v576, %v583
          %v585 = vrot.slane %v580, 4
          %v587 = vshrl.u32 %v461, 16
          %v589 = vrot.slane %v587, 7
          %v590 = vshll.u32 %v461, 16
          %v592 = vor.u32 %v589, %v590
          %v593 = vrot.slane %v589, 4
          %v595 = vshrl.u32 %v462, 16
          %v597 = vrot.slane %v595, 7
          %v598 = vshll.u32 %v462, 16
          %v600 = vor.u32 %v597, %v598
          %v601 = vsel %vm483, %v593, %v600
          %v602 = vrot.slane %v597, 4
          %v604 = vshrl.u32 %v463, 16
          %v606 = vrot.slane %v604, 7
          %v607 = vshll.u32 %v463, 16
          %v609 = vor.u32 %v606, %v607
          %v610 = vrot.slane %v606, 4
          %v612 = vshrl.u32 %v464, 16
          %v614 = vrot.slane %v612, 7
          %v615 = vshll.u32 %v464, 16
          %v617 = vor.u32 %v614, %v615
          %v618 = vsel %vm483, %v610, %v617
          %v619 = vrot.slane %v614, 4
          %v621 = vshrl.u32 %v465, 16
          %v623 = vrot.slane %v621, 7
          %v624 = vshll.u32 %v465, 16
          %v626 = vor.u32 %v623, %v624
          %v627 = vrot.slane %v623, 4
          %v629 = vshrl.u32 %v466, 16
          %v631 = vrot.slane %v629, 7
          %v632 = vshll.u32 %v466, 16
          %v634 = vor.u32 %v631, %v632
          %v635 = vsel %vm483, %v627, %v634
          %v636 = vrot.slane %v631, 4
          %v638 = vshrl.u32 %v467, 16
          %v640 = vrot.slane %v638, 7
          %v641 = vshll.u32 %v467, 16
          %v643 = vor.u32 %v640, %v641
          %v644 = vrot.slane %v640, 4
          %v646 = vshrl.u32 %v468, 16
          %v648 = vrot.slane %v646, 7
          %v649 = vshll.u32 %v468, 16
          %v651 = vor.u32 %v648, %v649
          %v652 = vsel %vm483, %v644, %v651
          %v653 = vrot.slane %v648, 4
          %v655 = vshrl.u32 %v469, 16
          %v657 = vrot.slane %v655, 7
          %v658 = vshll.u32 %v469, 16
          %v660 = vor.u32 %v657, %v658
          %v661 = vrot.slane %v657, 4
          %v663 = vshrl.u32 %v470, 16
          %v665 = vrot.slane %v663, 7
          %v666 = vshll.u32 %v470, 16
          %v668 = vor.u32 %v665, %v666
          %v669 = vsel %vm483, %v661, %v668
          %v670 = vrot.slane %v665, 4
          %v672 = vshrl.u32 %v471, 16
          %v674 = vrot.slane %v672, 7
          %v675 = vshll.u32 %v471, 16
          %v677 = vor.u32 %v674, %v675
          %v678 = vrot.slane %v674, 4
          %v680 = vshrl.u32 %v472, 16
          %v682 = vrot.slane %v680, 7
          %v683 = vshll.u32 %v472, 16
          %v685 = vor.u32 %v682, %v683
          %v686 = vsel %vm483, %v678, %v685
          %v687 = vrot.slane %v682, 4
          %v689 = vshrl.u32 %v473, 16
          %v691 = vrot.slane %v689, 7
          %v692 = vshll.u32 %v473, 16
          %v694 = vor.u32 %v691, %v692
          %v695 = vrot.slane %v691, 4
          %v697 = vshrl.u32 %v474, 16
          %v699 = vrot.slane %v697, 7
          %v700 = vshll.u32 %v474, 16
          %v702 = vor.u32 %v699, %v700
          %v703 = vsel %vm483, %v695, %v702
          %v704 = vrot.slane %v699, 4
          %v706 = vshrl.u32 %v475, 16
          %v708 = vrot.slane %v706, 7
          %v709 = vshll.u32 %v475, 16
          %v711 = vor.u32 %v708, %v709
          %v712 = vrot.slane %v708, 4
          %v714 = vshrl.u32 %v476, 16
          %v716 = vrot.slane %v714, 7
          %v717 = vshll.u32 %v476, 16
          %v719 = vor.u32 %v716, %v717
          %v720 = vsel %vm483, %v712, %v719
          %v721 = vrot.slane %v716, 4
          %v723 = vshrl.u32 %v477, 16
          %v725 = vrot.slane %v723, 7
          %v726 = vshll.u32 %v477, 16
          %v728 = vor.u32 %v725, %v726
          %v729 = vrot.slane %v725, 4
          %v731 = vshrl.u32 %v478, 16
          %v733 = vrot.slane %v731, 7
          %v734 = vshll.u32 %v478, 16
          %v736 = vor.u32 %v733, %v734
          %v737 = vsel %vm483, %v729, %v736
          %v738 = vrot.slane %v733, 4
          %v740 = vshrl.u32 %v479, 16
          %v742 = vrot.slane %v740, 7
          %v743 = vshll.u32 %v479, 16
          %v745 = vor.u32 %v742, %v743
          %v746 = vrot.slane %v742, 4
          %v748 = vshrl.u32 %v480, 16
          %v750 = vrot.slane %v748, 7
          %v751 = vshll.u32 %v480, 16
          %v753 = vor.u32 %v750, %v751
          %v754 = vsel %vm483, %v746, %v753
          %v755 = vrot.slane %v750, 4
          %s804 = scalar_lea.vmem [#allocation2], 24
          %vm805 = vcmask 1043456
          %vm806 = vsmask.f32 7938
          %vm807 = vmand %vm805, %vm806
          %v808 = vld [vmem:[%s804] sm:$0xf]
          %v809 = vsel %vm807, %v490, %v808
          %810 = vst [vmem:[%s804] sm:$0xf] %v809
          %811 = vst [vmem:[%s804 + $0x4] sm:$0xf] %v499
          %vm812 = vcmask 1040384
          %vm813 = vmand %vm812, %vm481
          %v814 = vld [vmem:[%s804 + $0x8] sm:$0x1]
          %v815 = vsel %vm813, %v500, %v814
          %816 = vst [vmem:[%s804 + $0x8] sm:$0x1] %v815
          %v817 = vld [vmem:[%s804 + $0xc] sm:$0xf]
          %v818 = vsel %vm807, %v507, %v817
          %819 = vst [vmem:[%s804 + $0xc] sm:$0xf] %v818
          %820 = vst [vmem:[%s804 + $0x10] sm:$0xf] %v516
          %v821 = vld [vmem:[%s804 + $0x14] sm:$0x1]
          %v822 = vsel %vm813, %v517, %v821
          %823 = vst [vmem:[%s804 + $0x14] sm:$0x1] %v822
          %v824 = vld [vmem:[%s804 + $0x18] sm:$0xf]
          %v825 = vsel %vm807, %v524, %v824
          %826 = vst [vmem:[%s804 + $0x18] sm:$0xf] %v825
          %827 = vst [vmem:[%s804 + $0x1c] sm:$0xf] %v533
          %v828 = vld [vmem:[%s804 + $0x20] sm:$0x1]
          %v829 = vsel %vm813, %v534, %v828
          %830 = vst [vmem:[%s804 + $0x20] sm:$0x1] %v829
          %v831 = vld [vmem:[%s804 + $0x24] sm:$0xf]
          %v832 = vsel %vm807, %v541, %v831
          %833 = vst [vmem:[%s804 + $0x24] sm:$0xf] %v832
          %834 = vst [vmem:[%s804 + $0x28] sm:$0xf] %v550
          %v835 = vld [vmem:[%s804 + $0x2c] sm:$0x1]
          %v836 = vsel %vm813, %v551, %v835
          %837 = vst [vmem:[%s804 + $0x2c] sm:$0x1] %v836
          %v838 = vld [vmem:[%s804 + $0x30] sm:$0xf]
          %v839 = vsel %vm807, %v558, %v838
          %840 = vst [vmem:[%s804 + $0x30] sm:$0xf] %v839
          %841 = vst [vmem:[%s804 + $0x34] sm:$0xf] %v567
          %v842 = vld [vmem:[%s804 + $0x38] sm:$0x1]
          %v843 = vsel %vm813, %v568, %v842
          %844 = vst [vmem:[%s804 + $0x38] sm:$0x1] %v843
          %v845 = vld [vmem:[%s804 + $0x3c] sm:$0xf]
          %v846 = vsel %vm807, %v575, %v845
          %847 = vst [vmem:[%s804 + $0x3c] sm:$0xf] %v846
          %848 = vst [vmem:[%s804 + $0x40] sm:$0xf] %v584
          %v849 = vld [vmem:[%s804 + $0x44] sm:$0x1]
          %v850 = vsel %vm813, %v585, %v849
          %851 = vst [vmem:[%s804 + $0x44] sm:$0x1] %v850
          %v852 = vld [vmem:[%s804 + $0x48] sm:$0xf]
          %v853 = vsel %vm807, %v592, %v852
          %854 = vst [vmem:[%s804 + $0x48] sm:$0xf] %v853
          %855 = vst [vmem:[%s804 + $0x4c] sm:$0xf] %v601
          %v856 = vld [vmem:[%s804 + $0x50] sm:$0x1]
          %v857 = vsel %vm813, %v602, %v856
          %858 = vst [vmem:[%s804 + $0x50] sm:$0x1] %v857
          %v859 = vld [vmem:[%s804 + $0x54] sm:$0xf]
          %v860 = vsel %vm807, %v609, %v859
          %861 = vst [vmem:[%s804 + $0x54] sm:$0xf] %v860
          %862 = vst [vmem:[%s804 + $0x58] sm:$0xf] %v618
          %v863 = vld [vmem:[%s804 + $0x5c] sm:$0x1]
          %v864 = vsel %vm813, %v619, %v863
          %865 = vst [vmem:[%s804 + $0x5c] sm:$0x1] %v864
          %v866 = vld [vmem:[%s804 + $0x60] sm:$0xf]
          %v867 = vsel %vm807, %v626, %v866
          %868 = vst [vmem:[%s804 + $0x60] sm:$0xf] %v867
          %869 = vst [vmem:[%s804 + $0x64] sm:$0xf] %v635
          %v870 = vld [vmem:[%s804 + $0x68] sm:$0x1]
          %v871 = vsel %vm813, %v636, %v870
          %872 = vst [vmem:[%s804 + $0x68] sm:$0x1] %v871
          %v873 = vld [vmem:[%s804 + $0x6c] sm:$0xf]
          %v874 = vsel %vm807, %v643, %v873
          %875 = vst [vmem:[%s804 + $0x6c] sm:$0xf] %v874
          %876 = vst [vmem:[%s804 + $0x70] sm:$0xf] %v652
          %v877 = vld [vmem:[%s804 + $0x74] sm:$0x1]
          %v878 = vsel %vm813, %v653, %v877
          %879 = vst [vmem:[%s804 + $0x74] sm:$0x1] %v878
          %v880 = vld [vmem:[%s804 + $0x78] sm:$0xf]
          %v881 = vsel %vm807, %v660, %v880
          %882 = vst [vmem:[%s804 + $0x78] sm:$0xf] %v881
          %883 = vst [vmem:[%s804 + $0x7c] sm:$0xf] %v669
          %v884 = vld [vmem:[%s804 + $0x80] sm:$0x1]
          %v885 = vsel %vm813, %v670, %v884
          %886 = vst [vmem:[%s804 + $0x80] sm:$0x1] %v885
          %v887 = vld [vmem:[%s804 + $0x84] sm:$0xf]
          %v888 = vsel %vm807, %v677, %v887
          %889 = vst [vmem:[%s804 + $0x84] sm:$0xf] %v888
          %890 = vst [vmem:[%s804 + $0x88] sm:$0xf] %v686
          %v891 = vld [vmem:[%s804 + $0x8c] sm:$0x1]
          %v892 = vsel %vm813, %v687, %v891
          %893 = vst [vmem:[%s804 + $0x8c] sm:$0x1] %v892
          %v894 = vld [vmem:[%s804 + $0x90] sm:$0xf]
          %v895 = vsel %vm807, %v694, %v894
          %896 = vst [vmem:[%s804 + $0x90] sm:$0xf] %v895
          %897 = vst [vmem:[%s804 + $0x94] sm:$0xf] %v703
          %v898 = vld [vmem:[%s804 + $0x98] sm:$0x1]
          %v899 = vsel %vm813, %v704, %v898
          %900 = vst [vmem:[%s804 + $0x98] sm:$0x1] %v899
          %v901 = vld [vmem:[%s804 + $0x9c] sm:$0xf]
          %v902 = vsel %vm807, %v711, %v901
          %903 = vst [vmem:[%s804 + $0x9c] sm:$0xf] %v902
          %904 = vst [vmem:[%s804 + $0xa0] sm:$0xf] %v720
          %v905 = vld [vmem:[%s804 + $0xa4] sm:$0x1]
          %v906 = vsel %vm813, %v721, %v905
          %907 = vst [vmem:[%s804 + $0xa4] sm:$0x1] %v906
          %v908 = vld [vmem:[%s804 + $0xa8] sm:$0xf]
          %v909 = vsel %vm807, %v728, %v908
          %910 = vst [vmem:[%s804 + $0xa8] sm:$0xf] %v909
          %911 = vst [vmem:[%s804 + $0xac] sm:$0xf] %v737
          %v912 = vld [vmem:[%s804 + $0xb0] sm:$0x1]
          %v913 = vsel %vm813, %v738, %v912
          %914 = vst [vmem:[%s804 + $0xb0] sm:$0x1] %v913
          %v915 = vld [vmem:[%s804 + $0xb4] sm:$0xf]
          %v916 = vsel %vm807, %v745, %v915
          %917 = vst [vmem:[%s804 + $0xb4] sm:$0xf] %v916
          %918 = vst [vmem:[%s804 + $0xb8] sm:$0xf] %v754
          %v919 = vld [vmem:[%s804 + $0xbc] sm:$0x1]
          %v920 = vsel %vm813, %v755, %v919
          %921 = vst [vmem:[%s804 + $0xbc] sm:$0x1] %v920
        $region56: #{tpu_custom_call.1} parent=39 // pred_fallthru
          _
        %s922 = smul.u32 %s30, 8
        %s923 = smul.u32 %s922, 3
        %s924 = smul.addr %s923, 4
        %s925 = scalar_lea.vmem [#allocation2], %s924
        %v926 = vld [vmem:[%s925] sm:$0xf]
        %v927 = vld [vmem:[%s925 + $0x4] sm:$0xf]
        %v928 = vld [vmem:[%s925 + $0xc] sm:$0xf]
        %v929 = vld [vmem:[%s925 + $0x10] sm:$0xf]
        %v930 = vld [vmem:[%s925 + $0x18] sm:$0xf]
        %v931 = vld [vmem:[%s925 + $0x1c] sm:$0xf]
        %v932 = vld [vmem:[%s925 + $0x24] sm:$0xf]
        %v933 = vld [vmem:[%s925 + $0x28] sm:$0xf]
        %v934 = vld [vmem:[%s925 + $0x30] sm:$0xf]
        %v935 = vld [vmem:[%s925 + $0x34] sm:$0xf]
        %v936 = vld [vmem:[%s925 + $0x3c] sm:$0xf]
        %v937 = vld [vmem:[%s925 + $0x40] sm:$0xf]
        %v938 = vld [vmem:[%s925 + $0x48] sm:$0xf]
        %v939 = vld [vmem:[%s925 + $0x4c] sm:$0xf]
        %v940 = vld [vmem:[%s925 + $0x54] sm:$0xf]
        %v941 = vld [vmem:[%s925 + $0x58] sm:$0xf]
        %v942 = vld [vmem:[%s925 + $0x60] sm:$0xf]
        %v943 = vld [vmem:[%s925 + $0x64] sm:$0xf]
        %v944 = vld [vmem:[%s925 + $0x6c] sm:$0xf]
        %v945 = vld [vmem:[%s925 + $0x70] sm:$0xf]
        %v966 = vunpack.c.l.b16 %v926
        %v967 = vunpack.c.l.b16 %v927
        %v968 = vunpack.c.l.b16 %v928
        %v969 = vunpack.c.l.b16 %v929
        %v970 = vunpack.c.l.b16 %v930
        %v971 = vunpack.c.l.b16 %v931
        %v972 = vunpack.c.l.b16 %v932
        %v973 = vunpack.c.l.b16 %v933
        %v974 = vunpack.c.l.b16 %v934
        %v975 = vunpack.c.l.b16 %v935
        %v976 = vunpack.c.l.b16 %v936
        %v977 = vunpack.c.l.b16 %v937
        %v978 = vunpack.c.l.b16 %v938
        %v979 = vunpack.c.l.b16 %v939
        %v980 = vunpack.c.l.b16 %v940
        %v981 = vunpack.c.l.b16 %v941
        %v982 = vunpack.c.l.b16 %v942
        %v983 = vunpack.c.l.b16 %v943
        %v984 = vunpack.c.l.b16 %v944
        %v985 = vunpack.c.l.b16 %v945
        %v986 = vpack.c.b16 %v967, %v966
        %v987 = vpack.c.b16 %v969, %v968
        %v988 = vpack.c.b16 %v971, %v970
        %v989 = vpack.c.b16 %v973, %v972
        %v990 = vpack.c.b16 %v975, %v974
        %v991 = vpack.c.b16 %v977, %v976
        %v992 = vpack.c.b16 %v979, %v978
        %v993 = vpack.c.b16 %v981, %v980
        %v994 = vpack.c.b16 %v983, %v982
        %v995 = vpack.c.b16 %v985, %v984
        %1006 = vst [vmem:[#allocation3] sm:$0xff] %v986
        %1007 = vst [vmem:[#allocation3 + $0x48] sm:$0xff] %v987
        %1008 = vst [vmem:[#allocation3 + $0x90] sm:$0xff] %v988
        %1009 = vst [vmem:[#allocation3 + $0xd8] sm:$0xff] %v989
        %1010 = vst [vmem:[#allocation3 + $0x120] sm:$0xff] %v990
        %1011 = vst [vmem:[#allocation3 + $0x168] sm:$0xff] %v991
        %1012 = vst [vmem:[#allocation3 + $0x1b0] sm:$0xff] %v992
        %1013 = vst [vmem:[#allocation3 + $0x1f8] sm:$0xff] %v993
        %1014 = vst [vmem:[#allocation3 + $0x240] sm:$0xff] %v994
        %1015 = vst [vmem:[#allocation3 + $0x288] sm:$0xff] %v995
        %v1016 = vld [vmem:[%s925] sm:$0xf]
        %v1017 = vld [vmem:[%s925 + $0x4] sm:$0xf]
        %v1018 = vld [vmem:[%s925 + $0x8] sm:$0x1]
        %v1019 = vld [vmem:[%s925 + $0xc] sm:$0xf]
        %v1020 = vld [vmem:[%s925 + $0x10] sm:$0xf]
        %v1021 = vld [vmem:[%s925 + $0x14] sm:$0x1]
        %v1022 = vld [vmem:[%s925 + $0x18] sm:$0xf]
        %v1023 = vld [vmem:[%s925 + $0x1c] sm:$0xf]
        %v1024 = vld [vmem:[%s925 + $0x20] sm:$0x1]
        %v1025 = vld [vmem:[%s925 + $0x24] sm:$0xf]
        %v1026 = vld [vmem:[%s925 + $0x28] sm:$0xf]
        %v1027 = vld [vmem:[%s925 + $0x2c] sm:$0x1]
        %v1028 = vld [vmem:[%s925 + $0x30] sm:$0xf]
        %v1029 = vld [vmem:[%s925 + $0x34] sm:$0xf]
        %v1030 = vld [vmem:[%s925 + $0x38] sm:$0x1]
        %v1031 = vld [vmem:[%s925 + $0x3c] sm:$0xf]
        %v1032 = vld [vmem:[%s925 + $0x40] sm:$0xf]
        %v1033 = vld [vmem:[%s925 + $0x44] sm:$0x1]
        %v1034 = vld [vmem:[%s925 + $0x48] sm:$0xf]
        %v1035 = vld [vmem:[%s925 + $0x4c] sm:$0xf]
        %v1036 = vld [vmem:[%s925 + $0x50] sm:$0x1]
        %v1037 = vld [vmem:[%s925 + $0x54] sm:$0xf]
        %v1038 = vld [vmem:[%s925 + $0x58] sm:$0xf]
        %v1039 = vld [vmem:[%s925 + $0x5c] sm:$0x1]
        %v1040 = vld [vmem:[%s925 + $0x60] sm:$0xf]
        %v1041 = vld [vmem:[%s925 + $0x64] sm:$0xf]
        %v1042 = vld [vmem:[%s925 + $0x68] sm:$0x1]
        %v1043 = vld [vmem:[%s925 + $0x6c] sm:$0xf]
        %v1044 = vld [vmem:[%s925 + $0x70] sm:$0xf]
        %v1045 = vld [vmem:[%s925 + $0x74] sm:$0x1]
        %vm1046 = vsmask.f32 3328
        %vm1047 = vsmask.f32 7440
        %vm1048 = vmor %vm1046, %vm1047
        %v1050 = vshrl.u32 %v1016, 16
        %v1052 = vrot.slane %v1050, 4
        %v1053 = vshll.u32 %v1016, 16
        %v1055 = vrot.slane %v1053, 5
        %v1056 = vor.u32 %v1052, %v1055
        %v1057 = vrot.slane %v1056, 4
        %v1059 = vshll.u32 %v1017, 16
        %v1061 = vrot.slane %v1059, 5
        %v1062 = vsel %vm1048, %v1057, %v1061
        %v1063 = vshrl.u32 %v1017, 16
        %v1065 = vrot.slane %v1063, 4
        %v1066 = vor.u32 %v1065, %v1061
        %v1067 = vrot.slane %v1066, 4
        %v1069 = vshll.u32 %v1018, 16
        %v1071 = vrot.slane %v1069, 5
        %v1072 = vsel %vm1048, %v1067, %v1071
        %v1074 = vshrl.u32 %v1019, 16
        %v1076 = vrot.slane %v1074, 4
        %v1077 = vshll.u32 %v1019, 16
        %v1079 = vrot.slane %v1077, 5
        %v1080 = vor.u32 %v1076, %v1079
        %v1081 = vrot.slane %v1080, 4
        %v1083 = vshll.u32 %v1020, 16
        %v1085 = vrot.slane %v1083, 5
        %v1086 = vsel %vm1048, %v1081, %v1085
        %v1087 = vshrl.u32 %v1020, 16
        %v1089 = vrot.slane %v1087, 4
        %v1090 = vor.u32 %v1089, %v1085
        %v1091 = vrot.slane %v1090, 4
        %v1093 = vshll.u32 %v1021, 16
        %v1095 = vrot.slane %v1093, 5
        %v1096 = vsel %vm1048, %v1091, %v1095
        %v1098 = vshrl.u32 %v1022, 16
        %v1100 = vrot.slane %v1098, 4
        %v1101 = vshll.u32 %v1022, 16
        %v1103 = vrot.slane %v1101, 5
        %v1104 = vor.u32 %v1100, %v1103
        %v1105 = vrot.slane %v1104, 4
        %v1107 = vshll.u32 %v1023, 16
        %v1109 = vrot.slane %v1107, 5
        %v1110 = vsel %vm1048, %v1105, %v1109
        %v1111 = vshrl.u32 %v1023, 16
        %v1113 = vrot.slane %v1111, 4
        %v1114 = vor.u32 %v1113, %v1109
        %v1115 = vrot.slane %v1114, 4
        %v1117 = vshll.u32 %v1024, 16
        %v1119 = vrot.slane %v1117, 5
        %v1120 = vsel %vm1048, %v1115, %v1119
        %v1122 = vshrl.u32 %v1025, 16
        %v1124 = vrot.slane %v1122, 4
        %v1125 = vshll.u32 %v1025, 16
        %v1127 = vrot.slane %v1125, 5
        %v1128 = vor.u32 %v1124, %v1127
        %v1129 = vrot.slane %v1128, 4
        %v1131 = vshll.u32 %v1026, 16
        %v1133 = vrot.slane %v1131, 5
        %v1134 = vsel %vm1048, %v1129, %v1133
        %v1135 = vshrl.u32 %v1026, 16
        %v1137 = vrot.slane %v1135, 4
        %v1138 = vor.u32 %v1137, %v1133
        %v1139 = vrot.slane %v1138, 4
        %v1141 = vshll.u32 %v1027, 16
        %v1143 = vrot.slane %v1141, 5
        %v1144 = vsel %vm1048, %v1139, %v1143
        %v1146 = vshrl.u32 %v1028, 16
        %v1148 = vrot.slane %v1146, 4
        %v1149 = vshll.u32 %v1028, 16
        %v1151 = vrot.slane %v1149, 5
        %v1152 = vor.u32 %v1148, %v1151
        %v1153 = vrot.slane %v1152, 4
        %v1155 = vshll.u32 %v1029, 16
        %v1157 = vrot.slane %v1155, 5
        %v1158 = vsel %vm1048, %v1153, %v1157
        %v1159 = vshrl.u32 %v1029, 16
        %v1161 = vrot.slane %v1159, 4
        %v1162 = vor.u32 %v1161, %v1157
        %v1163 = vrot.slane %v1162, 4
        %v1165 = vshll.u32 %v1030, 16
        %v1167 = vrot.slane %v1165, 5
        %v1168 = vsel %vm1048, %v1163, %v1167
        %v1170 = vshrl.u32 %v1031, 16
        %v1172 = vrot.slane %v1170, 4
        %v1173 = vshll.u32 %v1031, 16
        %v1175 = vrot.slane %v1173, 5
        %v1176 = vor.u32 %v1172, %v1175
        %v1177 = vrot.slane %v1176, 4
        %v1179 = vshll.u32 %v1032, 16
        %v1181 = vrot.slane %v1179, 5
        %v1182 = vsel %vm1048, %v1177, %v1181
        %v1183 = vshrl.u32 %v1032, 16
        %v1185 = vrot.slane %v1183, 4
        %v1186 = vor.u32 %v1185, %v1181
        %v1187 = vrot.slane %v1186, 4
        %v1189 = vshll.u32 %v1033, 16
        %v1191 = vrot.slane %v1189, 5
        %v1192 = vsel %vm1048, %v1187, %v1191
        %v1194 = vshrl.u32 %v1034, 16
        %v1196 = vrot.slane %v1194, 4
        %v1197 = vshll.u32 %v1034, 16
        %v1199 = vrot.slane %v1197, 5
        %v1200 = vor.u32 %v1196, %v1199
        %v1201 = vrot.slane %v1200, 4
        %v1203 = vshll.u32 %v1035, 16
        %v1205 = vrot.slane %v1203, 5
        %v1206 = vsel %vm1048, %v1201, %v1205
        %v1207 = vshrl.u32 %v1035, 16
        %v1209 = vrot.slane %v1207, 4
        %v1210 = vor.u32 %v1209, %v1205
        %v1211 = vrot.slane %v1210, 4
        %v1213 = vshll.u32 %v1036, 16
        %v1215 = vrot.slane %v1213, 5
        %v1216 = vsel %vm1048, %v1211, %v1215
        %v1218 = vshrl.u32 %v1037, 16
        %v1220 = vrot.slane %v1218, 4
        %v1221 = vshll.u32 %v1037, 16
        %v1223 = vrot.slane %v1221, 5
        %v1224 = vor.u32 %v1220, %v1223
        %v1225 = vrot.slane %v1224, 4
        %v1227 = vshll.u32 %v1038, 16
        %v1229 = vrot.slane %v1227, 5
        %v1230 = vsel %vm1048, %v1225, %v1229
        %v1231 = vshrl.u32 %v1038, 16
        %v1233 = vrot.slane %v1231, 4
        %v1234 = vor.u32 %v1233, %v1229
        %v1235 = vrot.slane %v1234, 4
        %v1237 = vshll.u32 %v1039, 16
        %v1239 = vrot.slane %v1237, 5
        %v1240 = vsel %vm1048, %v1235, %v1239
        %v1242 = vshrl.u32 %v1040, 16
        %v1244 = vrot.slane %v1242, 4
        %v1245 = vshll.u32 %v1040, 16
        %v1247 = vrot.slane %v1245, 5
        %v1248 = vor.u32 %v1244, %v1247
        %v1249 = vrot.slane %v1248, 4
        %v1251 = vshll.u32 %v1041, 16
        %v1253 = vrot.slane %v1251, 5
        %v1254 = vsel %vm1048, %v1249, %v1253
        %v1255 = vshrl.u32 %v1041, 16
        %v1257 = vrot.slane %v1255, 4
        %v1258 = vor.u32 %v1257, %v1253
        %v1259 = vrot.slane %v1258, 4
        %v1261 = vshll.u32 %v1042, 16
        %v1263 = vrot.slane %v1261, 5
        %v1264 = vsel %vm1048, %v1259, %v1263
        %v1266 = vshrl.u32 %v1043, 16
        %v1268 = vrot.slane %v1266, 4
        %v1269 = vshll.u32 %v1043, 16
        %v1271 = vrot.slane %v1269, 5
        %v1272 = vor.u32 %v1268, %v1271
        %v1273 = vrot.slane %v1272, 4
        %v1275 = vshll.u32 %v1044, 16
        %v1277 = vrot.slane %v1275, 5
        %v1278 = vsel %vm1048, %v1273, %v1277
        %v1279 = vshrl.u32 %v1044, 16
        %v1281 = vrot.slane %v1279, 4
        %v1282 = vor.u32 %v1281, %v1277
        %v1283 = vrot.slane %v1282, 4
        %v1285 = vshll.u32 %v1045, 16
        %v1287 = vrot.slane %v1285, 5
        %v1288 = vsel %vm1048, %v1283, %v1287
        %v1289 = vunpack.c.l.b16 %v1062
        %v1290 = vunpack.c.l.b16 %v1072
        %v1291 = vunpack.c.l.b16 %v1086
        %v1292 = vunpack.c.l.b16 %v1096
        %v1293 = vunpack.c.l.b16 %v1110
        %v1294 = vunpack.c.l.b16 %v1120
        %v1295 = vunpack.c.l.b16 %v1134
        %v1296 = vunpack.c.l.b16 %v1144
        %v1297 = vunpack.c.l.b16 %v1158
        %v1298 = vunpack.c.l.b16 %v1168
        %v1299 = vunpack.c.l.b16 %v1182
        %v1300 = vunpack.c.l.b16 %v1192
        %v1301 = vunpack.c.l.b16 %v1206
        %v1302 = vunpack.c.l.b16 %v1216
        %v1303 = vunpack.c.l.b16 %v1230
        %v1304 = vunpack.c.l.b16 %v1240
        %v1305 = vunpack.c.l.b16 %v1254
        %v1306 = vunpack.c.l.b16 %v1264
        %v1307 = vunpack.c.l.b16 %v1278
        %v1308 = vunpack.c.l.b16 %v1288
        %v1309 = vpack.c.b16 %v1290, %v1289
        %v1310 = vpack.c.b16 %v1292, %v1291
        %v1311 = vpack.c.b16 %v1294, %v1293
        %v1312 = vpack.c.b16 %v1296, %v1295
        %v1313 = vpack.c.b16 %v1298, %v1297
        %v1314 = vpack.c.b16 %v1300, %v1299
        %v1315 = vpack.c.b16 %v1302, %v1301
        %v1316 = vpack.c.b16 %v1304, %v1303
        %v1317 = vpack.c.b16 %v1306, %v1305
        %v1318 = vpack.c.b16 %v1308, %v1307
        %1329 = vst [vmem:[#allocation3 + $0x8] sm:$0xff] %v1309
        %1330 = vst [vmem:[#allocation3 + $0x50] sm:$0xff] %v1310
        %1331 = vst [vmem:[#allocation3 + $0x98] sm:$0xff] %v1311
        %1332 = vst [vmem:[#allocation3 + $0xe0] sm:$0xff] %v1312
        %1333 = vst [vmem:[#allocation3 + $0x128] sm:$0xff] %v1313
        %1334 = vst [vmem:[#allocation3 + $0x170] sm:$0xff] %v1314
        %1335 = vst [vmem:[#allocation3 + $0x1b8] sm:$0xff] %v1315
        %1336 = vst [vmem:[#allocation3 + $0x200] sm:$0xff] %v1316
        %1337 = vst [vmem:[#allocation3 + $0x248] sm:$0xff] %v1317
        %1338 = vst [vmem:[#allocation3 + $0x290] sm:$0xff] %v1318
        %v1339 = vld [vmem:[%s925] sm:$0xe]
        %v1340 = vld [vmem:[%s925 + $0x4] sm:$0xf]
        %v1341 = vld [vmem:[%s925 + $0x8] sm:$0x1]
        %v1342 = vld [vmem:[%s925 + $0xc] sm:$0xe]
        %v1343 = vld [vmem:[%s925 + $0x10] sm:$0xf]
        %v1344 = vld [vmem:[%s925 + $0x14] sm:$0x1]
        %v1345 = vld [vmem:[%s925 + $0x18] sm:$0xe]
        %v1346 = vld [vmem:[%s925 + $0x1c] sm:$0xf]
        %v1347 = vld [vmem:[%s925 + $0x20] sm:$0x1]
        %v1348 = vld [vmem:[%s925 + $0x24] sm:$0xe]
        %v1349 = vld [vmem:[%s925 + $0x28] sm:$0xf]
        %v1350 = vld [vmem:[%s925 + $0x2c] sm:$0x1]
        %v1351 = vld [vmem:[%s925 + $0x30] sm:$0xe]
        %v1352 = vld [vmem:[%s925 + $0x34] sm:$0xf]
        %v1353 = vld [vmem:[%s925 + $0x38] sm:$0x1]
        %v1354 = vld [vmem:[%s925 + $0x3c] sm:$0xe]
        %v1355 = vld [vmem:[%s925 + $0x40] sm:$0xf]
        %v1356 = vld [vmem:[%s925 + $0x44] sm:$0x1]
        %v1357 = vld [vmem:[%s925 + $0x48] sm:$0xe]
        %v1358 = vld [vmem:[%s925 + $0x4c] sm:$0xf]
        %v1359 = vld [vmem:[%s925 + $0x50] sm:$0x1]
        %v1360 = vld [vmem:[%s925 + $0x54] sm:$0xe]
        %v1361 = vld [vmem:[%s925 + $0x58] sm:$0xf]
        %v1362 = vld [vmem:[%s925 + $0x5c] sm:$0x1]
        %v1363 = vld [vmem:[%s925 + $0x60] sm:$0xe]
        %v1364 = vld [vmem:[%s925 + $0x64] sm:$0xf]
        %v1365 = vld [vmem:[%s925 + $0x68] sm:$0x1]
        %v1366 = vld [vmem:[%s925 + $0x6c] sm:$0xe]
        %v1367 = vld [vmem:[%s925 + $0x70] sm:$0xf]
        %v1368 = vld [vmem:[%s925 + $0x74] sm:$0x1]
        %vm1399 = vcmask 1042432
        %vm1400 = vcmask 1046532
        %vm1401 = vmor %vm1399, %vm1400
        %v1402 = vrot.slane %v1339, 5
        %v1403 = vrot.slane %v1402, 4
        %v1404 = vrot.slane %v1340, 5
        %v1405 = vsel %vm1401, %v1403, %v1404
        %v1406 = vrot.slane %v1404, 4
        %v1407 = vrot.slane %v1341, 5
        %v1408 = vsel %vm1401, %v1406, %v1407
        %v1409 = vrot.slane %v1342, 5
        %v1410 = vrot.slane %v1409, 4
        %v1411 = vrot.slane %v1343, 5
        %v1412 = vsel %vm1401, %v1410, %v1411
        %v1413 = vrot.slane %v1411, 4
        %v1414 = vrot.slane %v1344, 5
        %v1415 = vsel %vm1401, %v1413, %v1414
        %v1416 = vrot.slane %v1345, 5
        %v1417 = vrot.slane %v1416, 4
        %v1418 = vrot.slane %v1346, 5
        %v1419 = vsel %vm1401, %v1417, %v1418
        %v1420 = vrot.slane %v1418, 4
        %v1421 = vrot.slane %v1347, 5
        %v1422 = vsel %vm1401, %v1420, %v1421
        %v1423 = vrot.slane %v1348, 5
        %v1424 = vrot.slane %v1423, 4
        %v1425 = vrot.slane %v1349, 5
        %v1426 = vsel %vm1401, %v1424, %v1425
        %v1427 = vrot.slane %v1425, 4
        %v1428 = vrot.slane %v1350, 5
        %v1429 = vsel %vm1401, %v1427, %v1428
        %v1430 = vrot.slane %v1351, 5
        %v1431 = vrot.slane %v1430, 4
        %v1432 = vrot.slane %v1352, 5
        %v1433 = vsel %vm1401, %v1431, %v1432
        %v1434 = vrot.slane %v1432, 4
        %v1435 = vrot.slane %v1353, 5
        %v1436 = vsel %vm1401, %v1434, %v1435
        %v1437 = vrot.slane %v1354, 5
        %v1438 = vrot.slane %v1437, 4
        %v1439 = vrot.slane %v1355, 5
        %v1440 = vsel %vm1401, %v1438, %v1439
        %v1441 = vrot.slane %v1439, 4
        %v1442 = vrot.slane %v1356, 5
        %v1443 = vsel %vm1401, %v1441, %v1442
        %v1444 = vrot.slane %v1357, 5
        %v1445 = vrot.slane %v1444, 4
        %v1446 = vrot.slane %v1358, 5
        %v1447 = vsel %vm1401, %v1445, %v1446
        %v1448 = vrot.slane %v1446, 4
        %v1449 = vrot.slane %v1359, 5
        %v1450 = vsel %vm1401, %v1448, %v1449
        %v1451 = vrot.slane %v1360, 5
        %v1452 = vrot.slane %v1451, 4
        %v1453 = vrot.slane %v1361, 5
        %v1454 = vsel %vm1401, %v1452, %v1453
        %v1455 = vrot.slane %v1453, 4
        %v1456 = vrot.slane %v1362, 5
        %v1457 = vsel %vm1401, %v1455, %v1456
        %v1458 = vrot.slane %v1363, 5
        %v1459 = vrot.slane %v1458, 4
        %v1460 = vrot.slane %v1364, 5
        %v1461 = vsel %vm1401, %v1459, %v1460
        %v1462 = vrot.slane %v1460, 4
        %v1463 = vrot.slane %v1365, 5
        %v1464 = vsel %vm1401, %v1462, %v1463
        %v1465 = vrot.slane %v1366, 5
        %v1466 = vrot.slane %v1465, 4
        %v1467 = vrot.slane %v1367, 5
        %v1468 = vsel %vm1401, %v1466, %v1467
        %v1469 = vrot.slane %v1467, 4
        %v1470 = vrot.slane %v1368, 5
        %v1471 = vsel %vm1401, %v1469, %v1470
        %v1472 = vunpack.c.l.b16 %v1405
        %v1473 = vunpack.c.l.b16 %v1408
        %v1474 = vunpack.c.l.b16 %v1412
        %v1475 = vunpack.c.l.b16 %v1415
        %v1476 = vunpack.c.l.b16 %v1419
        %v1477 = vunpack.c.l.b16 %v1422
        %v1478 = vunpack.c.l.b16 %v1426
        %v1479 = vunpack.c.l.b16 %v1429
        %v1480 = vunpack.c.l.b16 %v1433
        %v1481 = vunpack.c.l.b16 %v1436
        %v1482 = vunpack.c.l.b16 %v1440
        %v1483 = vunpack.c.l.b16 %v1443
        %v1484 = vunpack.c.l.b16 %v1447
        %v1485 = vunpack.c.l.b16 %v1450
        %v1486 = vunpack.c.l.b16 %v1454
        %v1487 = vunpack.c.l.b16 %v1457
        %v1488 = vunpack.c.l.b16 %v1461
        %v1489 = vunpack.c.l.b16 %v1464
        %v1490 = vunpack.c.l.b16 %v1468
        %v1491 = vunpack.c.l.b16 %v1471
        %v1492 = vpack.c.b16 %v1473, %v1472
        %v1493 = vpack.c.b16 %v1475, %v1474
        %v1494 = vpack.c.b16 %v1477, %v1476
        %v1495 = vpack.c.b16 %v1479, %v1478
        %v1496 = vpack.c.b16 %v1481, %v1480
        %v1497 = vpack.c.b16 %v1483, %v1482
        %v1498 = vpack.c.b16 %v1485, %v1484
        %v1499 = vpack.c.b16 %v1487, %v1486
        %v1500 = vpack.c.b16 %v1489, %v1488
        %v1501 = vpack.c.b16 %v1491, %v1490
        %1512 = vst [vmem:[#allocation3 + $0x10] sm:$0xff] %v1492
        %1513 = vst [vmem:[#allocation3 + $0x58] sm:$0xff] %v1493
        %1514 = vst [vmem:[#allocation3 + $0xa0] sm:$0xff] %v1494
        %1515 = vst [vmem:[#allocation3 + $0xe8] sm:$0xff] %v1495
        %1516 = vst [vmem:[#allocation3 + $0x130] sm:$0xff] %v1496
        %1517 = vst [vmem:[#allocation3 + $0x178] sm:$0xff] %v1497
        %1518 = vst [vmem:[#allocation3 + $0x1c0] sm:$0xff] %v1498
        %1519 = vst [vmem:[#allocation3 + $0x208] sm:$0xff] %v1499
        %1520 = vst [vmem:[#allocation3 + $0x250] sm:$0xff] %v1500
        %1521 = vst [vmem:[#allocation3 + $0x298] sm:$0xff] %v1501
        %s1522 = sadd.s32 %s922, 1
        %s1523 = smul.u32 %s1522, 3
        %s1524 = smul.addr %s1523, 4
        %s1525 = scalar_lea.vmem [#allocation2], %s1524
        %v1526 = vld [vmem:[%s1525] sm:$0xf]
        %v1527 = vld [vmem:[%s1525 + $0x4] sm:$0xf]
        %v1528 = vld [vmem:[%s1525 + $0xc] sm:$0xf]
        %v1529 = vld [vmem:[%s1525 + $0x10] sm:$0xf]
        %v1530 = vld [vmem:[%s1525 + $0x18] sm:$0xf]
        %v1531 = vld [vmem:[%s1525 + $0x1c] sm:$0xf]
        %v1532 = vld [vmem:[%s1525 + $0x24] sm:$0xf]
        %v1533 = vld [vmem:[%s1525 + $0x28] sm:$0xf]
        %v1534 = vld [vmem:[%s1525 + $0x30] sm:$0xf]
        %v1535 = vld [vmem:[%s1525 + $0x34] sm:$0xf]
        %v1536 = vld [vmem:[%s1525 + $0x3c] sm:$0xf]
        %v1537 = vld [vmem:[%s1525 + $0x40] sm:$0xf]
        %v1538 = vld [vmem:[%s1525 + $0x48] sm:$0xf]
        %v1539 = vld [vmem:[%s1525 + $0x4c] sm:$0xf]
        %v1540 = vld [vmem:[%s1525 + $0x54] sm:$0xf]
        %v1541 = vld [vmem:[%s1525 + $0x58] sm:$0xf]
        %v1542 = vld [vmem:[%s1525 + $0x60] sm:$0xf]
        %v1543 = vld [vmem:[%s1525 + $0x64] sm:$0xf]
        %v1544 = vld [vmem:[%s1525 + $0x6c] sm:$0xf]
        %v1545 = vld [vmem:[%s1525 + $0x70] sm:$0xf]
        %v1566 = vunpack.c.l.b16 %v1526
        %v1567 = vunpack.c.l.b16 %v1527
        %v1568 = vunpack.c.l.b16 %v1528
        %v1569 = vunpack.c.l.b16 %v1529
        %v1570 = vunpack.c.l.b16 %v1530
        %v1571 = vunpack.c.l.b16 %v1531
        %v1572 = vunpack.c.l.b16 %v1532
        %v1573 = vunpack.c.l.b16 %v1533
        %v1574 = vunpack.c.l.b16 %v1534
        %v1575 = vunpack.c.l.b16 %v1535
        %v1576 = vunpack.c.l.b16 %v1536
        %v1577 = vunpack.c.l.b16 %v1537
        %v1578 = vunpack.c.l.b16 %v1538
        %v1579 = vunpack.c.l.b16 %v1539
        %v1580 = vunpack.c.l.b16 %v1540
        %v1581 = vunpack.c.l.b16 %v1541
        %v1582 = vunpack.c.l.b16 %v1542
        %v1583 = vunpack.c.l.b16 %v1543
        %v1584 = vunpack.c.l.b16 %v1544
        %v1585 = vunpack.c.l.b16 %v1545
        %v1586 = vpack.c.b16 %v1567, %v1566
        %v1587 = vpack.c.b16 %v1569, %v1568
        %v1588 = vpack.c.b16 %v1571, %v1570
        %v1589 = vpack.c.b16 %v1573, %v1572
        %v1590 = vpack.c.b16 %v1575, %v1574
        %v1591 = vpack.c.b16 %v1577, %v1576
        %v1592 = vpack.c.b16 %v1579, %v1578
        %v1593 = vpack.c.b16 %v1581, %v1580
        %v1594 = vpack.c.b16 %v1583, %v1582
        %v1595 = vpack.c.b16 %v1585, %v1584
        %1606 = vst [vmem:[#allocation3 + $0x18] sm:$0xff] %v1586
        %1607 = vst [vmem:[#allocation3 + $0x60] sm:$0xff] %v1587
        %1608 = vst [vmem:[#allocation3 + $0xa8] sm:$0xff] %v1588
        %1609 = vst [vmem:[#allocation3 + $0xf0] sm:$0xff] %v1589
        %1610 = vst [vmem:[#allocation3 + $0x138] sm:$0xff] %v1590
        %1611 = vst [vmem:[#allocation3 + $0x180] sm:$0xff] %v1591
        %1612 = vst [vmem:[#allocation3 + $0x1c8] sm:$0xff] %v1592
        %1613 = vst [vmem:[#allocation3 + $0x210] sm:$0xff] %v1593
        %1614 = vst [vmem:[#allocation3 + $0x258] sm:$0xff] %v1594
        %1615 = vst [vmem:[#allocation3 + $0x2a0] sm:$0xff] %v1595
        %v1616 = vld [vmem:[%s1525] sm:$0xf]
        %v1617 = vld [vmem:[%s1525 + $0x4] sm:$0xf]
        %v1618 = vld [vmem:[%s1525 + $0x8] sm:$0x1]
        %v1619 = vld [vmem:[%s1525 + $0xc] sm:$0xf]
        %v1620 = vld [vmem:[%s1525 + $0x10] sm:$0xf]
        %v1621 = vld [vmem:[%s1525 + $0x14] sm:$0x1]
        %v1622 = vld [vmem:[%s1525 + $0x18] sm:$0xf]
        %v1623 = vld [vmem:[%s1525 + $0x1c] sm:$0xf]
        %v1624 = vld [vmem:[%s1525 + $0x20] sm:$0x1]
        %v1625 = vld [vmem:[%s1525 + $0x24] sm:$0xf]
        %v1626 = vld [vmem:[%s1525 + $0x28] sm:$0xf]
        %v1627 = vld [vmem:[%s1525 + $0x2c] sm:$0x1]
        %v1628 = vld [vmem:[%s1525 + $0x30] sm:$0xf]
        %v1629 = vld [vmem:[%s1525 + $0x34] sm:$0xf]
        %v1630 = vld [vmem:[%s1525 + $0x38] sm:$0x1]
        %v1631 = vld [vmem:[%s1525 + $0x3c] sm:$0xf]
        %v1632 = vld [vmem:[%s1525 + $0x40] sm:$0xf]
        %v1633 = vld [vmem:[%s1525 + $0x44] sm:$0x1]
        %v1634 = vld [vmem:[%s1525 + $0x48] sm:$0xf]
        %v1635 = vld [vmem:[%s1525 + $0x4c] sm:$0xf]
        %v1636 = vld [vmem:[%s1525 + $0x50] sm:$0x1]
        %v1637 = vld [vmem:[%s1525 + $0x54] sm:$0xf]
        %v1638 = vld [vmem:[%s1525 + $0x58] sm:$0xf]
        %v1639 = vld [vmem:[%s1525 + $0x5c] sm:$0x1]
        %v1640 = vld [vmem:[%s1525 + $0x60] sm:$0xf]
        %v1641 = vld [vmem:[%s1525 + $0x64] sm:$0xf]
        %v1642 = vld [vmem:[%s1525 + $0x68] sm:$0x1]
        %v1643 = vld [vmem:[%s1525 + $0x6c] sm:$0xf]
        %v1644 = vld [vmem:[%s1525 + $0x70] sm:$0xf]
        %v1645 = vld [vmem:[%s1525 + $0x74] sm:$0x1]
        %v1647 = vshrl.u32 %v1616, 16
        %v1649 = vrot.slane %v1647, 4
        %v1650 = vshll.u32 %v1616, 16
        %v1652 = vrot.slane %v1650, 5
        %v1653 = vor.u32 %v1649, %v1652
        %v1654 = vrot.slane %v1653, 4
        %v1656 = vshll.u32 %v1617, 16
        %v1658 = vrot.slane %v1656, 5
        %v1659 = vsel %vm1048, %v1654, %v1658
        %v1660 = vshrl.u32 %v1617, 16
        %v1662 = vrot.slane %v1660, 4
        %v1663 = vor.u32 %v1662, %v1658
        %v1664 = vrot.slane %v1663, 4
        %v1666 = vshll.u32 %v1618, 16
        %v1668 = vrot.slane %v1666, 5
        %v1669 = vsel %vm1048, %v1664, %v1668
        %v1671 = vshrl.u32 %v1619, 16
        %v1673 = vrot.slane %v1671, 4
        %v1674 = vshll.u32 %v1619, 16
        %v1676 = vrot.slane %v1674, 5
        %v1677 = vor.u32 %v1673, %v1676
        %v1678 = vrot.slane %v1677, 4
        %v1680 = vshll.u32 %v1620, 16
        %v1682 = vrot.slane %v1680, 5
        %v1683 = vsel %vm1048, %v1678, %v1682
        %v1684 = vshrl.u32 %v1620, 16
        %v1686 = vrot.slane %v1684, 4
        %v1687 = vor.u32 %v1686, %v1682
        %v1688 = vrot.slane %v1687, 4
        %v1690 = vshll.u32 %v1621, 16
        %v1692 = vrot.slane %v1690, 5
        %v1693 = vsel %vm1048, %v1688, %v1692
        %v1695 = vshrl.u32 %v1622, 16
        %v1697 = vrot.slane %v1695, 4
        %v1698 = vshll.u32 %v1622, 16
        %v1700 = vrot.slane %v1698, 5
        %v1701 = vor.u32 %v1697, %v1700
        %v1702 = vrot.slane %v1701, 4
        %v1704 = vshll.u32 %v1623, 16
        %v1706 = vrot.slane %v1704, 5
        %v1707 = vsel %vm1048, %v1702, %v1706
        %v1708 = vshrl.u32 %v1623, 16
        %v1710 = vrot.slane %v1708, 4
        %v1711 = vor.u32 %v1710, %v1706
        %v1712 = vrot.slane %v1711, 4
        %v1714 = vshll.u32 %v1624, 16
        %v1716 = vrot.slane %v1714, 5
        %v1717 = vsel %vm1048, %v1712, %v1716
        %v1719 = vshrl.u32 %v1625, 16
        %v1721 = vrot.slane %v1719, 4
        %v1722 = vshll.u32 %v1625, 16
        %v1724 = vrot.slane %v1722, 5
        %v1725 = vor.u32 %v1721, %v1724
        %v1726 = vrot.slane %v1725, 4
        %v1728 = vshll.u32 %v1626, 16
        %v1730 = vrot.slane %v1728, 5
        %v1731 = vsel %vm1048, %v1726, %v1730
        %v1732 = vshrl.u32 %v1626, 16
        %v1734 = vrot.slane %v1732, 4
        %v1735 = vor.u32 %v1734, %v1730
        %v1736 = vrot.slane %v1735, 4
        %v1738 = vshll.u32 %v1627, 16
        %v1740 = vrot.slane %v1738, 5
        %v1741 = vsel %vm1048, %v1736, %v1740
        %v1743 = vshrl.u32 %v1628, 16
        %v1745 = vrot.slane %v1743, 4
        %v1746 = vshll.u32 %v1628, 16
        %v1748 = vrot.slane %v1746, 5
        %v1749 = vor.u32 %v1745, %v1748
        %v1750 = vrot.slane %v1749, 4
        %v1752 = vshll.u32 %v1629, 16
        %v1754 = vrot.slane %v1752, 5
        %v1755 = vsel %vm1048, %v1750, %v1754
        %v1756 = vshrl.u32 %v1629, 16
        %v1758 = vrot.slane %v1756, 4
        %v1759 = vor.u32 %v1758, %v1754
        %v1760 = vrot.slane %v1759, 4
        %v1762 = vshll.u32 %v1630, 16
        %v1764 = vrot.slane %v1762, 5
        %v1765 = vsel %vm1048, %v1760, %v1764
        %v1767 = vshrl.u32 %v1631, 16
        %v1769 = vrot.slane %v1767, 4
        %v1770 = vshll.u32 %v1631, 16
        %v1772 = vrot.slane %v1770, 5
        %v1773 = vor.u32 %v1769, %v1772
        %v1774 = vrot.slane %v1773, 4
        %v1776 = vshll.u32 %v1632, 16
        %v1778 = vrot.slane %v1776, 5
        %v1779 = vsel %vm1048, %v1774, %v1778
        %v1780 = vshrl.u32 %v1632, 16
        %v1782 = vrot.slane %v1780, 4
        %v1783 = vor.u32 %v1782, %v1778
        %v1784 = vrot.slane %v1783, 4
        %v1786 = vshll.u32 %v1633, 16
        %v1788 = vrot.slane %v1786, 5
        %v1789 = vsel %vm1048, %v1784, %v1788
        %v1791 = vshrl.u32 %v1634, 16
        %v1793 = vrot.slane %v1791, 4
        %v1794 = vshll.u32 %v1634, 16
        %v1796 = vrot.slane %v1794, 5
        %v1797 = vor.u32 %v1793, %v1796
        %v1798 = vrot.slane %v1797, 4
        %v1800 = vshll.u32 %v1635, 16
        %v1802 = vrot.slane %v1800, 5
        %v1803 = vsel %vm1048, %v1798, %v1802
        %v1804 = vshrl.u32 %v1635, 16
        %v1806 = vrot.slane %v1804, 4
        %v1807 = vor.u32 %v1806, %v1802
        %v1808 = vrot.slane %v1807, 4
        %v1810 = vshll.u32 %v1636, 16
        %v1812 = vrot.slane %v1810, 5
        %v1813 = vsel %vm1048, %v1808, %v1812
        %v1815 = vshrl.u32 %v1637, 16
        %v1817 = vrot.slane %v1815, 4
        %v1818 = vshll.u32 %v1637, 16
        %v1820 = vrot.slane %v1818, 5
        %v1821 = vor.u32 %v1817, %v1820
        %v1822 = vrot.slane %v1821, 4
        %v1824 = vshll.u32 %v1638, 16
        %v1826 = vrot.slane %v1824, 5
        %v1827 = vsel %vm1048, %v1822, %v1826
        %v1828 = vshrl.u32 %v1638, 16
        %v1830 = vrot.slane %v1828, 4
        %v1831 = vor.u32 %v1830, %v1826
        %v1832 = vrot.slane %v1831, 4
        %v1834 = vshll.u32 %v1639, 16
        %v1836 = vrot.slane %v1834, 5
        %v1837 = vsel %vm1048, %v1832, %v1836
        %v1839 = vshrl.u32 %v1640, 16
        %v1841 = vrot.slane %v1839, 4
        %v1842 = vshll.u32 %v1640, 16
        %v1844 = vrot.slane %v1842, 5
        %v1845 = vor.u32 %v1841, %v1844
        %v1846 = vrot.slane %v1845, 4
        %v1848 = vshll.u32 %v1641, 16
        %v1850 = vrot.slane %v1848, 5
        %v1851 = vsel %vm1048, %v1846, %v1850
        %v1852 = vshrl.u32 %v1641, 16
        %v1854 = vrot.slane %v1852, 4
        %v1855 = vor.u32 %v1854, %v1850
        %v1856 = vrot.slane %v1855, 4
        %v1858 = vshll.u32 %v1642, 16
        %v1860 = vrot.slane %v1858, 5
        %v1861 = vsel %vm1048, %v1856, %v1860
        %v1863 = vshrl.u32 %v1643, 16
        %v1865 = vrot.slane %v1863, 4
        %v1866 = vshll.u32 %v1643, 16
        %v1868 = vrot.slane %v1866, 5
        %v1869 = vor.u32 %v1865, %v1868
        %v1870 = vrot.slane %v1869, 4
        %v1872 = vshll.u32 %v1644, 16
        %v1874 = vrot.slane %v1872, 5
        %v1875 = vsel %vm1048, %v1870, %v1874
        %v1876 = vshrl.u32 %v1644, 16
        %v1878 = vrot.slane %v1876, 4
        %v1879 = vor.u32 %v1878, %v1874
        %v1880 = vrot.slane %v1879, 4
        %v1882 = vshll.u32 %v1645, 16
        %v1884 = vrot.slane %v1882, 5
        %v1885 = vsel %vm1048, %v1880, %v1884
        %v1886 = vunpack.c.l.b16 %v1659
        %v1887 = vunpack.c.l.b16 %v1669
        %v1888 = vunpack.c.l.b16 %v1683
        %v1889 = vunpack.c.l.b16 %v1693
        %v1890 = vunpack.c.l.b16 %v1707
        %v1891 = vunpack.c.l.b16 %v1717
        %v1892 = vunpack.c.l.b16 %v1731
        %v1893 = vunpack.c.l.b16 %v1741
        %v1894 = vunpack.c.l.b16 %v1755
        %v1895 = vunpack.c.l.b16 %v1765
        %v1896 = vunpack.c.l.b16 %v1779
        %v1897 = vunpack.c.l.b16 %v1789
        %v1898 = vunpack.c.l.b16 %v1803
        %v1899 = vunpack.c.l.b16 %v1813
        %v1900 = vunpack.c.l.b16 %v1827
        %v1901 = vunpack.c.l.b16 %v1837
        %v1902 = vunpack.c.l.b16 %v1851
        %v1903 = vunpack.c.l.b16 %v1861
        %v1904 = vunpack.c.l.b16 %v1875
        %v1905 = vunpack.c.l.b16 %v1885
        %v1906 = vpack.c.b16 %v1887, %v1886
        %v1907 = vpack.c.b16 %v1889, %v1888
        %v1908 = vpack.c.b16 %v1891, %v1890
        %v1909 = vpack.c.b16 %v1893, %v1892
        %v1910 = vpack.c.b16 %v1895, %v1894
        %v1911 = vpack.c.b16 %v1897, %v1896
        %v1912 = vpack.c.b16 %v1899, %v1898
        %v1913 = vpack.c.b16 %v1901, %v1900
        %v1914 = vpack.c.b16 %v1903, %v1902
        %v1915 = vpack.c.b16 %v1905, %v1904
        %1926 = vst [vmem:[#allocation3 + $0x20] sm:$0xff] %v1906
        %1927 = vst [vmem:[#allocation3 + $0x68] sm:$0xff] %v1907
        %1928 = vst [vmem:[#allocation3 + $0xb0] sm:$0xff] %v1908
        %1929 = vst [vmem:[#allocation3 + $0xf8] sm:$0xff] %v1909
        %1930 = vst [vmem:[#allocation3 + $0x140] sm:$0xff] %v1910
        %1931 = vst [vmem:[#allocation3 + $0x188] sm:$0xff] %v1911
        %1932 = vst [vmem:[#allocation3 + $0x1d0] sm:$0xff] %v1912
        %1933 = vst [vmem:[#allocation3 + $0x218] sm:$0xff] %v1913
        %1934 = vst [vmem:[#allocation3 + $0x260] sm:$0xff] %v1914
        %1935 = vst [vmem:[#allocation3 + $0x2a8] sm:$0xff] %v1915
        %v1936 = vld [vmem:[%s1525] sm:$0xe]
        %v1937 = vld [vmem:[%s1525 + $0x4] sm:$0xf]
        %v1938 = vld [vmem:[%s1525 + $0x8] sm:$0x1]
        %v1939 = vld [vmem:[%s1525 + $0xc] sm:$0xe]
        %v1940 = vld [vmem:[%s1525 + $0x10] sm:$0xf]
        %v1941 = vld [vmem:[%s1525 + $0x14] sm:$0x1]
        %v1942 = vld [vmem:[%s1525 + $0x18] sm:$0xe]
        %v1943 = vld [vmem:[%s1525 + $0x1c] sm:$0xf]
        %v1944 = vld [vmem:[%s1525 + $0x20] sm:$0x1]
        %v1945 = vld [vmem:[%s1525 + $0x24] sm:$0xe]
        %v1946 = vld [vmem:[%s1525 + $0x28] sm:$0xf]
        %v1947 = vld [vmem:[%s1525 + $0x2c] sm:$0x1]
        %v1948 = vld [vmem:[%s1525 + $0x30] sm:$0xe]
        %v1949 = vld [vmem:[%s1525 + $0x34] sm:$0xf]
        %v1950 = vld [vmem:[%s1525 + $0x38] sm:$0x1]
        %v1951 = vld [vmem:[%s1525 + $0x3c] sm:$0xe]
        %v1952 = vld [vmem:[%s1525 + $0x40] sm:$0xf]
        %v1953 = vld [vmem:[%s1525 + $0x44] sm:$0x1]
        %v1954 = vld [vmem:[%s1525 + $0x48] sm:$0xe]
        %v1955 = vld [vmem:[%s1525 + $0x4c] sm:$0xf]
        %v1956 = vld [vmem:[%s1525 + $0x50] sm:$0x1]
        %v1957 = vld [vmem:[%s1525 + $0x54] sm:$0xe]
        %v1958 = vld [vmem:[%s1525 + $0x58] sm:$0xf]
        %v1959 = vld [vmem:[%s1525 + $0x5c] sm:$0x1]
        %v1960 = vld [vmem:[%s1525 + $0x60] sm:$0xe]
        %v1961 = vld [vmem:[%s1525 + $0x64] sm:$0xf]
        %v1962 = vld [vmem:[%s1525 + $0x68] sm:$0x1]
        %v1963 = vld [vmem:[%s1525 + $0x6c] sm:$0xe]
        %v1964 = vld [vmem:[%s1525 + $0x70] sm:$0xf]
        %v1965 = vld [vmem:[%s1525 + $0x74] sm:$0x1]
        %v1996 = vrot.slane %v1936, 5
        %v1997 = vrot.slane %v1996, 4
        %v1998 = vrot.slane %v1937, 5
        %v1999 = vsel %vm1401, %v1997, %v1998
        %v2000 = vrot.slane %v1998, 4
        %v2001 = vrot.slane %v1938, 5
        %v2002 = vsel %vm1401, %v2000, %v2001
        %v2003 = vrot.slane %v1939, 5
        %v2004 = vrot.slane %v2003, 4
        %v2005 = vrot.slane %v1940, 5
        %v2006 = vsel %vm1401, %v2004, %v2005
        %v2007 = vrot.slane %v2005, 4
        %v2008 = vrot.slane %v1941, 5
        %v2009 = vsel %vm1401, %v2007, %v2008
        %v2010 = vrot.slane %v1942, 5
        %v2011 = vrot.slane %v2010, 4
        %v2012 = vrot.slane %v1943, 5
        %v2013 = vsel %vm1401, %v2011, %v2012
        %v2014 = vrot.slane %v2012, 4
        %v2015 = vrot.slane %v1944, 5
        %v2016 = vsel %vm1401, %v2014, %v2015
        %v2017 = vrot.slane %v1945, 5
        %v2018 = vrot.slane %v2017, 4
        %v2019 = vrot.slane %v1946, 5
        %v2020 = vsel %vm1401, %v2018, %v2019
        %v2021 = vrot.slane %v2019, 4
        %v2022 = vrot.slane %v1947, 5
        %v2023 = vsel %vm1401, %v2021, %v2022
        %v2024 = vrot.slane %v1948, 5
        %v2025 = vrot.slane %v2024, 4
        %v2026 = vrot.slane %v1949, 5
        %v2027 = vsel %vm1401, %v2025, %v2026
        %v2028 = vrot.slane %v2026, 4
        %v2029 = vrot.slane %v1950, 5
        %v2030 = vsel %vm1401, %v2028, %v2029
        %v2031 = vrot.slane %v1951, 5
        %v2032 = vrot.slane %v2031, 4
        %v2033 = vrot.slane %v1952, 5
        %v2034 = vsel %vm1401, %v2032, %v2033
        %v2035 = vrot.slane %v2033, 4
        %v2036 = vrot.slane %v1953, 5
        %v2037 = vsel %vm1401, %v2035, %v2036
        %v2038 = vrot.slane %v1954, 5
        %v2039 = vrot.slane %v2038, 4
        %v2040 = vrot.slane %v1955, 5
        %v2041 = vsel %vm1401, %v2039, %v2040
        %v2042 = vrot.slane %v2040, 4
        %v2043 = vrot.slane %v1956, 5
        %v2044 = vsel %vm1401, %v2042, %v2043
        %v2045 = vrot.slane %v1957, 5
        %v2046 = vrot.slane %v2045, 4
        %v2047 = vrot.slane %v1958, 5
        %v2048 = vsel %vm1401, %v2046, %v2047
        %v2049 = vrot.slane %v2047, 4
        %v2050 = vrot.slane %v1959, 5
        %v2051 = vsel %vm1401, %v2049, %v2050
        %v2052 = vrot.slane %v1960, 5
        %v2053 = vrot.slane %v2052, 4
        %v2054 = vrot.slane %v1961, 5
        %v2055 = vsel %vm1401, %v2053, %v2054
        %v2056 = vrot.slane %v2054, 4
        %v2057 = vrot.slane %v1962, 5
        %v2058 = vsel %vm1401, %v2056, %v2057
        %v2059 = vrot.slane %v1963, 5
        %v2060 = vrot.slane %v2059, 4
        %v2061 = vrot.slane %v1964, 5
        %v2062 = vsel %vm1401, %v2060, %v2061
        %v2063 = vrot.slane %v2061, 4
        %v2064 = vrot.slane %v1965, 5
        %v2065 = vsel %vm1401, %v2063, %v2064
        %v2066 = vunpack.c.l.b16 %v1999
        %v2067 = vunpack.c.l.b16 %v2002
        %v2068 = vunpack.c.l.b16 %v2006
        %v2069 = vunpack.c.l.b16 %v2009
        %v2070 = vunpack.c.l.b16 %v2013
        %v2071 = vunpack.c.l.b16 %v2016
        %v2072 = vunpack.c.l.b16 %v2020
        %v2073 = vunpack.c.l.b16 %v2023
        %v2074 = vunpack.c.l.b16 %v2027
        %v2075 = vunpack.c.l.b16 %v2030
        %v2076 = vunpack.c.l.b16 %v2034
        %v2077 = vunpack.c.l.b16 %v2037
        %v2078 = vunpack.c.l.b16 %v2041
        %v2079 = vunpack.c.l.b16 %v2044
        %v2080 = vunpack.c.l.b16 %v2048
        %v2081 = vunpack.c.l.b16 %v2051
        %v2082 = vunpack.c.l.b16 %v2055
        %v2083 = vunpack.c.l.b16 %v2058
        %v2084 = vunpack.c.l.b16 %v2062
        %v2085 = vunpack.c.l.b16 %v2065
        %v2086 = vpack.c.b16 %v2067, %v2066
        %v2087 = vpack.c.b16 %v2069, %v2068
        %v2088 = vpack.c.b16 %v2071, %v2070
        %v2089 = vpack.c.b16 %v2073, %v2072
        %v2090 = vpack.c.b16 %v2075, %v2074
        %v2091 = vpack.c.b16 %v2077, %v2076
        %v2092 = vpack.c.b16 %v2079, %v2078
        %v2093 = vpack.c.b16 %v2081, %v2080
        %v2094 = vpack.c.b16 %v2083, %v2082
        %v2095 = vpack.c.b16 %v2085, %v2084
        %2106 = vst [vmem:[#allocation3 + $0x28] sm:$0xff] %v2086
        %2107 = vst [vmem:[#allocation3 + $0x70] sm:$0xff] %v2087
        %2108 = vst [vmem:[#allocation3 + $0xb8] sm:$0xff] %v2088
        %2109 = vst [vmem:[#allocation3 + $0x100] sm:$0xff] %v2089
        %2110 = vst [vmem:[#allocation3 + $0x148] sm:$0xff] %v2090
        %2111 = vst [vmem:[#allocation3 + $0x190] sm:$0xff] %v2091
        %2112 = vst [vmem:[#allocation3 + $0x1d8] sm:$0xff] %v2092
        %2113 = vst [vmem:[#allocation3 + $0x220] sm:$0xff] %v2093
        %2114 = vst [vmem:[#allocation3 + $0x268] sm:$0xff] %v2094
        %2115 = vst [vmem:[#allocation3 + $0x2b0] sm:$0xff] %v2095
        %s2116 = sadd.s32 %s922, 2
        %s2117 = smul.u32 %s2116, 3
        %s2118 = smul.addr %s2117, 4
        %s2119 = scalar_lea.vmem [#allocation2], %s2118
        %v2120 = vld [vmem:[%s2119] sm:$0xf]
        %v2121 = vld [vmem:[%s2119 + $0x4] sm:$0xf]
        %v2122 = vld [vmem:[%s2119 + $0xc] sm:$0xf]
        %v2123 = vld [vmem:[%s2119 + $0x10] sm:$0xf]
        %v2124 = vld [vmem:[%s2119 + $0x18] sm:$0xf]
        %v2125 = vld [vmem:[%s2119 + $0x1c] sm:$0xf]
        %v2126 = vld [vmem:[%s2119 + $0x24] sm:$0xf]
        %v2127 = vld [vmem:[%s2119 + $0x28] sm:$0xf]
        %v2128 = vld [vmem:[%s2119 + $0x30] sm:$0xf]
        %v2129 = vld [vmem:[%s2119 + $0x34] sm:$0xf]
        %v2130 = vld [vmem:[%s2119 + $0x3c] sm:$0xf]
        %v2131 = vld [vmem:[%s2119 + $0x40] sm:$0xf]
        %v2132 = vld [vmem:[%s2119 + $0x48] sm:$0xf]
        %v2133 = vld [vmem:[%s2119 + $0x4c] sm:$0xf]
        %v2134 = vld [vmem:[%s2119 + $0x54] sm:$0xf]
        %v2135 = vld [vmem:[%s2119 + $0x58] sm:$0xf]
        %v2136 = vld [vmem:[%s2119 + $0x60] sm:$0xf]
        %v2137 = vld [vmem:[%s2119 + $0x64] sm:$0xf]
        %v2138 = vld [vmem:[%s2119 + $0x6c] sm:$0xf]
        %v2139 = vld [vmem:[%s2119 + $0x70] sm:$0xf]
        %v2160 = vunpack.c.l.b16 %v2120
        %v2161 = vunpack.c.l.b16 %v2121
        %v2162 = vunpack.c.l.b16 %v2122
        %v2163 = vunpack.c.l.b16 %v2123
        %v2164 = vunpack.c.l.b16 %v2124
        %v2165 = vunpack.c.l.b16 %v2125
        %v2166 = vunpack.c.l.b16 %v2126
        %v2167 = vunpack.c.l.b16 %v2127
        %v2168 = vunpack.c.l.b16 %v2128
        %v2169 = vunpack.c.l.b16 %v2129
        %v2170 = vunpack.c.l.b16 %v2130
        %v2171 = vunpack.c.l.b16 %v2131
        %v2172 = vunpack.c.l.b16 %v2132
        %v2173 = vunpack.c.l.b16 %v2133
        %v2174 = vunpack.c.l.b16 %v2134
        %v2175 = vunpack.c.l.b16 %v2135
        %v2176 = vunpack.c.l.b16 %v2136
        %v2177 = vunpack.c.l.b16 %v2137
        %v2178 = vunpack.c.l.b16 %v2138
        %v2179 = vunpack.c.l.b16 %v2139
        %v2180 = vpack.c.b16 %v2161, %v2160
        %v2181 = vpack.c.b16 %v2163, %v2162
        %v2182 = vpack.c.b16 %v2165, %v2164
        %v2183 = vpack.c.b16 %v2167, %v2166
        %v2184 = vpack.c.b16 %v2169, %v2168
        %v2185 = vpack.c.b16 %v2171, %v2170
        %v2186 = vpack.c.b16 %v2173, %v2172
        %v2187 = vpack.c.b16 %v2175, %v2174
        %v2188 = vpack.c.b16 %v2177, %v2176
        %v2189 = vpack.c.b16 %v2179, %v2178
        %2200 = vst [vmem:[#allocation3 + $0x30] sm:$0xff] %v2180
        %2201 = vst [vmem:[#allocation3 + $0x78] sm:$0xff] %v2181
        %2202 = vst [vmem:[#allocation3 + $0xc0] sm:$0xff] %v2182
        %2203 = vst [vmem:[#allocation3 + $0x108] sm:$0xff] %v2183
        %2204 = vst [vmem:[#allocation3 + $0x150] sm:$0xff] %v2184
        %2205 = vst [vmem:[#allocation3 + $0x198] sm:$0xff] %v2185
        %2206 = vst [vmem:[#allocation3 + $0x1e0] sm:$0xff] %v2186
        %2207 = vst [vmem:[#allocation3 + $0x228] sm:$0xff] %v2187
        %2208 = vst [vmem:[#allocation3 + $0x270] sm:$0xff] %v2188
        %2209 = vst [vmem:[#allocation3 + $0x2b8] sm:$0xff] %v2189
        %v2210 = vld [vmem:[%s2119] sm:$0xf]
        %v2211 = vld [vmem:[%s2119 + $0x4] sm:$0xf]
        %v2212 = vld [vmem:[%s2119 + $0x8] sm:$0x1]
        %v2213 = vld [vmem:[%s2119 + $0xc] sm:$0xf]
        %v2214 = vld [vmem:[%s2119 + $0x10] sm:$0xf]
        %v2215 = vld [vmem:[%s2119 + $0x14] sm:$0x1]
        %v2216 = vld [vmem:[%s2119 + $0x18] sm:$0xf]
        %v2217 = vld [vmem:[%s2119 + $0x1c] sm:$0xf]
        %v2218 = vld [vmem:[%s2119 + $0x20] sm:$0x1]
        %v2219 = vld [vmem:[%s2119 + $0x24] sm:$0xf]
        %v2220 = vld [vmem:[%s2119 + $0x28] sm:$0xf]
        %v2221 = vld [vmem:[%s2119 + $0x2c] sm:$0x1]
        %v2222 = vld [vmem:[%s2119 + $0x30] sm:$0xf]
        %v2223 = vld [vmem:[%s2119 + $0x34] sm:$0xf]
        %v2224 = vld [vmem:[%s2119 + $0x38] sm:$0x1]
        %v2225 = vld [vmem:[%s2119 + $0x3c] sm:$0xf]
        %v2226 = vld [vmem:[%s2119 + $0x40] sm:$0xf]
        %v2227 = vld [vmem:[%s2119 + $0x44] sm:$0x1]
        %v2228 = vld [vmem:[%s2119 + $0x48] sm:$0xf]
        %v2229 = vld [vmem:[%s2119 + $0x4c] sm:$0xf]
        %v2230 = vld [vmem:[%s2119 + $0x50] sm:$0x1]
        %v2231 = vld [vmem:[%s2119 + $0x54] sm:$0xf]
        %v2232 = vld [vmem:[%s2119 + $0x58] sm:$0xf]
        %v2233 = vld [vmem:[%s2119 + $0x5c] sm:$0x1]
        %v2234 = vld [vmem:[%s2119 + $0x60] sm:$0xf]
        %v2235 = vld [vmem:[%s2119 + $0x64] sm:$0xf]
        %v2236 = vld [vmem:[%s2119 + $0x68] sm:$0x1]
        %v2237 = vld [vmem:[%s2119 + $0x6c] sm:$0xf]
        %v2238 = vld [vmem:[%s2119 + $0x70] sm:$0xf]
        %v2239 = vld [vmem:[%s2119 + $0x74] sm:$0x1]
        %v2241 = vshrl.u32 %v2210, 16
        %v2243 = vrot.slane %v2241, 4
        %v2244 = vshll.u32 %v2210, 16
        %v2246 = vrot.slane %v2244, 5
        %v2247 = vor.u32 %v2243, %v2246
        %v2248 = vrot.slane %v2247, 4
        %v2250 = vshll.u32 %v2211, 16
        %v2252 = vrot.slane %v2250, 5
        %v2253 = vsel %vm1048, %v2248, %v2252
        %v2254 = vshrl.u32 %v2211, 16
        %v2256 = vrot.slane %v2254, 4
        %v2257 = vor.u32 %v2256, %v2252
        %v2258 = vrot.slane %v2257, 4
        %v2260 = vshll.u32 %v2212, 16
        %v2262 = vrot.slane %v2260, 5
        %v2263 = vsel %vm1048, %v2258, %v2262
        %v2265 = vshrl.u32 %v2213, 16
        %v2267 = vrot.slane %v2265, 4
        %v2268 = vshll.u32 %v2213, 16
        %v2270 = vrot.slane %v2268, 5
        %v2271 = vor.u32 %v2267, %v2270
        %v2272 = vrot.slane %v2271, 4
        %v2274 = vshll.u32 %v2214, 16
        %v2276 = vrot.slane %v2274, 5
        %v2277 = vsel %vm1048, %v2272, %v2276
        %v2278 = vshrl.u32 %v2214, 16
        %v2280 = vrot.slane %v2278, 4
        %v2281 = vor.u32 %v2280, %v2276
        %v2282 = vrot.slane %v2281, 4
        %v2284 = vshll.u32 %v2215, 16
        %v2286 = vrot.slane %v2284, 5
        %v2287 = vsel %vm1048, %v2282, %v2286
        %v2289 = vshrl.u32 %v2216, 16
        %v2291 = vrot.slane %v2289, 4
        %v2292 = vshll.u32 %v2216, 16
        %v2294 = vrot.slane %v2292, 5
        %v2295 = vor.u32 %v2291, %v2294
        %v2296 = vrot.slane %v2295, 4
        %v2298 = vshll.u32 %v2217, 16
        %v2300 = vrot.slane %v2298, 5
        %v2301 = vsel %vm1048, %v2296, %v2300
        %v2302 = vshrl.u32 %v2217, 16
        %v2304 = vrot.slane %v2302, 4
        %v2305 = vor.u32 %v2304, %v2300
        %v2306 = vrot.slane %v2305, 4
        %v2308 = vshll.u32 %v2218, 16
        %v2310 = vrot.slane %v2308, 5
        %v2311 = vsel %vm1048, %v2306, %v2310
        %v2313 = vshrl.u32 %v2219, 16
        %v2315 = vrot.slane %v2313, 4
        %v2316 = vshll.u32 %v2219, 16
        %v2318 = vrot.slane %v2316, 5
        %v2319 = vor.u32 %v2315, %v2318
        %v2320 = vrot.slane %v2319, 4
        %v2322 = vshll.u32 %v2220, 16
        %v2324 = vrot.slane %v2322, 5
        %v2325 = vsel %vm1048, %v2320, %v2324
        %v2326 = vshrl.u32 %v2220, 16
        %v2328 = vrot.slane %v2326, 4
        %v2329 = vor.u32 %v2328, %v2324
        %v2330 = vrot.slane %v2329, 4
        %v2332 = vshll.u32 %v2221, 16
        %v2334 = vrot.slane %v2332, 5
        %v2335 = vsel %vm1048, %v2330, %v2334
        %v2337 = vshrl.u32 %v2222, 16
        %v2339 = vrot.slane %v2337, 4
        %v2340 = vshll.u32 %v2222, 16
        %v2342 = vrot.slane %v2340, 5
        %v2343 = vor.u32 %v2339, %v2342
        %v2344 = vrot.slane %v2343, 4
        %v2346 = vshll.u32 %v2223, 16
        %v2348 = vrot.slane %v2346, 5
        %v2349 = vsel %vm1048, %v2344, %v2348
        %v2350 = vshrl.u32 %v2223, 16
        %v2352 = vrot.slane %v2350, 4
        %v2353 = vor.u32 %v2352, %v2348
        %v2354 = vrot.slane %v2353, 4
        %v2356 = vshll.u32 %v2224, 16
        %v2358 = vrot.slane %v2356, 5
        %v2359 = vsel %vm1048, %v2354, %v2358
        %v2361 = vshrl.u32 %v2225, 16
        %v2363 = vrot.slane %v2361, 4
        %v2364 = vshll.u32 %v2225, 16
        %v2366 = vrot.slane %v2364, 5
        %v2367 = vor.u32 %v2363, %v2366
        %v2368 = vrot.slane %v2367, 4
        %v2370 = vshll.u32 %v2226, 16
        %v2372 = vrot.slane %v2370, 5
        %v2373 = vsel %vm1048, %v2368, %v2372
        %v2374 = vshrl.u32 %v2226, 16
        %v2376 = vrot.slane %v2374, 4
        %v2377 = vor.u32 %v2376, %v2372
        %v2378 = vrot.slane %v2377, 4
        %v2380 = vshll.u32 %v2227, 16
        %v2382 = vrot.slane %v2380, 5
        %v2383 = vsel %vm1048, %v2378, %v2382
        %v2385 = vshrl.u32 %v2228, 16
        %v2387 = vrot.slane %v2385, 4
        %v2388 = vshll.u32 %v2228, 16
        %v2390 = vrot.slane %v2388, 5
        %v2391 = vor.u32 %v2387, %v2390
        %v2392 = vrot.slane %v2391, 4
        %v2394 = vshll.u32 %v2229, 16
        %v2396 = vrot.slane %v2394, 5
        %v2397 = vsel %vm1048, %v2392, %v2396
        %v2398 = vshrl.u32 %v2229, 16
        %v2400 = vrot.slane %v2398, 4
        %v2401 = vor.u32 %v2400, %v2396
        %v2402 = vrot.slane %v2401, 4
        %v2404 = vshll.u32 %v2230, 16
        %v2406 = vrot.slane %v2404, 5
        %v2407 = vsel %vm1048, %v2402, %v2406
        %v2409 = vshrl.u32 %v2231, 16
        %v2411 = vrot.slane %v2409, 4
        %v2412 = vshll.u32 %v2231, 16
        %v2414 = vrot.slane %v2412, 5
        %v2415 = vor.u32 %v2411, %v2414
        %v2416 = vrot.slane %v2415, 4
        %v2418 = vshll.u32 %v2232, 16
        %v2420 = vrot.slane %v2418, 5
        %v2421 = vsel %vm1048, %v2416, %v2420
        %v2422 = vshrl.u32 %v2232, 16
        %v2424 = vrot.slane %v2422, 4
        %v2425 = vor.u32 %v2424, %v2420
        %v2426 = vrot.slane %v2425, 4
        %v2428 = vshll.u32 %v2233, 16
        %v2430 = vrot.slane %v2428, 5
        %v2431 = vsel %vm1048, %v2426, %v2430
        %v2433 = vshrl.u32 %v2234, 16
        %v2435 = vrot.slane %v2433, 4
        %v2436 = vshll.u32 %v2234, 16
        %v2438 = vrot.slane %v2436, 5
        %v2439 = vor.u32 %v2435, %v2438
        %v2440 = vrot.slane %v2439, 4
        %v2442 = vshll.u32 %v2235, 16
        %v2444 = vrot.slane %v2442, 5
        %v2445 = vsel %vm1048, %v2440, %v2444
        %v2446 = vshrl.u32 %v2235, 16
        %v2448 = vrot.slane %v2446, 4
        %v2449 = vor.u32 %v2448, %v2444
        %v2450 = vrot.slane %v2449, 4
        %v2452 = vshll.u32 %v2236, 16
        %v2454 = vrot.slane %v2452, 5
        %v2455 = vsel %vm1048, %v2450, %v2454
        %v2457 = vshrl.u32 %v2237, 16
        %v2459 = vrot.slane %v2457, 4
        %v2460 = vshll.u32 %v2237, 16
        %v2462 = vrot.slane %v2460, 5
        %v2463 = vor.u32 %v2459, %v2462
        %v2464 = vrot.slane %v2463, 4
        %v2466 = vshll.u32 %v2238, 16
        %v2468 = vrot.slane %v2466, 5
        %v2469 = vsel %vm1048, %v2464, %v2468
        %v2470 = vshrl.u32 %v2238, 16
        %v2472 = vrot.slane %v2470, 4
        %v2473 = vor.u32 %v2472, %v2468
        %v2474 = vrot.slane %v2473, 4
        %v2476 = vshll.u32 %v2239, 16
        %v2478 = vrot.slane %v2476, 5
        %v2479 = vsel %vm1048, %v2474, %v2478
        %v2480 = vunpack.c.l.b16 %v2253
        %v2481 = vunpack.c.l.b16 %v2263
        %v2482 = vunpack.c.l.b16 %v2277
        %v2483 = vunpack.c.l.b16 %v2287
        %v2484 = vunpack.c.l.b16 %v2301
        %v2485 = vunpack.c.l.b16 %v2311
        %v2486 = vunpack.c.l.b16 %v2325
        %v2487 = vunpack.c.l.b16 %v2335
        %v2488 = vunpack.c.l.b16 %v2349
        %v2489 = vunpack.c.l.b16 %v2359
        %v2490 = vunpack.c.l.b16 %v2373
        %v2491 = vunpack.c.l.b16 %v2383
        %v2492 = vunpack.c.l.b16 %v2397
        %v2493 = vunpack.c.l.b16 %v2407
        %v2494 = vunpack.c.l.b16 %v2421
        %v2495 = vunpack.c.l.b16 %v2431
        %v2496 = vunpack.c.l.b16 %v2445
        %v2497 = vunpack.c.l.b16 %v2455
        %v2498 = vunpack.c.l.b16 %v2469
        %v2499 = vunpack.c.l.b16 %v2479
        %v2500 = vpack.c.b16 %v2481, %v2480
        %v2501 = vpack.c.b16 %v2483, %v2482
        %v2502 = vpack.c.b16 %v2485, %v2484
        %v2503 = vpack.c.b16 %v2487, %v2486
        %v2504 = vpack.c.b16 %v2489, %v2488
        %v2505 = vpack.c.b16 %v2491, %v2490
        %v2506 = vpack.c.b16 %v2493, %v2492
        %v2507 = vpack.c.b16 %v2495, %v2494
        %v2508 = vpack.c.b16 %v2497, %v2496
        %v2509 = vpack.c.b16 %v2499, %v2498
        %2520 = vst [vmem:[#allocation3 + $0x38] sm:$0xff] %v2500
        %2521 = vst [vmem:[#allocation3 + $0x80] sm:$0xff] %v2501
        %2522 = vst [vmem:[#allocation3 + $0xc8] sm:$0xff] %v2502
        %2523 = vst [vmem:[#allocation3 + $0x110] sm:$0xff] %v2503
        %2524 = vst [vmem:[#allocation3 + $0x158] sm:$0xff] %v2504
        %2525 = vst [vmem:[#allocation3 + $0x1a0] sm:$0xff] %v2505
        %2526 = vst [vmem:[#allocation3 + $0x1e8] sm:$0xff] %v2506
        %2527 = vst [vmem:[#allocation3 + $0x230] sm:$0xff] %v2507
        %2528 = vst [vmem:[#allocation3 + $0x278] sm:$0xff] %v2508
        %2529 = vst [vmem:[#allocation3 + $0x2c0] sm:$0xff] %v2509
        %v2530 = vld [vmem:[%s2119] sm:$0xe]
        %v2531 = vld [vmem:[%s2119 + $0x4] sm:$0xf]
        %v2532 = vld [vmem:[%s2119 + $0x8] sm:$0x1]
        %v2533 = vld [vmem:[%s2119 + $0xc] sm:$0xe]
        %v2534 = vld [vmem:[%s2119 + $0x10] sm:$0xf]
        %v2535 = vld [vmem:[%s2119 + $0x14] sm:$0x1]
        %v2536 = vld [vmem:[%s2119 + $0x18] sm:$0xe]
        %v2537 = vld [vmem:[%s2119 + $0x1c] sm:$0xf]
        %v2538 = vld [vmem:[%s2119 + $0x20] sm:$0x1]
        %v2539 = vld [vmem:[%s2119 + $0x24] sm:$0xe]
        %v2540 = vld [vmem:[%s2119 + $0x28] sm:$0xf]
        %v2541 = vld [vmem:[%s2119 + $0x2c] sm:$0x1]
        %v2542 = vld [vmem:[%s2119 + $0x30] sm:$0xe]
        %v2543 = vld [vmem:[%s2119 + $0x34] sm:$0xf]
        %v2544 = vld [vmem:[%s2119 + $0x38] sm:$0x1]
        %v2545 = vld [vmem:[%s2119 + $0x3c] sm:$0xe]
        %v2546 = vld [vmem:[%s2119 + $0x40] sm:$0xf]
        %v2547 = vld [vmem:[%s2119 + $0x44] sm:$0x1]
        %v2548 = vld [vmem:[%s2119 + $0x48] sm:$0xe]
        %v2549 = vld [vmem:[%s2119 + $0x4c] sm:$0xf]
        %v2550 = vld [vmem:[%s2119 + $0x50] sm:$0x1]
        %v2551 = vld [vmem:[%s2119 + $0x54] sm:$0xe]
        %v2552 = vld [vmem:[%s2119 + $0x58] sm:$0xf]
        %v2553 = vld [vmem:[%s2119 + $0x5c] sm:$0x1]
        %v2554 = vld [vmem:[%s2119 + $0x60] sm:$0xe]
        %v2555 = vld [vmem:[%s2119 + $0x64] sm:$0xf]
        %v2556 = vld [vmem:[%s2119 + $0x68] sm:$0x1]
        %v2557 = vld [vmem:[%s2119 + $0x6c] sm:$0xe]
        %v2558 = vld [vmem:[%s2119 + $0x70] sm:$0xf]
        %v2559 = vld [vmem:[%s2119 + $0x74] sm:$0x1]
        %v2590 = vrot.slane %v2530, 5
        %v2591 = vrot.slane %v2590, 4
        %v2592 = vrot.slane %v2531, 5
        %v2593 = vsel %vm1401, %v2591, %v2592
        %v2594 = vrot.slane %v2592, 4
        %v2595 = vrot.slane %v2532, 5
        %v2596 = vsel %vm1401, %v2594, %v2595
        %v2597 = vrot.slane %v2533, 5
        %v2598 = vrot.slane %v2597, 4
        %v2599 = vrot.slane %v2534, 5
        %v2600 = vsel %vm1401, %v2598, %v2599
        %v2601 = vrot.slane %v2599, 4
        %v2602 = vrot.slane %v2535, 5
        %v2603 = vsel %vm1401, %v2601, %v2602
        %v2604 = vrot.slane %v2536, 5
        %v2605 = vrot.slane %v2604, 4
        %v2606 = vrot.slane %v2537, 5
        %v2607 = vsel %vm1401, %v2605, %v2606
        %v2608 = vrot.slane %v2606, 4
        %v2609 = vrot.slane %v2538, 5
        %v2610 = vsel %vm1401, %v2608, %v2609
        %v2611 = vrot.slane %v2539, 5
        %v2612 = vrot.slane %v2611, 4
        %v2613 = vrot.slane %v2540, 5
        %v2614 = vsel %vm1401, %v2612, %v2613
        %v2615 = vrot.slane %v2613, 4
        %v2616 = vrot.slane %v2541, 5
        %v2617 = vsel %vm1401, %v2615, %v2616
        %v2618 = vrot.slane %v2542, 5
        %v2619 = vrot.slane %v2618, 4
        %v2620 = vrot.slane %v2543, 5
        %v2621 = vsel %vm1401, %v2619, %v2620
        %v2622 = vrot.slane %v2620, 4
        %v2623 = vrot.slane %v2544, 5
        %v2624 = vsel %vm1401, %v2622, %v2623
        %v2625 = vrot.slane %v2545, 5
        %v2626 = vrot.slane %v2625, 4
        %v2627 = vrot.slane %v2546, 5
        %v2628 = vsel %vm1401, %v2626, %v2627
        %v2629 = vrot.slane %v2627, 4
        %v2630 = vrot.slane %v2547, 5
        %v2631 = vsel %vm1401, %v2629, %v2630
        %v2632 = vrot.slane %v2548, 5
        %v2633 = vrot.slane %v2632, 4
        %v2634 = vrot.slane %v2549, 5
        %v2635 = vsel %vm1401, %v2633, %v2634
        %v2636 = vrot.slane %v2634, 4
        %v2637 = vrot.slane %v2550, 5
        %v2638 = vsel %vm1401, %v2636, %v2637
        %v2639 = vrot.slane %v2551, 5
        %v2640 = vrot.slane %v2639, 4
        %v2641 = vrot.slane %v2552, 5
        %v2642 = vsel %vm1401, %v2640, %v2641
        %v2643 = vrot.slane %v2641, 4
        %v2644 = vrot.slane %v2553, 5
        %v2645 = vsel %vm1401, %v2643, %v2644
        %v2646 = vrot.slane %v2554, 5
        %v2647 = vrot.slane %v2646, 4
        %v2648 = vrot.slane %v2555, 5
        %v2649 = vsel %vm1401, %v2647, %v2648
        %v2650 = vrot.slane %v2648, 4
        %v2651 = vrot.slane %v2556, 5
        %v2652 = vsel %vm1401, %v2650, %v2651
        %v2653 = vrot.slane %v2557, 5
        %v2654 = vrot.slane %v2653, 4
        %v2655 = vrot.slane %v2558, 5
        %v2656 = vsel %vm1401, %v2654, %v2655
        %v2657 = vrot.slane %v2655, 4
        %v2658 = vrot.slane %v2559, 5
        %v2659 = vsel %vm1401, %v2657, %v2658
        %v2660 = vunpack.c.l.b16 %v2593
        %v2661 = vunpack.c.l.b16 %v2596
        %v2662 = vunpack.c.l.b16 %v2600
        %v2663 = vunpack.c.l.b16 %v2603
        %v2664 = vunpack.c.l.b16 %v2607
        %v2665 = vunpack.c.l.b16 %v2610
        %v2666 = vunpack.c.l.b16 %v2614
        %v2667 = vunpack.c.l.b16 %v2617
        %v2668 = vunpack.c.l.b16 %v2621
        %v2669 = vunpack.c.l.b16 %v2624
        %v2670 = vunpack.c.l.b16 %v2628
        %v2671 = vunpack.c.l.b16 %v2631
        %v2672 = vunpack.c.l.b16 %v2635
        %v2673 = vunpack.c.l.b16 %v2638
        %v2674 = vunpack.c.l.b16 %v2642
        %v2675 = vunpack.c.l.b16 %v2645
        %v2676 = vunpack.c.l.b16 %v2649
        %v2677 = vunpack.c.l.b16 %v2652
        %v2678 = vunpack.c.l.b16 %v2656
        %v2679 = vunpack.c.l.b16 %v2659
        %v2680 = vpack.c.b16 %v2661, %v2660
        %v2681 = vpack.c.b16 %v2663, %v2662
        %v2682 = vpack.c.b16 %v2665, %v2664
        %v2683 = vpack.c.b16 %v2667, %v2666
        %v2684 = vpack.c.b16 %v2669, %v2668
        %v2685 = vpack.c.b16 %v2671, %v2670
        %v2686 = vpack.c.b16 %v2673, %v2672
        %v2687 = vpack.c.b16 %v2675, %v2674
        %v2688 = vpack.c.b16 %v2677, %v2676
        %v2689 = vpack.c.b16 %v2679, %v2678
        %2700 = vst [vmem:[#allocation3 + $0x40] sm:$0xff] %v2680
        %2701 = vst [vmem:[#allocation3 + $0x88] sm:$0xff] %v2681
        %2702 = vst [vmem:[#allocation3 + $0xd0] sm:$0xff] %v2682
        %2703 = vst [vmem:[#allocation3 + $0x118] sm:$0xff] %v2683
        %2704 = vst [vmem:[#allocation3 + $0x160] sm:$0xff] %v2684
        %2705 = vst [vmem:[#allocation3 + $0x1a8] sm:$0xff] %v2685
        %2706 = vst [vmem:[#allocation3 + $0x1f0] sm:$0xff] %v2686
        %2707 = vst [vmem:[#allocation3 + $0x238] sm:$0xff] %v2687
        %2708 = vst [vmem:[#allocation3 + $0x280] sm:$0xff] %v2688
        %2709 = vst [vmem:[#allocation3 + $0x2c8] sm:$0xff] %v2689
        %v2710 = vld [vmem:[#allocation3] sm:$0xff]
        %v2711 = vld [vmem:[#allocation3 + $0x8] sm:$0xff]
        %v2712 = vld [vmem:[#allocation3 + $0x10] sm:$0xff]
        %v2713 = vld [vmem:[#allocation3 + $0x18] sm:$0xff]
        %v2714 = vld [vmem:[#allocation3 + $0x20] sm:$0xff]
        %v2715 = vld [vmem:[#allocation3 + $0x28] sm:$0xff]
        %v2716 = vld [vmem:[#allocation3 + $0x30] sm:$0xff]
        %v2717 = vld [vmem:[#allocation3 + $0x38] sm:$0xff]
        %v2718 = vld [vmem:[#allocation3 + $0x40] sm:$0xff]
        %v2719 = vld [vmem:[#allocation3 + $0x48] sm:$0xff]
        %v2720 = vld [vmem:[#allocation3 + $0x50] sm:$0xff]
        %v2721 = vld [vmem:[#allocation3 + $0x58] sm:$0xff]
        %v2722 = vld [vmem:[#allocation3 + $0x60] sm:$0xff]
        %v2723 = vld [vmem:[#allocation3 + $0x68] sm:$0xff]
        %v2724 = vld [vmem:[#allocation3 + $0x70] sm:$0xff]
        %v2725 = vld [vmem:[#allocation3 + $0x78] sm:$0xff]
        %v2726 = vld [vmem:[#allocation3 + $0x80] sm:$0xff]
        %v2727 = vld [vmem:[#allocation3 + $0x88] sm:$0xff]
        %v2728 = vld [vmem:[#allocation3 + $0x90] sm:$0xff]
        %v2729 = vld [vmem:[#allocation3 + $0x98] sm:$0xff]
        %v2730 = vld [vmem:[#allocation3 + $0xa0] sm:$0xff]
        %v2731 = vld [vmem:[#allocation3 + $0xa8] sm:$0xff]
        %v2732 = vld [vmem:[#allocation3 + $0xb0] sm:$0xff]
        %v2733 = vld [vmem:[#allocation3 + $0xb8] sm:$0xff]
        %v2734 = vld [vmem:[#allocation3 + $0xc0] sm:$0xff]
        %v2735 = vld [vmem:[#allocation3 + $0xc8] sm:$0xff]
        %v2736 = vld [vmem:[#allocation3 + $0xd0] sm:$0xff]
        %v2737 = vld [vmem:[#allocation3 + $0xd8] sm:$0xff]
        %v2738 = vld [vmem:[#allocation3 + $0xe0] sm:$0xff]
        %v2739 = vld [vmem:[#allocation3 + $0xe8] sm:$0xff]
        %v2740 = vld [vmem:[#allocation3 + $0xf0] sm:$0xff]
        %v2741 = vld [vmem:[#allocation3 + $0xf8] sm:$0xff]
        %v2742 = vld [vmem:[#allocation3 + $0x100] sm:$0xff]
        %v2743 = vld [vmem:[#allocation3 + $0x108] sm:$0xff]
        %v2744 = vld [vmem:[#allocation3 + $0x110] sm:$0xff]
        %v2745 = vld [vmem:[#allocation3 + $0x118] sm:$0xff]
        %v2746 = vld [vmem:[#allocation3 + $0x120] sm:$0xff]
        %v2747 = vld [vmem:[#allocation3 + $0x128] sm:$0xff]
        %v2748 = vld [vmem:[#allocation3 + $0x130] sm:$0xff]
        %v2749 = vld [vmem:[#allocation3 + $0x138] sm:$0xff]
        %v2750 = vld [vmem:[#allocation3 + $0x140] sm:$0xff]
        %v2751 = vld [vmem:[#allocation3 + $0x148] sm:$0xff]
        %v2752 = vld [vmem:[#allocation3 + $0x150] sm:$0xff]
        %v2753 = vld [vmem:[#allocation3 + $0x158] sm:$0xff]
        %v2754 = vld [vmem:[#allocation3 + $0x160] sm:$0xff]
        %v2755 = vld [vmem:[#allocation3 + $0x168] sm:$0xff]
        %v2756 = vld [vmem:[#allocation3 + $0x170] sm:$0xff]
        %v2757 = vld [vmem:[#allocation3 + $0x178] sm:$0xff]
        %v2758 = vld [vmem:[#allocation3 + $0x180] sm:$0xff]
        %v2759 = vld [vmem:[#allocation3 + $0x188] sm:$0xff]
        %v2760 = vld [vmem:[#allocation3 + $0x190] sm:$0xff]
        %v2761 = vld [vmem:[#allocation3 + $0x198] sm:$0xff]
        %v2762 = vld [vmem:[#allocation3 + $0x1a0] sm:$0xff]
        %v2763 = vld [vmem:[#allocation3 + $0x1a8] sm:$0xff]
        %v2764 = vld [vmem:[#allocation3 + $0x1b0] sm:$0xff]
        %v2765 = vld [vmem:[#allocation3 + $0x1b8] sm:$0xff]
        %v2766 = vld [vmem:[#allocation3 + $0x1c0] sm:$0xff]
        %v2767 = vld [vmem:[#allocation3 + $0x1c8] sm:$0xff]
        %v2768 = vld [vmem:[#allocation3 + $0x1d0] sm:$0xff]
        %v2769 = vld [vmem:[#allocation3 + $0x1d8] sm:$0xff]
        %v2770 = vld [vmem:[#allocation3 + $0x1e0] sm:$0xff]
        %v2771 = vld [vmem:[#allocation3 + $0x1e8] sm:$0xff]
        %v2772 = vld [vmem:[#allocation3 + $0x1f0] sm:$0xff]
        %v2773 = vld [vmem:[#allocation3 + $0x1f8] sm:$0xff]
        %v2774 = vld [vmem:[#allocation3 + $0x200] sm:$0xff]
        %v2775 = vld [vmem:[#allocation3 + $0x208] sm:$0xff]
        %v2776 = vld [vmem:[#allocation3 + $0x210] sm:$0xff]
        %v2777 = vld [vmem:[#allocation3 + $0x218] sm:$0xff]
        %v2778 = vld [vmem:[#allocation3 + $0x220] sm:$0xff]
        %v2779 = vld [vmem:[#allocation3 + $0x228] sm:$0xff]
        %v2780 = vld [vmem:[#allocation3 + $0x230] sm:$0xff]
        %v2781 = vld [vmem:[#allocation3 + $0x238] sm:$0xff]
        %v2782 = vld [vmem:[#allocation3 + $0x240] sm:$0xff]
        %v2783 = vld [vmem:[#allocation3 + $0x248] sm:$0xff]
        %v2784 = vld [vmem:[#allocation3 + $0x250] sm:$0xff]
        %v2785 = vld [vmem:[#allocation3 + $0x258] sm:$0xff]
        %v2786 = vld [vmem:[#allocation3 + $0x260] sm:$0xff]
        %v2787 = vld [vmem:[#allocation3 + $0x268] sm:$0xff]
        %v2788 = vld [vmem:[#allocation3 + $0x270] sm:$0xff]
        %v2789 = vld [vmem:[#allocation3 + $0x278] sm:$0xff]
        %v2790 = vld [vmem:[#allocation3 + $0x280] sm:$0xff]
        %v2791 = vld [vmem:[#allocation3 + $0x288] sm:$0xff]
        %v2792 = vld [vmem:[#allocation3 + $0x290] sm:$0xff]
        %v2793 = vld [vmem:[#allocation3 + $0x298] sm:$0xff]
        %v2794 = vld [vmem:[#allocation3 + $0x2a0] sm:$0xff]
        %v2795 = vld [vmem:[#allocation3 + $0x2a8] sm:$0xff]
        %v2796 = vld [vmem:[#allocation3 + $0x2b0] sm:$0xff]
        %v2797 = vld [vmem:[#allocation3 + $0x2b8] sm:$0xff]
        %v2798 = vld [vmem:[#allocation3 + $0x2c0] sm:$0xff]
        %v2799 = vld [vmem:[#allocation3 + $0x2c8] sm:$0xff]
        %v2800 = vld [vmem:[#allocation9] sm:$0xff]
        %v2801 = vld [vmem:[#allocation9 + $0x8] sm:$0xff]
        %v2802 = vld [vmem:[#allocation9 + $0x10] sm:$0xff]
        %v2803 = vld [vmem:[#allocation9 + $0x18] sm:$0xff]
        %v2804 = vld [vmem:[#allocation9 + $0x20] sm:$0xff]
        %v2805 = vld [vmem:[#allocation9 + $0x28] sm:$0xff]
        %v2806 = vld [vmem:[#allocation9 + $0x30] sm:$0xff]
        %v2807 = vld [vmem:[#allocation9 + $0x38] sm:$0xff]
        %v2808 = vld [vmem:[#allocation9 + $0x40] sm:$0xff]
        %v2809 = vld [vmem:[#allocation9 + $0x48] sm:$0xff]
        %v2810 = vld [vmem:[#allocation9 + $0x50] sm:$0xff]
        %v2811 = vld [vmem:[#allocation9 + $0x58] sm:$0xff]
        %v2812 = vld [vmem:[#allocation9 + $0x60] sm:$0xff]
        %v2813 = vld [vmem:[#allocation9 + $0x68] sm:$0xff]
        %v2814 = vld [vmem:[#allocation9 + $0x70] sm:$0xff]
        %v2815 = vld [vmem:[#allocation9 + $0x78] sm:$0xff]
        %v2816 = vld [vmem:[#allocation9 + $0x80] sm:$0xff]
        %v2817 = vld [vmem:[#allocation9 + $0x88] sm:$0xff]
        %v2818 = vld [vmem:[#allocation9 + $0x90] sm:$0xff]
        %v2819 = vld [vmem:[#allocation9 + $0x98] sm:$0xff]
        %v2820 = vld [vmem:[#allocation9 + $0xa0] sm:$0xff]
        %v2821 = vld [vmem:[#allocation9 + $0xa8] sm:$0xff]
        %v2822 = vld [vmem:[#allocation9 + $0xb0] sm:$0xff]
        %v2823 = vld [vmem:[#allocation9 + $0xb8] sm:$0xff]
        %v2824 = vld [vmem:[#allocation9 + $0xc0] sm:$0xff]
        %v2825 = vld [vmem:[#allocation9 + $0xc8] sm:$0xff]
        %v2826 = vld [vmem:[#allocation9 + $0xd0] sm:$0xff]
        %v2827 = vld [vmem:[#allocation9 + $0xd8] sm:$0xff]
        %v2828 = vld [vmem:[#allocation9 + $0xe0] sm:$0xff]
        %v2829 = vld [vmem:[#allocation9 + $0xe8] sm:$0xff]
        %v2830 = vld [vmem:[#allocation9 + $0xf0] sm:$0xff]
        %v2831 = vld [vmem:[#allocation9 + $0xf8] sm:$0xff]
        %v2832 = vld [vmem:[#allocation9 + $0x100] sm:$0xff]
        %v2833 = vld [vmem:[#allocation9 + $0x108] sm:$0xff]
        %v2834 = vld [vmem:[#allocation9 + $0x110] sm:$0xff]
        %v2835 = vld [vmem:[#allocation9 + $0x118] sm:$0xff]
        %v2836 = vld [vmem:[#allocation9 + $0x120] sm:$0xff]
        %v2837 = vld [vmem:[#allocation9 + $0x128] sm:$0xff]
        %v2838 = vld [vmem:[#allocation9 + $0x130] sm:$0xff]
        %v2839 = vld [vmem:[#allocation9 + $0x138] sm:$0xff]
        %v2840 = vld [vmem:[#allocation9 + $0x140] sm:$0xff]
        %v2841 = vld [vmem:[#allocation9 + $0x148] sm:$0xff]
        %v2842 = vld [vmem:[#allocation9 + $0x150] sm:$0xff]
        %v2843 = vld [vmem:[#allocation9 + $0x158] sm:$0xff]
        %v2844 = vld [vmem:[#allocation9 + $0x160] sm:$0xff]
        %v2845 = vld [vmem:[#allocation9 + $0x168] sm:$0xff]
        %v2846 = vld [vmem:[#allocation9 + $0x170] sm:$0xff]
        %v2847 = vld [vmem:[#allocation9 + $0x178] sm:$0xff]
        %v2848 = vld [vmem:[#allocation9 + $0x180] sm:$0xff]
        %v2849 = vld [vmem:[#allocation9 + $0x188] sm:$0xff]
        %v2850 = vld [vmem:[#allocation9 + $0x190] sm:$0xff]
        %v2851 = vld [vmem:[#allocation9 + $0x198] sm:$0xff]
        %v2852 = vld [vmem:[#allocation9 + $0x1a0] sm:$0xff]
        %v2853 = vld [vmem:[#allocation9 + $0x1a8] sm:$0xff]
        %v2854 = vld [vmem:[#allocation9 + $0x1b0] sm:$0xff]
        %v2855 = vld [vmem:[#allocation9 + $0x1b8] sm:$0xff]
        %v2856 = vld [vmem:[#allocation9 + $0x1c0] sm:$0xff]
        %v2857 = vld [vmem:[#allocation9 + $0x1c8] sm:$0xff]
        %v2858 = vld [vmem:[#allocation9 + $0x1d0] sm:$0xff]
        %v2859 = vld [vmem:[#allocation9 + $0x1d8] sm:$0xff]
        %v2860 = vld [vmem:[#allocation9 + $0x1e0] sm:$0xff]
        %v2861 = vld [vmem:[#allocation9 + $0x1e8] sm:$0xff]
        %v2862 = vld [vmem:[#allocation9 + $0x1f0] sm:$0xff]
        %v2863 = vld [vmem:[#allocation9 + $0x1f8] sm:$0xff]
        %v2864 = vld [vmem:[#allocation9 + $0x200] sm:$0xff]
        %v2865 = vld [vmem:[#allocation9 + $0x208] sm:$0xff]
        %v2866 = vld [vmem:[#allocation9 + $0x210] sm:$0xff]
        %v2867 = vld [vmem:[#allocation9 + $0x218] sm:$0xff]
        %v2868 = vld [vmem:[#allocation9 + $0x220] sm:$0xff]
        %v2869 = vld [vmem:[#allocation9 + $0x228] sm:$0xff]
        %v2870 = vld [vmem:[#allocation9 + $0x230] sm:$0xff]
        %v2871 = vld [vmem:[#allocation9 + $0x238] sm:$0xff]
        %v2872 = vld [vmem:[#allocation9 + $0x240] sm:$0xff]
        %v2873 = vld [vmem:[#allocation9 + $0x248] sm:$0xff]
        %v2874 = vld [vmem:[#allocation9 + $0x250] sm:$0xff]
        %v2875 = vld [vmem:[#allocation9 + $0x258] sm:$0xff]
        %v2876 = vld [vmem:[#allocation9 + $0x260] sm:$0xff]
        %v2877 = vld [vmem:[#allocation9 + $0x268] sm:$0xff]
        %v2878 = vld [vmem:[#allocation9 + $0x270] sm:$0xff]
        %v2879 = vld [vmem:[#allocation9 + $0x278] sm:$0xff]
        %v2880 = vld [vmem:[#allocation9 + $0x280] sm:$0xff]
        %v2881 = vld [vmem:[#allocation9 + $0x288] sm:$0xff]
        %v2882 = vld [vmem:[#allocation9 + $0x290] sm:$0xff]
        %v2883 = vld [vmem:[#allocation9 + $0x298] sm:$0xff]
        %v2884 = vld [vmem:[#allocation9 + $0x2a0] sm:$0xff]
        %v2885 = vld [vmem:[#allocation9 + $0x2a8] sm:$0xff]
        %v2886 = vld [vmem:[#allocation9 + $0x2b0] sm:$0xff]
        %v2887 = vld [vmem:[#allocation9 + $0x2b8] sm:$0xff]
        %v2888 = vld [vmem:[#allocation9 + $0x2c0] sm:$0xff]
        %v2889 = vld [vmem:[#allocation9 + $0x2c8] sm:$0xff]
        %v2890 = vld [vmem:[#allocation9 + $0x2d0] sm:$0xff]
        %v2891 = vld [vmem:[#allocation9 + $0x2d8] sm:$0xff]
        %v2892 = vld [vmem:[#allocation9 + $0x2e0] sm:$0xff]
        %v2893 = vld [vmem:[#allocation9 + $0x2e8] sm:$0xff]
        %v2894 = vld [vmem:[#allocation9 + $0x2f0] sm:$0xff]
        %v2895 = vld [vmem:[#allocation9 + $0x2f8] sm:$0xff]
        %v2896 = vld [vmem:[#allocation9 + $0x300] sm:$0xff]
        %v2897 = vld [vmem:[#allocation9 + $0x308] sm:$0xff]
        %v2898 = vld [vmem:[#allocation9 + $0x310] sm:$0xff]
        %v2899 = vld [vmem:[#allocation9 + $0x318] sm:$0xff]
        %v2900 = vld [vmem:[#allocation9 + $0x320] sm:$0xff]
        %v2901 = vld [vmem:[#allocation9 + $0x328] sm:$0xff]
        %v2902 = vld [vmem:[#allocation9 + $0x330] sm:$0xff]
        %v2903 = vld [vmem:[#allocation9 + $0x338] sm:$0xff]
        %v2904 = vld [vmem:[#allocation9 + $0x340] sm:$0xff]
        %v2905 = vld [vmem:[#allocation9 + $0x348] sm:$0xff]
        %v2906 = vld [vmem:[#allocation9 + $0x350] sm:$0xff]
        %v2907 = vld [vmem:[#allocation9 + $0x358] sm:$0xff]
        %v2908 = vld [vmem:[#allocation9 + $0x360] sm:$0xff]
        %v2909 = vld [vmem:[#allocation9 + $0x368] sm:$0xff]
        %v2910 = vld [vmem:[#allocation9 + $0x370] sm:$0xff]
        %v2911 = vld [vmem:[#allocation9 + $0x378] sm:$0xff]
        %v2912 = vld [vmem:[#allocation9 + $0x380] sm:$0xff]
        %v2913 = vld [vmem:[#allocation9 + $0x388] sm:$0xff]
        %v2914 = vld [vmem:[#allocation9 + $0x390] sm:$0xff]
        %v2915 = vld [vmem:[#allocation9 + $0x398] sm:$0xff]
        %v2916 = vld [vmem:[#allocation9 + $0x3a0] sm:$0xff]
        %v2917 = vld [vmem:[#allocation9 + $0x3a8] sm:$0xff]
        %v2918 = vld [vmem:[#allocation9 + $0x3b0] sm:$0xff]
        %v2919 = vld [vmem:[#allocation9 + $0x3b8] sm:$0xff]
        %v2920 = vld [vmem:[#allocation9 + $0x3c0] sm:$0xff]
        %v2921 = vld [vmem:[#allocation9 + $0x3c8] sm:$0xff]
        %v2922 = vld [vmem:[#allocation9 + $0x3d0] sm:$0xff]
        %v2923 = vld [vmem:[#allocation9 + $0x3d8] sm:$0xff]
        %v2924 = vld [vmem:[#allocation9 + $0x3e0] sm:$0xff]
        %v2925 = vld [vmem:[#allocation9 + $0x3e8] sm:$0xff]
        %v2926 = vld [vmem:[#allocation9 + $0x3f0] sm:$0xff]
        %v2927 = vld [vmem:[#allocation9 + $0x3f8] sm:$0xff]
        %v2928 = vld [vmem:[#allocation9 + $0x400] sm:$0xff]
        %v2929 = vld [vmem:[#allocation9 + $0x408] sm:$0xff]
        %v2930 = vld [vmem:[#allocation9 + $0x410] sm:$0xff]
        %v2931 = vld [vmem:[#allocation9 + $0x418] sm:$0xff]
        %v2932 = vld [vmem:[#allocation9 + $0x420] sm:$0xff]
        %v2933 = vld [vmem:[#allocation9 + $0x428] sm:$0xff]
        %v2934 = vld [vmem:[#allocation9 + $0x430] sm:$0xff]
        %v2935 = vld [vmem:[#allocation9 + $0x438] sm:$0xff]
        %v2936 = vld [vmem:[#allocation9 + $0x440] sm:$0xff]
        %v2937 = vld [vmem:[#allocation9 + $0x448] sm:$0xff]
        %v2938 = vld [vmem:[#allocation9 + $0x450] sm:$0xff]
        %v2939 = vld [vmem:[#allocation9 + $0x458] sm:$0xff]
        %v2940 = vld [vmem:[#allocation9 + $0x460] sm:$0xff]
        %v2941 = vld [vmem:[#allocation9 + $0x468] sm:$0xff]
        %v2942 = vld [vmem:[#allocation9 + $0x470] sm:$0xff]
        %v2943 = vld [vmem:[#allocation9 + $0x478] sm:$0xff]
        %v2944 = vld [vmem:[%s2] sm:$0x3]
        %v2946 = vlaneseq
        %v2947 = vshrl.u32 %v2946, 7
        %v2948 = vsub.s32 0, %v2947
        %v2949 = vrot.slane %v2944, %v2948
        %v2950 = vlaneseq
        %v2951 = vshrl.u32 %v2950, 7
        %v2952 = vsub.s32 1, %v2951
        %v2953 = vrot.slane %v2944, %v2952
        %v3100 = vunpack.c.l.b16 %v2800
        %v3101 = vunpack.c.h.b16 %v2800
        %v3102 = vunpack.c.l.b16 %v2801
        %v3103 = vunpack.c.h.b16 %v2801
        %v3104 = vunpack.c.l.b16 %v2802
        %v3105 = vunpack.c.h.b16 %v2802
        %v3106 = vunpack.c.l.b16 %v2803
        %v3107 = vunpack.c.h.b16 %v2803
        %v3108 = vunpack.c.l.b16 %v2804
        %v3109 = vunpack.c.h.b16 %v2804
        %v3110 = vunpack.c.l.b16 %v2805
        %v3111 = vunpack.c.h.b16 %v2805
        %v3112 = vunpack.c.l.b16 %v2806
        %v3113 = vunpack.c.h.b16 %v2806
        %v3114 = vunpack.c.l.b16 %v2807
        %v3115 = vunpack.c.h.b16 %v2807
        %v3116 = vunpack.c.l.b16 %v2808
        %v3117 = vunpack.c.h.b16 %v2808
        %v3118 = vunpack.c.l.b16 %v2809
        %v3119 = vunpack.c.h.b16 %v2809
        %v3120 = vunpack.c.l.b16 %v2810
        %v3121 = vunpack.c.h.b16 %v2810
        %v3122 = vunpack.c.l.b16 %v2811
        %v3123 = vunpack.c.h.b16 %v2811
        %v3124 = vunpack.c.l.b16 %v2812
        %v3125 = vunpack.c.h.b16 %v2812
        %v3126 = vunpack.c.l.b16 %v2813
        %v3127 = vunpack.c.h.b16 %v2813
        %v3128 = vunpack.c.l.b16 %v2814
        %v3129 = vunpack.c.h.b16 %v2814
        %v3130 = vunpack.c.l.b16 %v2815
        %v3131 = vunpack.c.h.b16 %v2815
        %v3132 = vunpack.c.l.b16 %v2816
        %v3133 = vunpack.c.h.b16 %v2816
        %v3134 = vunpack.c.l.b16 %v2817
        %v3135 = vunpack.c.h.b16 %v2817
        %v3136 = vunpack.c.l.b16 %v2818
        %v3137 = vunpack.c.h.b16 %v2818
        %v3138 = vunpack.c.l.b16 %v2819
        %v3139 = vunpack.c.h.b16 %v2819
        %v3140 = vunpack.c.l.b16 %v2820
        %v3141 = vunpack.c.h.b16 %v2820
        %v3142 = vunpack.c.l.b16 %v2821
        %v3143 = vunpack.c.h.b16 %v2821
        %v3144 = vunpack.c.l.b16 %v2822
        %v3145 = vunpack.c.h.b16 %v2822
        %v3146 = vunpack.c.l.b16 %v2823
        %v3147 = vunpack.c.h.b16 %v2823
        %v3148 = vunpack.c.l.b16 %v2824
        %v3149 = vunpack.c.h.b16 %v2824
        %v3150 = vunpack.c.l.b16 %v2825
        %v3151 = vunpack.c.h.b16 %v2825
        %v3152 = vunpack.c.l.b16 %v2826
        %v3153 = vunpack.c.h.b16 %v2826
        %v3154 = vunpack.c.l.b16 %v2827
        %v3155 = vunpack.c.h.b16 %v2827
        %v3156 = vunpack.c.l.b16 %v2828
        %v3157 = vunpack.c.h.b16 %v2828
        %v3158 = vunpack.c.l.b16 %v2829
        %v3159 = vunpack.c.h.b16 %v2829
        %v3160 = vunpack.c.l.b16 %v2830
        %v3161 = vunpack.c.h.b16 %v2830
        %v3162 = vunpack.c.l.b16 %v2831
        %v3163 = vunpack.c.h.b16 %v2831
        %v3164 = vunpack.c.l.b16 %v2832
        %v3165 = vunpack.c.h.b16 %v2832
        %v3166 = vunpack.c.l.b16 %v2833
        %v3167 = vunpack.c.h.b16 %v2833
        %v3168 = vunpack.c.l.b16 %v2834
        %v3169 = vunpack.c.h.b16 %v2834
        %v3170 = vunpack.c.l.b16 %v2835
        %v3171 = vunpack.c.h.b16 %v2835
        %v3172 = vunpack.c.l.b16 %v2836
        %v3173 = vunpack.c.h.b16 %v2836
        %v3174 = vunpack.c.l.b16 %v2837
        %v3175 = vunpack.c.h.b16 %v2837
        %v3176 = vunpack.c.l.b16 %v2838
        %v3177 = vunpack.c.h.b16 %v2838
        %v3178 = vunpack.c.l.b16 %v2839
        %v3179 = vunpack.c.h.b16 %v2839
        %v3180 = vunpack.c.l.b16 %v2840
        %v3181 = vunpack.c.h.b16 %v2840
        %v3182 = vunpack.c.l.b16 %v2841
        %v3183 = vunpack.c.h.b16 %v2841
        %v3184 = vunpack.c.l.b16 %v2842
        %v3185 = vunpack.c.h.b16 %v2842
        %v3186 = vunpack.c.l.b16 %v2843
        %v3187 = vunpack.c.h.b16 %v2843
        %v3188 = vunpack.c.l.b16 %v2844
        %v3189 = vunpack.c.h.b16 %v2844
        %v3190 = vunpack.c.l.b16 %v2845
        %v3191 = vunpack.c.h.b16 %v2845
        %v3192 = vunpack.c.l.b16 %v2846
        %v3193 = vunpack.c.h.b16 %v2846
        %v3194 = vunpack.c.l.b16 %v2847
        %v3195 = vunpack.c.h.b16 %v2847
        %v3196 = vunpack.c.l.b16 %v2848
        %v3197 = vunpack.c.h.b16 %v2848
        %v3198 = vunpack.c.l.b16 %v2849
        %v3199 = vunpack.c.h.b16 %v2849
        %v3200 = vunpack.c.l.b16 %v2850
        %v3201 = vunpack.c.h.b16 %v2850
        %v3202 = vunpack.c.l.b16 %v2851
        %v3203 = vunpack.c.h.b16 %v2851
        %v3204 = vunpack.c.l.b16 %v2852
        %v3205 = vunpack.c.h.b16 %v2852
        %v3206 = vunpack.c.l.b16 %v2853
        %v3207 = vunpack.c.h.b16 %v2853
        %v3208 = vunpack.c.l.b16 %v2854
        %v3209 = vunpack.c.h.b16 %v2854
        %v3210 = vunpack.c.l.b16 %v2855
        %v3211 = vunpack.c.h.b16 %v2855
        %v3212 = vunpack.c.l.b16 %v2856
        %v3213 = vunpack.c.h.b16 %v2856
        %v3214 = vunpack.c.l.b16 %v2857
        %v3215 = vunpack.c.h.b16 %v2857
        %v3216 = vunpack.c.l.b16 %v2858
        %v3217 = vunpack.c.h.b16 %v2858
        %v3218 = vunpack.c.l.b16 %v2859
        %v3219 = vunpack.c.h.b16 %v2859
        %v3220 = vunpack.c.l.b16 %v2860
        %v3221 = vunpack.c.h.b16 %v2860
        %v3222 = vunpack.c.l.b16 %v2861
        %v3223 = vunpack.c.h.b16 %v2861
        %v3224 = vunpack.c.l.b16 %v2862
        %v3225 = vunpack.c.h.b16 %v2862
        %v3226 = vunpack.c.l.b16 %v2863
        %v3227 = vunpack.c.h.b16 %v2863
        %v3228 = vunpack.c.l.b16 %v2864
        %v3229 = vunpack.c.h.b16 %v2864
        %v3230 = vunpack.c.l.b16 %v2865
        %v3231 = vunpack.c.h.b16 %v2865
        %v3232 = vunpack.c.l.b16 %v2866
        %v3233 = vunpack.c.h.b16 %v2866
        %v3234 = vunpack.c.l.b16 %v2867
        %v3235 = vunpack.c.h.b16 %v2867
        %v3236 = vunpack.c.l.b16 %v2868
        %v3237 = vunpack.c.h.b16 %v2868
        %v3238 = vunpack.c.l.b16 %v2869
        %v3239 = vunpack.c.h.b16 %v2869
        %v3240 = vunpack.c.l.b16 %v2870
        %v3241 = vunpack.c.h.b16 %v2870
        %v3242 = vunpack.c.l.b16 %v2871
        %v3243 = vunpack.c.h.b16 %v2871
        %v3244 = vunpack.c.l.b16 %v2872
        %v3245 = vunpack.c.h.b16 %v2872
        %v3246 = vunpack.c.l.b16 %v2873
        %v3247 = vunpack.c.h.b16 %v2873
        %v3248 = vunpack.c.l.b16 %v2874
        %v3249 = vunpack.c.h.b16 %v2874
        %v3250 = vunpack.c.l.b16 %v2875
        %v3251 = vunpack.c.h.b16 %v2875
        %v3252 = vunpack.c.l.b16 %v2876
        %v3253 = vunpack.c.h.b16 %v2876
        %v3254 = vunpack.c.l.b16 %v2877
        %v3255 = vunpack.c.h.b16 %v2877
        %v3256 = vunpack.c.l.b16 %v2878
        %v3257 = vunpack.c.h.b16 %v2878
        %v3258 = vunpack.c.l.b16 %v2879
        %v3259 = vunpack.c.h.b16 %v2879
        %v3260 = vunpack.c.l.b16 %v2880
        %v3261 = vunpack.c.h.b16 %v2880
        %v3262 = vunpack.c.l.b16 %v2881
        %v3263 = vunpack.c.h.b16 %v2881
        %v3264 = vunpack.c.l.b16 %v2882
        %v3265 = vunpack.c.h.b16 %v2882
        %v3266 = vunpack.c.l.b16 %v2883
        %v3267 = vunpack.c.h.b16 %v2883
        %v3268 = vunpack.c.l.b16 %v2884
        %v3269 = vunpack.c.h.b16 %v2884
        %v3270 = vunpack.c.l.b16 %v2885
        %v3271 = vunpack.c.h.b16 %v2885
        %v3272 = vunpack.c.l.b16 %v2886
        %v3273 = vunpack.c.h.b16 %v2886
        %v3274 = vunpack.c.l.b16 %v2887
        %v3275 = vunpack.c.h.b16 %v2887
        %v3276 = vunpack.c.l.b16 %v2888
        %v3277 = vunpack.c.h.b16 %v2888
        %v3278 = vunpack.c.l.b16 %v2889
        %v3279 = vunpack.c.h.b16 %v2889
        %v3280 = vunpack.c.l.b16 %v2890
        %v3281 = vunpack.c.h.b16 %v2890
        %v3282 = vunpack.c.l.b16 %v2891
        %v3283 = vunpack.c.h.b16 %v2891
        %v3284 = vunpack.c.l.b16 %v2892
        %v3285 = vunpack.c.h.b16 %v2892
        %v3286 = vunpack.c.l.b16 %v2893
        %v3287 = vunpack.c.h.b16 %v2893
        %v3288 = vunpack.c.l.b16 %v2894
        %v3289 = vunpack.c.h.b16 %v2894
        %v3290 = vunpack.c.l.b16 %v2895
        %v3291 = vunpack.c.h.b16 %v2895
        %v3292 = vunpack.c.l.b16 %v2896
        %v3293 = vunpack.c.h.b16 %v2896
        %v3294 = vunpack.c.l.b16 %v2897
        %v3295 = vunpack.c.h.b16 %v2897
        %v3296 = vunpack.c.l.b16 %v2898
        %v3297 = vunpack.c.h.b16 %v2898
        %v3298 = vunpack.c.l.b16 %v2899
        %v3299 = vunpack.c.h.b16 %v2899
        %v3300 = vunpack.c.l.b16 %v2900
        %v3301 = vunpack.c.h.b16 %v2900
        %v3302 = vunpack.c.l.b16 %v2901
        %v3303 = vunpack.c.h.b16 %v2901
        %v3304 = vunpack.c.l.b16 %v2902
        %v3305 = vunpack.c.h.b16 %v2902
        %v3306 = vunpack.c.l.b16 %v2903
        %v3307 = vunpack.c.h.b16 %v2903
        %v3308 = vunpack.c.l.b16 %v2904
        %v3309 = vunpack.c.h.b16 %v2904
        %v3310 = vunpack.c.l.b16 %v2905
        %v3311 = vunpack.c.h.b16 %v2905
        %v3312 = vunpack.c.l.b16 %v2906
        %v3313 = vunpack.c.h.b16 %v2906
        %v3314 = vunpack.c.l.b16 %v2907
        %v3315 = vunpack.c.h.b16 %v2907
        %v3316 = vunpack.c.l.b16 %v2908
        %v3317 = vunpack.c.h.b16 %v2908
        %v3318 = vunpack.c.l.b16 %v2909
        %v3319 = vunpack.c.h.b16 %v2909
        %v3320 = vunpack.c.l.b16 %v2910
        %v3321 = vunpack.c.h.b16 %v2910
        %v3322 = vunpack.c.l.b16 %v2911
        %v3323 = vunpack.c.h.b16 %v2911
        %v3324 = vunpack.c.l.b16 %v2912
        %v3325 = vunpack.c.h.b16 %v2912
        %v3326 = vunpack.c.l.b16 %v2913
        %v3327 = vunpack.c.h.b16 %v2913
        %v3328 = vunpack.c.l.b16 %v2914
        %v3329 = vunpack.c.h.b16 %v2914
        %v3330 = vunpack.c.l.b16 %v2915
        %v3331 = vunpack.c.h.b16 %v2915
        %v3332 = vunpack.c.l.b16 %v2916
        %v3333 = vunpack.c.h.b16 %v2916
        %v3334 = vunpack.c.l.b16 %v2917
        %v3335 = vunpack.c.h.b16 %v2917
        %v3336 = vunpack.c.l.b16 %v2918
        %v3337 = vunpack.c.h.b16 %v2918
        %v3338 = vunpack.c.l.b16 %v2919
        %v3339 = vunpack.c.h.b16 %v2919
        %v3340 = vunpack.c.l.b16 %v2920
        %v3341 = vunpack.c.h.b16 %v2920
        %v3342 = vunpack.c.l.b16 %v2921
        %v3343 = vunpack.c.h.b16 %v2921
        %v3344 = vunpack.c.l.b16 %v2922
        %v3345 = vunpack.c.h.b16 %v2922
        %v3346 = vunpack.c.l.b16 %v2923
        %v3347 = vunpack.c.h.b16 %v2923
        %v3348 = vunpack.c.l.b16 %v2924
        %v3349 = vunpack.c.h.b16 %v2924
        %v3350 = vunpack.c.l.b16 %v2925
        %v3351 = vunpack.c.h.b16 %v2925
        %v3352 = vunpack.c.l.b16 %v2926
        %v3353 = vunpack.c.h.b16 %v2926
        %v3354 = vunpack.c.l.b16 %v2927
        %v3355 = vunpack.c.h.b16 %v2927
        %v3356 = vunpack.c.l.b16 %v2928
        %v3357 = vunpack.c.h.b16 %v2928
        %v3358 = vunpack.c.l.b16 %v2929
        %v3359 = vunpack.c.h.b16 %v2929
        %v3360 = vunpack.c.l.b16 %v2930
        %v3361 = vunpack.c.h.b16 %v2930
        %v3362 = vunpack.c.l.b16 %v2931
        %v3363 = vunpack.c.h.b16 %v2931
        %v3364 = vunpack.c.l.b16 %v2932
        %v3365 = vunpack.c.h.b16 %v2932
        %v3366 = vunpack.c.l.b16 %v2933
        %v3367 = vunpack.c.h.b16 %v2933
        %v3368 = vunpack.c.l.b16 %v2934
        %v3369 = vunpack.c.h.b16 %v2934
        %v3370 = vunpack.c.l.b16 %v2935
        %v3371 = vunpack.c.h.b16 %v2935
        %v3372 = vunpack.c.l.b16 %v2936
        %v3373 = vunpack.c.h.b16 %v2936
        %v3374 = vunpack.c.l.b16 %v2937
        %v3375 = vunpack.c.h.b16 %v2937
        %v3376 = vunpack.c.l.b16 %v2938
        %v3377 = vunpack.c.h.b16 %v2938
        %v3378 = vunpack.c.l.b16 %v2939
        %v3379 = vunpack.c.h.b16 %v2939
        %v3380 = vunpack.c.l.b16 %v2940
        %v3381 = vunpack.c.h.b16 %v2940
        %v3382 = vunpack.c.l.b16 %v2941
        %v3383 = vunpack.c.h.b16 %v2941
        %v3384 = vunpack.c.l.b16 %v2942
        %v3385 = vunpack.c.h.b16 %v2942
        %v3386 = vunpack.c.l.b16 %v2943
        %v3387 = vunpack.c.h.b16 %v2943
        %v3388 = vpack.c.b16 %v3102, %v3100
        %v3389 = vpack.c.b16 %v3103, %v3101
        %v3390 = vpack.c.b16 %v3106, %v3104
        %v3391 = vpack.c.b16 %v3107, %v3105
        %v3392 = vpack.c.b16 %v3110, %v3108
        %v3393 = vpack.c.b16 %v3111, %v3109
        %v3394 = vpack.c.b16 %v3114, %v3112
        %v3395 = vpack.c.b16 %v3115, %v3113
        %v3396 = vpack.c.b16 %v3118, %v3116
        %v3397 = vpack.c.b16 %v3119, %v3117
        %v3398 = vpack.c.b16 %v3122, %v3120
        %v3399 = vpack.c.b16 %v3123, %v3121
        %v3400 = vpack.c.b16 %v3126, %v3124
        %v3401 = vpack.c.b16 %v3127, %v3125
        %v3402 = vpack.c.b16 %v3130, %v3128
        %v3403 = vpack.c.b16 %v3131, %v3129
        %v3404 = vpack.c.b16 %v3134, %v3132
        %v3405 = vpack.c.b16 %v3135, %v3133
        %v3406 = vpack.c.b16 %v3138, %v3136
        %v3407 = vpack.c.b16 %v3139, %v3137
        %v3408 = vpack.c.b16 %v3142, %v3140
        %v3409 = vpack.c.b16 %v3143, %v3141
        %v3410 = vpack.c.b16 %v3146, %v3144
        %v3411 = vpack.c.b16 %v3147, %v3145
        %v3412 = vpack.c.b16 %v3150, %v3148
        %v3413 = vpack.c.b16 %v3151, %v3149
        %v3414 = vpack.c.b16 %v3154, %v3152
        %v3415 = vpack.c.b16 %v3155, %v3153
        %v3416 = vpack.c.b16 %v3158, %v3156
        %v3417 = vpack.c.b16 %v3159, %v3157
        %v3418 = vpack.c.b16 %v3162, %v3160
        %v3419 = vpack.c.b16 %v3163, %v3161
        %v3420 = vpack.c.b16 %v3166, %v3164
        %v3421 = vpack.c.b16 %v3167, %v3165
        %v3422 = vpack.c.b16 %v3170, %v3168
        %v3423 = vpack.c.b16 %v3171, %v3169
        %v3424 = vpack.c.b16 %v3174, %v3172
        %v3425 = vpack.c.b16 %v3175, %v3173
        %v3426 = vpack.c.b16 %v3178, %v3176
        %v3427 = vpack.c.b16 %v3179, %v3177
        %v3428 = vpack.c.b16 %v3182, %v3180
        %v3429 = vpack.c.b16 %v3183, %v3181
        %v3430 = vpack.c.b16 %v3186, %v3184
        %v3431 = vpack.c.b16 %v3187, %v3185
        %v3432 = vpack.c.b16 %v3190, %v3188
        %v3433 = vpack.c.b16 %v3191, %v3189
        %v3434 = vpack.c.b16 %v3194, %v3192
        %v3435 = vpack.c.b16 %v3195, %v3193
        %v3436 = vpack.c.b16 %v3198, %v3196
        %v3437 = vpack.c.b16 %v3199, %v3197
        %v3438 = vpack.c.b16 %v3202, %v3200
        %v3439 = vpack.c.b16 %v3203, %v3201
        %v3440 = vpack.c.b16 %v3206, %v3204
        %v3441 = vpack.c.b16 %v3207, %v3205
        %v3442 = vpack.c.b16 %v3210, %v3208
        %v3443 = vpack.c.b16 %v3211, %v3209
        %v3444 = vpack.c.b16 %v3214, %v3212
        %v3445 = vpack.c.b16 %v3215, %v3213
        %v3446 = vpack.c.b16 %v3218, %v3216
        %v3447 = vpack.c.b16 %v3219, %v3217
        %v3448 = vpack.c.b16 %v3222, %v3220
        %v3449 = vpack.c.b16 %v3223, %v3221
        %v3450 = vpack.c.b16 %v3226, %v3224
        %v3451 = vpack.c.b16 %v3227, %v3225
        %v3452 = vpack.c.b16 %v3230, %v3228
        %v3453 = vpack.c.b16 %v3231, %v3229
        %v3454 = vpack.c.b16 %v3234, %v3232
        %v3455 = vpack.c.b16 %v3235, %v3233
        %v3456 = vpack.c.b16 %v3238, %v3236
        %v3457 = vpack.c.b16 %v3239, %v3237
        %v3458 = vpack.c.b16 %v3242, %v3240
        %v3459 = vpack.c.b16 %v3243, %v3241
        %v3460 = vpack.c.b16 %v3246, %v3244
        %v3461 = vpack.c.b16 %v3247, %v3245
        %v3462 = vpack.c.b16 %v3250, %v3248
        %v3463 = vpack.c.b16 %v3251, %v3249
        %v3464 = vpack.c.b16 %v3254, %v3252
        %v3465 = vpack.c.b16 %v3255, %v3253
        %v3466 = vpack.c.b16 %v3258, %v3256
        %v3467 = vpack.c.b16 %v3259, %v3257
        %v3468 = vpack.c.b16 %v3262, %v3260
        %v3469 = vpack.c.b16 %v3263, %v3261
        %v3470 = vpack.c.b16 %v3266, %v3264
        %v3471 = vpack.c.b16 %v3267, %v3265
        %v3472 = vpack.c.b16 %v3270, %v3268
        %v3473 = vpack.c.b16 %v3271, %v3269
        %v3474 = vpack.c.b16 %v3274, %v3272
        %v3475 = vpack.c.b16 %v3275, %v3273
        %v3476 = vpack.c.b16 %v3278, %v3276
        %v3477 = vpack.c.b16 %v3279, %v3277
        %v3478 = vpack.c.b16 %v3282, %v3280
        %v3479 = vpack.c.b16 %v3283, %v3281
        %v3480 = vpack.c.b16 %v3286, %v3284
        %v3481 = vpack.c.b16 %v3287, %v3285
        %v3482 = vpack.c.b16 %v3290, %v3288
        %v3483 = vpack.c.b16 %v3291, %v3289
        %v3484 = vpack.c.b16 %v3294, %v3292
        %v3485 = vpack.c.b16 %v3295, %v3293
        %v3486 = vpack.c.b16 %v3298, %v3296
        %v3487 = vpack.c.b16 %v3299, %v3297
        %v3488 = vpack.c.b16 %v3302, %v3300
        %v3489 = vpack.c.b16 %v3303, %v3301
        %v3490 = vpack.c.b16 %v3306, %v3304
        %v3491 = vpack.c.b16 %v3307, %v3305
        %v3492 = vpack.c.b16 %v3310, %v3308
        %v3493 = vpack.c.b16 %v3311, %v3309
        %v3494 = vpack.c.b16 %v3314, %v3312
        %v3495 = vpack.c.b16 %v3315, %v3313
        %v3496 = vpack.c.b16 %v3318, %v3316
        %v3497 = vpack.c.b16 %v3319, %v3317
        %v3498 = vpack.c.b16 %v3322, %v3320
        %v3499 = vpack.c.b16 %v3323, %v3321
        %v3500 = vpack.c.b16 %v3326, %v3324
        %v3501 = vpack.c.b16 %v3327, %v3325
        %v3502 = vpack.c.b16 %v3330, %v3328
        %v3503 = vpack.c.b16 %v3331, %v3329
        %v3504 = vpack.c.b16 %v3334, %v3332
        %v3505 = vpack.c.b16 %v3335, %v3333
        %v3506 = vpack.c.b16 %v3338, %v3336
        %v3507 = vpack.c.b16 %v3339, %v3337
        %v3508 = vpack.c.b16 %v3342, %v3340
        %v3509 = vpack.c.b16 %v3343, %v3341
        %v3510 = vpack.c.b16 %v3346, %v3344
        %v3511 = vpack.c.b16 %v3347, %v3345
        %v3512 = vpack.c.b16 %v3350, %v3348
        %v3513 = vpack.c.b16 %v3351, %v3349
        %v3514 = vpack.c.b16 %v3354, %v3352
        %v3515 = vpack.c.b16 %v3355, %v3353
        %v3516 = vpack.c.b16 %v3358, %v3356
        %v3517 = vpack.c.b16 %v3359, %v3357
        %v3518 = vpack.c.b16 %v3362, %v3360
        %v3519 = vpack.c.b16 %v3363, %v3361
        %v3520 = vpack.c.b16 %v3366, %v3364
        %v3521 = vpack.c.b16 %v3367, %v3365
        %v3522 = vpack.c.b16 %v3370, %v3368
        %v3523 = vpack.c.b16 %v3371, %v3369
        %v3524 = vpack.c.b16 %v3374, %v3372
        %v3525 = vpack.c.b16 %v3375, %v3373
        %v3526 = vpack.c.b16 %v3378, %v3376
        %v3527 = vpack.c.b16 %v3379, %v3377
        %v3528 = vpack.c.b16 %v3382, %v3380
        %v3529 = vpack.c.b16 %v3383, %v3381
        %v3530 = vpack.c.b16 %v3386, %v3384
        %v3531 = vpack.c.b16 %v3387, %v3385
        %3676 = vmatprep.subr.bf16.mxu0 %v3389
        %3677 = vmatpush1.bf16.msra.mxu0 %v3388
        %3678 = vmatprep.subr.bf16.mxu0 %v3391
        %3679 = vmatpush1.bf16.msra.mxu0 %v3390
        %3680 = vmatprep.subr.bf16.mxu0 %v3393
        %3681 = vmatpush1.bf16.msra.mxu0 %v3392
        %3682 = vmatprep.subr.bf16.mxu0 %v3395
        %3683 = vmatpush1.bf16.msra.mxu0 %v3394
        %3684 = vmatprep.subr.bf16.mxu0 %v3397
        %3685 = vmatpush1.bf16.msra.mxu0 %v3396
        %3686 = vmatprep.subr.bf16.mxu0 %v3399
        %3687 = vmatpush1.bf16.msra.mxu0 %v3398
        %3688 = vmatprep.subr.bf16.mxu0 %v3401
        %3689 = vmatpush1.bf16.msra.mxu0 %v3400
        %3690 = vmatprep.subr.bf16.mxu0 %v3403
        %3691 = vmatpush1.bf16.msra.mxu0 %v3402
        %3692 = vmatprep.subr.bf16.mxu0 %v3405
        %3693 = vmatpush1.bf16.msra.mxu0 %v3404
        %3694 = vmatprep.subr.bf16.mxu0 %v3407
        %3695 = vmatpush1.bf16.msra.mxu0 %v3406
        %3696 = vmatprep.subr.bf16.mxu0 %v3409
        %3697 = vmatpush1.bf16.msra.mxu0 %v3408
        %3698 = vmatprep.subr.bf16.mxu0 %v3411
        %3699 = vmatpush1.bf16.msra.mxu0 %v3410
        %3700 = vmatprep.subr.bf16.mxu0 %v3413
        %3701 = vmatpush1.bf16.msra.mxu0 %v3412
        %3702 = vmatprep.subr.bf16.mxu0 %v3415
        %3703 = vmatpush1.bf16.msra.mxu0 %v3414
        %3704 = vmatprep.subr.bf16.mxu0 %v3417
        %3705 = vmatpush1.bf16.msra.mxu0 %v3416
        %3706 = vmatprep.subr.bf16.mxu0 %v3419
        %3707 = vmatpush1.bf16.msra.mxu0 %v3418
        %3708 = vmatprep.mubr.bf16.mxu0 %v2711
        %3709 = vmatmul.mubr.bf16.gmra.mrb[0].mxu0 %v2710
        %v3710 = vpop.f32.mrb[0].mxu0
        %v3711 = vadd.f32 %v2949, %v3710
        %v3712 = vpop.f32.mrb[0].mxu0
        %v3713 = vadd.f32 %v2953, %v3712
        %v3714 = vpop.f32.mrb[0].mxu0
        %v3715 = vadd.f32 %v2949, %v3714
        %v3716 = vpop.f32.mrb[0].mxu0
        %v3717 = vadd.f32 %v2953, %v3716
        %3718 = vmatprep.mubr.bf16.mxu0 %v2720
        %3719 = vmatmul.mubr.bf16.gmra.mrb[0].mxu0 %v2719
        %v3720 = vpop.f32.mrb[0].mxu0
        %v3721 = vadd.f32 %v2949, %v3720
        %v3722 = vpop.f32.mrb[0].mxu0
        %v3723 = vadd.f32 %v2953, %v3722
        %v3724 = vpop.f32.mrb[0].mxu0
        %v3725 = vadd.f32 %v2949, %v3724
        %v3726 = vpop.f32.mrb[0].mxu0
        %v3727 = vadd.f32 %v2953, %v3726
        %3728 = vmatprep.mubr.bf16.mxu0 %v2729
        %3729 = vmatmul.mubr.bf16.gmra.mrb[0].mxu0 %v2728
        %v3730 = vpop.f32.mrb[0].mxu0
        %v3731 = vadd.f32 %v2949, %v3730
        %v3732 = vpop.f32.mrb[0].mxu0
        %v3733 = vadd.f32 %v2953, %v3732
        %v3734 = vpop.f32.mrb[0].mxu0
        %v3735 = vadd.f32 %v2949, %v3734
        %v3736 = vpop.f32.mrb[0].mxu0
        %v3737 = vadd.f32 %v2953, %v3736
        %3738 = vmatprep.mubr.bf16.mxu0 %v2738
        %3739 = vmatmul.mubr.bf16.gmra.mrb[0].mxu0 %v2737
        %v3740 = vpop.f32.mrb[0].mxu0
        %v3741 = vadd.f32 %v2949, %v3740
        %v3742 = vpop.f32.mrb[0].mxu0
        %v3743 = vadd.f32 %v2953, %v3742
        %v3744 = vpop.f32.mrb[0].mxu0
        %v3745 = vadd.f32 %v2949, %v3744
        %v3746 = vpop.f32.mrb[0].mxu0
        %v3747 = vadd.f32 %v2953, %v3746
        %3748 = vmatprep.mubr.bf16.mxu0 %v2747
        %3749 = vmatmul.mubr.bf16.gmra.mrb[0].mxu0 %v2746
        %v3750 = vpop.f32.mrb[0].mxu0
        %v3751 = vadd.f32 %v2949, %v3750
        %v3752 = vpop.f32.mrb[0].mxu0
        %v3753 = vadd.f32 %v2953, %v3752
        %v3754 = vpop.f32.mrb[0].mxu0
        %v3755 = vadd.f32 %v2949, %v3754
        %v3756 = vpop.f32.mrb[0].mxu0
        %v3757 = vadd.f32 %v2953, %v3756
        %3758 = vmatprep.mubr.bf16.mxu0 %v2756
        %3759 = vmatmul.mubr.bf16.gmra.mrb[0].mxu0 %v2755
        %v3760 = vpop.f32.mrb[0].mxu0
        %v3761 = vadd.f32 %v2949, %v3760
        %v3762 = vpop.f32.mrb[0].mxu0
        %v3763 = vadd.f32 %v2953, %v3762
        %v3764 = vpop.f32.mrb[0].mxu0
        %v3765 = vadd.f32 %v2949, %v3764
        %v3766 = vpop.f32.mrb[0].mxu0
        %v3767 = vadd.f32 %v2953, %v3766
        %3768 = vmatprep.mubr.bf16.mxu0 %v2765
        %3769 = vmatmul.mubr.bf16.gmra.mrb[0].mxu0 %v2764
        %v3770 = vpop.f32.mrb[0].mxu0
        %v3771 = vadd.f32 %v2949, %v3770
        %v3772 = vpop.f32.mrb[0].mxu0
        %v3773 = vadd.f32 %v2953, %v3772
        %v3774 = vpop.f32.mrb[0].mxu0
        %v3775 = vadd.f32 %v2949, %v3774
        %v3776 = vpop.f32.mrb[0].mxu0
        %v3777 = vadd.f32 %v2953, %v3776
        %3778 = vmatprep.mubr.bf16.mxu0 %v2774
        %3779 = vmatmul.mubr.bf16.gmra.mrb[0].mxu0 %v2773
        %v3780 = vpop.f32.mrb[0].mxu0
        %v3781 = vadd.f32 %v2949, %v3780
        %v3782 = vpop.f32.mrb[0].mxu0
        %v3783 = vadd.f32 %v2953, %v3782
        %v3784 = vpop.f32.mrb[0].mxu0
        %v3785 = vadd.f32 %v2949, %v3784
        %v3786 = vpop.f32.mrb[0].mxu0
        %v3787 = vadd.f32 %v2953, %v3786
        %3788 = vmatprep.mubr.bf16.mxu0 %v2783
        %3789 = vmatmul.mubr.bf16.gmra.mrb[0].mxu0 %v2782
        %v3790 = vpop.f32.mrb[0].mxu0
        %v3791 = vadd.f32 %v2949, %v3790
        %v3792 = vpop.f32.mrb[0].mxu0
        %v3793 = vadd.f32 %v2953, %v3792
        %v3794 = vpop.f32.mrb[0].mxu0
        %v3795 = vadd.f32 %v2949, %v3794
        %v3796 = vpop.f32.mrb[0].mxu0
        %v3797 = vadd.f32 %v2953, %v3796
        %3798 = vmatprep.mubr.bf16.mxu0 %v2792
        %3799 = vmatmul.mubr.bf16.gmra.mrb[0].mxu0 %v2791
        %v3800 = vpop.f32.mrb[0].mxu0
        %v3801 = vadd.f32 %v2949, %v3800
        %v3802 = vpop.f32.mrb[0].mxu0
        %v3803 = vadd.f32 %v2953, %v3802
        %v3804 = vpop.f32.mrb[0].mxu0
        %v3805 = vadd.f32 %v2949, %v3804
        %v3806 = vpop.f32.mrb[0].mxu0
        %v3807 = vadd.f32 %v2953, %v3806
        %3808 = vdwg.mxu0
        %3809 = vmatprep.subr.bf16.mxu0 %v3421
        %3810 = vmatpush1.bf16.msra.mxu0 %v3420
        %3811 = vmatprep.subr.bf16.mxu0 %v3423
        %3812 = vmatpush1.bf16.msra.mxu0 %v3422
        %3813 = vmatprep.subr.bf16.mxu0 %v3425
        %3814 = vmatpush1.bf16.msra.mxu0 %v3424
        %3815 = vmatprep.subr.bf16.mxu0 %v3427
        %3816 = vmatpush1.bf16.msra.mxu0 %v3426
        %3817 = vmatprep.subr.bf16.mxu0 %v3429
        %3818 = vmatpush1.bf16.msra.mxu0 %v3428
        %3819 = vmatprep.subr.bf16.mxu0 %v3431
        %3820 = vmatpush1.bf16.msra.mxu0 %v3430
        %3821 = vmatprep.subr.bf16.mxu0 %v3433
        %3822 = vmatpush1.bf16.msra.mxu0 %v3432
        %3823 = vmatprep.subr.bf16.mxu0 %v3435
        %3824 = vmatpush1.bf16.msra.mxu0 %v3434
        %3825 = vmatprep.subr.bf16.mxu0 %v3437
        %3826 = vmatpush1.bf16.msra.mxu0 %v3436
        %3827 = vmatprep.subr.bf16.mxu0 %v3439
        %3828 = vmatpush1.bf16.msra.mxu0 %v3438
        %3829 = vmatprep.subr.bf16.mxu0 %v3441
        %3830 = vmatpush1.bf16.msra.mxu0 %v3440
        %3831 = vmatprep.subr.bf16.mxu0 %v3443
        %3832 = vmatpush1.bf16.msra.mxu0 %v3442
        %3833 = vmatprep.subr.bf16.mxu0 %v3445
        %3834 = vmatpush1.bf16.msra.mxu0 %v3444
        %3835 = vmatprep.subr.bf16.mxu0 %v3447
        %3836 = vmatpush1.bf16.msra.mxu0 %v3446
        %3837 = vmatprep.subr.bf16.mxu0 %v3449
        %3838 = vmatpush1.bf16.msra.mxu0 %v3448
        %3839 = vmatprep.subr.bf16.mxu0 %v3451
        %3840 = vmatpush1.bf16.msra.mxu0 %v3450
        %3841 = vmatprep.mubr.bf16.mxu0 %v2713
        %3842 = vmatmul.mubr.bf16.gmra.mrb[0].mxu0 %v2712
        %v3843 = vpop.f32.mrb[0].mxu0
        %v3844 = vadd.f32 %v3711, %v3843
        %v3845 = vpop.f32.mrb[0].mxu0
        %v3846 = vadd.f32 %v3713, %v3845
        %v3847 = vpop.f32.mrb[0].mxu0
        %v3848 = vadd.f32 %v3715, %v3847
        %v3849 = vpop.f32.mrb[0].mxu0
        %v3850 = vadd.f32 %v3717, %v3849
        %3851 = vmatprep.mubr.bf16.mxu0 %v2722
        %3852 = vmatmul.mubr.bf16.gmra.mrb[0].mxu0 %v2721
        %v3853 = vpop.f32.mrb[0].mxu0
        %v3854 = vadd.f32 %v3721, %v3853
        %v3855 = vpop.f32.mrb[0].mxu0
        %v3856 = vadd.f32 %v3723, %v3855
        %v3857 = vpop.f32.mrb[0].mxu0
        %v3858 = vadd.f32 %v3725, %v3857
        %v3859 = vpop.f32.mrb[0].mxu0
        %v3860 = vadd.f32 %v3727, %v3859
        %3861 = vmatprep.mubr.bf16.mxu0 %v2731
        %3862 = vmatmul.mubr.bf16.gmra.mrb[0].mxu0 %v2730
        %v3863 = vpop.f32.mrb[0].mxu0
        %v3864 = vadd.f32 %v3731, %v3863
        %v3865 = vpop.f32.mrb[0].mxu0
        %v3866 = vadd.f32 %v3733, %v3865
        %v3867 = vpop.f32.mrb[0].mxu0
        %v3868 = vadd.f32 %v3735, %v3867
        %v3869 = vpop.f32.mrb[0].mxu0
        %v3870 = vadd.f32 %v3737, %v3869
        %3871 = vmatprep.mubr.bf16.mxu0 %v2740
        %3872 = vmatmul.mubr.bf16.gmra.mrb[0].mxu0 %v2739
        %v3873 = vpop.f32.mrb[0].mxu0
        %v3874 = vadd.f32 %v3741, %v3873
        %v3875 = vpop.f32.mrb[0].mxu0
        %v3876 = vadd.f32 %v3743, %v3875
        %v3877 = vpop.f32.mrb[0].mxu0
        %v3878 = vadd.f32 %v3745, %v3877
        %v3879 = vpop.f32.mrb[0].mxu0
        %v3880 = vadd.f32 %v3747, %v3879
        %3881 = vmatprep.mubr.bf16.mxu0 %v2749
        %3882 = vmatmul.mubr.bf16.gmra.mrb[0].mxu0 %v2748
        %v3883 = vpop.f32.mrb[0].mxu0
        %v3884 = vadd.f32 %v3751, %v3883
        %v3885 = vpop.f32.mrb[0].mxu0
        %v3886 = vadd.f32 %v3753, %v3885
        %v3887 = vpop.f32.mrb[0].mxu0
        %v3888 = vadd.f32 %v3755, %v3887
        %v3889 = vpop.f32.mrb[0].mxu0
        %v3890 = vadd.f32 %v3757, %v3889
        %3891 = vmatprep.mubr.bf16.mxu0 %v2758
        %3892 = vmatmul.mubr.bf16.gmra.mrb[0].mxu0 %v2757
        %v3893 = vpop.f32.mrb[0].mxu0
        %v3894 = vadd.f32 %v3761, %v3893
        %v3895 = vpop.f32.mrb[0].mxu0
        %v3896 = vadd.f32 %v3763, %v3895
        %v3897 = vpop.f32.mrb[0].mxu0
        %v3898 = vadd.f32 %v3765, %v3897
        %v3899 = vpop.f32.mrb[0].mxu0
        %v3900 = vadd.f32 %v3767, %v3899
        %3901 = vmatprep.mubr.bf16.mxu0 %v2767
        %3902 = vmatmul.mubr.bf16.gmra.mrb[0].mxu0 %v2766
        %v3903 = vpop.f32.mrb[0].mxu0
        %v3904 = vadd.f32 %v3771, %v3903
        %v3905 = vpop.f32.mrb[0].mxu0
        %v3906 = vadd.f32 %v3773, %v3905
        %v3907 = vpop.f32.mrb[0].mxu0
        %v3908 = vadd.f32 %v3775, %v3907
        %v3909 = vpop.f32.mrb[0].mxu0
        %v3910 = vadd.f32 %v3777, %v3909
        %3911 = vmatprep.mubr.bf16.mxu0 %v2776
        %3912 = vmatmul.mubr.bf16.gmra.mrb[0].mxu0 %v2775
        %v3913 = vpop.f32.mrb[0].mxu0
        %v3914 = vadd.f32 %v3781, %v3913
        %v3915 = vpop.f32.mrb[0].mxu0
        %v3916 = vadd.f32 %v3783, %v3915
        %v3917 = vpop.f32.mrb[0].mxu0
        %v3918 = vadd.f32 %v3785, %v3917
        %v3919 = vpop.f32.mrb[0].mxu0
        %v3920 = vadd.f32 %v3787, %v3919
        %3921 = vmatprep.mubr.bf16.mxu0 %v2785
        %3922 = vmatmul.mubr.bf16.gmra.mrb[0].mxu0 %v2784
        %v3923 = vpop.f32.mrb[0].mxu0
        %v3924 = vadd.f32 %v3791, %v3923
        %v3925 = vpop.f32.mrb[0].mxu0
        %v3926 = vadd.f32 %v3793, %v3925
        %v3927 = vpop.f32.mrb[0].mxu0
        %v3928 = vadd.f32 %v3795, %v3927
        %v3929 = vpop.f32.mrb[0].mxu0
        %v3930 = vadd.f32 %v3797, %v3929
        %3931 = vmatprep.mubr.bf16.mxu0 %v2794
        %3932 = vmatmul.mubr.bf16.gmra.mrb[0].mxu0 %v2793
        %v3933 = vpop.f32.mrb[0].mxu0
        %v3934 = vadd.f32 %v3801, %v3933
        %v3935 = vpop.f32.mrb[0].mxu0
        %v3936 = vadd.f32 %v3803, %v3935
        %v3937 = vpop.f32.mrb[0].mxu0
        %v3938 = vadd.f32 %v3805, %v3937
        %v3939 = vpop.f32.mrb[0].mxu0
        %v3940 = vadd.f32 %v3807, %v3939
        %3941 = vdwg.mxu0
        %3942 = vmatprep.subr.bf16.mxu0 %v3453
        %3943 = vmatpush1.bf16.msra.mxu0 %v3452
        %3944 = vmatprep.subr.bf16.mxu0 %v3455
        %3945 = vmatpush1.bf16.msra.mxu0 %v3454
        %3946 = vmatprep.subr.bf16.mxu0 %v3457
        %3947 = vmatpush1.bf16.msra.mxu0 %v3456
        %3948 = vmatprep.subr.bf16.mxu0 %v3459
        %3949 = vmatpush1.bf16.msra.mxu0 %v3458
        %3950 = vmatprep.subr.bf16.mxu0 %v3461
        %3951 = vmatpush1.bf16.msra.mxu0 %v3460
        %3952 = vmatprep.subr.bf16.mxu0 %v3463
        %3953 = vmatpush1.bf16.msra.mxu0 %v3462
        %3954 = vmatprep.subr.bf16.mxu0 %v3465
        %3955 = vmatpush1.bf16.msra.mxu0 %v3464
        %3956 = vmatprep.subr.bf16.mxu0 %v3467
        %3957 = vmatpush1.bf16.msra.mxu0 %v3466
        %3958 = vmatprep.subr.bf16.mxu0 %v3469
        %3959 = vmatpush1.bf16.msra.mxu0 %v3468
        %3960 = vmatprep.subr.bf16.mxu0 %v3471
        %3961 = vmatpush1.bf16.msra.mxu0 %v3470
        %3962 = vmatprep.subr.bf16.mxu0 %v3473
        %3963 = vmatpush1.bf16.msra.mxu0 %v3472
        %3964 = vmatprep.subr.bf16.mxu0 %v3475
        %3965 = vmatpush1.bf16.msra.mxu0 %v3474
        %3966 = vmatprep.subr.bf16.mxu0 %v3477
        %3967 = vmatpush1.bf16.msra.mxu0 %v3476
        %3968 = vmatprep.subr.bf16.mxu0 %v3479
        %3969 = vmatpush1.bf16.msra.mxu0 %v3478
        %3970 = vmatprep.subr.bf16.mxu0 %v3481
        %3971 = vmatpush1.bf16.msra.mxu0 %v3480
        %3972 = vmatprep.subr.bf16.mxu0 %v3483
        %3973 = vmatpush1.bf16.msra.mxu0 %v3482
        %3974 = vmatprep.mubr.bf16.mxu0 %v2715
        %3975 = vmatmul.mubr.bf16.gmra.mrb[0].mxu0 %v2714
        %v3976 = vpop.f32.mrb[0].mxu0
        %v3977 = vadd.f32 %v3844, %v3976
        %v3978 = vpop.f32.mrb[0].mxu0
        %v3979 = vadd.f32 %v3846, %v3978
        %v3980 = vpop.f32.mrb[0].mxu0
        %v3981 = vadd.f32 %v3848, %v3980
        %v3982 = vpop.f32.mrb[0].mxu0
        %v3983 = vadd.f32 %v3850, %v3982
        %3984 = vmatprep.mubr.bf16.mxu0 %v2724
        %3985 = vmatmul.mubr.bf16.gmra.mrb[0].mxu0 %v2723
        %v3986 = vpop.f32.mrb[0].mxu0
        %v3987 = vadd.f32 %v3854, %v3986
        %v3988 = vpop.f32.mrb[0].mxu0
        %v3989 = vadd.f32 %v3856, %v3988
        %v3990 = vpop.f32.mrb[0].mxu0
        %v3991 = vadd.f32 %v3858, %v3990
        %v3992 = vpop.f32.mrb[0].mxu0
        %v3993 = vadd.f32 %v3860, %v3992
        %3994 = vmatprep.mubr.bf16.mxu0 %v2733
        %3995 = vmatmul.mubr.bf16.gmra.mrb[0].mxu0 %v2732
        %v3996 = vpop.f32.mrb[0].mxu0
        %v3997 = vadd.f32 %v3864, %v3996
        %v3998 = vpop.f32.mrb[0].mxu0
        %v3999 = vadd.f32 %v3866, %v3998
        %v4000 = vpop.f32.mrb[0].mxu0
        %v4001 = vadd.f32 %v3868, %v4000
        %v4002 = vpop.f32.mrb[0].mxu0
        %v4003 = vadd.f32 %v3870, %v4002
        %4004 = vmatprep.mubr.bf16.mxu0 %v2742
        %4005 = vmatmul.mubr.bf16.gmra.mrb[0].mxu0 %v2741
        %v4006 = vpop.f32.mrb[0].mxu0
        %v4007 = vadd.f32 %v3874, %v4006
        %v4008 = vpop.f32.mrb[0].mxu0
        %v4009 = vadd.f32 %v3876, %v4008
        %v4010 = vpop.f32.mrb[0].mxu0
        %v4011 = vadd.f32 %v3878, %v4010
        %v4012 = vpop.f32.mrb[0].mxu0
        %v4013 = vadd.f32 %v3880, %v4012
        %4014 = vmatprep.mubr.bf16.mxu0 %v2751
        %4015 = vmatmul.mubr.bf16.gmra.mrb[0].mxu0 %v2750
        %v4016 = vpop.f32.mrb[0].mxu0
        %v4017 = vadd.f32 %v3884, %v4016
        %v4018 = vpop.f32.mrb[0].mxu0
        %v4019 = vadd.f32 %v3886, %v4018
        %v4020 = vpop.f32.mrb[0].mxu0
        %v4021 = vadd.f32 %v3888, %v4020
        %v4022 = vpop.f32.mrb[0].mxu0
        %v4023 = vadd.f32 %v3890, %v4022
        %4024 = vmatprep.mubr.bf16.mxu0 %v2760
        %4025 = vmatmul.mubr.bf16.gmra.mrb[0].mxu0 %v2759
        %v4026 = vpop.f32.mrb[0].mxu0
        %v4027 = vadd.f32 %v3894, %v4026
        %v4028 = vpop.f32.mrb[0].mxu0
        %v4029 = vadd.f32 %v3896, %v4028
        %v4030 = vpop.f32.mrb[0].mxu0
        %v4031 = vadd.f32 %v3898, %v4030
        %v4032 = vpop.f32.mrb[0].mxu0
        %v4033 = vadd.f32 %v3900, %v4032
        %4034 = vmatprep.mubr.bf16.mxu0 %v2769
        %4035 = vmatmul.mubr.bf16.gmra.mrb[0].mxu0 %v2768
        %v4036 = vpop.f32.mrb[0].mxu0
        %v4037 = vadd.f32 %v3904, %v4036
        %v4038 = vpop.f32.mrb[0].mxu0
        %v4039 = vadd.f32 %v3906, %v4038
        %v4040 = vpop.f32.mrb[0].mxu0
        %v4041 = vadd.f32 %v3908, %v4040
        %v4042 = vpop.f32.mrb[0].mxu0
        %v4043 = vadd.f32 %v3910, %v4042
        %4044 = vmatprep.mubr.bf16.mxu0 %v2778
        %4045 = vmatmul.mubr.bf16.gmra.mrb[0].mxu0 %v2777
        %v4046 = vpop.f32.mrb[0].mxu0
        %v4047 = vadd.f32 %v3914, %v4046
        %v4048 = vpop.f32.mrb[0].mxu0
        %v4049 = vadd.f32 %v3916, %v4048
        %v4050 = vpop.f32.mrb[0].mxu0
        %v4051 = vadd.f32 %v3918, %v4050
        %v4052 = vpop.f32.mrb[0].mxu0
        %v4053 = vadd.f32 %v3920, %v4052
        %4054 = vmatprep.mubr.bf16.mxu0 %v2787
        %4055 = vmatmul.mubr.bf16.gmra.mrb[0].mxu0 %v2786
        %v4056 = vpop.f32.mrb[0].mxu0
        %v4057 = vadd.f32 %v3924, %v4056
        %v4058 = vpop.f32.mrb[0].mxu0
        %v4059 = vadd.f32 %v3926, %v4058
        %v4060 = vpop.f32.mrb[0].mxu0
        %v4061 = vadd.f32 %v3928, %v4060
        %v4062 = vpop.f32.mrb[0].mxu0
        %v4063 = vadd.f32 %v3930, %v4062
        %4064 = vmatprep.mubr.bf16.mxu0 %v2796
        %4065 = vmatmul.mubr.bf16.gmra.mrb[0].mxu0 %v2795
        %v4066 = vpop.f32.mrb[0].mxu0
        %v4067 = vadd.f32 %v3934, %v4066
        %v4068 = vpop.f32.mrb[0].mxu0
        %v4069 = vadd.f32 %v3936, %v4068
        %v4070 = vpop.f32.mrb[0].mxu0
        %v4071 = vadd.f32 %v3938, %v4070
        %v4072 = vpop.f32.mrb[0].mxu0
        %v4073 = vadd.f32 %v3940, %v4072
        %4074 = vdwg.mxu0
        %4075 = vmatprep.subr.bf16.mxu0 %v3485
        %4076 = vmatpush1.bf16.msra.mxu0 %v3484
        %4077 = vmatprep.subr.bf16.mxu0 %v3487
        %4078 = vmatpush1.bf16.msra.mxu0 %v3486
        %4079 = vmatprep.subr.bf16.mxu0 %v3489
        %4080 = vmatpush1.bf16.msra.mxu0 %v3488
        %4081 = vmatprep.subr.bf16.mxu0 %v3491
        %4082 = vmatpush1.bf16.msra.mxu0 %v3490
        %4083 = vmatprep.subr.bf16.mxu0 %v3493
        %4084 = vmatpush1.bf16.msra.mxu0 %v3492
        %4085 = vmatprep.subr.bf16.mxu0 %v3495
        %4086 = vmatpush1.bf16.msra.mxu0 %v3494
        %4087 = vmatprep.subr.bf16.mxu0 %v3497
        %4088 = vmatpush1.bf16.msra.mxu0 %v3496
        %4089 = vmatprep.subr.bf16.mxu0 %v3499
        %4090 = vmatpush1.bf16.msra.mxu0 %v3498
        %4091 = vmatprep.subr.bf16.mxu0 %v3501
        %4092 = vmatpush1.bf16.msra.mxu0 %v3500
        %4093 = vmatprep.subr.bf16.mxu0 %v3503
        %4094 = vmatpush1.bf16.msra.mxu0 %v3502
        %4095 = vmatprep.subr.bf16.mxu0 %v3505
        %4096 = vmatpush1.bf16.msra.mxu0 %v3504
        %4097 = vmatprep.subr.bf16.mxu0 %v3507
        %4098 = vmatpush1.bf16.msra.mxu0 %v3506
        %4099 = vmatprep.subr.bf16.mxu0 %v3509
        %4100 = vmatpush1.bf16.msra.mxu0 %v3508
        %4101 = vmatprep.subr.bf16.mxu0 %v3511
        %4102 = vmatpush1.bf16.msra.mxu0 %v3510
        %4103 = vmatprep.subr.bf16.mxu0 %v3513
        %4104 = vmatpush1.bf16.msra.mxu0 %v3512
        %4105 = vmatprep.subr.bf16.mxu0 %v3515
        %4106 = vmatpush1.bf16.msra.mxu0 %v3514
        %4107 = vmatprep.mubr.bf16.mxu0 %v2717
        %4108 = vmatmul.mubr.bf16.gmra.mrb[0].mxu0 %v2716
        %v4109 = vpop.f32.mrb[0].mxu0
        %v4110 = vadd.f32 %v3977, %v4109
        %v4111 = vpop.f32.mrb[0].mxu0
        %v4112 = vadd.f32 %v3979, %v4111
        %v4113 = vpop.f32.mrb[0].mxu0
        %v4114 = vadd.f32 %v3981, %v4113
        %v4115 = vpop.f32.mrb[0].mxu0
        %v4116 = vadd.f32 %v3983, %v4115
        %4117 = vmatprep.mubr.bf16.mxu0 %v2726
        %4118 = vmatmul.mubr.bf16.gmra.mrb[0].mxu0 %v2725
        %v4119 = vpop.f32.mrb[0].mxu0
        %v4120 = vadd.f32 %v3987, %v4119
        %v4121 = vpop.f32.mrb[0].mxu0
        %v4122 = vadd.f32 %v3989, %v4121
        %v4123 = vpop.f32.mrb[0].mxu0
        %v4124 = vadd.f32 %v3991, %v4123
        %v4125 = vpop.f32.mrb[0].mxu0
        %v4126 = vadd.f32 %v3993, %v4125
        %4127 = vmatprep.mubr.bf16.mxu0 %v2735
        %4128 = vmatmul.mubr.bf16.gmra.mrb[0].mxu0 %v2734
        %v4129 = vpop.f32.mrb[0].mxu0
        %v4130 = vadd.f32 %v3997, %v4129
        %v4131 = vpop.f32.mrb[0].mxu0
        %v4132 = vadd.f32 %v3999, %v4131
        %v4133 = vpop.f32.mrb[0].mxu0
        %v4134 = vadd.f32 %v4001, %v4133
        %v4135 = vpop.f32.mrb[0].mxu0
        %v4136 = vadd.f32 %v4003, %v4135
        %4137 = vmatprep.mubr.bf16.mxu0 %v2744
        %4138 = vmatmul.mubr.bf16.gmra.mrb[0].mxu0 %v2743
        %v4139 = vpop.f32.mrb[0].mxu0
        %v4140 = vadd.f32 %v4007, %v4139
        %v4141 = vpop.f32.mrb[0].mxu0
        %v4142 = vadd.f32 %v4009, %v4141
        %v4143 = vpop.f32.mrb[0].mxu0
        %v4144 = vadd.f32 %v4011, %v4143
        %v4145 = vpop.f32.mrb[0].mxu0
        %v4146 = vadd.f32 %v4013, %v4145
        %4147 = vmatprep.mubr.bf16.mxu0 %v2753
        %4148 = vmatmul.mubr.bf16.gmra.mrb[0].mxu0 %v2752
        %v4149 = vpop.f32.mrb[0].mxu0
        %v4150 = vadd.f32 %v4017, %v4149
        %v4151 = vpop.f32.mrb[0].mxu0
        %v4152 = vadd.f32 %v4019, %v4151
        %v4153 = vpop.f32.mrb[0].mxu0
        %v4154 = vadd.f32 %v4021, %v4153
        %v4155 = vpop.f32.mrb[0].mxu0
        %v4156 = vadd.f32 %v4023, %v4155
        %4157 = vmatprep.mubr.bf16.mxu0 %v2762
        %4158 = vmatmul.mubr.bf16.gmra.mrb[0].mxu0 %v2761
        %v4159 = vpop.f32.mrb[0].mxu0
        %v4160 = vadd.f32 %v4027, %v4159
        %v4161 = vpop.f32.mrb[0].mxu0
        %v4162 = vadd.f32 %v4029, %v4161
        %v4163 = vpop.f32.mrb[0].mxu0
        %v4164 = vadd.f32 %v4031, %v4163
        %v4165 = vpop.f32.mrb[0].mxu0
        %v4166 = vadd.f32 %v4033, %v4165
        %4167 = vmatprep.mubr.bf16.mxu0 %v2771
        %4168 = vmatmul.mubr.bf16.gmra.mrb[0].mxu0 %v2770
        %v4169 = vpop.f32.mrb[0].mxu0
        %v4170 = vadd.f32 %v4037, %v4169
        %v4171 = vpop.f32.mrb[0].mxu0
        %v4172 = vadd.f32 %v4039, %v4171
        %v4173 = vpop.f32.mrb[0].mxu0
        %v4174 = vadd.f32 %v4041, %v4173
        %v4175 = vpop.f32.mrb[0].mxu0
        %v4176 = vadd.f32 %v4043, %v4175
        %4177 = vmatprep.mubr.bf16.mxu0 %v2780
        %4178 = vmatmul.mubr.bf16.gmra.mrb[0].mxu0 %v2779
        %v4179 = vpop.f32.mrb[0].mxu0
        %v4180 = vadd.f32 %v4047, %v4179
        %v4181 = vpop.f32.mrb[0].mxu0
        %v4182 = vadd.f32 %v4049, %v4181
        %v4183 = vpop.f32.mrb[0].mxu0
        %v4184 = vadd.f32 %v4051, %v4183
        %v4185 = vpop.f32.mrb[0].mxu0
        %v4186 = vadd.f32 %v4053, %v4185
        %4187 = vmatprep.mubr.bf16.mxu0 %v2789
        %4188 = vmatmul.mubr.bf16.gmra.mrb[0].mxu0 %v2788
        %v4189 = vpop.f32.mrb[0].mxu0
        %v4190 = vadd.f32 %v4057, %v4189
        %v4191 = vpop.f32.mrb[0].mxu0
        %v4192 = vadd.f32 %v4059, %v4191
        %v4193 = vpop.f32.mrb[0].mxu0
        %v4194 = vadd.f32 %v4061, %v4193
        %v4195 = vpop.f32.mrb[0].mxu0
        %v4196 = vadd.f32 %v4063, %v4195
        %4197 = vmatprep.mubr.bf16.mxu0 %v2798
        %4198 = vmatmul.mubr.bf16.gmra.mrb[0].mxu0 %v2797
        %v4199 = vpop.f32.mrb[0].mxu0
        %v4200 = vadd.f32 %v4067, %v4199
        %v4201 = vpop.f32.mrb[0].mxu0
        %v4202 = vadd.f32 %v4069, %v4201
        %v4203 = vpop.f32.mrb[0].mxu0
        %v4204 = vadd.f32 %v4071, %v4203
        %v4205 = vpop.f32.mrb[0].mxu0
        %v4206 = vadd.f32 %v4073, %v4205
        %4207 = vdwg.mxu0
        %4208 = vmatprep.subr.bf16.mxu0 %v3517
        %4209 = vmatpush1.bf16.msra.mxu0 %v3516
        %4210 = vmatprep.subr.bf16.mxu0 %v3519
        %4211 = vmatpush1.bf16.msra.mxu0 %v3518
        %4212 = vmatprep.subr.bf16.mxu0 %v3521
        %4213 = vmatpush1.bf16.msra.mxu0 %v3520
        %4214 = vmatprep.subr.bf16.mxu0 %v3523
        %4215 = vmatpush1.bf16.msra.mxu0 %v3522
        %4216 = vmatprep.subr.bf16.mxu0 %v3525
        %4217 = vmatpush1.bf16.msra.mxu0 %v3524
        %4218 = vmatprep.subr.bf16.mxu0 %v3527
        %4219 = vmatpush1.bf16.msra.mxu0 %v3526
        %4220 = vmatprep.subr.bf16.mxu0 %v3529
        %4221 = vmatpush1.bf16.msra.mxu0 %v3528
        %4222 = vmatprep.subr.bf16.mxu0 %v3531
        %4223 = vmatpush1.bf16.msra.mxu0 %v3530
        %4224 = vmatprep.subr.bf16.mxu0 0
        %4225 = vmatpush1.bf16.msra.mxu0 0
        %4226 = vmatprep.subr.bf16.mxu0 0
        %4227 = vmatpush1.bf16.msra.mxu0 0
        %4228 = vmatprep.subr.bf16.mxu0 0
        %4229 = vmatpush1.bf16.msra.mxu0 0
        %4230 = vmatprep.subr.bf16.mxu0 0
        %4231 = vmatpush1.bf16.msra.mxu0 0
        %4232 = vmatprep.subr.bf16.mxu0 0
        %4233 = vmatpush1.bf16.msra.mxu0 0
        %4234 = vmatprep.subr.bf16.mxu0 0
        %4235 = vmatpush1.bf16.msra.mxu0 0
        %4236 = vmatprep.subr.bf16.mxu0 0
        %4237 = vmatpush1.bf16.msra.mxu0 0
        %4238 = vmatprep.subr.bf16.mxu0 0
        %4239 = vmatpush1.bf16.msra.mxu0 0
        %4240 = vmatprep.mubr.bf16.mxu0 0
        %4241 = vmatmul.mubr.bf16.gmra.mrb[0].mxu0 %v2718
        %v4242 = vpop.f32.mrb[0].mxu0
        %v4243 = vadd.f32 %v4110, %v4242
        %v4244 = vpop.f32.mrb[0].mxu0
        %v4245 = vadd.f32 %v4112, %v4244
        %v4246 = vpop.f32.mrb[0].mxu0
        %v4247 = vadd.f32 %v4114, %v4246
        %v4248 = vpop.f32.mrb[0].mxu0
        %v4249 = vadd.f32 %v4116, %v4248
        %4250 = vmatprep.mubr.bf16.mxu0 0
        %4251 = vmatmul.mubr.bf16.gmra.mrb[0].mxu0 %v2727
        %v4252 = vpop.f32.mrb[0].mxu0
        %v4253 = vadd.f32 %v4120, %v4252
        %v4254 = vpop.f32.mrb[0].mxu0
        %v4255 = vadd.f32 %v4122, %v4254
        %v4256 = vpop.f32.mrb[0].mxu0
        %v4257 = vadd.f32 %v4124, %v4256
        %v4258 = vpop.f32.mrb[0].mxu0
        %v4259 = vadd.f32 %v4126, %v4258
        %4260 = vmatprep.mubr.bf16.mxu0 0
        %4261 = vmatmul.mubr.bf16.gmra.mrb[0].mxu0 %v2736
        %v4262 = vpop.f32.mrb[0].mxu0
        %v4263 = vadd.f32 %v4130, %v4262
        %v4264 = vpop.f32.mrb[0].mxu0
        %v4265 = vadd.f32 %v4132, %v4264
        %v4266 = vpop.f32.mrb[0].mxu0
        %v4267 = vadd.f32 %v4134, %v4266
        %v4268 = vpop.f32.mrb[0].mxu0
        %v4269 = vadd.f32 %v4136, %v4268
        %4270 = vmatprep.mubr.bf16.mxu0 0
        %4271 = vmatmul.mubr.bf16.gmra.mrb[0].mxu0 %v2745
        %v4272 = vpop.f32.mrb[0].mxu0
        %v4273 = vadd.f32 %v4140, %v4272
        %v4274 = vpop.f32.mrb[0].mxu0
        %v4275 = vadd.f32 %v4142, %v4274
        %v4276 = vpop.f32.mrb[0].mxu0
        %v4277 = vadd.f32 %v4144, %v4276
        %v4278 = vpop.f32.mrb[0].mxu0
        %v4279 = vadd.f32 %v4146, %v4278
        %4280 = vmatprep.mubr.bf16.mxu0 0
        %4281 = vmatmul.mubr.bf16.gmra.mrb[0].mxu0 %v2754
        %v4282 = vpop.f32.mrb[0].mxu0
        %v4283 = vadd.f32 %v4150, %v4282
        %v4284 = vpop.f32.mrb[0].mxu0
        %v4285 = vadd.f32 %v4152, %v4284
        %v4286 = vpop.f32.mrb[0].mxu0
        %v4287 = vadd.f32 %v4154, %v4286
        %v4288 = vpop.f32.mrb[0].mxu0
        %v4289 = vadd.f32 %v4156, %v4288
        %4290 = vmatprep.mubr.bf16.mxu0 0
        %4291 = vmatmul.mubr.bf16.gmra.mrb[0].mxu0 %v2763
        %v4292 = vpop.f32.mrb[0].mxu0
        %v4293 = vadd.f32 %v4160, %v4292
        %v4294 = vpop.f32.mrb[0].mxu0
        %v4295 = vadd.f32 %v4162, %v4294
        %v4296 = vpop.f32.mrb[0].mxu0
        %v4297 = vadd.f32 %v4164, %v4296
        %v4298 = vpop.f32.mrb[0].mxu0
        %v4299 = vadd.f32 %v4166, %v4298
        %4300 = vmatprep.mubr.bf16.mxu0 0
        %4301 = vmatmul.mubr.bf16.gmra.mrb[0].mxu0 %v2772
        %v4302 = vpop.f32.mrb[0].mxu0
        %v4303 = vadd.f32 %v4170, %v4302
        %v4304 = vpop.f32.mrb[0].mxu0
        %v4305 = vadd.f32 %v4172, %v4304
        %v4306 = vpop.f32.mrb[0].mxu0
        %v4307 = vadd.f32 %v4174, %v4306
        %v4308 = vpop.f32.mrb[0].mxu0
        %v4309 = vadd.f32 %v4176, %v4308
        %4310 = vmatprep.mubr.bf16.mxu0 0
        %4311 = vmatmul.mubr.bf16.gmra.mrb[0].mxu0 %v2781
        %v4312 = vpop.f32.mrb[0].mxu0
        %v4313 = vadd.f32 %v4180, %v4312
        %v4314 = vpop.f32.mrb[0].mxu0
        %v4315 = vadd.f32 %v4182, %v4314
        %v4316 = vpop.f32.mrb[0].mxu0
        %v4317 = vadd.f32 %v4184, %v4316
        %v4318 = vpop.f32.mrb[0].mxu0
        %v4319 = vadd.f32 %v4186, %v4318
        %4320 = vmatprep.mubr.bf16.mxu0 0
        %4321 = vmatmul.mubr.bf16.gmra.mrb[0].mxu0 %v2790
        %v4322 = vpop.f32.mrb[0].mxu0
        %v4323 = vadd.f32 %v4190, %v4322
        %v4324 = vpop.f32.mrb[0].mxu0
        %v4325 = vadd.f32 %v4192, %v4324
        %v4326 = vpop.f32.mrb[0].mxu0
        %v4327 = vadd.f32 %v4194, %v4326
        %v4328 = vpop.f32.mrb[0].mxu0
        %v4329 = vadd.f32 %v4196, %v4328
        %4330 = vmatprep.mubr.bf16.mxu0 0
        %4331 = vmatmul.mubr.bf16.gmra.mrb[0].mxu0 %v2799
        %v4332 = vpop.f32.mrb[0].mxu0
        %v4333 = vadd.f32 %v4200, %v4332
        %v4334 = vpop.f32.mrb[0].mxu0
        %v4335 = vadd.f32 %v4202, %v4334
        %v4336 = vpop.f32.mrb[0].mxu0
        %v4337 = vadd.f32 %v4204, %v4336
        %v4338 = vpop.f32.mrb[0].mxu0
        %v4339 = vadd.f32 %v4206, %v4338
        %4340 = vdwg.mxu0
        %v4341 = vmax.f32 %v4243, 0.0
        %v4342 = vmax.f32 %v4245, 0.0
        %v4343 = vmax.f32 %v4247, 0.0
        %v4344 = vmax.f32 %v4249, 0.0
        %v4345 = vmax.f32 %v4253, 0.0
        %v4346 = vmax.f32 %v4255, 0.0
        %v4347 = vmax.f32 %v4257, 0.0
        %v4348 = vmax.f32 %v4259, 0.0
        %v4349 = vmax.f32 %v4263, 0.0
        %v4350 = vmax.f32 %v4265, 0.0
        %v4351 = vmax.f32 %v4267, 0.0
        %v4352 = vmax.f32 %v4269, 0.0
        %v4353 = vmax.f32 %v4273, 0.0
        %v4354 = vmax.f32 %v4275, 0.0
        %v4355 = vmax.f32 %v4277, 0.0
        %v4356 = vmax.f32 %v4279, 0.0
        %v4357 = vmax.f32 %v4283, 0.0
        %v4358 = vmax.f32 %v4285, 0.0
        %v4359 = vmax.f32 %v4287, 0.0
        %v4360 = vmax.f32 %v4289, 0.0
        %v4361 = vmax.f32 %v4293, 0.0
        %v4362 = vmax.f32 %v4295, 0.0
        %v4363 = vmax.f32 %v4297, 0.0
        %v4364 = vmax.f32 %v4299, 0.0
        %v4365 = vmax.f32 %v4303, 0.0
        %v4366 = vmax.f32 %v4305, 0.0
        %v4367 = vmax.f32 %v4307, 0.0
        %v4368 = vmax.f32 %v4309, 0.0
        %v4369 = vmax.f32 %v4313, 0.0
        %v4370 = vmax.f32 %v4315, 0.0
        %v4371 = vmax.f32 %v4317, 0.0
        %v4372 = vmax.f32 %v4319, 0.0
        %v4373 = vmax.f32 %v4323, 0.0
        %v4374 = vmax.f32 %v4325, 0.0
        %v4375 = vmax.f32 %v4327, 0.0
        %v4376 = vmax.f32 %v4329, 0.0
        %v4377 = vmax.f32 %v4333, 0.0
        %v4378 = vmax.f32 %v4335, 0.0
        %v4379 = vmax.f32 %v4337, 0.0
        %v4380 = vmax.f32 %v4339, 0.0
        %4381 = vst [vmem:[#allocation4] sm:$0xff] 0.0
        %4382 = vst [vmem:[#allocation4 + $0x8] sm:$0xff] 0.0
        %4383 = vst [vmem:[#allocation4 + $0x10] sm:$0xff] 0.0
        %4384 = vst [vmem:[#allocation4 + $0x18] sm:$0xff] 0.0
        %4385 = vst [vmem:[#allocation4 + $0x20] sm:$0xff] 0.0
        %4386 = vst [vmem:[#allocation4 + $0x28] sm:$0xff] 0.0
        %4387 = vst [vmem:[#allocation4 + $0x30] sm:$0xff] 0.0
        %4388 = vst [vmem:[#allocation4 + $0x38] sm:$0xff] 0.0
        %4389 = vst [vmem:[#allocation4 + $0x40] sm:$0xff] 0.0
        %4390 = vst [vmem:[#allocation4 + $0x48] sm:$0xff] 0.0
        %4391 = vst [vmem:[#allocation4 + $0x50] sm:$0xff] 0.0
        %4392 = vst [vmem:[#allocation4 + $0x58] sm:$0xff] 0.0
        %4393 = vst [vmem:[#allocation4 + $0x60] sm:$0xff] 0.0
        %4394 = vst [vmem:[#allocation4 + $0x68] sm:$0xff] 0.0
        %4395 = vst [vmem:[#allocation4 + $0x70] sm:$0xff] 0.0
        %4396 = vst [vmem:[#allocation4 + $0x78] sm:$0xff] 0.0
        %4397 = vst [vmem:[#allocation4 + $0x80] sm:$0xff] 0.0
        %4398 = vst [vmem:[#allocation4 + $0x88] sm:$0xff] 0.0
        %4399 = vst [vmem:[#allocation4 + $0x90] sm:$0xff] 0.0
        %4400 = vst [vmem:[#allocation4 + $0x98] sm:$0xff] 0.0
        %4401 = vst [vmem:[#allocation4 + $0xa0] sm:$0xff] 0.0
        %4402 = vst [vmem:[#allocation4 + $0xa8] sm:$0xff] 0.0
        %4403 = vst [vmem:[#allocation4 + $0xb0] sm:$0xff] 0.0
        %4404 = vst [vmem:[#allocation4 + $0xb8] sm:$0xff] 0.0
        %4405 = vst [vmem:[#allocation4 + $0xc0] sm:$0xff] 0.0
        %4406 = vst [vmem:[#allocation4 + $0xc8] sm:$0xff] 0.0
        %4407 = vst [vmem:[#allocation4 + $0xd0] sm:$0xff] 0.0
        %4408 = vst [vmem:[#allocation4 + $0xd8] sm:$0xff] 0.0
        %4409 = vst [vmem:[#allocation4 + $0xe0] sm:$0xff] 0.0
        %4410 = vst [vmem:[#allocation4 + $0xe8] sm:$0xff] 0.0
        %4411 = vst [vmem:[#allocation4 + $0xf0] sm:$0xff] 0.0
        %4412 = vst [vmem:[#allocation4 + $0xf8] sm:$0xff] 0.0
        %4413 = vst [vmem:[#allocation4 + $0x100] sm:$0xff] 0.0
        %4414 = vst [vmem:[#allocation4 + $0x108] sm:$0xff] 0.0
        %4415 = vst [vmem:[#allocation4 + $0x110] sm:$0xff] 0.0
        %4416 = vst [vmem:[#allocation4 + $0x118] sm:$0xff] 0.0
        %4417 = vst [vmem:[#allocation4 + $0x120] sm:$0xff] 0.0
        %4418 = vst [vmem:[#allocation4 + $0x128] sm:$0xff] 0.0
        %4419 = vst [vmem:[#allocation4 + $0x130] sm:$0xff] 0.0
        %4420 = vst [vmem:[#allocation4 + $0x138] sm:$0xff] 0.0
        %4421 = vst [vmem:[#allocation4 + $0x140] sm:$0xff] 0.0
        %4422 = vst [vmem:[#allocation4 + $0x148] sm:$0xff] 0.0
        %4423 = vst [vmem:[#allocation4 + $0x150] sm:$0xff] 0.0
        %4424 = vst [vmem:[#allocation4 + $0x158] sm:$0xff] 0.0
        %4425 = vst [vmem:[#allocation4 + $0x160] sm:$0xff] 0.0
        %4426 = vst [vmem:[#allocation4 + $0x168] sm:$0xff] 0.0
        %4427 = vst [vmem:[#allocation4 + $0x170] sm:$0xff] 0.0
        %4428 = vst [vmem:[#allocation4 + $0x178] sm:$0xff] 0.0
        %4429 = vst [vmem:[#allocation4 + $0x180] sm:$0xff] 0.0
        %4430 = vst [vmem:[#allocation4 + $0x188] sm:$0xff] 0.0
        %4431 = vst [vmem:[#allocation4 + $0x190] sm:$0xff] 0.0
        %4432 = vst [vmem:[#allocation4 + $0x198] sm:$0xff] 0.0
        %4433 = vst [vmem:[#allocation4 + $0x1a0] sm:$0xff] 0.0
        %4434 = vst [vmem:[#allocation4 + $0x1a8] sm:$0xff] 0.0
        %4435 = vst [vmem:[#allocation4 + $0x1b0] sm:$0xff] 0.0
        %4436 = vst [vmem:[#allocation4 + $0x1b8] sm:$0xff] 0.0
        %4437 = vst [vmem:[#allocation4 + $0x1c0] sm:$0xff] 0.0
        %4438 = vst [vmem:[#allocation4 + $0x1c8] sm:$0xff] 0.0
        %4439 = vst [vmem:[#allocation4 + $0x1d0] sm:$0xff] 0.0
        %4440 = vst [vmem:[#allocation4 + $0x1d8] sm:$0xff] 0.0
        %vm4481 = vcmask 1040384
        %v4482 = vrot.slane %v4341, 7
        %v4483 = vrot.slane %v4342, 7
        %v4484 = vrot.slane %v4343, 7
        %v4485 = vsel %vm4481, %v4482, %v4484
        %v4486 = vrot.slane %v4344, 7
        %v4487 = vsel %vm4481, %v4483, %v4486
        %v4488 = vrot.slane %v4345, 7
        %v4489 = vrot.slane %v4346, 7
        %v4490 = vrot.slane %v4347, 7
        %v4491 = vsel %vm4481, %v4488, %v4490
        %v4492 = vrot.slane %v4348, 7
        %v4493 = vsel %vm4481, %v4489, %v4492
        %v4494 = vrot.slane %v4349, 7
        %v4495 = vrot.slane %v4350, 7
        %v4496 = vrot.slane %v4351, 7
        %v4497 = vsel %vm4481, %v4494, %v4496
        %v4498 = vrot.slane %v4352, 7
        %v4499 = vsel %vm4481, %v4495, %v4498
        %v4500 = vrot.slane %v4353, 7
        %v4501 = vrot.slane %v4354, 7
        %v4502 = vrot.slane %v4355, 7
        %v4503 = vsel %vm4481, %v4500, %v4502
        %v4504 = vrot.slane %v4356, 7
        %v4505 = vsel %vm4481, %v4501, %v4504
        %v4506 = vrot.slane %v4357, 7
        %v4507 = vrot.slane %v4358, 7
        %v4508 = vrot.slane %v4359, 7
        %v4509 = vsel %vm4481, %v4506, %v4508
        %v4510 = vrot.slane %v4360, 7
        %v4511 = vsel %vm4481, %v4507, %v4510
        %v4512 = vrot.slane %v4361, 7
        %v4513 = vrot.slane %v4362, 7
        %v4514 = vrot.slane %v4363, 7
        %v4515 = vsel %vm4481, %v4512, %v4514
        %v4516 = vrot.slane %v4364, 7
        %v4517 = vsel %vm4481, %v4513, %v4516
        %v4518 = vrot.slane %v4365, 7
        %v4519 = vrot.slane %v4366, 7
        %v4520 = vrot.slane %v4367, 7
        %v4521 = vsel %vm4481, %v4518, %v4520
        %v4522 = vrot.slane %v4368, 7
        %v4523 = vsel %vm4481, %v4519, %v4522
        %v4524 = vrot.slane %v4369, 7
        %v4525 = vrot.slane %v4370, 7
        %v4526 = vrot.slane %v4371, 7
        %v4527 = vsel %vm4481, %v4524, %v4526
        %v4528 = vrot.slane %v4372, 7
        %v4529 = vsel %vm4481, %v4525, %v4528
        %v4530 = vrot.slane %v4373, 7
        %v4531 = vrot.slane %v4374, 7
        %v4532 = vrot.slane %v4375, 7
        %v4533 = vsel %vm4481, %v4530, %v4532
        %v4534 = vrot.slane %v4376, 7
        %v4535 = vsel %vm4481, %v4531, %v4534
        %v4536 = vrot.slane %v4377, 7
        %v4537 = vrot.slane %v4378, 7
        %v4538 = vrot.slane %v4379, 7
        %v4539 = vsel %vm4481, %v4536, %v4538
        %v4540 = vrot.slane %v4380, 7
        %v4541 = vsel %vm4481, %v4537, %v4540
        %4602 = vst [vmem:[#allocation4] sm:$0xfe] %v4482
        %4603 = vst [vmem:[#allocation4 + $0x8] sm:$0xfe] %v4483
        %4604 = vst [vmem:[#allocation4 + $0x10] sm:$0xff] %v4485
        %4605 = vst [vmem:[#allocation4 + $0x18] sm:$0xff] %v4487
        %4606 = vst [vmem:[#allocation4 + $0x20] sm:$0x1] %v4484
        %4607 = vst [vmem:[#allocation4 + $0x28] sm:$0x1] %v4486
        %4608 = vst [vmem:[#allocation4 + $0x30] sm:$0xfe] %v4488
        %4609 = vst [vmem:[#allocation4 + $0x38] sm:$0xfe] %v4489
        %4610 = vst [vmem:[#allocation4 + $0x40] sm:$0xff] %v4491
        %4611 = vst [vmem:[#allocation4 + $0x48] sm:$0xff] %v4493
        %4612 = vst [vmem:[#allocation4 + $0x50] sm:$0x1] %v4490
        %4613 = vst [vmem:[#allocation4 + $0x58] sm:$0x1] %v4492
        %4614 = vst [vmem:[#allocation4 + $0x60] sm:$0xfe] %v4494
        %4615 = vst [vmem:[#allocation4 + $0x68] sm:$0xfe] %v4495
        %4616 = vst [vmem:[#allocation4 + $0x70] sm:$0xff] %v4497
        %4617 = vst [vmem:[#allocation4 + $0x78] sm:$0xff] %v4499
        %4618 = vst [vmem:[#allocation4 + $0x80] sm:$0x1] %v4496
        %4619 = vst [vmem:[#allocation4 + $0x88] sm:$0x1] %v4498
        %4620 = vst [vmem:[#allocation4 + $0x90] sm:$0xfe] %v4500
        %4621 = vst [vmem:[#allocation4 + $0x98] sm:$0xfe] %v4501
        %4622 = vst [vmem:[#allocation4 + $0xa0] sm:$0xff] %v4503
        %4623 = vst [vmem:[#allocation4 + $0xa8] sm:$0xff] %v4505
        %4624 = vst [vmem:[#allocation4 + $0xb0] sm:$0x1] %v4502
        %4625 = vst [vmem:[#allocation4 + $0xb8] sm:$0x1] %v4504
        %4626 = vst [vmem:[#allocation4 + $0xc0] sm:$0xfe] %v4506
        %4627 = vst [vmem:[#allocation4 + $0xc8] sm:$0xfe] %v4507
        %4628 = vst [vmem:[#allocation4 + $0xd0] sm:$0xff] %v4509
        %4629 = vst [vmem:[#allocation4 + $0xd8] sm:$0xff] %v4511
        %4630 = vst [vmem:[#allocation4 + $0xe0] sm:$0x1] %v4508
        %4631 = vst [vmem:[#allocation4 + $0xe8] sm:$0x1] %v4510
        %4632 = vst [vmem:[#allocation4 + $0xf0] sm:$0xfe] %v4512
        %4633 = vst [vmem:[#allocation4 + $0xf8] sm:$0xfe] %v4513
        %4634 = vst [vmem:[#allocation4 + $0x100] sm:$0xff] %v4515
        %4635 = vst [vmem:[#allocation4 + $0x108] sm:$0xff] %v4517
        %4636 = vst [vmem:[#allocation4 + $0x110] sm:$0x1] %v4514
        %4637 = vst [vmem:[#allocation4 + $0x118] sm:$0x1] %v4516
        %4638 = vst [vmem:[#allocation4 + $0x120] sm:$0xfe] %v4518
        %4639 = vst [vmem:[#allocation4 + $0x128] sm:$0xfe] %v4519
        %4640 = vst [vmem:[#allocation4 + $0x130] sm:$0xff] %v4521
        %4641 = vst [vmem:[#allocation4 + $0x138] sm:$0xff] %v4523
        %4642 = vst [vmem:[#allocation4 + $0x140] sm:$0x1] %v4520
        %4643 = vst [vmem:[#allocation4 + $0x148] sm:$0x1] %v4522
        %4644 = vst [vmem:[#allocation4 + $0x150] sm:$0xfe] %v4524
        %4645 = vst [vmem:[#allocation4 + $0x158] sm:$0xfe] %v4525
        %4646 = vst [vmem:[#allocation4 + $0x160] sm:$0xff] %v4527
        %4647 = vst [vmem:[#allocation4 + $0x168] sm:$0xff] %v4529
        %4648 = vst [vmem:[#allocation4 + $0x170] sm:$0x1] %v4526
        %4649 = vst [vmem:[#allocation4 + $0x178] sm:$0x1] %v4528
        %4650 = vst [vmem:[#allocation4 + $0x180] sm:$0xfe] %v4530
        %4651 = vst [vmem:[#allocation4 + $0x188] sm:$0xfe] %v4531
        %4652 = vst [vmem:[#allocation4 + $0x190] sm:$0xff] %v4533
        %4653 = vst [vmem:[#allocation4 + $0x198] sm:$0xff] %v4535
        %4654 = vst [vmem:[#allocation4 + $0x1a0] sm:$0x1] %v4532
        %4655 = vst [vmem:[#allocation4 + $0x1a8] sm:$0x1] %v4534
        %4656 = vst [vmem:[#allocation4 + $0x1b0] sm:$0xfe] %v4536
        %4657 = vst [vmem:[#allocation4 + $0x1b8] sm:$0xfe] %v4537
        %4658 = vst [vmem:[#allocation4 + $0x1c0] sm:$0xff] %v4539
        %4659 = vst [vmem:[#allocation4 + $0x1c8] sm:$0xff] %v4541
        %4660 = vst [vmem:[#allocation4 + $0x1d0] sm:$0x1] %v4538
        %4661 = vst [vmem:[#allocation4 + $0x1d8] sm:$0x1] %v4540
        // Predicated region
        $region57: #{tpu_custom_call.1} parent=39 // pred_check
          %p4662 = pneg %p289
        $region58: #{tpu_custom_call.1} parent=39 // pred_check_branch
          %4664 = sbr.rel (%p4662) target = $region60
        $region59: #{tpu_custom_call.1} parent=39 // pred_region
          %4665 = vst [vmem:[#allocation4] sm:$0xff] 0.0
          %4666 = vst [vmem:[#allocation4 + $0x8] sm:$0xff] 0.0
          %4667 = vst [vmem:[#allocation4 + $0x10] sm:$0xff] 0.0
          %4668 = vst [vmem:[#allocation4 + $0x18] sm:$0xff] 0.0
          %4669 = vst [vmem:[#allocation4 + $0x20] sm:$0xff] 0.0
          %4670 = vst [vmem:[#allocation4 + $0x28] sm:$0xff] 0.0
        $region60: #{tpu_custom_call.1} parent=39 // pred_fallthru
          _
        %p4671 = scmp.eq.s32.totalorder %s30, 1
        // Predicated region
        $region61: #{tpu_custom_call.1} parent=39 // pred_check
          %p4672 = pneg %p4671
        $region62: #{tpu_custom_call.1} parent=39 // pred_check_branch
          %4674 = sbr.rel (%p4672) target = $region64
        $region63: #{tpu_custom_call.1} parent=39 // pred_region
          %s4675 = scalar_lea.vmem [#allocation4], 432
          %4676 = vst [vmem:[%s4675] sm:$0xff] 0.0
          %4677 = vst [vmem:[%s4675 + $0x8] sm:$0xff] 0.0
          %4678 = vst [vmem:[%s4675 + $0x10] sm:$0xff] 0.0
          %4679 = vst [vmem:[%s4675 + $0x18] sm:$0xff] 0.0
          %4680 = vst [vmem:[%s4675 + $0x20] sm:$0xff] 0.0
          %4681 = vst [vmem:[%s4675 + $0x28] sm:$0xff] 0.0
        $region64: #{tpu_custom_call.1} parent=39 // pred_fallthru
          _
        %v4682 = vld [vmem:[#allocation4] sm:$0xff]
        %v4683 = vld [vmem:[#allocation4 + $0x8] sm:$0xff]
        %v4684 = vld [vmem:[#allocation4 + $0x10] sm:$0xff]
        %v4685 = vld [vmem:[#allocation4 + $0x18] sm:$0xff]
        %v4686 = vld [vmem:[#allocation4 + $0x30] sm:$0xff]
        %v4687 = vld [vmem:[#allocation4 + $0x38] sm:$0xff]
        %v4688 = vld [vmem:[#allocation4 + $0x40] sm:$0xff]
        %v4689 = vld [vmem:[#allocation4 + $0x48] sm:$0xff]
        %v4690 = vld [vmem:[#allocation4 + $0x60] sm:$0xff]
        %v4691 = vld [vmem:[#allocation4 + $0x68] sm:$0xff]
        %v4692 = vld [vmem:[#allocation4 + $0x70] sm:$0xff]
        %v4693 = vld [vmem:[#allocation4 + $0x78] sm:$0xff]
        %v4694 = vld [vmem:[#allocation4 + $0x90] sm:$0xff]
        %v4695 = vld [vmem:[#allocation4 + $0x98] sm:$0xff]
        %v4696 = vld [vmem:[#allocation4 + $0xa0] sm:$0xff]
        %v4697 = vld [vmem:[#allocation4 + $0xa8] sm:$0xff]
        %v4698 = vld [vmem:[#allocation4 + $0xc0] sm:$0xff]
        %v4699 = vld [vmem:[#allocation4 + $0xc8] sm:$0xff]
        %v4700 = vld [vmem:[#allocation4 + $0xd0] sm:$0xff]
        %v4701 = vld [vmem:[#allocation4 + $0xd8] sm:$0xff]
        %v4702 = vld [vmem:[#allocation4 + $0xf0] sm:$0xff]
        %v4703 = vld [vmem:[#allocation4 + $0xf8] sm:$0xff]
        %v4704 = vld [vmem:[#allocation4 + $0x100] sm:$0xff]
        %v4705 = vld [vmem:[#allocation4 + $0x108] sm:$0xff]
        %v4706 = vld [vmem:[#allocation4 + $0x120] sm:$0xff]
        %v4707 = vld [vmem:[#allocation4 + $0x128] sm:$0xff]
        %v4708 = vld [vmem:[#allocation4 + $0x130] sm:$0xff]
        %v4709 = vld [vmem:[#allocation4 + $0x138] sm:$0xff]
        %v4710 = vld [vmem:[#allocation4 + $0x150] sm:$0xff]
        %v4711 = vld [vmem:[#allocation4 + $0x158] sm:$0xff]
        %v4712 = vld [vmem:[#allocation4 + $0x160] sm:$0xff]
        %v4713 = vld [vmem:[#allocation4 + $0x168] sm:$0xff]
        %v4714 = vld [vmem:[#allocation11] sm:$0x3]
        %v4716 = vlaneseq
        %v4717 = vshrl.u32 %v4716, 7
        %v4718 = vsub.s32 0, %v4717
        %v4719 = vrot.slane %v4714, %v4718
        %v4720 = vlaneseq
        %v4721 = vshrl.u32 %v4720, 7
        %v4722 = vsub.s32 1, %v4721
        %v4723 = vrot.slane %v4714, %v4722
        %v4726 = vmul.f32 %v4682, %v4719
        %v4727 = vmul.f32 %v4683, %v4723
        %v4728 = vmul.f32 %v4684, %v4719
        %v4729 = vmul.f32 %v4685, %v4723
        %v4730 = vmul.f32 %v4686, %v4719
        %v4731 = vmul.f32 %v4687, %v4723
        %v4732 = vmul.f32 %v4688, %v4719
        %v4733 = vmul.f32 %v4689, %v4723
        %v4734 = vmul.f32 %v4690, %v4719
        %v4735 = vmul.f32 %v4691, %v4723
        %v4736 = vmul.f32 %v4692, %v4719
        %v4737 = vmul.f32 %v4693, %v4723
        %v4738 = vmul.f32 %v4694, %v4719
        %v4739 = vmul.f32 %v4695, %v4723
        %v4740 = vmul.f32 %v4696, %v4719
        %v4741 = vmul.f32 %v4697, %v4723
        %v4742 = vmul.f32 %v4698, %v4719
        %v4743 = vmul.f32 %v4699, %v4723
        %v4744 = vmul.f32 %v4700, %v4719
        %v4745 = vmul.f32 %v4701, %v4723
        %v4746 = vmul.f32 %v4702, %v4719
        %v4747 = vmul.f32 %v4703, %v4723
        %v4748 = vmul.f32 %v4704, %v4719
        %v4749 = vmul.f32 %v4705, %v4723
        %v4750 = vmul.f32 %v4706, %v4719
        %v4751 = vmul.f32 %v4707, %v4723
        %v4752 = vmul.f32 %v4708, %v4719
        %v4753 = vmul.f32 %v4709, %v4723
        %v4754 = vmul.f32 %v4710, %v4719
        %v4755 = vmul.f32 %v4711, %v4723
        %v4756 = vmul.f32 %v4712, %v4719
        %v4757 = vmul.f32 %v4713, %v4723
        %v4758 = vadd.f32 %v4726, %v4727
        %4759 = vadd.xlane.f32.xlu0 %v4758
        %v4760 = vpop.xlane.xlu0 %4759
        %v4761 = vadd.f32 %v4728, %v4729
        %4762 = vadd.xlane.f32.xlu0 %v4761
        %v4763 = vpop.xlane.xlu0 %4762
        %v4764 = vadd.f32 %v4730, %v4731
        %4765 = vadd.xlane.f32.xlu0 %v4764
        %v4766 = vpop.xlane.xlu0 %4765
        %v4767 = vadd.f32 %v4732, %v4733
        %4768 = vadd.xlane.f32.xlu0 %v4767
        %v4769 = vpop.xlane.xlu0 %4768
        %v4770 = vadd.f32 %v4734, %v4735
        %4771 = vadd.xlane.f32.xlu0 %v4770
        %v4772 = vpop.xlane.xlu0 %4771
        %v4773 = vadd.f32 %v4736, %v4737
        %4774 = vadd.xlane.f32.xlu0 %v4773
        %v4775 = vpop.xlane.xlu0 %4774
        %v4776 = vadd.f32 %v4738, %v4739
        %4777 = vadd.xlane.f32.xlu0 %v4776
        %v4778 = vpop.xlane.xlu0 %4777
        %v4779 = vadd.f32 %v4740, %v4741
        %4780 = vadd.xlane.f32.xlu0 %v4779
        %v4781 = vpop.xlane.xlu0 %4780
        %v4782 = vadd.f32 %v4742, %v4743
        %4783 = vadd.xlane.f32.xlu0 %v4782
        %v4784 = vpop.xlane.xlu0 %4783
        %v4785 = vadd.f32 %v4744, %v4745
        %4786 = vadd.xlane.f32.xlu0 %v4785
        %v4787 = vpop.xlane.xlu0 %4786
        %v4788 = vadd.f32 %v4746, %v4747
        %4789 = vadd.xlane.f32.xlu0 %v4788
        %v4790 = vpop.xlane.xlu0 %4789
        %v4791 = vadd.f32 %v4748, %v4749
        %4792 = vadd.xlane.f32.xlu0 %v4791
        %v4793 = vpop.xlane.xlu0 %4792
        %v4794 = vadd.f32 %v4750, %v4751
        %4795 = vadd.xlane.f32.xlu0 %v4794
        %v4796 = vpop.xlane.xlu0 %4795
        %v4797 = vadd.f32 %v4752, %v4753
        %4798 = vadd.xlane.f32.xlu0 %v4797
        %v4799 = vpop.xlane.xlu0 %4798
        %v4800 = vadd.f32 %v4754, %v4755
        %4801 = vadd.xlane.f32.xlu0 %v4800
        %v4802 = vpop.xlane.xlu0 %4801
        %v4803 = vadd.f32 %v4756, %v4757
        %4804 = vadd.xlane.f32.xlu0 %v4803
        %v4805 = vpop.xlane.xlu0 %4804
        %v4806 = vadd.f32 %v4760, 0.0
        %v4807 = vadd.f32 %v4763, 0.0
        %v4808 = vadd.f32 %v4766, 0.0
        %v4809 = vadd.f32 %v4769, 0.0
        %v4810 = vadd.f32 %v4772, 0.0
        %v4811 = vadd.f32 %v4775, 0.0
        %v4812 = vadd.f32 %v4778, 0.0
        %v4813 = vadd.f32 %v4781, 0.0
        %v4814 = vadd.f32 %v4784, 0.0
        %v4815 = vadd.f32 %v4787, 0.0
        %v4816 = vadd.f32 %v4790, 0.0
        %v4817 = vadd.f32 %v4793, 0.0
        %v4818 = vadd.f32 %v4796, 0.0
        %v4819 = vadd.f32 %v4799, 0.0
        %v4820 = vadd.f32 %v4802, 0.0
        %v4821 = vadd.f32 %v4805, 0.0
        %v4822 = vld [vmem:[#allocation4] sm:$0xfe]
        %v4823 = vld [vmem:[#allocation4 + $0x8] sm:$0xfe]
        %v4824 = vld [vmem:[#allocation4 + $0x20] sm:$0x1]
        %v4825 = vld [vmem:[#allocation4 + $0x28] sm:$0x1]
        %v4826 = vld [vmem:[#allocation4 + $0x30] sm:$0xfe]
        %v4827 = vld [vmem:[#allocation4 + $0x38] sm:$0xfe]
        %v4828 = vld [vmem:[#allocation4 + $0x50] sm:$0x1]
        %v4829 = vld [vmem:[#allocation4 + $0x58] sm:$0x1]
        %v4830 = vld [vmem:[#allocation4 + $0x60] sm:$0xfe]
        %v4831 = vld [vmem:[#allocation4 + $0x68] sm:$0xfe]
        %v4832 = vld [vmem:[#allocation4 + $0x80] sm:$0x1]
        %v4833 = vld [vmem:[#allocation4 + $0x88] sm:$0x1]
        %v4834 = vld [vmem:[#allocation4 + $0x90] sm:$0xfe]
        %v4835 = vld [vmem:[#allocation4 + $0x98] sm:$0xfe]
        %v4836 = vld [vmem:[#allocation4 + $0xb0] sm:$0x1]
        %v4837 = vld [vmem:[#allocation4 + $0xb8] sm:$0x1]
        %v4838 = vld [vmem:[#allocation4 + $0xc0] sm:$0xfe]
        %v4839 = vld [vmem:[#allocation4 + $0xc8] sm:$0xfe]
        %v4840 = vld [vmem:[#allocation4 + $0xe0] sm:$0x1]
        %v4841 = vld [vmem:[#allocation4 + $0xe8] sm:$0x1]
        %v4842 = vld [vmem:[#allocation4 + $0xf0] sm:$0xfe]
        %v4843 = vld [vmem:[#allocation4 + $0xf8] sm:$0xfe]
        %v4844 = vld [vmem:[#allocation4 + $0x110] sm:$0x1]
        %v4845 = vld [vmem:[#allocation4 + $0x118] sm:$0x1]
        %v4846 = vld [vmem:[#allocation4 + $0x120] sm:$0xfe]
        %v4847 = vld [vmem:[#allocation4 + $0x128] sm:$0xfe]
        %v4848 = vld [vmem:[#allocation4 + $0x140] sm:$0x1]
        %v4849 = vld [vmem:[#allocation4 + $0x148] sm:$0x1]
        %v4850 = vld [vmem:[#allocation4 + $0x150] sm:$0xfe]
        %v4851 = vld [vmem:[#allocation4 + $0x158] sm:$0xfe]
        %v4852 = vld [vmem:[#allocation4 + $0x170] sm:$0x1]
        %v4853 = vld [vmem:[#allocation4 + $0x178] sm:$0x1]
        %s4854 = scalar_lea.vmem [#allocation11], 2
        %v4855 = vld [vmem:[%s4854] sm:$0x3]
        %v4857 = vlaneseq
        %v4858 = vshrl.u32 %v4857, 7
        %v4859 = vsub.s32 0, %v4858
        %v4860 = vrot.slane %v4855, %v4859
        %v4861 = vlaneseq
        %v4862 = vshrl.u32 %v4861, 7
        %v4863 = vsub.s32 1, %v4862
        %v4864 = vrot.slane %v4855, %v4863
        %v4867 = vmul.f32 %v4822, %v4860
        %v4868 = vmul.f32 %v4823, %v4864
        %v4869 = vmul.f32 %v4684, %v4860
        %v4870 = vmul.f32 %v4685, %v4864
        %v4871 = vmul.f32 %v4824, %v4860
        %v4872 = vmul.f32 %v4825, %v4864
        %v4873 = vmul.f32 %v4826, %v4860
        %v4874 = vmul.f32 %v4827, %v4864
        %v4875 = vmul.f32 %v4688, %v4860
        %v4876 = vmul.f32 %v4689, %v4864
        %v4877 = vmul.f32 %v4828, %v4860
        %v4878 = vmul.f32 %v4829, %v4864
        %v4879 = vmul.f32 %v4830, %v4860
        %v4880 = vmul.f32 %v4831, %v4864
        %v4881 = vmul.f32 %v4692, %v4860
        %v4882 = vmul.f32 %v4693, %v4864
        %v4883 = vmul.f32 %v4832, %v4860
        %v4884 = vmul.f32 %v4833, %v4864
        %v4885 = vmul.f32 %v4834, %v4860
        %v4886 = vmul.f32 %v4835, %v4864
        %v4887 = vmul.f32 %v4696, %v4860
        %v4888 = vmul.f32 %v4697, %v4864
        %v4889 = vmul.f32 %v4836, %v4860
        %v4890 = vmul.f32 %v4837, %v4864
        %v4891 = vmul.f32 %v4838, %v4860
        %v4892 = vmul.f32 %v4839, %v4864
        %v4893 = vmul.f32 %v4700, %v4860
        %v4894 = vmul.f32 %v4701, %v4864
        %v4895 = vmul.f32 %v4840, %v4860
        %v4896 = vmul.f32 %v4841, %v4864
        %v4897 = vmul.f32 %v4842, %v4860
        %v4898 = vmul.f32 %v4843, %v4864
        %v4899 = vmul.f32 %v4704, %v4860
        %v4900 = vmul.f32 %v4705, %v4864
        %v4901 = vmul.f32 %v4844, %v4860
        %v4902 = vmul.f32 %v4845, %v4864
        %v4903 = vmul.f32 %v4846, %v4860
        %v4904 = vmul.f32 %v4847, %v4864
        %v4905 = vmul.f32 %v4708, %v4860
        %v4906 = vmul.f32 %v4709, %v4864
        %v4907 = vmul.f32 %v4848, %v4860
        %v4908 = vmul.f32 %v4849, %v4864
        %v4909 = vmul.f32 %v4850, %v4860
        %v4910 = vmul.f32 %v4851, %v4864
        %v4911 = vmul.f32 %v4712, %v4860
        %v4912 = vmul.f32 %v4713, %v4864
        %v4913 = vmul.f32 %v4852, %v4860
        %v4914 = vmul.f32 %v4853, %v4864
        %vm4915 = vcmask 1047553
        %v4916 = vsel %vm4915, %v4867, 0.0
        %v4917 = vsel %vm4915, %v4868, 0.0
        %v4918 = vadd.f32 %v4916, %v4917
        %4919 = vadd.xlane.f32.xlu0 %v4918
        %v4920 = vpop.xlane.xlu0 %4919
        %v4921 = vadd.f32 %v4869, %v4870
        %4922 = vadd.xlane.f32.xlu0 %v4921
        %v4923 = vpop.xlane.xlu0 %4922
        %v4924 = vsel %vm4481, %v4871, 0.0
        %v4925 = vsel %vm4481, %v4872, 0.0
        %v4926 = vadd.f32 %v4924, %v4925
        %4927 = vadd.xlane.f32.xlu0 %v4926
        %v4928 = vpop.xlane.xlu0 %4927
        %v4929 = vsel %vm4915, %v4873, 0.0
        %v4930 = vsel %vm4915, %v4874, 0.0
        %v4931 = vadd.f32 %v4929, %v4930
        %4932 = vadd.xlane.f32.xlu0 %v4931
        %v4933 = vpop.xlane.xlu0 %4932
        %v4934 = vadd.f32 %v4875, %v4876
        %4935 = vadd.xlane.f32.xlu0 %v4934
        %v4936 = vpop.xlane.xlu0 %4935
        %v4937 = vsel %vm4481, %v4877, 0.0
        %v4938 = vsel %vm4481, %v4878, 0.0
        %v4939 = vadd.f32 %v4937, %v4938
        %4940 = vadd.xlane.f32.xlu0 %v4939
        %v4941 = vpop.xlane.xlu0 %4940
        %v4942 = vsel %vm4915, %v4879, 0.0
        %v4943 = vsel %vm4915, %v4880, 0.0
        %v4944 = vadd.f32 %v4942, %v4943
        %4945 = vadd.xlane.f32.xlu0 %v4944
        %v4946 = vpop.xlane.xlu0 %4945
        %v4947 = vadd.f32 %v4881, %v4882
        %4948 = vadd.xlane.f32.xlu0 %v4947
        %v4949 = vpop.xlane.xlu0 %4948
        %v4950 = vsel %vm4481, %v4883, 0.0
        %v4951 = vsel %vm4481, %v4884, 0.0
        %v4952 = vadd.f32 %v4950, %v4951
        %4953 = vadd.xlane.f32.xlu0 %v4952
        %v4954 = vpop.xlane.xlu0 %4953
        %v4955 = vsel %vm4915, %v4885, 0.0
        %v4956 = vsel %vm4915, %v4886, 0.0
        %v4957 = vadd.f32 %v4955, %v4956
        %4958 = vadd.xlane.f32.xlu0 %v4957
        %v4959 = vpop.xlane.xlu0 %4958
        %v4960 = vadd.f32 %v4887, %v4888
        %4961 = vadd.xlane.f32.xlu0 %v4960
        %v4962 = vpop.xlane.xlu0 %4961
        %v4963 = vsel %vm4481, %v4889, 0.0
        %v4964 = vsel %vm4481, %v4890, 0.0
        %v4965 = vadd.f32 %v4963, %v4964
        %4966 = vadd.xlane.f32.xlu0 %v4965
        %v4967 = vpop.xlane.xlu0 %4966
        %v4968 = vsel %vm4915, %v4891, 0.0
        %v4969 = vsel %vm4915, %v4892, 0.0
        %v4970 = vadd.f32 %v4968, %v4969
        %4971 = vadd.xlane.f32.xlu0 %v4970
        %v4972 = vpop.xlane.xlu0 %4971
        %v4973 = vadd.f32 %v4893, %v4894
        %4974 = vadd.xlane.f32.xlu0 %v4973
        %v4975 = vpop.xlane.xlu0 %4974
        %v4976 = vsel %vm4481, %v4895, 0.0
        %v4977 = vsel %vm4481, %v4896, 0.0
        %v4978 = vadd.f32 %v4976, %v4977
        %4979 = vadd.xlane.f32.xlu0 %v4978
        %v4980 = vpop.xlane.xlu0 %4979
        %v4981 = vsel %vm4915, %v4897, 0.0
        %v4982 = vsel %vm4915, %v4898, 0.0
        %v4983 = vadd.f32 %v4981, %v4982
        %4984 = vadd.xlane.f32.xlu0 %v4983
        %v4985 = vpop.xlane.xlu0 %4984
        %v4986 = vadd.f32 %v4899, %v4900
        %4987 = vadd.xlane.f32.xlu0 %v4986
        %v4988 = vpop.xlane.xlu0 %4987
        %v4989 = vsel %vm4481, %v4901, 0.0
        %v4990 = vsel %vm4481, %v4902, 0.0
        %v4991 = vadd.f32 %v4989, %v4990
        %4992 = vadd.xlane.f32.xlu0 %v4991
        %v4993 = vpop.xlane.xlu0 %4992
        %v4994 = vsel %vm4915, %v4903, 0.0
        %v4995 = vsel %vm4915, %v4904, 0.0
        %v4996 = vadd.f32 %v4994, %v4995
        %4997 = vadd.xlane.f32.xlu0 %v4996
        %v4998 = vpop.xlane.xlu0 %4997
        %v4999 = vadd.f32 %v4905, %v4906
        %5000 = vadd.xlane.f32.xlu0 %v4999
        %v5001 = vpop.xlane.xlu0 %5000
        %v5002 = vsel %vm4481, %v4907, 0.0
        %v5003 = vsel %vm4481, %v4908, 0.0
        %v5004 = vadd.f32 %v5002, %v5003
        %5005 = vadd.xlane.f32.xlu0 %v5004
        %v5006 = vpop.xlane.xlu0 %5005
        %v5007 = vsel %vm4915, %v4909, 0.0
        %v5008 = vsel %vm4915, %v4910, 0.0
        %v5009 = vadd.f32 %v5007, %v5008
        %5010 = vadd.xlane.f32.xlu0 %v5009
        %v5011 = vpop.xlane.xlu0 %5010
        %v5012 = vadd.f32 %v4911, %v4912
        %5013 = vadd.xlane.f32.xlu0 %v5012
        %v5014 = vpop.xlane.xlu0 %5013
        %v5015 = vsel %vm4481, %v4913, 0.0
        %v5016 = vsel %vm4481, %v4914, 0.0
        %v5017 = vadd.f32 %v5015, %v5016
        %5018 = vadd.xlane.f32.xlu0 %v5017
        %v5019 = vpop.xlane.xlu0 %5018
        %vm5044 = vcmask 1046528
        %v5045 = vrot.slane %v4920, 1
        %v5046 = vrot.slane %v4923, 1
        %v5047 = vsel %vm5044, %v5045, %v5046
        %v5048 = vrot.slane %v4928, 1
        %v5049 = vsel %vm5044, %v5046, %v5048
        %v5050 = vrot.slane %v4933, 1
        %v5051 = vrot.slane %v4936, 1
        %v5052 = vsel %vm5044, %v5050, %v5051
        %v5053 = vrot.slane %v4941, 1
        %v5054 = vsel %vm5044, %v5051, %v5053
        %v5055 = vrot.slane %v4946, 1
        %v5056 = vrot.slane %v4949, 1
        %v5057 = vsel %vm5044, %v5055, %v5056
        %v5058 = vrot.slane %v4954, 1
        %v5059 = vsel %vm5044, %v5056, %v5058
        %v5060 = vrot.slane %v4959, 1
        %v5061 = vrot.slane %v4962, 1
        %v5062 = vsel %vm5044, %v5060, %v5061
        %v5063 = vrot.slane %v4967, 1
        %v5064 = vsel %vm5044, %v5061, %v5063
        %v5065 = vrot.slane %v4972, 1
        %v5066 = vrot.slane %v4975, 1
        %v5067 = vsel %vm5044, %v5065, %v5066
        %v5068 = vrot.slane %v4980, 1
        %v5069 = vsel %vm5044, %v5066, %v5068
        %v5070 = vrot.slane %v4985, 1
        %v5071 = vrot.slane %v4988, 1
        %v5072 = vsel %vm5044, %v5070, %v5071
        %v5073 = vrot.slane %v4993, 1
        %v5074 = vsel %vm5044, %v5071, %v5073
        %v5075 = vrot.slane %v4998, 1
        %v5076 = vrot.slane %v5001, 1
        %v5077 = vsel %vm5044, %v5075, %v5076
        %v5078 = vrot.slane %v5006, 1
        %v5079 = vsel %vm5044, %v5076, %v5078
        %v5080 = vrot.slane %v5011, 1
        %v5081 = vrot.slane %v5014, 1
        %v5082 = vsel %vm5044, %v5080, %v5081
        %v5083 = vrot.slane %v5019, 1
        %v5084 = vsel %vm5044, %v5081, %v5083
        %v5101 = vadd.f32 %v4806, %v5047
        %v5102 = vadd.f32 %v4807, %v5049
        %v5103 = vadd.f32 %v4808, %v5052
        %v5104 = vadd.f32 %v4809, %v5054
        %v5105 = vadd.f32 %v4810, %v5057
        %v5106 = vadd.f32 %v4811, %v5059
        %v5107 = vadd.f32 %v4812, %v5062
        %v5108 = vadd.f32 %v4813, %v5064
        %v5109 = vadd.f32 %v4814, %v5067
        %v5110 = vadd.f32 %v4815, %v5069
        %v5111 = vadd.f32 %v4816, %v5072
        %v5112 = vadd.f32 %v4817, %v5074
        %v5113 = vadd.f32 %v4818, %v5077
        %v5114 = vadd.f32 %v4819, %v5079
        %v5115 = vadd.f32 %v4820, %v5082
        %v5116 = vadd.f32 %v4821, %v5084
        %v5117 = vld [vmem:[#allocation4] sm:$0xfc]
        %v5118 = vld [vmem:[#allocation4 + $0x8] sm:$0xfc]
        %v5119 = vld [vmem:[#allocation4 + $0x20] sm:$0x3]
        %v5120 = vld [vmem:[#allocation4 + $0x28] sm:$0x3]
        %v5121 = vld [vmem:[#allocation4 + $0x30] sm:$0xfc]
        %v5122 = vld [vmem:[#allocation4 + $0x38] sm:$0xfc]
        %v5123 = vld [vmem:[#allocation4 + $0x50] sm:$0x3]
        %v5124 = vld [vmem:[#allocation4 + $0x58] sm:$0x3]
        %v5125 = vld [vmem:[#allocation4 + $0x60] sm:$0xfc]
        %v5126 = vld [vmem:[#allocation4 + $0x68] sm:$0xfc]
        %v5127 = vld [vmem:[#allocation4 + $0x80] sm:$0x3]
        %v5128 = vld [vmem:[#allocation4 + $0x88] sm:$0x3]
        %v5129 = vld [vmem:[#allocation4 + $0x90] sm:$0xfc]
        %v5130 = vld [vmem:[#allocation4 + $0x98] sm:$0xfc]
        %v5131 = vld [vmem:[#allocation4 + $0xb0] sm:$0x3]
        %v5132 = vld [vmem:[#allocation4 + $0xb8] sm:$0x3]
        %v5133 = vld [vmem:[#allocation4 + $0xc0] sm:$0xfc]
        %v5134 = vld [vmem:[#allocation4 + $0xc8] sm:$0xfc]
        %v5135 = vld [vmem:[#allocation4 + $0xe0] sm:$0x3]
        %v5136 = vld [vmem:[#allocation4 + $0xe8] sm:$0x3]
        %v5137 = vld [vmem:[#allocation4 + $0xf0] sm:$0xfc]
        %v5138 = vld [vmem:[#allocation4 + $0xf8] sm:$0xfc]
        %v5139 = vld [vmem:[#allocation4 + $0x110] sm:$0x3]
        %v5140 = vld [vmem:[#allocation4 + $0x118] sm:$0x3]
        %v5141 = vld [vmem:[#allocation4 + $0x120] sm:$0xfc]
        %v5142 = vld [vmem:[#allocation4 + $0x128] sm:$0xfc]
        %v5143 = vld [vmem:[#allocation4 + $0x140] sm:$0x3]
        %v5144 = vld [vmem:[#allocation4 + $0x148] sm:$0x3]
        %v5145 = vld [vmem:[#allocation4 + $0x150] sm:$0xfc]
        %v5146 = vld [vmem:[#allocation4 + $0x158] sm:$0xfc]
        %v5147 = vld [vmem:[#allocation4 + $0x170] sm:$0x3]
        %v5148 = vld [vmem:[#allocation4 + $0x178] sm:$0x3]
        %s5149 = scalar_lea.vmem [#allocation11], 4
        %v5150 = vld [vmem:[%s5149] sm:$0x3]
        %v5152 = vlaneseq
        %v5153 = vshrl.u32 %v5152, 7
        %v5154 = vsub.s32 0, %v5153
        %v5155 = vrot.slane %v5150, %v5154
        %v5156 = vlaneseq
        %v5157 = vshrl.u32 %v5156, 7
        %v5158 = vsub.s32 1, %v5157
        %v5159 = vrot.slane %v5150, %v5158
        %v5162 = vmul.f32 %v5117, %v5155
        %v5163 = vmul.f32 %v5118, %v5159
        %v5164 = vmul.f32 %v4684, %v5155
        %v5165 = vmul.f32 %v4685, %v5159
        %v5166 = vmul.f32 %v5119, %v5155
        %v5167 = vmul.f32 %v5120, %v5159
        %v5168 = vmul.f32 %v5121, %v5155
        %v5169 = vmul.f32 %v5122, %v5159
        %v5170 = vmul.f32 %v4688, %v5155
        %v5171 = vmul.f32 %v4689, %v5159
        %v5172 = vmul.f32 %v5123, %v5155
        %v5173 = vmul.f32 %v5124, %v5159
        %v5174 = vmul.f32 %v5125, %v5155
        %v5175 = vmul.f32 %v5126, %v5159
        %v5176 = vmul.f32 %v4692, %v5155
        %v5177 = vmul.f32 %v4693, %v5159
        %v5178 = vmul.f32 %v5127, %v5155
        %v5179 = vmul.f32 %v5128, %v5159
        %v5180 = vmul.f32 %v5129, %v5155
        %v5181 = vmul.f32 %v5130, %v5159
        %v5182 = vmul.f32 %v4696, %v5155
        %v5183 = vmul.f32 %v4697, %v5159
        %v5184 = vmul.f32 %v5131, %v5155
        %v5185 = vmul.f32 %v5132, %v5159
        %v5186 = vmul.f32 %v5133, %v5155
        %v5187 = vmul.f32 %v5134, %v5159
        %v5188 = vmul.f32 %v4700, %v5155
        %v5189 = vmul.f32 %v4701, %v5159
        %v5190 = vmul.f32 %v5135, %v5155
        %v5191 = vmul.f32 %v5136, %v5159
        %v5192 = vmul.f32 %v5137, %v5155
        %v5193 = vmul.f32 %v5138, %v5159
        %v5194 = vmul.f32 %v4704, %v5155
        %v5195 = vmul.f32 %v4705, %v5159
        %v5196 = vmul.f32 %v5139, %v5155
        %v5197 = vmul.f32 %v5140, %v5159
        %v5198 = vmul.f32 %v5141, %v5155
        %v5199 = vmul.f32 %v5142, %v5159
        %v5200 = vmul.f32 %v4708, %v5155
        %v5201 = vmul.f32 %v4709, %v5159
        %v5202 = vmul.f32 %v5143, %v5155
        %v5203 = vmul.f32 %v5144, %v5159
        %v5204 = vmul.f32 %v5145, %v5155
        %v5205 = vmul.f32 %v5146, %v5159
        %v5206 = vmul.f32 %v4712, %v5155
        %v5207 = vmul.f32 %v4713, %v5159
        %v5208 = vmul.f32 %v5147, %v5155
        %v5209 = vmul.f32 %v5148, %v5159
        %vm5210 = vcmask 1047554
        %v5211 = vsel %vm5210, %v5162, 0.0
        %v5212 = vsel %vm5210, %v5163, 0.0
        %v5213 = vadd.f32 %v5211, %v5212
        %5214 = vadd.xlane.f32.xlu0 %v5213
        %v5215 = vpop.xlane.xlu0 %5214
        %v5216 = vadd.f32 %v5164, %v5165
        %5217 = vadd.xlane.f32.xlu0 %v5216
        %v5218 = vpop.xlane.xlu0 %5217
        %vm5219 = vcmask 1041408
        %v5220 = vsel %vm5219, %v5166, 0.0
        %v5221 = vsel %vm5219, %v5167, 0.0
        %v5222 = vadd.f32 %v5220, %v5221
        %5223 = vadd.xlane.f32.xlu0 %v5222
        %v5224 = vpop.xlane.xlu0 %5223
        %v5225 = vsel %vm5210, %v5168, 0.0
        %v5226 = vsel %vm5210, %v5169, 0.0
        %v5227 = vadd.f32 %v5225, %v5226
        %5228 = vadd.xlane.f32.xlu0 %v5227
        %v5229 = vpop.xlane.xlu0 %5228
        %v5230 = vadd.f32 %v5170, %v5171
        %5231 = vadd.xlane.f32.xlu0 %v5230
        %v5232 = vpop.xlane.xlu0 %5231
        %v5233 = vsel %vm5219, %v5172, 0.0
        %v5234 = vsel %vm5219, %v5173, 0.0
        %v5235 = vadd.f32 %v5233, %v5234
        %5236 = vadd.xlane.f32.xlu0 %v5235
        %v5237 = vpop.xlane.xlu0 %5236
        %v5238 = vsel %vm5210, %v5174, 0.0
        %v5239 = vsel %vm5210, %v5175, 0.0
        %v5240 = vadd.f32 %v5238, %v5239
        %5241 = vadd.xlane.f32.xlu0 %v5240
        %v5242 = vpop.xlane.xlu0 %5241
        %v5243 = vadd.f32 %v5176, %v5177
        %5244 = vadd.xlane.f32.xlu0 %v5243
        %v5245 = vpop.xlane.xlu0 %5244
        %v5246 = vsel %vm5219, %v5178, 0.0
        %v5247 = vsel %vm5219, %v5179, 0.0
        %v5248 = vadd.f32 %v5246, %v5247
        %5249 = vadd.xlane.f32.xlu0 %v5248
        %v5250 = vpop.xlane.xlu0 %5249
        %v5251 = vsel %vm5210, %v5180, 0.0
        %v5252 = vsel %vm5210, %v5181, 0.0
        %v5253 = vadd.f32 %v5251, %v5252
        %5254 = vadd.xlane.f32.xlu0 %v5253
        %v5255 = vpop.xlane.xlu0 %5254
        %v5256 = vadd.f32 %v5182, %v5183
        %5257 = vadd.xlane.f32.xlu0 %v5256
        %v5258 = vpop.xlane.xlu0 %5257
        %v5259 = vsel %vm5219, %v5184, 0.0
        %v5260 = vsel %vm5219, %v5185, 0.0
        %v5261 = vadd.f32 %v5259, %v5260
        %5262 = vadd.xlane.f32.xlu0 %v5261
        %v5263 = vpop.xlane.xlu0 %5262
        %v5264 = vsel %vm5210, %v5186, 0.0
        %v5265 = vsel %vm5210, %v5187, 0.0
        %v5266 = vadd.f32 %v5264, %v5265
        %5267 = vadd.xlane.f32.xlu0 %v5266
        %v5268 = vpop.xlane.xlu0 %5267
        %v5269 = vadd.f32 %v5188, %v5189
        %5270 = vadd.xlane.f32.xlu0 %v5269
        %v5271 = vpop.xlane.xlu0 %5270
        %v5272 = vsel %vm5219, %v5190, 0.0
        %v5273 = vsel %vm5219, %v5191, 0.0
        %v5274 = vadd.f32 %v5272, %v5273
        %5275 = vadd.xlane.f32.xlu0 %v5274
        %v5276 = vpop.xlane.xlu0 %5275
        %v5277 = vsel %vm5210, %v5192, 0.0
        %v5278 = vsel %vm5210, %v5193, 0.0
        %v5279 = vadd.f32 %v5277, %v5278
        %5280 = vadd.xlane.f32.xlu0 %v5279
        %v5281 = vpop.xlane.xlu0 %5280
        %v5282 = vadd.f32 %v5194, %v5195
        %5283 = vadd.xlane.f32.xlu0 %v5282
        %v5284 = vpop.xlane.xlu0 %5283
        %v5285 = vsel %vm5219, %v5196, 0.0
        %v5286 = vsel %vm5219, %v5197, 0.0
        %v5287 = vadd.f32 %v5285, %v5286
        %5288 = vadd.xlane.f32.xlu0 %v5287
        %v5289 = vpop.xlane.xlu0 %5288
        %v5290 = vsel %vm5210, %v5198, 0.0
        %v5291 = vsel %vm5210, %v5199, 0.0
        %v5292 = vadd.f32 %v5290, %v5291
        %5293 = vadd.xlane.f32.xlu0 %v5292
        %v5294 = vpop.xlane.xlu0 %5293
        %v5295 = vadd.f32 %v5200, %v5201
        %5296 = vadd.xlane.f32.xlu0 %v5295
        %v5297 = vpop.xlane.xlu0 %5296
        %v5298 = vsel %vm5219, %v5202, 0.0
        %v5299 = vsel %vm5219, %v5203, 0.0
        %v5300 = vadd.f32 %v5298, %v5299
        %5301 = vadd.xlane.f32.xlu0 %v5300
        %v5302 = vpop.xlane.xlu0 %5301
        %v5303 = vsel %vm5210, %v5204, 0.0
        %v5304 = vsel %vm5210, %v5205, 0.0
        %v5305 = vadd.f32 %v5303, %v5304
        %5306 = vadd.xlane.f32.xlu0 %v5305
        %v5307 = vpop.xlane.xlu0 %5306
        %v5308 = vadd.f32 %v5206, %v5207
        %5309 = vadd.xlane.f32.xlu0 %v5308
        %v5310 = vpop.xlane.xlu0 %5309
        %v5311 = vsel %vm5219, %v5208, 0.0
        %v5312 = vsel %vm5219, %v5209, 0.0
        %v5313 = vadd.f32 %v5311, %v5312
        %5314 = vadd.xlane.f32.xlu0 %v5313
        %v5315 = vpop.xlane.xlu0 %5314
        %vm5340 = vcmask 1045504
        %v5341 = vrot.slane %v5215, 2
        %v5342 = vrot.slane %v5218, 2
        %v5343 = vsel %vm5340, %v5341, %v5342
        %v5344 = vrot.slane %v5224, 2
        %v5345 = vsel %vm5340, %v5342, %v5344
        %v5346 = vrot.slane %v5229, 2
        %v5347 = vrot.slane %v5232, 2
        %v5348 = vsel %vm5340, %v5346, %v5347
        %v5349 = vrot.slane %v5237, 2
        %v5350 = vsel %vm5340, %v5347, %v5349
        %v5351 = vrot.slane %v5242, 2
        %v5352 = vrot.slane %v5245, 2
        %v5353 = vsel %vm5340, %v5351, %v5352
        %v5354 = vrot.slane %v5250, 2
        %v5355 = vsel %vm5340, %v5352, %v5354
        %v5356 = vrot.slane %v5255, 2
        %v5357 = vrot.slane %v5258, 2
        %v5358 = vsel %vm5340, %v5356, %v5357
        %v5359 = vrot.slane %v5263, 2
        %v5360 = vsel %vm5340, %v5357, %v5359
        %v5361 = vrot.slane %v5268, 2
        %v5362 = vrot.slane %v5271, 2
        %v5363 = vsel %vm5340, %v5361, %v5362
        %v5364 = vrot.slane %v5276, 2
        %v5365 = vsel %vm5340, %v5362, %v5364
        %v5366 = vrot.slane %v5281, 2
        %v5367 = vrot.slane %v5284, 2
        %v5368 = vsel %vm5340, %v5366, %v5367
        %v5369 = vrot.slane %v5289, 2
        %v5370 = vsel %vm5340, %v5367, %v5369
        %v5371 = vrot.slane %v5294, 2
        %v5372 = vrot.slane %v5297, 2
        %v5373 = vsel %vm5340, %v5371, %v5372
        %v5374 = vrot.slane %v5302, 2
        %v5375 = vsel %vm5340, %v5372, %v5374
        %v5376 = vrot.slane %v5307, 2
        %v5377 = vrot.slane %v5310, 2
        %v5378 = vsel %vm5340, %v5376, %v5377
        %v5379 = vrot.slane %v5315, 2
        %v5380 = vsel %vm5340, %v5377, %v5379
        %v5397 = vadd.f32 %v5101, %v5343
        %v5398 = vadd.f32 %v5102, %v5345
        %v5399 = vadd.f32 %v5103, %v5348
        %v5400 = vadd.f32 %v5104, %v5350
        %v5401 = vadd.f32 %v5105, %v5353
        %v5402 = vadd.f32 %v5106, %v5355
        %v5403 = vadd.f32 %v5107, %v5358
        %v5404 = vadd.f32 %v5108, %v5360
        %v5405 = vadd.f32 %v5109, %v5363
        %v5406 = vadd.f32 %v5110, %v5365
        %v5407 = vadd.f32 %v5111, %v5368
        %v5408 = vadd.f32 %v5112, %v5370
        %v5409 = vadd.f32 %v5113, %v5373
        %v5410 = vadd.f32 %v5114, %v5375
        %v5411 = vadd.f32 %v5115, %v5378
        %v5412 = vadd.f32 %v5116, %v5380
        %s5413 = scalar_lea.vmem [#allocation4], 48
        %v5414 = vld [vmem:[%s5413] sm:$0xff]
        %v5415 = vld [vmem:[%s5413 + $0x8] sm:$0xff]
        %v5416 = vld [vmem:[%s5413 + $0x10] sm:$0xff]
        %v5417 = vld [vmem:[%s5413 + $0x18] sm:$0xff]
        %v5418 = vld [vmem:[%s5413 + $0x30] sm:$0xff]
        %v5419 = vld [vmem:[%s5413 + $0x38] sm:$0xff]
        %v5420 = vld [vmem:[%s5413 + $0x40] sm:$0xff]
        %v5421 = vld [vmem:[%s5413 + $0x48] sm:$0xff]
        %v5422 = vld [vmem:[%s5413 + $0x60] sm:$0xff]
        %v5423 = vld [vmem:[%s5413 + $0x68] sm:$0xff]
        %v5424 = vld [vmem:[%s5413 + $0x70] sm:$0xff]
        %v5425 = vld [vmem:[%s5413 + $0x78] sm:$0xff]
        %v5426 = vld [vmem:[%s5413 + $0x90] sm:$0xff]
        %v5427 = vld [vmem:[%s5413 + $0x98] sm:$0xff]
        %v5428 = vld [vmem:[%s5413 + $0xa0] sm:$0xff]
        %v5429 = vld [vmem:[%s5413 + $0xa8] sm:$0xff]
        %v5430 = vld [vmem:[%s5413 + $0xc0] sm:$0xff]
        %v5431 = vld [vmem:[%s5413 + $0xc8] sm:$0xff]
        %v5432 = vld [vmem:[%s5413 + $0xd0] sm:$0xff]
        %v5433 = vld [vmem:[%s5413 + $0xd8] sm:$0xff]
        %v5434 = vld [vmem:[%s5413 + $0xf0] sm:$0xff]
        %v5435 = vld [vmem:[%s5413 + $0xf8] sm:$0xff]
        %v5436 = vld [vmem:[%s5413 + $0x100] sm:$0xff]
        %v5437 = vld [vmem:[%s5413 + $0x108] sm:$0xff]
        %v5438 = vld [vmem:[%s5413 + $0x120] sm:$0xff]
        %v5439 = vld [vmem:[%s5413 + $0x128] sm:$0xff]
        %v5440 = vld [vmem:[%s5413 + $0x130] sm:$0xff]
        %v5441 = vld [vmem:[%s5413 + $0x138] sm:$0xff]
        %v5442 = vld [vmem:[%s5413 + $0x150] sm:$0xff]
        %v5443 = vld [vmem:[%s5413 + $0x158] sm:$0xff]
        %v5444 = vld [vmem:[%s5413 + $0x160] sm:$0xff]
        %v5445 = vld [vmem:[%s5413 + $0x168] sm:$0xff]
        %s5446 = scalar_lea.vmem [#allocation11], 6
        %v5447 = vld [vmem:[%s5446] sm:$0x3]
        %v5449 = vlaneseq
        %v5450 = vshrl.u32 %v5449, 7
        %v5451 = vsub.s32 0, %v5450
        %v5452 = vrot.slane %v5447, %v5451
        %v5453 = vlaneseq
        %v5454 = vshrl.u32 %v5453, 7
        %v5455 = vsub.s32 1, %v5454
        %v5456 = vrot.slane %v5447, %v5455
        %v5459 = vmul.f32 %v5414, %v5452
        %v5460 = vmul.f32 %v5415, %v5456
        %v5461 = vmul.f32 %v5416, %v5452
        %v5462 = vmul.f32 %v5417, %v5456
        %v5463 = vmul.f32 %v5418, %v5452
        %v5464 = vmul.f32 %v5419, %v5456
        %v5465 = vmul.f32 %v5420, %v5452
        %v5466 = vmul.f32 %v5421, %v5456
        %v5467 = vmul.f32 %v5422, %v5452
        %v5468 = vmul.f32 %v5423, %v5456
        %v5469 = vmul.f32 %v5424, %v5452
        %v5470 = vmul.f32 %v5425, %v5456
        %v5471 = vmul.f32 %v5426, %v5452
        %v5472 = vmul.f32 %v5427, %v5456
        %v5473 = vmul.f32 %v5428, %v5452
        %v5474 = vmul.f32 %v5429, %v5456
        %v5475 = vmul.f32 %v5430, %v5452
        %v5476 = vmul.f32 %v5431, %v5456
        %v5477 = vmul.f32 %v5432, %v5452
        %v5478 = vmul.f32 %v5433, %v5456
        %v5479 = vmul.f32 %v5434, %v5452
        %v5480 = vmul.f32 %v5435, %v5456
        %v5481 = vmul.f32 %v5436, %v5452
        %v5482 = vmul.f32 %v5437, %v5456
        %v5483 = vmul.f32 %v5438, %v5452
        %v5484 = vmul.f32 %v5439, %v5456
        %v5485 = vmul.f32 %v5440, %v5452
        %v5486 = vmul.f32 %v5441, %v5456
        %v5487 = vmul.f32 %v5442, %v5452
        %v5488 = vmul.f32 %v5443, %v5456
        %v5489 = vmul.f32 %v5444, %v5452
        %v5490 = vmul.f32 %v5445, %v5456
        %v5491 = vadd.f32 %v5459, %v5460
        %5492 = vadd.xlane.f32.xlu0 %v5491
        %v5493 = vpop.xlane.xlu0 %5492
        %v5494 = vadd.f32 %v5461, %v5462
        %5495 = vadd.xlane.f32.xlu0 %v5494
        %v5496 = vpop.xlane.xlu0 %5495
        %v5497 = vadd.f32 %v5463, %v5464
        %5498 = vadd.xlane.f32.xlu0 %v5497
        %v5499 = vpop.xlane.xlu0 %5498
        %v5500 = vadd.f32 %v5465, %v5466
        %5501 = vadd.xlane.f32.xlu0 %v5500
        %v5502 = vpop.xlane.xlu0 %5501
        %v5503 = vadd.f32 %v5467, %v5468
        %5504 = vadd.xlane.f32.xlu0 %v5503
        %v5505 = vpop.xlane.xlu0 %5504
        %v5506 = vadd.f32 %v5469, %v5470
        %5507 = vadd.xlane.f32.xlu0 %v5506
        %v5508 = vpop.xlane.xlu0 %5507
        %v5509 = vadd.f32 %v5471, %v5472
        %5510 = vadd.xlane.f32.xlu0 %v5509
        %v5511 = vpop.xlane.xlu0 %5510
        %v5512 = vadd.f32 %v5473, %v5474
        %5513 = vadd.xlane.f32.xlu0 %v5512
        %v5514 = vpop.xlane.xlu0 %5513
        %v5515 = vadd.f32 %v5475, %v5476
        %5516 = vadd.xlane.f32.xlu0 %v5515
        %v5517 = vpop.xlane.xlu0 %5516
        %v5518 = vadd.f32 %v5477, %v5478
        %5519 = vadd.xlane.f32.xlu0 %v5518
        %v5520 = vpop.xlane.xlu0 %5519
        %v5521 = vadd.f32 %v5479, %v5480
        %5522 = vadd.xlane.f32.xlu0 %v5521
        %v5523 = vpop.xlane.xlu0 %5522
        %v5524 = vadd.f32 %v5481, %v5482
        %5525 = vadd.xlane.f32.xlu0 %v5524
        %v5526 = vpop.xlane.xlu0 %5525
        %v5527 = vadd.f32 %v5483, %v5484
        %5528 = vadd.xlane.f32.xlu0 %v5527
        %v5529 = vpop.xlane.xlu0 %5528
        %v5530 = vadd.f32 %v5485, %v5486
        %5531 = vadd.xlane.f32.xlu0 %v5530
        %v5532 = vpop.xlane.xlu0 %5531
        %v5533 = vadd.f32 %v5487, %v5488
        %5534 = vadd.xlane.f32.xlu0 %v5533
        %v5535 = vpop.xlane.xlu0 %5534
        %v5536 = vadd.f32 %v5489, %v5490
        %5537 = vadd.xlane.f32.xlu0 %v5536
        %v5538 = vpop.xlane.xlu0 %5537
        %v5539 = vadd.f32 %v5397, %v5493
        %v5540 = vadd.f32 %v5398, %v5496
        %v5541 = vadd.f32 %v5399, %v5499
        %v5542 = vadd.f32 %v5400, %v5502
        %v5543 = vadd.f32 %v5401, %v5505
        %v5544 = vadd.f32 %v5402, %v5508
        %v5545 = vadd.f32 %v5403, %v5511
        %v5546 = vadd.f32 %v5404, %v5514
        %v5547 = vadd.f32 %v5405, %v5517
        %v5548 = vadd.f32 %v5406, %v5520
        %v5549 = vadd.f32 %v5407, %v5523
        %v5550 = vadd.f32 %v5408, %v5526
        %v5551 = vadd.f32 %v5409, %v5529
        %v5552 = vadd.f32 %v5410, %v5532
        %v5553 = vadd.f32 %v5411, %v5535
        %v5554 = vadd.f32 %v5412, %v5538
        %v5555 = vld [vmem:[%s5413] sm:$0xfe]
        %v5556 = vld [vmem:[%s5413 + $0x8] sm:$0xfe]
        %v5557 = vld [vmem:[%s5413 + $0x20] sm:$0x1]
        %v5558 = vld [vmem:[%s5413 + $0x28] sm:$0x1]
        %v5559 = vld [vmem:[%s5413 + $0x30] sm:$0xfe]
        %v5560 = vld [vmem:[%s5413 + $0x38] sm:$0xfe]
        %v5561 = vld [vmem:[%s5413 + $0x50] sm:$0x1]
        %v5562 = vld [vmem:[%s5413 + $0x58] sm:$0x1]
        %v5563 = vld [vmem:[%s5413 + $0x60] sm:$0xfe]
        %v5564 = vld [vmem:[%s5413 + $0x68] sm:$0xfe]
        %v5565 = vld [vmem:[%s5413 + $0x80] sm:$0x1]
        %v5566 = vld [vmem:[%s5413 + $0x88] sm:$0x1]
        %v5567 = vld [vmem:[%s5413 + $0x90] sm:$0xfe]
        %v5568 = vld [vmem:[%s5413 + $0x98] sm:$0xfe]
        %v5569 = vld [vmem:[%s5413 + $0xb0] sm:$0x1]
        %v5570 = vld [vmem:[%s5413 + $0xb8] sm:$0x1]
        %v5571 = vld [vmem:[%s5413 + $0xc0] sm:$0xfe]
        %v5572 = vld [vmem:[%s5413 + $0xc8] sm:$0xfe]
        %v5573 = vld [vmem:[%s5413 + $0xe0] sm:$0x1]
        %v5574 = vld [vmem:[%s5413 + $0xe8] sm:$0x1]
        %v5575 = vld [vmem:[%s5413 + $0xf0] sm:$0xfe]
        %v5576 = vld [vmem:[%s5413 + $0xf8] sm:$0xfe]
        %v5577 = vld [vmem:[%s5413 + $0x110] sm:$0x1]
        %v5578 = vld [vmem:[%s5413 + $0x118] sm:$0x1]
        %v5579 = vld [vmem:[%s5413 + $0x120] sm:$0xfe]
        %v5580 = vld [vmem:[%s5413 + $0x128] sm:$0xfe]
        %v5581 = vld [vmem:[%s5413 + $0x140] sm:$0x1]
        %v5582 = vld [vmem:[%s5413 + $0x148] sm:$0x1]
        %v5583 = vld [vmem:[%s5413 + $0x150] sm:$0xfe]
        %v5584 = vld [vmem:[%s5413 + $0x158] sm:$0xfe]
        %v5585 = vld [vmem:[%s5413 + $0x170] sm:$0x1]
        %v5586 = vld [vmem:[%s5413 + $0x178] sm:$0x1]
        %s5587 = scalar_lea.vmem [#allocation11], 8
        %v5588 = vld [vmem:[%s5587] sm:$0x3]
        %v5590 = vlaneseq
        %v5591 = vshrl.u32 %v5590, 7
        %v5592 = vsub.s32 0, %v5591
        %v5593 = vrot.slane %v5588, %v5592
        %v5594 = vlaneseq
        %v5595 = vshrl.u32 %v5594, 7
        %v5596 = vsub.s32 1, %v5595
        %v5597 = vrot.slane %v5588, %v5596
        %v5600 = vmul.f32 %v5555, %v5593
        %v5601 = vmul.f32 %v5556, %v5597
        %v5602 = vmul.f32 %v5416, %v5593
        %v5603 = vmul.f32 %v5417, %v5597
        %v5604 = vmul.f32 %v5557, %v5593
        %v5605 = vmul.f32 %v5558, %v5597
        %v5606 = vmul.f32 %v5559, %v5593
        %v5607 = vmul.f32 %v5560, %v5597
        %v5608 = vmul.f32 %v5420, %v5593
        %v5609 = vmul.f32 %v5421, %v5597
        %v5610 = vmul.f32 %v5561, %v5593
        %v5611 = vmul.f32 %v5562, %v5597
        %v5612 = vmul.f32 %v5563, %v5593
        %v5613 = vmul.f32 %v5564, %v5597
        %v5614 = vmul.f32 %v5424, %v5593
        %v5615 = vmul.f32 %v5425, %v5597
        %v5616 = vmul.f32 %v5565, %v5593
        %v5617 = vmul.f32 %v5566, %v5597
        %v5618 = vmul.f32 %v5567, %v5593
        %v5619 = vmul.f32 %v5568, %v5597
        %v5620 = vmul.f32 %v5428, %v5593
        %v5621 = vmul.f32 %v5429, %v5597
        %v5622 = vmul.f32 %v5569, %v5593
        %v5623 = vmul.f32 %v5570, %v5597
        %v5624 = vmul.f32 %v5571, %v5593
        %v5625 = vmul.f32 %v5572, %v5597
        %v5626 = vmul.f32 %v5432, %v5593
        %v5627 = vmul.f32 %v5433, %v5597
        %v5628 = vmul.f32 %v5573, %v5593
        %v5629 = vmul.f32 %v5574, %v5597
        %v5630 = vmul.f32 %v5575, %v5593
        %v5631 = vmul.f32 %v5576, %v5597
        %v5632 = vmul.f32 %v5436, %v5593
        %v5633 = vmul.f32 %v5437, %v5597
        %v5634 = vmul.f32 %v5577, %v5593
        %v5635 = vmul.f32 %v5578, %v5597
        %v5636 = vmul.f32 %v5579, %v5593
        %v5637 = vmul.f32 %v5580, %v5597
        %v5638 = vmul.f32 %v5440, %v5593
        %v5639 = vmul.f32 %v5441, %v5597
        %v5640 = vmul.f32 %v5581, %v5593
        %v5641 = vmul.f32 %v5582, %v5597
        %v5642 = vmul.f32 %v5583, %v5593
        %v5643 = vmul.f32 %v5584, %v5597
        %v5644 = vmul.f32 %v5444, %v5593
        %v5645 = vmul.f32 %v5445, %v5597
        %v5646 = vmul.f32 %v5585, %v5593
        %v5647 = vmul.f32 %v5586, %v5597
        %v5648 = vsel %vm4915, %v5600, 0.0
        %v5649 = vsel %vm4915, %v5601, 0.0
        %v5650 = vadd.f32 %v5648, %v5649
        %5651 = vadd.xlane.f32.xlu0 %v5650
        %v5652 = vpop.xlane.xlu0 %5651
        %v5653 = vadd.f32 %v5602, %v5603
        %5654 = vadd.xlane.f32.xlu0 %v5653
        %v5655 = vpop.xlane.xlu0 %5654
        %v5656 = vsel %vm4481, %v5604, 0.0
        %v5657 = vsel %vm4481, %v5605, 0.0
        %v5658 = vadd.f32 %v5656, %v5657
        %5659 = vadd.xlane.f32.xlu0 %v5658
        %v5660 = vpop.xlane.xlu0 %5659
        %v5661 = vsel %vm4915, %v5606, 0.0
        %v5662 = vsel %vm4915, %v5607, 0.0
        %v5663 = vadd.f32 %v5661, %v5662
        %5664 = vadd.xlane.f32.xlu0 %v5663
        %v5665 = vpop.xlane.xlu0 %5664
        %v5666 = vadd.f32 %v5608, %v5609
        %5667 = vadd.xlane.f32.xlu0 %v5666
        %v5668 = vpop.xlane.xlu0 %5667
        %v5669 = vsel %vm4481, %v5610, 0.0
        %v5670 = vsel %vm4481, %v5611, 0.0
        %v5671 = vadd.f32 %v5669, %v5670
        %5672 = vadd.xlane.f32.xlu0 %v5671
        %v5673 = vpop.xlane.xlu0 %5672
        %v5674 = vsel %vm4915, %v5612, 0.0
        %v5675 = vsel %vm4915, %v5613, 0.0
        %v5676 = vadd.f32 %v5674, %v5675
        %5677 = vadd.xlane.f32.xlu0 %v5676
        %v5678 = vpop.xlane.xlu0 %5677
        %v5679 = vadd.f32 %v5614, %v5615
        %5680 = vadd.xlane.f32.xlu0 %v5679
        %v5681 = vpop.xlane.xlu0 %5680
        %v5682 = vsel %vm4481, %v5616, 0.0
        %v5683 = vsel %vm4481, %v5617, 0.0
        %v5684 = vadd.f32 %v5682, %v5683
        %5685 = vadd.xlane.f32.xlu0 %v5684
        %v5686 = vpop.xlane.xlu0 %5685
        %v5687 = vsel %vm4915, %v5618, 0.0
        %v5688 = vsel %vm4915, %v5619, 0.0
        %v5689 = vadd.f32 %v5687, %v5688
        %5690 = vadd.xlane.f32.xlu0 %v5689
        %v5691 = vpop.xlane.xlu0 %5690
        %v5692 = vadd.f32 %v5620, %v5621
        %5693 = vadd.xlane.f32.xlu0 %v5692
        %v5694 = vpop.xlane.xlu0 %5693
        %v5695 = vsel %vm4481, %v5622, 0.0
        %v5696 = vsel %vm4481, %v5623, 0.0
        %v5697 = vadd.f32 %v5695, %v5696
        %5698 = vadd.xlane.f32.xlu0 %v5697
        %v5699 = vpop.xlane.xlu0 %5698
        %v5700 = vsel %vm4915, %v5624, 0.0
        %v5701 = vsel %vm4915, %v5625, 0.0
        %v5702 = vadd.f32 %v5700, %v5701
        %5703 = vadd.xlane.f32.xlu0 %v5702
        %v5704 = vpop.xlane.xlu0 %5703
        %v5705 = vadd.f32 %v5626, %v5627
        %5706 = vadd.xlane.f32.xlu0 %v5705
        %v5707 = vpop.xlane.xlu0 %5706
        %v5708 = vsel %vm4481, %v5628, 0.0
        %v5709 = vsel %vm4481, %v5629, 0.0
        %v5710 = vadd.f32 %v5708, %v5709
        %5711 = vadd.xlane.f32.xlu0 %v5710
        %v5712 = vpop.xlane.xlu0 %5711
        %v5713 = vsel %vm4915, %v5630, 0.0
        %v5714 = vsel %vm4915, %v5631, 0.0
        %v5715 = vadd.f32 %v5713, %v5714
        %5716 = vadd.xlane.f32.xlu0 %v5715
        %v5717 = vpop.xlane.xlu0 %5716
        %v5718 = vadd.f32 %v5632, %v5633
        %5719 = vadd.xlane.f32.xlu0 %v5718
        %v5720 = vpop.xlane.xlu0 %5719
        %v5721 = vsel %vm4481, %v5634, 0.0
        %v5722 = vsel %vm4481, %v5635, 0.0
        %v5723 = vadd.f32 %v5721, %v5722
        %5724 = vadd.xlane.f32.xlu0 %v5723
        %v5725 = vpop.xlane.xlu0 %5724
        %v5726 = vsel %vm4915, %v5636, 0.0
        %v5727 = vsel %vm4915, %v5637, 0.0
        %v5728 = vadd.f32 %v5726, %v5727
        %5729 = vadd.xlane.f32.xlu0 %v5728
        %v5730 = vpop.xlane.xlu0 %5729
        %v5731 = vadd.f32 %v5638, %v5639
        %5732 = vadd.xlane.f32.xlu0 %v5731
        %v5733 = vpop.xlane.xlu0 %5732
        %v5734 = vsel %vm4481, %v5640, 0.0
        %v5735 = vsel %vm4481, %v5641, 0.0
        %v5736 = vadd.f32 %v5734, %v5735
        %5737 = vadd.xlane.f32.xlu0 %v5736
        %v5738 = vpop.xlane.xlu0 %5737
        %v5739 = vsel %vm4915, %v5642, 0.0
        %v5740 = vsel %vm4915, %v5643, 0.0
        %v5741 = vadd.f32 %v5739, %v5740
        %5742 = vadd.xlane.f32.xlu0 %v5741
        %v5743 = vpop.xlane.xlu0 %5742
        %v5744 = vadd.f32 %v5644, %v5645
        %5745 = vadd.xlane.f32.xlu0 %v5744
        %v5746 = vpop.xlane.xlu0 %5745
        %v5747 = vsel %vm4481, %v5646, 0.0
        %v5748 = vsel %vm4481, %v5647, 0.0
        %v5749 = vadd.f32 %v5747, %v5748
        %5750 = vadd.xlane.f32.xlu0 %v5749
        %v5751 = vpop.xlane.xlu0 %5750
        %v5776 = vrot.slane %v5652, 1
        %v5777 = vrot.slane %v5655, 1
        %v5778 = vsel %vm5044, %v5776, %v5777
        %v5779 = vrot.slane %v5660, 1
        %v5780 = vsel %vm5044, %v5777, %v5779
        %v5781 = vrot.slane %v5665, 1
        %v5782 = vrot.slane %v5668, 1
        %v5783 = vsel %vm5044, %v5781, %v5782
        %v5784 = vrot.slane %v5673, 1
        %v5785 = vsel %vm5044, %v5782, %v5784
        %v5786 = vrot.slane %v5678, 1
        %v5787 = vrot.slane %v5681, 1
        %v5788 = vsel %vm5044, %v5786, %v5787
        %v5789 = vrot.slane %v5686, 1
        %v5790 = vsel %vm5044, %v5787, %v5789
        %v5791 = vrot.slane %v5691, 1
        %v5792 = vrot.slane %v5694, 1
        %v5793 = vsel %vm5044, %v5791, %v5792
        %v5794 = vrot.slane %v5699, 1
        %v5795 = vsel %vm5044, %v5792, %v5794
        %v5796 = vrot.slane %v5704, 1
        %v5797 = vrot.slane %v5707, 1
        %v5798 = vsel %vm5044, %v5796, %v5797
        %v5799 = vrot.slane %v5712, 1
        %v5800 = vsel %vm5044, %v5797, %v5799
        %v5801 = vrot.slane %v5717, 1
        %v5802 = vrot.slane %v5720, 1
        %v5803 = vsel %vm5044, %v5801, %v5802
        %v5804 = vrot.slane %v5725, 1
        %v5805 = vsel %vm5044, %v5802, %v5804
        %v5806 = vrot.slane %v5730, 1
        %v5807 = vrot.slane %v5733, 1
        %v5808 = vsel %vm5044, %v5806, %v5807
        %v5809 = vrot.slane %v5738, 1
        %v5810 = vsel %vm5044, %v5807, %v5809
        %v5811 = vrot.slane %v5743, 1
        %v5812 = vrot.slane %v5746, 1
        %v5813 = vsel %vm5044, %v5811, %v5812
        %v5814 = vrot.slane %v5751, 1
        %v5815 = vsel %vm5044, %v5812, %v5814
        %v5832 = vadd.f32 %v5539, %v5778
        %v5833 = vadd.f32 %v5540, %v5780
        %v5834 = vadd.f32 %v5541, %v5783
        %v5835 = vadd.f32 %v5542, %v5785
        %v5836 = vadd.f32 %v5543, %v5788
        %v5837 = vadd.f32 %v5544, %v5790
        %v5838 = vadd.f32 %v5545, %v5793
        %v5839 = vadd.f32 %v5546, %v5795
        %v5840 = vadd.f32 %v5547, %v5798
        %v5841 = vadd.f32 %v5548, %v5800
        %v5842 = vadd.f32 %v5549, %v5803
        %v5843 = vadd.f32 %v5550, %v5805
        %v5844 = vadd.f32 %v5551, %v5808
        %v5845 = vadd.f32 %v5552, %v5810
        %v5846 = vadd.f32 %v5553, %v5813
        %v5847 = vadd.f32 %v5554, %v5815
        %v5848 = vld [vmem:[%s5413] sm:$0xfc]
        %v5849 = vld [vmem:[%s5413 + $0x8] sm:$0xfc]
        %v5850 = vld [vmem:[%s5413 + $0x20] sm:$0x3]
        %v5851 = vld [vmem:[%s5413 + $0x28] sm:$0x3]
        %v5852 = vld [vmem:[%s5413 + $0x30] sm:$0xfc]
        %v5853 = vld [vmem:[%s5413 + $0x38] sm:$0xfc]
        %v5854 = vld [vmem:[%s5413 + $0x50] sm:$0x3]
        %v5855 = vld [vmem:[%s5413 + $0x58] sm:$0x3]
        %v5856 = vld [vmem:[%s5413 + $0x60] sm:$0xfc]
        %v5857 = vld [vmem:[%s5413 + $0x68] sm:$0xfc]
        %v5858 = vld [vmem:[%s5413 + $0x80] sm:$0x3]
        %v5859 = vld [vmem:[%s5413 + $0x88] sm:$0x3]
        %v5860 = vld [vmem:[%s5413 + $0x90] sm:$0xfc]
        %v5861 = vld [vmem:[%s5413 + $0x98] sm:$0xfc]
        %v5862 = vld [vmem:[%s5413 + $0xb0] sm:$0x3]
        %v5863 = vld [vmem:[%s5413 + $0xb8] sm:$0x3]
        %v5864 = vld [vmem:[%s5413 + $0xc0] sm:$0xfc]
        %v5865 = vld [vmem:[%s5413 + $0xc8] sm:$0xfc]
        %v5866 = vld [vmem:[%s5413 + $0xe0] sm:$0x3]
        %v5867 = vld [vmem:[%s5413 + $0xe8] sm:$0x3]
        %v5868 = vld [vmem:[%s5413 + $0xf0] sm:$0xfc]
        %v5869 = vld [vmem:[%s5413 + $0xf8] sm:$0xfc]
        %v5870 = vld [vmem:[%s5413 + $0x110] sm:$0x3]
        %v5871 = vld [vmem:[%s5413 + $0x118] sm:$0x3]
        %v5872 = vld [vmem:[%s5413 + $0x120] sm:$0xfc]
        %v5873 = vld [vmem:[%s5413 + $0x128] sm:$0xfc]
        %v5874 = vld [vmem:[%s5413 + $0x140] sm:$0x3]
        %v5875 = vld [vmem:[%s5413 + $0x148] sm:$0x3]
        %v5876 = vld [vmem:[%s5413 + $0x150] sm:$0xfc]
        %v5877 = vld [vmem:[%s5413 + $0x158] sm:$0xfc]
        %v5878 = vld [vmem:[%s5413 + $0x170] sm:$0x3]
        %v5879 = vld [vmem:[%s5413 + $0x178] sm:$0x3]
        %s5880 = scalar_lea.vmem [#allocation11], 10
        %v5881 = vld [vmem:[%s5880] sm:$0x3]
        %v5883 = vlaneseq
        %v5884 = vshrl.u32 %v5883, 7
        %v5885 = vsub.s32 0, %v5884
        %v5886 = vrot.slane %v5881, %v5885
        %v5887 = vlaneseq
        %v5888 = vshrl.u32 %v5887, 7
        %v5889 = vsub.s32 1, %v5888
        %v5890 = vrot.slane %v5881, %v5889
        %v5893 = vmul.f32 %v5848, %v5886
        %v5894 = vmul.f32 %v5849, %v5890
        %v5895 = vmul.f32 %v5416, %v5886
        %v5896 = vmul.f32 %v5417, %v5890
        %v5897 = vmul.f32 %v5850, %v5886
        %v5898 = vmul.f32 %v5851, %v5890
        %v5899 = vmul.f32 %v5852, %v5886
        %v5900 = vmul.f32 %v5853, %v5890
        %v5901 = vmul.f32 %v5420, %v5886
        %v5902 = vmul.f32 %v5421, %v5890
        %v5903 = vmul.f32 %v5854, %v5886
        %v5904 = vmul.f32 %v5855, %v5890
        %v5905 = vmul.f32 %v5856, %v5886
        %v5906 = vmul.f32 %v5857, %v5890
        %v5907 = vmul.f32 %v5424, %v5886
        %v5908 = vmul.f32 %v5425, %v5890
        %v5909 = vmul.f32 %v5858, %v5886
        %v5910 = vmul.f32 %v5859, %v5890
        %v5911 = vmul.f32 %v5860, %v5886
        %v5912 = vmul.f32 %v5861, %v5890
        %v5913 = vmul.f32 %v5428, %v5886
        %v5914 = vmul.f32 %v5429, %v5890
        %v5915 = vmul.f32 %v5862, %v5886
        %v5916 = vmul.f32 %v5863, %v5890
        %v5917 = vmul.f32 %v5864, %v5886
        %v5918 = vmul.f32 %v5865, %v5890
        %v5919 = vmul.f32 %v5432, %v5886
        %v5920 = vmul.f32 %v5433, %v5890
        %v5921 = vmul.f32 %v5866, %v5886
        %v5922 = vmul.f32 %v5867, %v5890
        %v5923 = vmul.f32 %v5868, %v5886
        %v5924 = vmul.f32 %v5869, %v5890
        %v5925 = vmul.f32 %v5436, %v5886
        %v5926 = vmul.f32 %v5437, %v5890
        %v5927 = vmul.f32 %v5870, %v5886
        %v5928 = vmul.f32 %v5871, %v5890
        %v5929 = vmul.f32 %v5872, %v5886
        %v5930 = vmul.f32 %v5873, %v5890
        %v5931 = vmul.f32 %v5440, %v5886
        %v5932 = vmul.f32 %v5441, %v5890
        %v5933 = vmul.f32 %v5874, %v5886
        %v5934 = vmul.f32 %v5875, %v5890
        %v5935 = vmul.f32 %v5876, %v5886
        %v5936 = vmul.f32 %v5877, %v5890
        %v5937 = vmul.f32 %v5444, %v5886
        %v5938 = vmul.f32 %v5445, %v5890
        %v5939 = vmul.f32 %v5878, %v5886
        %v5940 = vmul.f32 %v5879, %v5890
        %v5941 = vsel %vm5210, %v5893, 0.0
        %v5942 = vsel %vm5210, %v5894, 0.0
        %v5943 = vadd.f32 %v5941, %v5942
        %5944 = vadd.xlane.f32.xlu0 %v5943
        %v5945 = vpop.xlane.xlu0 %5944
        %v5946 = vadd.f32 %v5895, %v5896
        %5947 = vadd.xlane.f32.xlu0 %v5946
        %v5948 = vpop.xlane.xlu0 %5947
        %v5949 = vsel %vm5219, %v5897, 0.0
        %v5950 = vsel %vm5219, %v5898, 0.0
        %v5951 = vadd.f32 %v5949, %v5950
        %5952 = vadd.xlane.f32.xlu0 %v5951
        %v5953 = vpop.xlane.xlu0 %5952
        %v5954 = vsel %vm5210, %v5899, 0.0
        %v5955 = vsel %vm5210, %v5900, 0.0
        %v5956 = vadd.f32 %v5954, %v5955
        %5957 = vadd.xlane.f32.xlu0 %v5956
        %v5958 = vpop.xlane.xlu0 %5957
        %v5959 = vadd.f32 %v5901, %v5902
        %5960 = vadd.xlane.f32.xlu0 %v5959
        %v5961 = vpop.xlane.xlu0 %5960
        %v5962 = vsel %vm5219, %v5903, 0.0
        %v5963 = vsel %vm5219, %v5904, 0.0
        %v5964 = vadd.f32 %v5962, %v5963
        %5965 = vadd.xlane.f32.xlu0 %v5964
        %v5966 = vpop.xlane.xlu0 %5965
        %v5967 = vsel %vm5210, %v5905, 0.0
        %v5968 = vsel %vm5210, %v5906, 0.0
        %v5969 = vadd.f32 %v5967, %v5968
        %5970 = vadd.xlane.f32.xlu0 %v5969
        %v5971 = vpop.xlane.xlu0 %5970
        %v5972 = vadd.f32 %v5907, %v5908
        %5973 = vadd.xlane.f32.xlu0 %v5972
        %v5974 = vpop.xlane.xlu0 %5973
        %v5975 = vsel %vm5219, %v5909, 0.0
        %v5976 = vsel %vm5219, %v5910, 0.0
        %v5977 = vadd.f32 %v5975, %v5976
        %5978 = vadd.xlane.f32.xlu0 %v5977
        %v5979 = vpop.xlane.xlu0 %5978
        %v5980 = vsel %vm5210, %v5911, 0.0
        %v5981 = vsel %vm5210, %v5912, 0.0
        %v5982 = vadd.f32 %v5980, %v5981
        %5983 = vadd.xlane.f32.xlu0 %v5982
        %v5984 = vpop.xlane.xlu0 %5983
        %v5985 = vadd.f32 %v5913, %v5914
        %5986 = vadd.xlane.f32.xlu0 %v5985
        %v5987 = vpop.xlane.xlu0 %5986
        %v5988 = vsel %vm5219, %v5915, 0.0
        %v5989 = vsel %vm5219, %v5916, 0.0
        %v5990 = vadd.f32 %v5988, %v5989
        %5991 = vadd.xlane.f32.xlu0 %v5990
        %v5992 = vpop.xlane.xlu0 %5991
        %v5993 = vsel %vm5210, %v5917, 0.0
        %v5994 = vsel %vm5210, %v5918, 0.0
        %v5995 = vadd.f32 %v5993, %v5994
        %5996 = vadd.xlane.f32.xlu0 %v5995
        %v5997 = vpop.xlane.xlu0 %5996
        %v5998 = vadd.f32 %v5919, %v5920
        %5999 = vadd.xlane.f32.xlu0 %v5998
        %v6000 = vpop.xlane.xlu0 %5999
        %v6001 = vsel %vm5219, %v5921, 0.0
        %v6002 = vsel %vm5219, %v5922, 0.0
        %v6003 = vadd.f32 %v6001, %v6002
        %6004 = vadd.xlane.f32.xlu0 %v6003
        %v6005 = vpop.xlane.xlu0 %6004
        %v6006 = vsel %vm5210, %v5923, 0.0
        %v6007 = vsel %vm5210, %v5924, 0.0
        %v6008 = vadd.f32 %v6006, %v6007
        %6009 = vadd.xlane.f32.xlu0 %v6008
        %v6010 = vpop.xlane.xlu0 %6009
        %v6011 = vadd.f32 %v5925, %v5926
        %6012 = vadd.xlane.f32.xlu0 %v6011
        %v6013 = vpop.xlane.xlu0 %6012
        %v6014 = vsel %vm5219, %v5927, 0.0
        %v6015 = vsel %vm5219, %v5928, 0.0
        %v6016 = vadd.f32 %v6014, %v6015
        %6017 = vadd.xlane.f32.xlu0 %v6016
        %v6018 = vpop.xlane.xlu0 %6017
        %v6019 = vsel %vm5210, %v5929, 0.0
        %v6020 = vsel %vm5210, %v5930, 0.0
        %v6021 = vadd.f32 %v6019, %v6020
        %6022 = vadd.xlane.f32.xlu0 %v6021
        %v6023 = vpop.xlane.xlu0 %6022
        %v6024 = vadd.f32 %v5931, %v5932
        %6025 = vadd.xlane.f32.xlu0 %v6024
        %v6026 = vpop.xlane.xlu0 %6025
        %v6027 = vsel %vm5219, %v5933, 0.0
        %v6028 = vsel %vm5219, %v5934, 0.0
        %v6029 = vadd.f32 %v6027, %v6028
        %6030 = vadd.xlane.f32.xlu0 %v6029
        %v6031 = vpop.xlane.xlu0 %6030
        %v6032 = vsel %vm5210, %v5935, 0.0
        %v6033 = vsel %vm5210, %v5936, 0.0
        %v6034 = vadd.f32 %v6032, %v6033
        %6035 = vadd.xlane.f32.xlu0 %v6034
        %v6036 = vpop.xlane.xlu0 %6035
        %v6037 = vadd.f32 %v5937, %v5938
        %6038 = vadd.xlane.f32.xlu0 %v6037
        %v6039 = vpop.xlane.xlu0 %6038
        %v6040 = vsel %vm5219, %v5939, 0.0
        %v6041 = vsel %vm5219, %v5940, 0.0
        %v6042 = vadd.f32 %v6040, %v6041
        %6043 = vadd.xlane.f32.xlu0 %v6042
        %v6044 = vpop.xlane.xlu0 %6043
        %v6069 = vrot.slane %v5945, 2
        %v6070 = vrot.slane %v5948, 2
        %v6071 = vsel %vm5340, %v6069, %v6070
        %v6072 = vrot.slane %v5953, 2
        %v6073 = vsel %vm5340, %v6070, %v6072
        %v6074 = vrot.slane %v5958, 2
        %v6075 = vrot.slane %v5961, 2
        %v6076 = vsel %vm5340, %v6074, %v6075
        %v6077 = vrot.slane %v5966, 2
        %v6078 = vsel %vm5340, %v6075, %v6077
        %v6079 = vrot.slane %v5971, 2
        %v6080 = vrot.slane %v5974, 2
        %v6081 = vsel %vm5340, %v6079, %v6080
        %v6082 = vrot.slane %v5979, 2
        %v6083 = vsel %vm5340, %v6080, %v6082
        %v6084 = vrot.slane %v5984, 2
        %v6085 = vrot.slane %v5987, 2
        %v6086 = vsel %vm5340, %v6084, %v6085
        %v6087 = vrot.slane %v5992, 2
        %v6088 = vsel %vm5340, %v6085, %v6087
        %v6089 = vrot.slane %v5997, 2
        %v6090 = vrot.slane %v6000, 2
        %v6091 = vsel %vm5340, %v6089, %v6090
        %v6092 = vrot.slane %v6005, 2
        %v6093 = vsel %vm5340, %v6090, %v6092
        %v6094 = vrot.slane %v6010, 2
        %v6095 = vrot.slane %v6013, 2
        %v6096 = vsel %vm5340, %v6094, %v6095
        %v6097 = vrot.slane %v6018, 2
        %v6098 = vsel %vm5340, %v6095, %v6097
        %v6099 = vrot.slane %v6023, 2
        %v6100 = vrot.slane %v6026, 2
        %v6101 = vsel %vm5340, %v6099, %v6100
        %v6102 = vrot.slane %v6031, 2
        %v6103 = vsel %vm5340, %v6100, %v6102
        %v6104 = vrot.slane %v6036, 2
        %v6105 = vrot.slane %v6039, 2
        %v6106 = vsel %vm5340, %v6104, %v6105
        %v6107 = vrot.slane %v6044, 2
        %v6108 = vsel %vm5340, %v6105, %v6107
        %v6125 = vadd.f32 %v5832, %v6071
        %v6126 = vadd.f32 %v5833, %v6073
        %v6127 = vadd.f32 %v5834, %v6076
        %v6128 = vadd.f32 %v5835, %v6078
        %v6129 = vadd.f32 %v5836, %v6081
        %v6130 = vadd.f32 %v5837, %v6083
        %v6131 = vadd.f32 %v5838, %v6086
        %v6132 = vadd.f32 %v5839, %v6088
        %v6133 = vadd.f32 %v5840, %v6091
        %v6134 = vadd.f32 %v5841, %v6093
        %v6135 = vadd.f32 %v5842, %v6096
        %v6136 = vadd.f32 %v5843, %v6098
        %v6137 = vadd.f32 %v5844, %v6101
        %v6138 = vadd.f32 %v5845, %v6103
        %v6139 = vadd.f32 %v5846, %v6106
        %v6140 = vadd.f32 %v5847, %v6108
        %s6141 = scalar_lea.vmem [#allocation4], 96
        %v6142 = vld [vmem:[%s6141] sm:$0xff]
        %v6143 = vld [vmem:[%s6141 + $0x8] sm:$0xff]
        %v6144 = vld [vmem:[%s6141 + $0x10] sm:$0xff]
        %v6145 = vld [vmem:[%s6141 + $0x18] sm:$0xff]
        %v6146 = vld [vmem:[%s6141 + $0x30] sm:$0xff]
        %v6147 = vld [vmem:[%s6141 + $0x38] sm:$0xff]
        %v6148 = vld [vmem:[%s6141 + $0x40] sm:$0xff]
        %v6149 = vld [vmem:[%s6141 + $0x48] sm:$0xff]
        %v6150 = vld [vmem:[%s6141 + $0x60] sm:$0xff]
        %v6151 = vld [vmem:[%s6141 + $0x68] sm:$0xff]
        %v6152 = vld [vmem:[%s6141 + $0x70] sm:$0xff]
        %v6153 = vld [vmem:[%s6141 + $0x78] sm:$0xff]
        %v6154 = vld [vmem:[%s6141 + $0x90] sm:$0xff]
        %v6155 = vld [vmem:[%s6141 + $0x98] sm:$0xff]
        %v6156 = vld [vmem:[%s6141 + $0xa0] sm:$0xff]
        %v6157 = vld [vmem:[%s6141 + $0xa8] sm:$0xff]
        %v6158 = vld [vmem:[%s6141 + $0xc0] sm:$0xff]
        %v6159 = vld [vmem:[%s6141 + $0xc8] sm:$0xff]
        %v6160 = vld [vmem:[%s6141 + $0xd0] sm:$0xff]
        %v6161 = vld [vmem:[%s6141 + $0xd8] sm:$0xff]
        %v6162 = vld [vmem:[%s6141 + $0xf0] sm:$0xff]
        %v6163 = vld [vmem:[%s6141 + $0xf8] sm:$0xff]
        %v6164 = vld [vmem:[%s6141 + $0x100] sm:$0xff]
        %v6165 = vld [vmem:[%s6141 + $0x108] sm:$0xff]
        %v6166 = vld [vmem:[%s6141 + $0x120] sm:$0xff]
        %v6167 = vld [vmem:[%s6141 + $0x128] sm:$0xff]
        %v6168 = vld [vmem:[%s6141 + $0x130] sm:$0xff]
        %v6169 = vld [vmem:[%s6141 + $0x138] sm:$0xff]
        %v6170 = vld [vmem:[%s6141 + $0x150] sm:$0xff]
        %v6171 = vld [vmem:[%s6141 + $0x158] sm:$0xff]
        %v6172 = vld [vmem:[%s6141 + $0x160] sm:$0xff]
        %v6173 = vld [vmem:[%s6141 + $0x168] sm:$0xff]
        %s6174 = scalar_lea.vmem [#allocation11], 12
        %v6175 = vld [vmem:[%s6174] sm:$0x3]
        %v6177 = vlaneseq
        %v6178 = vshrl.u32 %v6177, 7
        %v6179 = vsub.s32 0, %v6178
        %v6180 = vrot.slane %v6175, %v6179
        %v6181 = vlaneseq
        %v6182 = vshrl.u32 %v6181, 7
        %v6183 = vsub.s32 1, %v6182
        %v6184 = vrot.slane %v6175, %v6183
        %v6187 = vmul.f32 %v6142, %v6180
        %v6188 = vmul.f32 %v6143, %v6184
        %v6189 = vmul.f32 %v6144, %v6180
        %v6190 = vmul.f32 %v6145, %v6184
        %v6191 = vmul.f32 %v6146, %v6180
        %v6192 = vmul.f32 %v6147, %v6184
        %v6193 = vmul.f32 %v6148, %v6180
        %v6194 = vmul.f32 %v6149, %v6184
        %v6195 = vmul.f32 %v6150, %v6180
        %v6196 = vmul.f32 %v6151, %v6184
        %v6197 = vmul.f32 %v6152, %v6180
        %v6198 = vmul.f32 %v6153, %v6184
        %v6199 = vmul.f32 %v6154, %v6180
        %v6200 = vmul.f32 %v6155, %v6184
        %v6201 = vmul.f32 %v6156, %v6180
        %v6202 = vmul.f32 %v6157, %v6184
        %v6203 = vmul.f32 %v6158, %v6180
        %v6204 = vmul.f32 %v6159, %v6184
        %v6205 = vmul.f32 %v6160, %v6180
        %v6206 = vmul.f32 %v6161, %v6184
        %v6207 = vmul.f32 %v6162, %v6180
        %v6208 = vmul.f32 %v6163, %v6184
        %v6209 = vmul.f32 %v6164, %v6180
        %v6210 = vmul.f32 %v6165, %v6184
        %v6211 = vmul.f32 %v6166, %v6180
        %v6212 = vmul.f32 %v6167, %v6184
        %v6213 = vmul.f32 %v6168, %v6180
        %v6214 = vmul.f32 %v6169, %v6184
        %v6215 = vmul.f32 %v6170, %v6180
        %v6216 = vmul.f32 %v6171, %v6184
        %v6217 = vmul.f32 %v6172, %v6180
        %v6218 = vmul.f32 %v6173, %v6184
        %v6219 = vadd.f32 %v6187, %v6188
        %6220 = vadd.xlane.f32.xlu0 %v6219
        %v6221 = vpop.xlane.xlu0 %6220
        %v6222 = vadd.f32 %v6189, %v6190
        %6223 = vadd.xlane.f32.xlu0 %v6222
        %v6224 = vpop.xlane.xlu0 %6223
        %v6225 = vadd.f32 %v6191, %v6192
        %6226 = vadd.xlane.f32.xlu0 %v6225
        %v6227 = vpop.xlane.xlu0 %6226
        %v6228 = vadd.f32 %v6193, %v6194
        %6229 = vadd.xlane.f32.xlu0 %v6228
        %v6230 = vpop.xlane.xlu0 %6229
        %v6231 = vadd.f32 %v6195, %v6196
        %6232 = vadd.xlane.f32.xlu0 %v6231
        %v6233 = vpop.xlane.xlu0 %6232
        %v6234 = vadd.f32 %v6197, %v6198
        %6235 = vadd.xlane.f32.xlu0 %v6234
        %v6236 = vpop.xlane.xlu0 %6235
        %v6237 = vadd.f32 %v6199, %v6200
        %6238 = vadd.xlane.f32.xlu0 %v6237
        %v6239 = vpop.xlane.xlu0 %6238
        %v6240 = vadd.f32 %v6201, %v6202
        %6241 = vadd.xlane.f32.xlu0 %v6240
        %v6242 = vpop.xlane.xlu0 %6241
        %v6243 = vadd.f32 %v6203, %v6204
        %6244 = vadd.xlane.f32.xlu0 %v6243
        %v6245 = vpop.xlane.xlu0 %6244
        %v6246 = vadd.f32 %v6205, %v6206
        %6247 = vadd.xlane.f32.xlu0 %v6246
        %v6248 = vpop.xlane.xlu0 %6247
        %v6249 = vadd.f32 %v6207, %v6208
        %6250 = vadd.xlane.f32.xlu0 %v6249
        %v6251 = vpop.xlane.xlu0 %6250
        %v6252 = vadd.f32 %v6209, %v6210
        %6253 = vadd.xlane.f32.xlu0 %v6252
        %v6254 = vpop.xlane.xlu0 %6253
        %v6255 = vadd.f32 %v6211, %v6212
        %6256 = vadd.xlane.f32.xlu0 %v6255
        %v6257 = vpop.xlane.xlu0 %6256
        %v6258 = vadd.f32 %v6213, %v6214
        %6259 = vadd.xlane.f32.xlu0 %v6258
        %v6260 = vpop.xlane.xlu0 %6259
        %v6261 = vadd.f32 %v6215, %v6216
        %6262 = vadd.xlane.f32.xlu0 %v6261
        %v6263 = vpop.xlane.xlu0 %6262
        %v6264 = vadd.f32 %v6217, %v6218
        %6265 = vadd.xlane.f32.xlu0 %v6264
        %v6266 = vpop.xlane.xlu0 %6265
        %v6267 = vadd.f32 %v6125, %v6221
        %v6268 = vadd.f32 %v6126, %v6224
        %v6269 = vadd.f32 %v6127, %v6227
        %v6270 = vadd.f32 %v6128, %v6230
        %v6271 = vadd.f32 %v6129, %v6233
        %v6272 = vadd.f32 %v6130, %v6236
        %v6273 = vadd.f32 %v6131, %v6239
        %v6274 = vadd.f32 %v6132, %v6242
        %v6275 = vadd.f32 %v6133, %v6245
        %v6276 = vadd.f32 %v6134, %v6248
        %v6277 = vadd.f32 %v6135, %v6251
        %v6278 = vadd.f32 %v6136, %v6254
        %v6279 = vadd.f32 %v6137, %v6257
        %v6280 = vadd.f32 %v6138, %v6260
        %v6281 = vadd.f32 %v6139, %v6263
        %v6282 = vadd.f32 %v6140, %v6266
        %v6283 = vld [vmem:[%s6141] sm:$0xfe]
        %v6284 = vld [vmem:[%s6141 + $0x8] sm:$0xfe]
        %v6285 = vld [vmem:[%s6141 + $0x20] sm:$0x1]
        %v6286 = vld [vmem:[%s6141 + $0x28] sm:$0x1]
        %v6287 = vld [vmem:[%s6141 + $0x30] sm:$0xfe]
        %v6288 = vld [vmem:[%s6141 + $0x38] sm:$0xfe]
        %v6289 = vld [vmem:[%s6141 + $0x50] sm:$0x1]
        %v6290 = vld [vmem:[%s6141 + $0x58] sm:$0x1]
        %v6291 = vld [vmem:[%s6141 + $0x60] sm:$0xfe]
        %v6292 = vld [vmem:[%s6141 + $0x68] sm:$0xfe]
        %v6293 = vld [vmem:[%s6141 + $0x80] sm:$0x1]
        %v6294 = vld [vmem:[%s6141 + $0x88] sm:$0x1]
        %v6295 = vld [vmem:[%s6141 + $0x90] sm:$0xfe]
        %v6296 = vld [vmem:[%s6141 + $0x98] sm:$0xfe]
        %v6297 = vld [vmem:[%s6141 + $0xb0] sm:$0x1]
        %v6298 = vld [vmem:[%s6141 + $0xb8] sm:$0x1]
        %v6299 = vld [vmem:[%s6141 + $0xc0] sm:$0xfe]
        %v6300 = vld [vmem:[%s6141 + $0xc8] sm:$0xfe]
        %v6301 = vld [vmem:[%s6141 + $0xe0] sm:$0x1]
        %v6302 = vld [vmem:[%s6141 + $0xe8] sm:$0x1]
        %v6303 = vld [vmem:[%s6141 + $0xf0] sm:$0xfe]
        %v6304 = vld [vmem:[%s6141 + $0xf8] sm:$0xfe]
        %v6305 = vld [vmem:[%s6141 + $0x110] sm:$0x1]
        %v6306 = vld [vmem:[%s6141 + $0x118] sm:$0x1]
        %v6307 = vld [vmem:[%s6141 + $0x120] sm:$0xfe]
        %v6308 = vld [vmem:[%s6141 + $0x128] sm:$0xfe]
        %v6309 = vld [vmem:[%s6141 + $0x140] sm:$0x1]
        %v6310 = vld [vmem:[%s6141 + $0x148] sm:$0x1]
        %v6311 = vld [vmem:[%s6141 + $0x150] sm:$0xfe]
        %v6312 = vld [vmem:[%s6141 + $0x158] sm:$0xfe]
        %v6313 = vld [vmem:[%s6141 + $0x170] sm:$0x1]
        %v6314 = vld [vmem:[%s6141 + $0x178] sm:$0x1]
        %s6315 = scalar_lea.vmem [#allocation11], 14
        %v6316 = vld [vmem:[%s6315] sm:$0x3]
        %v6318 = vlaneseq
        %v6319 = vshrl.u32 %v6318, 7
        %v6320 = vsub.s32 0, %v6319
        %v6321 = vrot.slane %v6316, %v6320
        %v6322 = vlaneseq
        %v6323 = vshrl.u32 %v6322, 7
        %v6324 = vsub.s32 1, %v6323
        %v6325 = vrot.slane %v6316, %v6324
        %v6328 = vmul.f32 %v6283, %v6321
        %v6329 = vmul.f32 %v6284, %v6325
        %v6330 = vmul.f32 %v6144, %v6321
        %v6331 = vmul.f32 %v6145, %v6325
        %v6332 = vmul.f32 %v6285, %v6321
        %v6333 = vmul.f32 %v6286, %v6325
        %v6334 = vmul.f32 %v6287, %v6321
        %v6335 = vmul.f32 %v6288, %v6325
        %v6336 = vmul.f32 %v6148, %v6321
        %v6337 = vmul.f32 %v6149, %v6325
        %v6338 = vmul.f32 %v6289, %v6321
        %v6339 = vmul.f32 %v6290, %v6325
        %v6340 = vmul.f32 %v6291, %v6321
        %v6341 = vmul.f32 %v6292, %v6325
        %v6342 = vmul.f32 %v6152, %v6321
        %v6343 = vmul.f32 %v6153, %v6325
        %v6344 = vmul.f32 %v6293, %v6321
        %v6345 = vmul.f32 %v6294, %v6325
        %v6346 = vmul.f32 %v6295, %v6321
        %v6347 = vmul.f32 %v6296, %v6325
        %v6348 = vmul.f32 %v6156, %v6321
        %v6349 = vmul.f32 %v6157, %v6325
        %v6350 = vmul.f32 %v6297, %v6321
        %v6351 = vmul.f32 %v6298, %v6325
        %v6352 = vmul.f32 %v6299, %v6321
        %v6353 = vmul.f32 %v6300, %v6325
        %v6354 = vmul.f32 %v6160, %v6321
        %v6355 = vmul.f32 %v6161, %v6325
        %v6356 = vmul.f32 %v6301, %v6321
        %v6357 = vmul.f32 %v6302, %v6325
        %v6358 = vmul.f32 %v6303, %v6321
        %v6359 = vmul.f32 %v6304, %v6325
        %v6360 = vmul.f32 %v6164, %v6321
        %v6361 = vmul.f32 %v6165, %v6325
        %v6362 = vmul.f32 %v6305, %v6321
        %v6363 = vmul.f32 %v6306, %v6325
        %v6364 = vmul.f32 %v6307, %v6321
        %v6365 = vmul.f32 %v6308, %v6325
        %v6366 = vmul.f32 %v6168, %v6321
        %v6367 = vmul.f32 %v6169, %v6325
        %v6368 = vmul.f32 %v6309, %v6321
        %v6369 = vmul.f32 %v6310, %v6325
        %v6370 = vmul.f32 %v6311, %v6321
        %v6371 = vmul.f32 %v6312, %v6325
        %v6372 = vmul.f32 %v6172, %v6321
        %v6373 = vmul.f32 %v6173, %v6325
        %v6374 = vmul.f32 %v6313, %v6321
        %v6375 = vmul.f32 %v6314, %v6325
        %v6376 = vsel %vm4915, %v6328, 0.0
        %v6377 = vsel %vm4915, %v6329, 0.0
        %v6378 = vadd.f32 %v6376, %v6377
        %6379 = vadd.xlane.f32.xlu0 %v6378
        %v6380 = vpop.xlane.xlu0 %6379
        %v6381 = vadd.f32 %v6330, %v6331
        %6382 = vadd.xlane.f32.xlu0 %v6381
        %v6383 = vpop.xlane.xlu0 %6382
        %v6384 = vsel %vm4481, %v6332, 0.0
        %v6385 = vsel %vm4481, %v6333, 0.0
        %v6386 = vadd.f32 %v6384, %v6385
        %6387 = vadd.xlane.f32.xlu0 %v6386
        %v6388 = vpop.xlane.xlu0 %6387
        %v6389 = vsel %vm4915, %v6334, 0.0
        %v6390 = vsel %vm4915, %v6335, 0.0
        %v6391 = vadd.f32 %v6389, %v6390
        %6392 = vadd.xlane.f32.xlu0 %v6391
        %v6393 = vpop.xlane.xlu0 %6392
        %v6394 = vadd.f32 %v6336, %v6337
        %6395 = vadd.xlane.f32.xlu0 %v6394
        %v6396 = vpop.xlane.xlu0 %6395
        %v6397 = vsel %vm4481, %v6338, 0.0
        %v6398 = vsel %vm4481, %v6339, 0.0
        %v6399 = vadd.f32 %v6397, %v6398
        %6400 = vadd.xlane.f32.xlu0 %v6399
        %v6401 = vpop.xlane.xlu0 %6400
        %v6402 = vsel %vm4915, %v6340, 0.0
        %v6403 = vsel %vm4915, %v6341, 0.0
        %v6404 = vadd.f32 %v6402, %v6403
        %6405 = vadd.xlane.f32.xlu0 %v6404
        %v6406 = vpop.xlane.xlu0 %6405
        %v6407 = vadd.f32 %v6342, %v6343
        %6408 = vadd.xlane.f32.xlu0 %v6407
        %v6409 = vpop.xlane.xlu0 %6408
        %v6410 = vsel %vm4481, %v6344, 0.0
        %v6411 = vsel %vm4481, %v6345, 0.0
        %v6412 = vadd.f32 %v6410, %v6411
        %6413 = vadd.xlane.f32.xlu0 %v6412
        %v6414 = vpop.xlane.xlu0 %6413
        %v6415 = vsel %vm4915, %v6346, 0.0
        %v6416 = vsel %vm4915, %v6347, 0.0
        %v6417 = vadd.f32 %v6415, %v6416
        %6418 = vadd.xlane.f32.xlu0 %v6417
        %v6419 = vpop.xlane.xlu0 %6418
        %v6420 = vadd.f32 %v6348, %v6349
        %6421 = vadd.xlane.f32.xlu0 %v6420
        %v6422 = vpop.xlane.xlu0 %6421
        %v6423 = vsel %vm4481, %v6350, 0.0
        %v6424 = vsel %vm4481, %v6351, 0.0
        %v6425 = vadd.f32 %v6423, %v6424
        %6426 = vadd.xlane.f32.xlu0 %v6425
        %v6427 = vpop.xlane.xlu0 %6426
        %v6428 = vsel %vm4915, %v6352, 0.0
        %v6429 = vsel %vm4915, %v6353, 0.0
        %v6430 = vadd.f32 %v6428, %v6429
        %6431 = vadd.xlane.f32.xlu0 %v6430
        %v6432 = vpop.xlane.xlu0 %6431
        %v6433 = vadd.f32 %v6354, %v6355
        %6434 = vadd.xlane.f32.xlu0 %v6433
        %v6435 = vpop.xlane.xlu0 %6434
        %v6436 = vsel %vm4481, %v6356, 0.0
        %v6437 = vsel %vm4481, %v6357, 0.0
        %v6438 = vadd.f32 %v6436, %v6437
        %6439 = vadd.xlane.f32.xlu0 %v6438
        %v6440 = vpop.xlane.xlu0 %6439
        %v6441 = vsel %vm4915, %v6358, 0.0
        %v6442 = vsel %vm4915, %v6359, 0.0
        %v6443 = vadd.f32 %v6441, %v6442
        %6444 = vadd.xlane.f32.xlu0 %v6443
        %v6445 = vpop.xlane.xlu0 %6444
        %v6446 = vadd.f32 %v6360, %v6361
        %6447 = vadd.xlane.f32.xlu0 %v6446
        %v6448 = vpop.xlane.xlu0 %6447
        %v6449 = vsel %vm4481, %v6362, 0.0
        %v6450 = vsel %vm4481, %v6363, 0.0
        %v6451 = vadd.f32 %v6449, %v6450
        %6452 = vadd.xlane.f32.xlu0 %v6451
        %v6453 = vpop.xlane.xlu0 %6452
        %v6454 = vsel %vm4915, %v6364, 0.0
        %v6455 = vsel %vm4915, %v6365, 0.0
        %v6456 = vadd.f32 %v6454, %v6455
        %6457 = vadd.xlane.f32.xlu0 %v6456
        %v6458 = vpop.xlane.xlu0 %6457
        %v6459 = vadd.f32 %v6366, %v6367
        %6460 = vadd.xlane.f32.xlu0 %v6459
        %v6461 = vpop.xlane.xlu0 %6460
        %v6462 = vsel %vm4481, %v6368, 0.0
        %v6463 = vsel %vm4481, %v6369, 0.0
        %v6464 = vadd.f32 %v6462, %v6463
        %6465 = vadd.xlane.f32.xlu0 %v6464
        %v6466 = vpop.xlane.xlu0 %6465
        %v6467 = vsel %vm4915, %v6370, 0.0
        %v6468 = vsel %vm4915, %v6371, 0.0
        %v6469 = vadd.f32 %v6467, %v6468
        %6470 = vadd.xlane.f32.xlu0 %v6469
        %v6471 = vpop.xlane.xlu0 %6470
        %v6472 = vadd.f32 %v6372, %v6373
        %6473 = vadd.xlane.f32.xlu0 %v6472
        %v6474 = vpop.xlane.xlu0 %6473
        %v6475 = vsel %vm4481, %v6374, 0.0
        %v6476 = vsel %vm4481, %v6375, 0.0
        %v6477 = vadd.f32 %v6475, %v6476
        %6478 = vadd.xlane.f32.xlu0 %v6477
        %v6479 = vpop.xlane.xlu0 %6478
        %v6504 = vrot.slane %v6380, 1
        %v6505 = vrot.slane %v6383, 1
        %v6506 = vsel %vm5044, %v6504, %v6505
        %v6507 = vrot.slane %v6388, 1
        %v6508 = vsel %vm5044, %v6505, %v6507
        %v6509 = vrot.slane %v6393, 1
        %v6510 = vrot.slane %v6396, 1
        %v6511 = vsel %vm5044, %v6509, %v6510
        %v6512 = vrot.slane %v6401, 1
        %v6513 = vsel %vm5044, %v6510, %v6512
        %v6514 = vrot.slane %v6406, 1
        %v6515 = vrot.slane %v6409, 1
        %v6516 = vsel %vm5044, %v6514, %v6515
        %v6517 = vrot.slane %v6414, 1
        %v6518 = vsel %vm5044, %v6515, %v6517
        %v6519 = vrot.slane %v6419, 1
        %v6520 = vrot.slane %v6422, 1
        %v6521 = vsel %vm5044, %v6519, %v6520
        %v6522 = vrot.slane %v6427, 1
        %v6523 = vsel %vm5044, %v6520, %v6522
        %v6524 = vrot.slane %v6432, 1
        %v6525 = vrot.slane %v6435, 1
        %v6526 = vsel %vm5044, %v6524, %v6525
        %v6527 = vrot.slane %v6440, 1
        %v6528 = vsel %vm5044, %v6525, %v6527
        %v6529 = vrot.slane %v6445, 1
        %v6530 = vrot.slane %v6448, 1
        %v6531 = vsel %vm5044, %v6529, %v6530
        %v6532 = vrot.slane %v6453, 1
        %v6533 = vsel %vm5044, %v6530, %v6532
        %v6534 = vrot.slane %v6458, 1
        %v6535 = vrot.slane %v6461, 1
        %v6536 = vsel %vm5044, %v6534, %v6535
        %v6537 = vrot.slane %v6466, 1
        %v6538 = vsel %vm5044, %v6535, %v6537
        %v6539 = vrot.slane %v6471, 1
        %v6540 = vrot.slane %v6474, 1
        %v6541 = vsel %vm5044, %v6539, %v6540
        %v6542 = vrot.slane %v6479, 1
        %v6543 = vsel %vm5044, %v6540, %v6542
        %v6560 = vadd.f32 %v6267, %v6506
        %v6561 = vadd.f32 %v6268, %v6508
        %v6562 = vadd.f32 %v6269, %v6511
        %v6563 = vadd.f32 %v6270, %v6513
        %v6564 = vadd.f32 %v6271, %v6516
        %v6565 = vadd.f32 %v6272, %v6518
        %v6566 = vadd.f32 %v6273, %v6521
        %v6567 = vadd.f32 %v6274, %v6523
        %v6568 = vadd.f32 %v6275, %v6526
        %v6569 = vadd.f32 %v6276, %v6528
        %v6570 = vadd.f32 %v6277, %v6531
        %v6571 = vadd.f32 %v6278, %v6533
        %v6572 = vadd.f32 %v6279, %v6536
        %v6573 = vadd.f32 %v6280, %v6538
        %v6574 = vadd.f32 %v6281, %v6541
        %v6575 = vadd.f32 %v6282, %v6543
        %v6576 = vld [vmem:[%s6141] sm:$0xfc]
        %v6577 = vld [vmem:[%s6141 + $0x8] sm:$0xfc]
        %v6578 = vld [vmem:[%s6141 + $0x20] sm:$0x3]
        %v6579 = vld [vmem:[%s6141 + $0x28] sm:$0x3]
        %v6580 = vld [vmem:[%s6141 + $0x30] sm:$0xfc]
        %v6581 = vld [vmem:[%s6141 + $0x38] sm:$0xfc]
        %v6582 = vld [vmem:[%s6141 + $0x50] sm:$0x3]
        %v6583 = vld [vmem:[%s6141 + $0x58] sm:$0x3]
        %v6584 = vld [vmem:[%s6141 + $0x60] sm:$0xfc]
        %v6585 = vld [vmem:[%s6141 + $0x68] sm:$0xfc]
        %v6586 = vld [vmem:[%s6141 + $0x80] sm:$0x3]
        %v6587 = vld [vmem:[%s6141 + $0x88] sm:$0x3]
        %v6588 = vld [vmem:[%s6141 + $0x90] sm:$0xfc]
        %v6589 = vld [vmem:[%s6141 + $0x98] sm:$0xfc]
        %v6590 = vld [vmem:[%s6141 + $0xb0] sm:$0x3]
        %v6591 = vld [vmem:[%s6141 + $0xb8] sm:$0x3]
        %v6592 = vld [vmem:[%s6141 + $0xc0] sm:$0xfc]
        %v6593 = vld [vmem:[%s6141 + $0xc8] sm:$0xfc]
        %v6594 = vld [vmem:[%s6141 + $0xe0] sm:$0x3]
        %v6595 = vld [vmem:[%s6141 + $0xe8] sm:$0x3]
        %v6596 = vld [vmem:[%s6141 + $0xf0] sm:$0xfc]
        %v6597 = vld [vmem:[%s6141 + $0xf8] sm:$0xfc]
        %v6598 = vld [vmem:[%s6141 + $0x110] sm:$0x3]
        %v6599 = vld [vmem:[%s6141 + $0x118] sm:$0x3]
        %v6600 = vld [vmem:[%s6141 + $0x120] sm:$0xfc]
        %v6601 = vld [vmem:[%s6141 + $0x128] sm:$0xfc]
        %v6602 = vld [vmem:[%s6141 + $0x140] sm:$0x3]
        %v6603 = vld [vmem:[%s6141 + $0x148] sm:$0x3]
        %v6604 = vld [vmem:[%s6141 + $0x150] sm:$0xfc]
        %v6605 = vld [vmem:[%s6141 + $0x158] sm:$0xfc]
        %v6606 = vld [vmem:[%s6141 + $0x170] sm:$0x3]
        %v6607 = vld [vmem:[%s6141 + $0x178] sm:$0x3]
        %s6608 = scalar_lea.vmem [#allocation11], 16
        %v6609 = vld [vmem:[%s6608] sm:$0x3]
        %v6611 = vlaneseq
        %v6612 = vshrl.u32 %v6611, 7
        %v6613 = vsub.s32 0, %v6612
        %v6614 = vrot.slane %v6609, %v6613
        %v6615 = vlaneseq
        %v6616 = vshrl.u32 %v6615, 7
        %v6617 = vsub.s32 1, %v6616
        %v6618 = vrot.slane %v6609, %v6617
        %v6621 = vmul.f32 %v6576, %v6614
        %v6622 = vmul.f32 %v6577, %v6618
        %v6623 = vmul.f32 %v6144, %v6614
        %v6624 = vmul.f32 %v6145, %v6618
        %v6625 = vmul.f32 %v6578, %v6614
        %v6626 = vmul.f32 %v6579, %v6618
        %v6627 = vmul.f32 %v6580, %v6614
        %v6628 = vmul.f32 %v6581, %v6618
        %v6629 = vmul.f32 %v6148, %v6614
        %v6630 = vmul.f32 %v6149, %v6618
        %v6631 = vmul.f32 %v6582, %v6614
        %v6632 = vmul.f32 %v6583, %v6618
        %v6633 = vmul.f32 %v6584, %v6614
        %v6634 = vmul.f32 %v6585, %v6618
        %v6635 = vmul.f32 %v6152, %v6614
        %v6636 = vmul.f32 %v6153, %v6618
        %v6637 = vmul.f32 %v6586, %v6614
        %v6638 = vmul.f32 %v6587, %v6618
        %v6639 = vmul.f32 %v6588, %v6614
        %v6640 = vmul.f32 %v6589, %v6618
        %v6641 = vmul.f32 %v6156, %v6614
        %v6642 = vmul.f32 %v6157, %v6618
        %v6643 = vmul.f32 %v6590, %v6614
        %v6644 = vmul.f32 %v6591, %v6618
        %v6645 = vmul.f32 %v6592, %v6614
        %v6646 = vmul.f32 %v6593, %v6618
        %v6647 = vmul.f32 %v6160, %v6614
        %v6648 = vmul.f32 %v6161, %v6618
        %v6649 = vmul.f32 %v6594, %v6614
        %v6650 = vmul.f32 %v6595, %v6618
        %v6651 = vmul.f32 %v6596, %v6614
        %v6652 = vmul.f32 %v6597, %v6618
        %v6653 = vmul.f32 %v6164, %v6614
        %v6654 = vmul.f32 %v6165, %v6618
        %v6655 = vmul.f32 %v6598, %v6614
        %v6656 = vmul.f32 %v6599, %v6618
        %v6657 = vmul.f32 %v6600, %v6614
        %v6658 = vmul.f32 %v6601, %v6618
        %v6659 = vmul.f32 %v6168, %v6614
        %v6660 = vmul.f32 %v6169, %v6618
        %v6661 = vmul.f32 %v6602, %v6614
        %v6662 = vmul.f32 %v6603, %v6618
        %v6663 = vmul.f32 %v6604, %v6614
        %v6664 = vmul.f32 %v6605, %v6618
        %v6665 = vmul.f32 %v6172, %v6614
        %v6666 = vmul.f32 %v6173, %v6618
        %v6667 = vmul.f32 %v6606, %v6614
        %v6668 = vmul.f32 %v6607, %v6618
        %v6669 = vsel %vm5210, %v6621, 0.0
        %v6670 = vsel %vm5210, %v6622, 0.0
        %v6671 = vadd.f32 %v6669, %v6670
        %6672 = vadd.xlane.f32.xlu0 %v6671
        %v6673 = vpop.xlane.xlu0 %6672
        %v6674 = vadd.f32 %v6623, %v6624
        %6675 = vadd.xlane.f32.xlu0 %v6674
        %v6676 = vpop.xlane.xlu0 %6675
        %v6677 = vsel %vm5219, %v6625, 0.0
        %v6678 = vsel %vm5219, %v6626, 0.0
        %v6679 = vadd.f32 %v6677, %v6678
        %6680 = vadd.xlane.f32.xlu0 %v6679
        %v6681 = vpop.xlane.xlu0 %6680
        %v6682 = vsel %vm5210, %v6627, 0.0
        %v6683 = vsel %vm5210, %v6628, 0.0
        %v6684 = vadd.f32 %v6682, %v6683
        %6685 = vadd.xlane.f32.xlu0 %v6684
        %v6686 = vpop.xlane.xlu0 %6685
        %v6687 = vadd.f32 %v6629, %v6630
        %6688 = vadd.xlane.f32.xlu0 %v6687
        %v6689 = vpop.xlane.xlu0 %6688
        %v6690 = vsel %vm5219, %v6631, 0.0
        %v6691 = vsel %vm5219, %v6632, 0.0
        %v6692 = vadd.f32 %v6690, %v6691
        %6693 = vadd.xlane.f32.xlu0 %v6692
        %v6694 = vpop.xlane.xlu0 %6693
        %v6695 = vsel %vm5210, %v6633, 0.0
        %v6696 = vsel %vm5210, %v6634, 0.0
        %v6697 = vadd.f32 %v6695, %v6696
        %6698 = vadd.xlane.f32.xlu0 %v6697
        %v6699 = vpop.xlane.xlu0 %6698
        %v6700 = vadd.f32 %v6635, %v6636
        %6701 = vadd.xlane.f32.xlu0 %v6700
        %v6702 = vpop.xlane.xlu0 %6701
        %v6703 = vsel %vm5219, %v6637, 0.0
        %v6704 = vsel %vm5219, %v6638, 0.0
        %v6705 = vadd.f32 %v6703, %v6704
        %6706 = vadd.xlane.f32.xlu0 %v6705
        %v6707 = vpop.xlane.xlu0 %6706
        %v6708 = vsel %vm5210, %v6639, 0.0
        %v6709 = vsel %vm5210, %v6640, 0.0
        %v6710 = vadd.f32 %v6708, %v6709
        %6711 = vadd.xlane.f32.xlu0 %v6710
        %v6712 = vpop.xlane.xlu0 %6711
        %v6713 = vadd.f32 %v6641, %v6642
        %6714 = vadd.xlane.f32.xlu0 %v6713
        %v6715 = vpop.xlane.xlu0 %6714
        %v6716 = vsel %vm5219, %v6643, 0.0
        %v6717 = vsel %vm5219, %v6644, 0.0
        %v6718 = vadd.f32 %v6716, %v6717
        %6719 = vadd.xlane.f32.xlu0 %v6718
        %v6720 = vpop.xlane.xlu0 %6719
        %v6721 = vsel %vm5210, %v6645, 0.0
        %v6722 = vsel %vm5210, %v6646, 0.0
        %v6723 = vadd.f32 %v6721, %v6722
        %6724 = vadd.xlane.f32.xlu0 %v6723
        %v6725 = vpop.xlane.xlu0 %6724
        %v6726 = vadd.f32 %v6647, %v6648
        %6727 = vadd.xlane.f32.xlu0 %v6726
        %v6728 = vpop.xlane.xlu0 %6727
        %v6729 = vsel %vm5219, %v6649, 0.0
        %v6730 = vsel %vm5219, %v6650, 0.0
        %v6731 = vadd.f32 %v6729, %v6730
        %6732 = vadd.xlane.f32.xlu0 %v6731
        %v6733 = vpop.xlane.xlu0 %6732
        %v6734 = vsel %vm5210, %v6651, 0.0
        %v6735 = vsel %vm5210, %v6652, 0.0
        %v6736 = vadd.f32 %v6734, %v6735
        %6737 = vadd.xlane.f32.xlu0 %v6736
        %v6738 = vpop.xlane.xlu0 %6737
        %v6739 = vadd.f32 %v6653, %v6654
        %6740 = vadd.xlane.f32.xlu0 %v6739
        %v6741 = vpop.xlane.xlu0 %6740
        %v6742 = vsel %vm5219, %v6655, 0.0
        %v6743 = vsel %vm5219, %v6656, 0.0
        %v6744 = vadd.f32 %v6742, %v6743
        %6745 = vadd.xlane.f32.xlu0 %v6744
        %v6746 = vpop.xlane.xlu0 %6745
        %v6747 = vsel %vm5210, %v6657, 0.0
        %v6748 = vsel %vm5210, %v6658, 0.0
        %v6749 = vadd.f32 %v6747, %v6748
        %6750 = vadd.xlane.f32.xlu0 %v6749
        %v6751 = vpop.xlane.xlu0 %6750
        %v6752 = vadd.f32 %v6659, %v6660
        %6753 = vadd.xlane.f32.xlu0 %v6752
        %v6754 = vpop.xlane.xlu0 %6753
        %v6755 = vsel %vm5219, %v6661, 0.0
        %v6756 = vsel %vm5219, %v6662, 0.0
        %v6757 = vadd.f32 %v6755, %v6756
        %6758 = vadd.xlane.f32.xlu0 %v6757
        %v6759 = vpop.xlane.xlu0 %6758
        %v6760 = vsel %vm5210, %v6663, 0.0
        %v6761 = vsel %vm5210, %v6664, 0.0
        %v6762 = vadd.f32 %v6760, %v6761
        %6763 = vadd.xlane.f32.xlu0 %v6762
        %v6764 = vpop.xlane.xlu0 %6763
        %v6765 = vadd.f32 %v6665, %v6666
        %6766 = vadd.xlane.f32.xlu0 %v6765
        %v6767 = vpop.xlane.xlu0 %6766
        %v6768 = vsel %vm5219, %v6667, 0.0
        %v6769 = vsel %vm5219, %v6668, 0.0
        %v6770 = vadd.f32 %v6768, %v6769
        %6771 = vadd.xlane.f32.xlu0 %v6770
        %v6772 = vpop.xlane.xlu0 %6771
        %v6797 = vrot.slane %v6673, 2
        %v6798 = vrot.slane %v6676, 2
        %v6799 = vsel %vm5340, %v6797, %v6798
        %v6800 = vrot.slane %v6681, 2
        %v6801 = vsel %vm5340, %v6798, %v6800
        %v6802 = vrot.slane %v6686, 2
        %v6803 = vrot.slane %v6689, 2
        %v6804 = vsel %vm5340, %v6802, %v6803
        %v6805 = vrot.slane %v6694, 2
        %v6806 = vsel %vm5340, %v6803, %v6805
        %v6807 = vrot.slane %v6699, 2
        %v6808 = vrot.slane %v6702, 2
        %v6809 = vsel %vm5340, %v6807, %v6808
        %v6810 = vrot.slane %v6707, 2
        %v6811 = vsel %vm5340, %v6808, %v6810
        %v6812 = vrot.slane %v6712, 2
        %v6813 = vrot.slane %v6715, 2
        %v6814 = vsel %vm5340, %v6812, %v6813
        %v6815 = vrot.slane %v6720, 2
        %v6816 = vsel %vm5340, %v6813, %v6815
        %v6817 = vrot.slane %v6725, 2
        %v6818 = vrot.slane %v6728, 2
        %v6819 = vsel %vm5340, %v6817, %v6818
        %v6820 = vrot.slane %v6733, 2
        %v6821 = vsel %vm5340, %v6818, %v6820
        %v6822 = vrot.slane %v6738, 2
        %v6823 = vrot.slane %v6741, 2
        %v6824 = vsel %vm5340, %v6822, %v6823
        %v6825 = vrot.slane %v6746, 2
        %v6826 = vsel %vm5340, %v6823, %v6825
        %v6827 = vrot.slane %v6751, 2
        %v6828 = vrot.slane %v6754, 2
        %v6829 = vsel %vm5340, %v6827, %v6828
        %v6830 = vrot.slane %v6759, 2
        %v6831 = vsel %vm5340, %v6828, %v6830
        %v6832 = vrot.slane %v6764, 2
        %v6833 = vrot.slane %v6767, 2
        %v6834 = vsel %vm5340, %v6832, %v6833
        %v6835 = vrot.slane %v6772, 2
        %v6836 = vsel %vm5340, %v6833, %v6835
        %v6853 = vadd.f32 %v6560, %v6799
        %v6854 = vadd.f32 %v6561, %v6801
        %v6855 = vadd.f32 %v6562, %v6804
        %v6856 = vadd.f32 %v6563, %v6806
        %v6857 = vadd.f32 %v6564, %v6809
        %v6858 = vadd.f32 %v6565, %v6811
        %v6859 = vadd.f32 %v6566, %v6814
        %v6860 = vadd.f32 %v6567, %v6816
        %v6861 = vadd.f32 %v6568, %v6819
        %v6862 = vadd.f32 %v6569, %v6821
        %v6863 = vadd.f32 %v6570, %v6824
        %v6864 = vadd.f32 %v6571, %v6826
        %v6865 = vadd.f32 %v6572, %v6829
        %v6866 = vadd.f32 %v6573, %v6831
        %v6867 = vadd.f32 %v6574, %v6834
        %v6868 = vadd.f32 %v6575, %v6836
        %v6869 = vld [vmem:[#allocation5] sm:$0x1]
        %v6871 = vlaneseq
        %v6872 = vshrl.u32 %v6871, 7
        %v6873 = vsub.s32 0, %v6872
        %v6874 = vrot.slane %v6869, %v6873
        %6875 = vset.pattern.permute.xlu0 0
        %6876 = vperm.xlu0 %6875, %v6874
        %v6877 = vpop.permute.xlu0 %6876
        %v6879 = vadd.f32 %v6853, %v6877
        %v6880 = vadd.f32 %v6854, %v6877
        %v6881 = vadd.f32 %v6855, %v6877
        %v6882 = vadd.f32 %v6856, %v6877
        %v6883 = vadd.f32 %v6857, %v6877
        %v6884 = vadd.f32 %v6858, %v6877
        %v6885 = vadd.f32 %v6859, %v6877
        %v6886 = vadd.f32 %v6860, %v6877
        %v6887 = vadd.f32 %v6861, %v6877
        %v6888 = vadd.f32 %v6862, %v6877
        %v6889 = vadd.f32 %v6863, %v6877
        %v6890 = vadd.f32 %v6864, %v6877
        %v6891 = vadd.f32 %v6865, %v6877
        %v6892 = vadd.f32 %v6866, %v6877
        %v6893 = vadd.f32 %v6867, %v6877
        %v6894 = vadd.f32 %v6868, %v6877
        %6911 = vset.pattern.permute.xlu0 0
        %6912 = vperm.xlu0 %6911, %v6879
        %v6913 = vpop.permute.xlu0 %6912
        %6914 = vset.pattern.permute.xlu0 0
        %6915 = vperm.xlu0 %6914, %v6880
        %v6916 = vpop.permute.xlu0 %6915
        %6917 = vset.pattern.permute.xlu0 0
        %6918 = vperm.xlu0 %6917, %v6881
        %v6919 = vpop.permute.xlu0 %6918
        %6920 = vset.pattern.permute.xlu0 0
        %6921 = vperm.xlu0 %6920, %v6882
        %v6922 = vpop.permute.xlu0 %6921
        %6923 = vset.pattern.permute.xlu0 0
        %6924 = vperm.xlu0 %6923, %v6883
        %v6925 = vpop.permute.xlu0 %6924
        %6926 = vset.pattern.permute.xlu0 0
        %6927 = vperm.xlu0 %6926, %v6884
        %v6928 = vpop.permute.xlu0 %6927
        %6929 = vset.pattern.permute.xlu0 0
        %6930 = vperm.xlu0 %6929, %v6885
        %v6931 = vpop.permute.xlu0 %6930
        %6932 = vset.pattern.permute.xlu0 0
        %6933 = vperm.xlu0 %6932, %v6886
        %v6934 = vpop.permute.xlu0 %6933
        %6935 = vset.pattern.permute.xlu0 0
        %6936 = vperm.xlu0 %6935, %v6887
        %v6937 = vpop.permute.xlu0 %6936
        %6938 = vset.pattern.permute.xlu0 0
        %6939 = vperm.xlu0 %6938, %v6888
        %v6940 = vpop.permute.xlu0 %6939
        %6941 = vset.pattern.permute.xlu0 0
        %6942 = vperm.xlu0 %6941, %v6889
        %v6943 = vpop.permute.xlu0 %6942
        %6944 = vset.pattern.permute.xlu0 0
        %6945 = vperm.xlu0 %6944, %v6890
        %v6946 = vpop.permute.xlu0 %6945
        %6947 = vset.pattern.permute.xlu0 0
        %6948 = vperm.xlu0 %6947, %v6891
        %v6949 = vpop.permute.xlu0 %6948
        %6950 = vset.pattern.permute.xlu0 0
        %6951 = vperm.xlu0 %6950, %v6892
        %v6952 = vpop.permute.xlu0 %6951
        %6953 = vset.pattern.permute.xlu0 0
        %6954 = vperm.xlu0 %6953, %v6893
        %v6955 = vpop.permute.xlu0 %6954
        %6956 = vset.pattern.permute.xlu0 0
        %6957 = vperm.xlu0 %6956, %v6894
        %v6958 = vpop.permute.xlu0 %6957
        %v6959 = vlaneseq
        %v6960 = vand.u32 %v6959, 127
        %v6961 = vlaneseq
        %v6962 = vshrl.u32 %v6961, 7
        %v6963 = vsub.s32 %v6960, %v6962
        %v6964 = vrot.slane %v6913, %v6963
        %v6965 = vadd.s32 %v6960, 4294967288
        %v6966 = vlaneseq
        %v6967 = vshrl.u32 %v6966, 7
        %v6968 = vsub.s32 %v6965, %v6967
        %v6969 = vrot.slane %v6916, %v6968
        %vm6970 = vcmask 130112
        %v6971 = vsel %vm6970, %v6969, %v6964
        %v6972 = vlaneseq
        %v6973 = vshrl.u32 %v6972, 7
        %v6974 = vsub.s32 %v6960, %v6973
        %v6975 = vrot.slane %v6919, %v6974
        %v6976 = vlaneseq
        %v6977 = vshrl.u32 %v6976, 7
        %v6978 = vsub.s32 %v6965, %v6977
        %v6979 = vrot.slane %v6922, %v6978
        %v6980 = vsel %vm6970, %v6979, %v6975
        %v6981 = vlaneseq
        %v6982 = vshrl.u32 %v6981, 7
        %v6983 = vsub.s32 %v6960, %v6982
        %v6984 = vrot.slane %v6925, %v6983
        %v6985 = vlaneseq
        %v6986 = vshrl.u32 %v6985, 7
        %v6987 = vsub.s32 %v6965, %v6986
        %v6988 = vrot.slane %v6928, %v6987
        %v6989 = vsel %vm6970, %v6988, %v6984
        %v6990 = vlaneseq
        %v6991 = vshrl.u32 %v6990, 7
        %v6992 = vsub.s32 %v6960, %v6991
        %v6993 = vrot.slane %v6931, %v6992
        %v6994 = vlaneseq
        %v6995 = vshrl.u32 %v6994, 7
        %v6996 = vsub.s32 %v6965, %v6995
        %v6997 = vrot.slane %v6934, %v6996
        %v6998 = vsel %vm6970, %v6997, %v6993
        %v6999 = vlaneseq
        %v7000 = vshrl.u32 %v6999, 7
        %v7001 = vsub.s32 %v6960, %v7000
        %v7002 = vrot.slane %v6937, %v7001
        %v7003 = vlaneseq
        %v7004 = vshrl.u32 %v7003, 7
        %v7005 = vsub.s32 %v6965, %v7004
        %v7006 = vrot.slane %v6940, %v7005
        %v7007 = vsel %vm6970, %v7006, %v7002
        %v7008 = vlaneseq
        %v7009 = vshrl.u32 %v7008, 7
        %v7010 = vsub.s32 %v6960, %v7009
        %v7011 = vrot.slane %v6943, %v7010
        %v7012 = vlaneseq
        %v7013 = vshrl.u32 %v7012, 7
        %v7014 = vsub.s32 %v6965, %v7013
        %v7015 = vrot.slane %v6946, %v7014
        %v7016 = vsel %vm6970, %v7015, %v7011
        %v7017 = vlaneseq
        %v7018 = vshrl.u32 %v7017, 7
        %v7019 = vsub.s32 %v6960, %v7018
        %v7020 = vrot.slane %v6949, %v7019
        %v7021 = vlaneseq
        %v7022 = vshrl.u32 %v7021, 7
        %v7023 = vsub.s32 %v6965, %v7022
        %v7024 = vrot.slane %v6952, %v7023
        %v7025 = vsel %vm6970, %v7024, %v7020
        %v7026 = vlaneseq
        %v7027 = vshrl.u32 %v7026, 7
        %v7028 = vsub.s32 %v6960, %v7027
        %v7029 = vrot.slane %v6955, %v7028
        %v7030 = vlaneseq
        %v7031 = vshrl.u32 %v7030, 7
        %v7032 = vsub.s32 %v6965, %v7031
        %v7033 = vrot.slane %v6958, %v7032
        %v7034 = vsel %vm6970, %v7033, %v7029
        %vm7035 = vcmask 1041409
        %v7036 = vsel %vm7035, %v6980, %v6971
        %vm7037 = vcmask 1042434
        %v7038 = vsel %vm7037, %v6989, %v7036
        %vm7039 = vcmask 1043459
        %v7040 = vsel %vm7039, %v6998, %v7038
        %vm7041 = vcmask 1044484
        %v7042 = vsel %vm7041, %v7007, %v7040
        %vm7043 = vcmask 1045509
        %v7044 = vsel %vm7043, %v7016, %v7042
        %vm7045 = vcmask 1046534
        %v7046 = vsel %vm7045, %v7025, %v7044
        %vm7047 = vcmask 1047559
        %v7048 = vsel %vm7047, %v7034, %v7046
        %vm7050 = vcmask 130048
        %7051 = vst.msk [vmem:[%s287] sm:$0xff] %vm7050, %v7048
        %s7052 = sand.u32 %s157, 1
        %s7053 = scalar_lea.sflag [#allocation8], %s7052
        %s7054 = sand.u32 %s157, 1
        %s7055 = smul.addr %s7054, 8
        %s7056 = scalar_lea.vmem [#allocation12], %s7055
        // Predicated region
        $region65: #{tpu_custom_call.1} parent=39 // pred_check
          %p7057 = pneg %p167
        $region66: #{tpu_custom_call.1} parent=39 // pred_check_branch
          %7059 = sbr.rel (%p7057) target = $region68
        $region67: #{tpu_custom_call.1} parent=39 // pred_region
          %s7061 = ssub.s32 128, 128
          %7062 = vsyncadd %s7053, %s7061
          %s7063 = smul.addr %s29, 2
          %s7064 = sadd.s32 %s30, %s7063
          %s7065 = smul.addr %s7064, 128
          %s7066 = scalar_lea.hbm %s5, %s7065
          %s7068 = sshll.u32 %s7056, 4
          %s7069 = int_to_ptr.vmem [resolvable:$true] %s7068
          %7071 = dma.vmem_to_hbm [thread:$0]  %s7069, 128, %s7066, %s7053
        $region68: #{tpu_custom_call.1} parent=39 // pred_fallthru
          _
      $region40: #{tpu_custom_call.1} parent=5 // pred_fallthru
        _
      %p7072 = scmp.le.s32.totalorder 2, %s20
      // Predicated region
      $region69: #{tpu_custom_call.1} parent=5 // pred_check
        %p7073 = pneg %p7072
      $region70: #{tpu_custom_call.1} parent=5 // pred_check_branch
        %7075 = sbr.rel (%p7073) target = $region72
      $region71: #{tpu_custom_call.1} parent=5 // pred_region
        %s7076 = ssub.s32 %s20, 2
        // Predicated region
        $region73: #{tpu_custom_call.1} parent=71 // pred_check
          %p7077 = pneg %p173
        $region74: #{tpu_custom_call.1} parent=71 // pred_check_branch
          %7079 = sbr.rel (%p7077) target = $region76
        $region75: #{tpu_custom_call.1} parent=71 // pred_region
          %s7080 = sand.u32 %s158, 1
          %s7081 = scalar_lea.sflag [#allocation8], %s7080
          %s7082 = sand.u32 %s158, 1
          %s7083 = smul.addr %s7082, 8
          %s7084 = scalar_lea.vmem [#allocation12], %s7083
          %7085 = dma.done %s7081, 128
        $region76: #{tpu_custom_call.1} parent=71 // pred_fallthru
          _
      $region72: #{tpu_custom_call.1} parent=5 // pred_fallthru
        _
    $region6: #{tpu_custom_call.1} parent=1 // loop_footer
      %s24 = sadd.s32 1, %s20
    $region7: #{tpu_custom_call.1} parent=1 // loop_footer_branch
      %19 = sbr.rel target = $region3
    $region8: #{tpu_custom_call.1} parent=1 // loop_exit
      _
    %7086 = vsyncpa [#allocation7], 1
    %s7087 = scalar_lea.sflag [#allocation7], 1
    %7088 = vsyncpa %s7087, 1
    %7089 = vsyncpa [#allocation10], 1
    %7090 = vsyncpa [#allocation8], 1
    %s7091 = scalar_lea.sflag [#allocation8], 1
    %7092 = vsyncpa %s7091, 1

</llo_original>
